<compile_context>
chip_gen: v5e
topology: v5e:2x2
jax: 0.10.0
libtpu: 0.0.40
codegen_flags: <defaults>
</compile_context>

<pallas_src>
import jax
import jax.numpy as jnp
from jax.experimental import pallas as pl
from jax.experimental.pallas import tpu as pltpu

LANE = 128


def _round_up(x, m):
    return (x + m - 1) // m * m


def _fused_simple_res_block_kernel(x_ref, w1_ref, s1_ref, b1_ref,
                                   w2_ref, s2_ref, b2_ref,
                                   o_ref, xpad_ref, x1pad_ref, acc_ref):
    """One batch element per grid step; everything after the input load stays in VMEM."""
    H, W = o_ref.shape[1], o_ref.shape[2]

    # Build the zero halos in VMEM (no jnp.pad round trip through HBM).  Zeroing the small
    # pad buffers every step keeps the kernel stateless across grid iterations (safe under
    # megacore "parallel" splitting of the batch axis).
    xpad_ref[...] = jnp.zeros(xpad_ref.shape, xpad_ref.dtype)
    x1pad_ref[...] = jnp.zeros(x1pad_ref.shape, x1pad_ref.dtype)
    xpad_ref[1:H + 1, 1:W + 1, :] = x_ref[0].astype(xpad_ref.dtype)

    def conv3x3(src_ref, w_ref):
        # 3x3 conv as 9 shifted (H,W,C) x (C,Cout_p) contractions on the MXU.
        # bf16 operands, f32 accumulation into a VMEM scratch accumulator.
        # (Tap slices are unaligned VMEM reads; a pltpu.roll-based swizzle is not
        #  applicable here since the shifted axes are not the lane axis.)
        first = True
        for dy in range(3):
            for dx in range(3):
                patch = src_ref[dy:dy + H, dx:dx + W, :].astype(jnp.bfloat16)
                tap = jnp.einsum("hwc,co->hwo", patch, w_ref[dy, dx],
                                 preferred_element_type=jnp.float32)
                if first:
                    acc_ref[...] = tap      # first tap: plain store, no zero-init RMW
                    first = False
                else:
                    acc_ref[...] += tap
        return acc_ref[...]

    # conv1 + folded BN + ReLU; x1 stays in VMEM (never written to HBM).
    x1 = jnp.maximum(conv3x3(xpad_ref, w1_ref) * s1_ref[0] + b1_ref[0], 0.0)
    x1pad_ref[1:H + 1, 1:W + 1, :] = x1

    # conv2 + folded BN, residual add (x1 reused as a live VMEM value), final ReLU.
    y = conv3x3(x1pad_ref, w2_ref) * s2_ref[0] + b2_ref[0]
    out = jnp.maximum(x1 + y, 0.0)
    o_ref[0] = out.astype(o_ref.dtype)            # lane-dense (Cout padded to 128) store


def simple_res_block(x_nchw, params):
    """Forward of SimpleResBlock. Input/output are NCHW to match PyTorch."""
    x = jnp.transpose(x_nchw, (0, 2, 3, 1))       # -> NHWC (channels on the lane axis)
    N, H, W, cin = x.shape
    cout = params["w1"].shape[-1]
    cout_p = _round_up(cout, LANE)                # lane-dense intermediate/output channels

    # Pad only the OUTPUT channel axis (the padded channels stay exactly zero through
    # both convs/BNs/ReLUs) and convert conv weights to bf16 for the MXU once.
    pc = cout_p - cout
    w1 = jnp.pad(params["w1"], ((0, 0), (0, 0), (0, 0), (0, pc))).astype(jnp.bfloat16)
    w2 = jnp.pad(params["w2"], ((0, 0), (0, 0), (0, pc), (0, pc))).astype(jnp.bfloat16)
    s1 = jnp.pad(params["s1"], ((0, 0), (0, pc)))
    b1 = jnp.pad(params["b1"], ((0, 0), (0, pc)))
    s2 = jnp.pad(params["s2"], ((0, 0), (0, pc)))
    b2 = jnp.pad(params["b2"], ((0, 0), (0, pc)))

    out_p = pl.pallas_call(
        _fused_simple_res_block_kernel,
        out_shape=jax.ShapeDtypeStruct((N, H, W, cout_p), x.dtype),
        grid_spec=pltpu.PrefetchScalarGridSpec(
            num_scalar_prefetch=0,
            grid=(N,),
            in_specs=[
                pl.BlockSpec((1, H, W, cin), lambda n: (n, 0, 0, 0)),        # x (unpadded)
                pl.BlockSpec((3, 3, cin, cout_p), lambda n: (0, 0, 0, 0)),   # w1 (bf16)
                pl.BlockSpec((1, cout_p), lambda n: (0, 0)),                 # s1
                pl.BlockSpec((1, cout_p), lambda n: (0, 0)),                 # b1
                pl.BlockSpec((3, 3, cout_p, cout_p), lambda n: (0, 0, 0, 0)),# w2 (bf16)
                pl.BlockSpec((1, cout_p), lambda n: (0, 0)),                 # s2
                pl.BlockSpec((1, cout_p), lambda n: (0, 0)),                 # b2
            ],
            out_specs=pl.BlockSpec((1, H, W, cout_p), lambda n: (n, 0, 0, 0)),
            scratch_shapes=[
                pltpu.VMEM((H + 2, W + 2, cin), jnp.float32),     # padded input halo
                pltpu.VMEM((H + 2, W + 2, cout_p), jnp.float32),  # padded x1 halo (VMEM-resident)
                pltpu.VMEM((H, W, cout_p), jnp.float32),          # f32 accumulator
            ],
        ),
        compiler_params=pltpu.CompilerParams(
            dimension_semantics=("parallel",),
            vmem_limit_bytes=32 * 1024 * 1024,
        ),
    )(x, w1, s1, b1, w2, s2, b2)

    out = out_p[..., :cout]                       # drop the zero padded channels
    return jnp.transpose(out, (0, 3, 1, 2))       # -> NCHW


def fold_bn(gamma, beta, running_mean, running_var, eps=1e-5):
    scale = gamma / jnp.sqrt(running_var + eps)
    bias = beta - running_mean * scale
    return scale[None, :], bias[None, :]          # (1, C)


def reference_simple_res_block(x_nchw, params):
    """Pure-JAX f32 reference (NCHW) for a sanity check."""
    def conv_bn(x, w_hwio, scale, bias):
        y = jax.lax.conv_general_dilated(
            x, w_hwio, window_strides=(1, 1), padding=((1, 1), (1, 1)),
            dimension_numbers=("NCHW", "HWIO", "NCHW"))
        return y * scale[0][None, :, None, None] + bias[0][None, :, None, None]

    x1 = jax.nn.relu(conv_bn(x_nchw, params["w1"], params["s1"], params["b1"]))
    x2 = conv_bn(x1, params["w2"], params["s2"], params["b2"])
    return jax.nn.relu(x1 + x2)


def init_params(key, in_ch, out_ch):
    ks = jax.random.split(key, 10)
    # Conv weights stored as (kh, kw, Cin, Cout) == HWIO (PyTorch stores OIHW).
    w1 = 0.1 * jax.random.normal(ks[0], (3, 3, in_ch, out_ch), jnp.float32)
    w2 = 0.1 * jax.random.normal(ks[1], (3, 3, out_ch, out_ch), jnp.float32)
    # BatchNorm2d params + running stats (inference semantics).
    g1 = 1.0 + 0.1 * jax.random.normal(ks[2], (out_ch,), jnp.float32)
    b1 = 0.1 * jax.random.normal(ks[3], (out_ch,), jnp.float32)
    m1 = 0.05 * jax.random.normal(ks[4], (out_ch,), jnp.float32)
    v1 = 1.0 + 0.1 * jnp.abs(jax.random.normal(ks[5], (out_ch,), jnp.float32))
    g2 = 1.0 + 0.1 * jax.random.normal(ks[6], (out_ch,), jnp.float32)
    b2 = 0.1 * jax.random.normal(ks[7], (out_ch,), jnp.float32)
    m2 = 0.05 * jax.random.normal(ks[8], (out_ch,), jnp.float32)
    v2 = 1.0 + 0.1 * jnp.abs(jax.random.normal(ks[9], (out_ch,), jnp.float32))
    s1, bias1 = fold_bn(g1, b1, m1, v1)
    s2, bias2 = fold_bn(g2, b2, m2, v2)
    return {"w1": w1, "s1": s1, "b1": bias1,
            "w2": w2, "s2": s2, "b2": bias2}


if __name__ == "__main__":
    key = jax.random.PRNGKey(0)
    k_x, k_p = jax.random.split(key)

    N, in_ch, out_ch, H, W = 2, 4, 8, 16, 16
    x = jax.random.normal(k_x, (N, in_ch, H, W), jnp.float32)   # NCHW like PyTorch
    params = init_params(k_p, in_ch, out_ch)

    fwd = jax.jit(simple_res_block)
    out = jax.block_until_ready(fwd(x, params))

    ref = jax.block_until_ready(reference_simple_res_block(x, params))
    assert out.shape == (N, out_ch, H, W), out.shape
    max_err = float(jnp.max(jnp.abs(out - ref)))
    # Tolerance widened slightly: kernel uses bf16 MXU operands with f32 accumulation,
    # reference is pure f32.
    assert jnp.allclose(out, ref, atol=3e-2, rtol=3e-2), max_err

    print("KERNEL_OK")
</pallas_src>

<mosaic_0001>
module attributes {stable_mosaic.version = 11 : i64} {
  func.func @_fused_simple_res_block_kernel(%arg0: i32, %arg1: memref<1x16x16x4xf32, #tpu.memory_space<vmem>>, %arg2: memref<3x3x4x128xbf16, #tpu.memory_space<vmem>>, %arg3: memref<1x128xf32, #tpu.memory_space<vmem>>, %arg4: memref<1x128xf32, #tpu.memory_space<vmem>>, %arg5: memref<3x3x128x128xbf16, #tpu.memory_space<vmem>>, %arg6: memref<1x128xf32, #tpu.memory_space<vmem>>, %arg7: memref<1x128xf32, #tpu.memory_space<vmem>>, %arg8: memref<1x16x16x128xf32, #tpu.memory_space<vmem>>, %arg9: memref<18x18x4xf32, #tpu.memory_space<vmem>>, %arg10: memref<18x18x128xf32, #tpu.memory_space<vmem>>, %arg11: memref<16x16x128xf32, #tpu.memory_space<vmem>>) attributes {dimension_semantics = [#tpu.dimension_semantics<parallel>], iteration_bounds = array<i64: 2>, scalar_prefetch = 0 : i64, scratch_operands = 3 : i64, tpu.core_type = #tpu.core_type<tc>, window_params = [{transform_indices = @transform_0, window_bounds = array<i64: 1, 16, 16, 4>}, {pipeline_mode = #tpu.pipeline_mode<synchronous>, transform_indices = @transform_1, window_bounds = array<i64: 3, 3, 4, 128>}, {pipeline_mode = #tpu.pipeline_mode<synchronous>, transform_indices = @transform_2, window_bounds = array<i64: 1, 128>}, {pipeline_mode = #tpu.pipeline_mode<synchronous>, transform_indices = @transform_3, window_bounds = array<i64: 1, 128>}, {pipeline_mode = #tpu.pipeline_mode<synchronous>, transform_indices = @transform_4, window_bounds = array<i64: 3, 3, 128, 128>}, {pipeline_mode = #tpu.pipeline_mode<synchronous>, transform_indices = @transform_5, window_bounds = array<i64: 1, 128>}, {pipeline_mode = #tpu.pipeline_mode<synchronous>, transform_indices = @transform_6, window_bounds = array<i64: 1, 128>}, {transform_indices = @transform_7, window_bounds = array<i64: 1, 16, 16, 128>}]} {
    %cst = arith.constant 0.000000e+00 : f32
    %0 = vector.broadcast %cst : f32 to vector<18x18x4xf32>
    %c0 = arith.constant 0 : index
    %c0_0 = arith.constant 0 : index
    %c0_1 = arith.constant 0 : index
    %1 = vector.load %arg9[%c0, %c0_0, %c0_1] : memref<18x18x4xf32, #tpu.memory_space<vmem>>, vector<18x18x4xf32>
    tpu.vector_store %arg9[%c0, %c0_0, %c0_1], %0 {strides = array<i32>} : memref<18x18x4xf32, #tpu.memory_space<vmem>>, vector<18x18x4xf32>,
    %cst_2 = arith.constant 0.000000e+00 : f32
    %2 = vector.broadcast %cst_2 : f32 to vector<18x18x128xf32>
    %c0_3 = arith.constant 0 : index
    %c0_4 = arith.constant 0 : index
    %c0_5 = arith.constant 0 : index
    %3 = vector.load %arg10[%c0_3, %c0_4, %c0_5] : memref<18x18x128xf32, #tpu.memory_space<vmem>>, vector<18x18x128xf32>
    tpu.vector_store %arg10[%c0_3, %c0_4, %c0_5], %2 {strides = array<i32>} : memref<18x18x128xf32, #tpu.memory_space<vmem>>, vector<18x18x128xf32>,
    %c0_6 = arith.constant 0 : index
    %c0_7 = arith.constant 0 : index
    %c0_8 = arith.constant 0 : index
    %c0_9 = arith.constant 0 : index
    %4 = vector.load %arg1[%c0_6, %c0_7, %c0_8, %c0_9] : memref<1x16x16x4xf32, #tpu.memory_space<vmem>>, vector<1x16x16x4xf32>
    %5 = vector.shape_cast %4 : vector<1x16x16x4xf32> to vector<16x16x4xf32>
    %c1 = arith.constant 1 : index
    %c1_10 = arith.constant 1 : index
    %c0_11 = arith.constant 0 : index
    %6 = vector.load %arg9[%c1, %c1_10, %c0_11] : memref<18x18x4xf32, #tpu.memory_space<vmem>>, vector<16x16x4xf32>
    tpu.vector_store %arg9[%c1, %c1_10, %c0_11], %5 {strides = array<i32>} : memref<18x18x4xf32, #tpu.memory_space<vmem>>, vector<16x16x4xf32>,
    %c0_12 = arith.constant 0 : index
    %c0_13 = arith.constant 0 : index
    %c0_14 = arith.constant 0 : index
    %7 = vector.load %arg9[%c0_12, %c0_13, %c0_14] : memref<18x18x4xf32, #tpu.memory_space<vmem>>, vector<16x16x4xf32>
    %8 = arith.truncf %7 : vector<16x16x4xf32> to vector<16x16x4xbf16>
    %c0_15 = arith.constant 0 : index
    %c0_16 = arith.constant 0 : index
    %c0_17 = arith.constant 0 : index
    %c0_18 = arith.constant 0 : index
    %9 = vector.load %arg2[%c0_15, %c0_16, %c0_17, %c0_18] : memref<3x3x4x128xbf16, #tpu.memory_space<vmem>>, vector<1x1x4x128xbf16>
    %10 = vector.shape_cast %9 : vector<1x1x4x128xbf16> to vector<4x128xbf16>
    "tpu.trace_start"() <{level = 10 : i32, message = "hwc,co->hwo"}> : () -> ()
    %cst_19 = arith.constant dense<0.000000e+00> : vector<16x16x128xf32>
    %11 = tpu.matmul %8, %10, %cst_19 {dimension_numbers = #tpu.dot_dimension_numbers<[2], [0], [0, 1], [1], [0, 0, 0, 1, 1, 1], [], []>} : vector<16x16x4xbf16>, vector<4x128xbf16>, vector<16x16x128xf32> -> vector<16x16x128xf32>
    "tpu.trace_stop"() : () -> ()
    %c0_20 = arith.constant 0 : index
    %c0_21 = arith.constant 0 : index
    %c0_22 = arith.constant 0 : index
    %12 = vector.load %arg11[%c0_20, %c0_21, %c0_22] : memref<16x16x128xf32, #tpu.memory_space<vmem>>, vector<16x16x128xf32>
    tpu.vector_store %arg11[%c0_20, %c0_21, %c0_22], %11 {strides = array<i32>} : memref<16x16x128xf32, #tpu.memory_space<vmem>>, vector<16x16x128xf32>,
    %c0_23 = arith.constant 0 : index
    %c1_24 = arith.constant 1 : index
    %c0_25 = arith.constant 0 : index
    %13 = vector.load %arg9[%c0_23, %c1_24, %c0_25] : memref<18x18x4xf32, #tpu.memory_space<vmem>>, vector<16x16x4xf32>
    %14 = arith.truncf %13 : vector<16x16x4xf32> to vector<16x16x4xbf16>
    %c0_26 = arith.constant 0 : index
    %c1_27 = arith.constant 1 : index
    %c0_28 = arith.constant 0 : index
    %c0_29 = arith.constant 0 : index
    %15 = vector.load %arg2[%c0_26, %c1_27, %c0_28, %c0_29] : memref<3x3x4x128xbf16, #tpu.memory_space<vmem>>, vector<1x1x4x128xbf16>
    %16 = vector.shape_cast %15 : vector<1x1x4x128xbf16> to vector<4x128xbf16>
    "tpu.trace_start"() <{level = 10 : i32, message = "hwc,co->hwo"}> : () -> ()
    %cst_30 = arith.constant dense<0.000000e+00> : vector<16x16x128xf32>
    %17 = tpu.matmul %14, %16, %cst_30 {dimension_numbers = #tpu.dot_dimension_numbers<[2], [0], [0, 1], [1], [0, 0, 0, 1, 1, 1], [], []>} : vector<16x16x4xbf16>, vector<4x128xbf16>, vector<16x16x128xf32> -> vector<16x16x128xf32>
    "tpu.trace_stop"() : () -> ()
    %c0_31 = arith.constant 0 : index
    %c0_32 = arith.constant 0 : index
    %c0_33 = arith.constant 0 : index
    %18 = vector.load %arg11[%c0_31, %c0_32, %c0_33] : memref<16x16x128xf32, #tpu.memory_space<vmem>>, vector<16x16x128xf32>
    %19 = arith.addf %18, %17 : vector<16x16x128xf32>
    %c0_34 = arith.constant 0 : index
    %c0_35 = arith.constant 0 : index
    %c0_36 = arith.constant 0 : index
    %20 = vector.load %arg11[%c0_34, %c0_35, %c0_36] : memref<16x16x128xf32, #tpu.memory_space<vmem>>, vector<16x16x128xf32>
    tpu.vector_store %arg11[%c0_34, %c0_35, %c0_36], %19 {strides = array<i32>} : memref<16x16x128xf32, #tpu.memory_space<vmem>>, vector<16x16x128xf32>,
    %c0_37 = arith.constant 0 : index
    %c2 = arith.constant 2 : index
    %c0_38 = arith.constant 0 : index
    %21 = vector.load %arg9[%c0_37, %c2, %c0_38] : memref<18x18x4xf32, #tpu.memory_space<vmem>>, vector<16x16x4xf32>
    %22 = arith.truncf %21 : vector<16x16x4xf32> to vector<16x16x4xbf16>
    %c0_39 = arith.constant 0 : index
    %c2_40 = arith.constant 2 : index
    %c0_41 = arith.constant 0 : index
    %c0_42 = arith.constant 0 : index
    %23 = vector.load %arg2[%c0_39, %c2_40, %c0_41, %c0_42] : memref<3x3x4x128xbf16, #tpu.memory_space<vmem>>, vector<1x1x4x128xbf16>
    %24 = vector.shape_cast %23 : vector<1x1x4x128xbf16> to vector<4x128xbf16>
    "tpu.trace_start"() <{level = 10 : i32, message = "hwc,co->hwo"}> : () -> ()
    %cst_43 = arith.constant dense<0.000000e+00> : vector<16x16x128xf32>
    %25 = tpu.matmul %22, %24, %cst_43 {dimension_numbers = #tpu.dot_dimension_numbers<[2], [0], [0, 1], [1], [0, 0, 0, 1, 1, 1], [], []>} : vector<16x16x4xbf16>, vector<4x128xbf16>, vector<16x16x128xf32> -> vector<16x16x128xf32>
    "tpu.trace_stop"() : () -> ()
    %c0_44 = arith.constant 0 : index
    %c0_45 = arith.constant 0 : index
    %c0_46 = arith.constant 0 : index
    %26 = vector.load %arg11[%c0_44, %c0_45, %c0_46] : memref<16x16x128xf32, #tpu.memory_space<vmem>>, vector<16x16x128xf32>
    %27 = arith.addf %26, %25 : vector<16x16x128xf32>
    %c0_47 = arith.constant 0 : index
    %c0_48 = arith.constant 0 : index
    %c0_49 = arith.constant 0 : index
    %28 = vector.load %arg11[%c0_47, %c0_48, %c0_49] : memref<16x16x128xf32, #tpu.memory_space<vmem>>, vector<16x16x128xf32>
    tpu.vector_store %arg11[%c0_47, %c0_48, %c0_49], %27 {strides = array<i32>} : memref<16x16x128xf32, #tpu.memory_space<vmem>>, vector<16x16x128xf32>,
    %c1_50 = arith.constant 1 : index
    %c0_51 = arith.constant 0 : index
    %c0_52 = arith.constant 0 : index
    %29 = vector.load %arg9[%c1_50, %c0_51, %c0_52] : memref<18x18x4xf32, #tpu.memory_space<vmem>>, vector<16x16x4xf32>
    %30 = arith.truncf %29 : vector<16x16x4xf32> to vector<16x16x4xbf16>
    %c1_53 = arith.constant 1 : index
    %c0_54 = arith.constant 0 : index
    %c0_55 = arith.constant 0 : index
    %c0_56 = arith.constant 0 : index
    %31 = vector.load %arg2[%c1_53, %c0_54, %c0_55, %c0_56] : memref<3x3x4x128xbf16, #tpu.memory_space<vmem>>, vector<1x1x4x128xbf16>
    %32 = vector.shape_cast %31 : vector<1x1x4x128xbf16> to vector<4x128xbf16>
    "tpu.trace_start"() <{level = 10 : i32, message = "hwc,co->hwo"}> : () -> ()
    %cst_57 = arith.constant dense<0.000000e+00> : vector<16x16x128xf32>
    %33 = tpu.matmul %30, %32, %cst_57 {dimension_numbers = #tpu.dot_dimension_numbers<[2], [0], [0, 1], [1], [0, 0, 0, 1, 1, 1], [], []>} : vector<16x16x4xbf16>, vector<4x128xbf16>, vector<16x16x128xf32> -> vector<16x16x128xf32>
    "tpu.trace_stop"() : () -> ()
    %c0_58 = arith.constant 0 : index
    %c0_59 = arith.constant 0 : index
    %c0_60 = arith.constant 0 : index
    %34 = vector.load %arg11[%c0_58, %c0_59, %c0_60] : memref<16x16x128xf32, #tpu.memory_space<vmem>>, vector<16x16x128xf32>
    %35 = arith.addf %34, %33 : vector<16x16x128xf32>
    %c0_61 = arith.constant 0 : index
    %c0_62 = arith.constant 0 : index
    %c0_63 = arith.constant 0 : index
    %36 = vector.load %arg11[%c0_61, %c0_62, %c0_63] : memref<16x16x128xf32, #tpu.memory_space<vmem>>, vector<16x16x128xf32>
    tpu.vector_store %arg11[%c0_61, %c0_62, %c0_63], %35 {strides = array<i32>} : memref<16x16x128xf32, #tpu.memory_space<vmem>>, vector<16x16x128xf32>,
    %c1_64 = arith.constant 1 : index
    %c1_65 = arith.constant 1 : index
    %c0_66 = arith.constant 0 : index
    %37 = vector.load %arg9[%c1_64, %c1_65, %c0_66] : memref<18x18x4xf32, #tpu.memory_space<vmem>>, vector<16x16x4xf32>
    %38 = arith.truncf %37 : vector<16x16x4xf32> to vector<16x16x4xbf16>
    %c1_67 = arith.constant 1 : index
    %c1_68 = arith.constant 1 : index
    %c0_69 = arith.constant 0 : index
    %c0_70 = arith.constant 0 : index
    %39 = vector.load %arg2[%c1_67, %c1_68, %c0_69, %c0_70] : memref<3x3x4x128xbf16, #tpu.memory_space<vmem>>, vector<1x1x4x128xbf16>
    %40 = vector.shape_cast %39 : vector<1x1x4x128xbf16> to vector<4x128xbf16>
    "tpu.trace_start"() <{level = 10 : i32, message = "hwc,co->hwo"}> : () -> ()
    %cst_71 = arith.constant dense<0.000000e+00> : vector<16x16x128xf32>
    %41 = tpu.matmul %38, %40, %cst_71 {dimension_numbers = #tpu.dot_dimension_numbers<[2], [0], [0, 1], [1], [0, 0, 0, 1, 1, 1], [], []>} : vector<16x16x4xbf16>, vector<4x128xbf16>, vector<16x16x128xf32> -> vector<16x16x128xf32>
    "tpu.trace_stop"() : () -> ()
    %c0_72 = arith.constant 0 : index
    %c0_73 = arith.constant 0 : index
    %c0_74 = arith.constant 0 : index
    %42 = vector.load %arg11[%c0_72, %c0_73, %c0_74] : memref<16x16x128xf32, #tpu.memory_space<vmem>>, vector<16x16x128xf32>
    %43 = arith.addf %42, %41 : vector<16x16x128xf32>
    %c0_75 = arith.constant 0 : index
    %c0_76 = arith.constant 0 : index
    %c0_77 = arith.constant 0 : index
    %44 = vector.load %arg11[%c0_75, %c0_76, %c0_77] : memref<16x16x128xf32, #tpu.memory_space<vmem>>, vector<16x16x128xf32>
    tpu.vector_store %arg11[%c0_75, %c0_76, %c0_77], %43 {strides = array<i32>} : memref<16x16x128xf32, #tpu.memory_space<vmem>>, vector<16x16x128xf32>,
    %c1_78 = arith.constant 1 : index
    %c2_79 = arith.constant 2 : index
    %c0_80 = arith.constant 0 : index
    %45 = vector.load %arg9[%c1_78, %c2_79, %c0_80] : memref<18x18x4xf32, #tpu.memory_space<vmem>>, vector<16x16x4xf32>
    %46 = arith.truncf %45 : vector<16x16x4xf32> to vector<16x16x4xbf16>
    %c1_81 = arith.constant 1 : index
    %c2_82 = arith.constant 2 : index
    %c0_83 = arith.constant 0 : index
    %c0_84 = arith.constant 0 : index
    %47 = vector.load %arg2[%c1_81, %c2_82, %c0_83, %c0_84] : memref<3x3x4x128xbf16, #tpu.memory_space<vmem>>, vector<1x1x4x128xbf16>
    %48 = vector.shape_cast %47 : vector<1x1x4x128xbf16> to vector<4x128xbf16>
    "tpu.trace_start"() <{level = 10 : i32, message = "hwc,co->hwo"}> : () -> ()
    %cst_85 = arith.constant dense<0.000000e+00> : vector<16x16x128xf32>
    %49 = tpu.matmul %46, %48, %cst_85 {dimension_numbers = #tpu.dot_dimension_numbers<[2], [0], [0, 1], [1], [0, 0, 0, 1, 1, 1], [], []>} : vector<16x16x4xbf16>, vector<4x128xbf16>, vector<16x16x128xf32> -> vector<16x16x128xf32>
    "tpu.trace_stop"() : () -> ()
    %c0_86 = arith.constant 0 : index
    %c0_87 = arith.constant 0 : index
    %c0_88 = arith.constant 0 : index
    %50 = vector.load %arg11[%c0_86, %c0_87, %c0_88] : memref<16x16x128xf32, #tpu.memory_space<vmem>>, vector<16x16x128xf32>
    %51 = arith.addf %50, %49 : vector<16x16x128xf32>
    %c0_89 = arith.constant 0 : index
    %c0_90 = arith.constant 0 : index
    %c0_91 = arith.constant 0 : index
    %52 = vector.load %arg11[%c0_89, %c0_90, %c0_91] : memref<16x16x128xf32, #tpu.memory_space<vmem>>, vector<16x16x128xf32>
    tpu.vector_store %arg11[%c0_89, %c0_90, %c0_91], %51 {strides = array<i32>} : memref<16x16x128xf32, #tpu.memory_space<vmem>>, vector<16x16x128xf32>,
    %c2_92 = arith.constant 2 : index
    %c0_93 = arith.constant 0 : index
    %c0_94 = arith.constant 0 : index
    %53 = vector.load %arg9[%c2_92, %c0_93, %c0_94] : memref<18x18x4xf32, #tpu.memory_space<vmem>>, vector<16x16x4xf32>
    %54 = arith.truncf %53 : vector<16x16x4xf32> to vector<16x16x4xbf16>
    %c2_95 = arith.constant 2 : index
    %c0_96 = arith.constant 0 : index
    %c0_97 = arith.constant 0 : index
    %c0_98 = arith.constant 0 : index
    %55 = vector.load %arg2[%c2_95, %c0_96, %c0_97, %c0_98] : memref<3x3x4x128xbf16, #tpu.memory_space<vmem>>, vector<1x1x4x128xbf16>
    %56 = vector.shape_cast %55 : vector<1x1x4x128xbf16> to vector<4x128xbf16>
    "tpu.trace_start"() <{level = 10 : i32, message = "hwc,co->hwo"}> : () -> ()
    %cst_99 = arith.constant dense<0.000000e+00> : vector<16x16x128xf32>
    %57 = tpu.matmul %54, %56, %cst_99 {dimension_numbers = #tpu.dot_dimension_numbers<[2], [0], [0, 1], [1], [0, 0, 0, 1, 1, 1], [], []>} : vector<16x16x4xbf16>, vector<4x128xbf16>, vector<16x16x128xf32> -> vector<16x16x128xf32>
    "tpu.trace_stop"() : () -> ()
    %c0_100 = arith.constant 0 : index
    %c0_101 = arith.constant 0 : index
    %c0_102 = arith.constant 0 : index
    %58 = vector.load %arg11[%c0_100, %c0_101, %c0_102] : memref<16x16x128xf32, #tpu.memory_space<vmem>>, vector<16x16x128xf32>
    %59 = arith.addf %58, %57 : vector<16x16x128xf32>
    %c0_103 = arith.constant 0 : index
    %c0_104 = arith.constant 0 : index
    %c0_105 = arith.constant 0 : index
    %60 = vector.load %arg11[%c0_103, %c0_104, %c0_105] : memref<16x16x128xf32, #tpu.memory_space<vmem>>, vector<16x16x128xf32>
    tpu.vector_store %arg11[%c0_103, %c0_104, %c0_105], %59 {strides = array<i32>} : memref<16x16x128xf32, #tpu.memory_space<vmem>>, vector<16x16x128xf32>,
    %c2_106 = arith.constant 2 : index
    %c1_107 = arith.constant 1 : index
    %c0_108 = arith.constant 0 : index
    %61 = vector.load %arg9[%c2_106, %c1_107, %c0_108] : memref<18x18x4xf32, #tpu.memory_space<vmem>>, vector<16x16x4xf32>
    %62 = arith.truncf %61 : vector<16x16x4xf32> to vector<16x16x4xbf16>
    %c2_109 = arith.constant 2 : index
    %c1_110 = arith.constant 1 : index
    %c0_111 = arith.constant 0 : index
    %c0_112 = arith.constant 0 : index
    %63 = vector.load %arg2[%c2_109, %c1_110, %c0_111, %c0_112] : memref<3x3x4x128xbf16, #tpu.memory_space<vmem>>, vector<1x1x4x128xbf16>
    %64 = vector.shape_cast %63 : vector<1x1x4x128xbf16> to vector<4x128xbf16>
    "tpu.trace_start"() <{level = 10 : i32, message = "hwc,co->hwo"}> : () -> ()
    %cst_113 = arith.constant dense<0.000000e+00> : vector<16x16x128xf32>
    %65 = tpu.matmul %62, %64, %cst_113 {dimension_numbers = #tpu.dot_dimension_numbers<[2], [0], [0, 1], [1], [0, 0, 0, 1, 1, 1], [], []>} : vector<16x16x4xbf16>, vector<4x128xbf16>, vector<16x16x128xf32> -> vector<16x16x128xf32>
    "tpu.trace_stop"() : () -> ()
    %c0_114 = arith.constant 0 : index
    %c0_115 = arith.constant 0 : index
    %c0_116 = arith.constant 0 : index
    %66 = vector.load %arg11[%c0_114, %c0_115, %c0_116] : memref<16x16x128xf32, #tpu.memory_space<vmem>>, vector<16x16x128xf32>
    %67 = arith.addf %66, %65 : vector<16x16x128xf32>
    %c0_117 = arith.constant 0 : index
    %c0_118 = arith.constant 0 : index
    %c0_119 = arith.constant 0 : index
    %68 = vector.load %arg11[%c0_117, %c0_118, %c0_119] : memref<16x16x128xf32, #tpu.memory_space<vmem>>, vector<16x16x128xf32>
    tpu.vector_store %arg11[%c0_117, %c0_118, %c0_119], %67 {strides = array<i32>} : memref<16x16x128xf32, #tpu.memory_space<vmem>>, vector<16x16x128xf32>,
    %c2_120 = arith.constant 2 : index
    %c2_121 = arith.constant 2 : index
    %c0_122 = arith.constant 0 : index
    %69 = vector.load %arg9[%c2_120, %c2_121, %c0_122] : memref<18x18x4xf32, #tpu.memory_space<vmem>>, vector<16x16x4xf32>
    %70 = arith.truncf %69 : vector<16x16x4xf32> to vector<16x16x4xbf16>
    %c2_123 = arith.constant 2 : index
    %c2_124 = arith.constant 2 : index
    %c0_125 = arith.constant 0 : index
    %c0_126 = arith.constant 0 : index
    %71 = vector.load %arg2[%c2_123, %c2_124, %c0_125, %c0_126] : memref<3x3x4x128xbf16, #tpu.memory_space<vmem>>, vector<1x1x4x128xbf16>
    %72 = vector.shape_cast %71 : vector<1x1x4x128xbf16> to vector<4x128xbf16>
    "tpu.trace_start"() <{level = 10 : i32, message = "hwc,co->hwo"}> : () -> ()
    %cst_127 = arith.constant dense<0.000000e+00> : vector<16x16x128xf32>
    %73 = tpu.matmul %70, %72, %cst_127 {dimension_numbers = #tpu.dot_dimension_numbers<[2], [0], [0, 1], [1], [0, 0, 0, 1, 1, 1], [], []>} : vector<16x16x4xbf16>, vector<4x128xbf16>, vector<16x16x128xf32> -> vector<16x16x128xf32>
    "tpu.trace_stop"() : () -> ()
    %c0_128 = arith.constant 0 : index
    %c0_129 = arith.constant 0 : index
    %c0_130 = arith.constant 0 : index
    %74 = vector.load %arg11[%c0_128, %c0_129, %c0_130] : memref<16x16x128xf32, #tpu.memory_space<vmem>>, vector<16x16x128xf32>
    %75 = arith.addf %74, %73 : vector<16x16x128xf32>
    %c0_131 = arith.constant 0 : index
    %c0_132 = arith.constant 0 : index
    %c0_133 = arith.constant 0 : index
    %76 = vector.load %arg11[%c0_131, %c0_132, %c0_133] : memref<16x16x128xf32, #tpu.memory_space<vmem>>, vector<16x16x128xf32>
    tpu.vector_store %arg11[%c0_131, %c0_132, %c0_133], %75 {strides = array<i32>} : memref<16x16x128xf32, #tpu.memory_space<vmem>>, vector<16x16x128xf32>,
    %c0_134 = arith.constant 0 : index
    %c0_135 = arith.constant 0 : index
    %c0_136 = arith.constant 0 : index
    %77 = vector.load %arg11[%c0_134, %c0_135, %c0_136] : memref<16x16x128xf32, #tpu.memory_space<vmem>>, vector<16x16x128xf32>
    %c0_137 = arith.constant 0 : index
    %c0_138 = arith.constant 0 : index
    %78 = vector.load %arg3[%c0_137, %c0_138] : memref<1x128xf32, #tpu.memory_space<vmem>>, vector<1x128xf32>
    %79 = vector.shape_cast %78 : vector<1x128xf32> to vector<128xf32>
    %80 = vector.shape_cast %79 : vector<128xf32> to vector<1x1x128xf32>
    %81 = vector.broadcast %80 : vector<1x1x128xf32> to vector<16x16x128xf32>
    %82 = arith.mulf %77, %81 : vector<16x16x128xf32>
    %c0_139 = arith.constant 0 : index
    %c0_140 = arith.constant 0 : index
    %83 = vector.load %arg4[%c0_139, %c0_140] : memref<1x128xf32, #tpu.memory_space<vmem>>, vector<1x128xf32>
    %84 = vector.shape_cast %83 : vector<1x128xf32> to vector<128xf32>
    %85 = vector.shape_cast %84 : vector<128xf32> to vector<1x1x128xf32>
    %86 = vector.broadcast %85 : vector<1x1x128xf32> to vector<16x16x128xf32>
    %87 = arith.addf %82, %86 : vector<16x16x128xf32>
    %cst_141 = arith.constant 0.000000e+00 : f32
    %88 = vector.broadcast %cst_141 : f32 to vector<16x16x128xf32>
    %89 = arith.maximumf %87, %88 : vector<16x16x128xf32>
    %c1_142 = arith.constant 1 : index
    %c1_143 = arith.constant 1 : index
    %c0_144 = arith.constant 0 : index
    %90 = vector.load %arg10[%c1_142, %c1_143, %c0_144] : memref<18x18x128xf32, #tpu.memory_space<vmem>>, vector<16x16x128xf32>
    tpu.vector_store %arg10[%c1_142, %c1_143, %c0_144], %89 {strides = array<i32>} : memref<18x18x128xf32, #tpu.memory_space<vmem>>, vector<16x16x128xf32>,
    %c0_145 = arith.constant 0 : index
    %c0_146 = arith.constant 0 : index
    %c0_147 = arith.constant 0 : index
    %91 = vector.load %arg10[%c0_145, %c0_146, %c0_147] : memref<18x18x128xf32, #tpu.memory_space<vmem>>, vector<16x16x128xf32>
    %92 = arith.truncf %91 : vector<16x16x128xf32> to vector<16x16x128xbf16>
    %c0_148 = arith.constant 0 : index
    %c0_149 = arith.constant 0 : index
    %c0_150 = arith.constant 0 : index
    %c0_151 = arith.constant 0 : index
    %93 = vector.load %arg5[%c0_148, %c0_149, %c0_150, %c0_151] : memref<3x3x128x128xbf16, #tpu.memory_space<vmem>>, vector<1x1x128x128xbf16>
    %94 = vector.shape_cast %93 : vector<1x1x128x128xbf16> to vector<128x128xbf16>
    "tpu.trace_start"() <{level = 10 : i32, message = "hwc,co->hwo"}> : () -> ()
    %cst_152 = arith.constant dense<0.000000e+00> : vector<16x16x128xf32>
    %95 = tpu.matmul %92, %94, %cst_152 {dimension_numbers = #tpu.dot_dimension_numbers<[2], [0], [0, 1], [1], [0, 0, 0, 1, 1, 1], [], []>} : vector<16x16x128xbf16>, vector<128x128xbf16>, vector<16x16x128xf32> -> vector<16x16x128xf32>
    "tpu.trace_stop"() : () -> ()
    %c0_153 = arith.constant 0 : index
    %c0_154 = arith.constant 0 : index
    %c0_155 = arith.constant 0 : index
    %96 = vector.load %arg11[%c0_153, %c0_154, %c0_155] : memref<16x16x128xf32, #tpu.memory_space<vmem>>, vector<16x16x128xf32>
    tpu.vector_store %arg11[%c0_153, %c0_154, %c0_155], %95 {strides = array<i32>} : memref<16x16x128xf32, #tpu.memory_space<vmem>>, vector<16x16x128xf32>,
    %c0_156 = arith.constant 0 : index
    %c1_157 = arith.constant 1 : index
    %c0_158 = arith.constant 0 : index
    %97 = vector.load %arg10[%c0_156, %c1_157, %c0_158] : memref<18x18x128xf32, #tpu.memory_space<vmem>>, vector<16x16x128xf32>
    %98 = arith.truncf %97 : vector<16x16x128xf32> to vector<16x16x128xbf16>
    %c0_159 = arith.constant 0 : index
    %c1_160 = arith.constant 1 : index
    %c0_161 = arith.constant 0 : index
    %c0_162 = arith.constant 0 : index
    %99 = vector.load %arg5[%c0_159, %c1_160, %c0_161, %c0_162] : memref<3x3x128x128xbf16, #tpu.memory_space<vmem>>, vector<1x1x128x128xbf16>
    %100 = vector.shape_cast %99 : vector<1x1x128x128xbf16> to vector<128x128xbf16>
    "tpu.trace_start"() <{level = 10 : i32, message = "hwc,co->hwo"}> : () -> ()
    %cst_163 = arith.constant dense<0.000000e+00> : vector<16x16x128xf32>
    %101 = tpu.matmul %98, %100, %cst_163 {dimension_numbers = #tpu.dot_dimension_numbers<[2], [0], [0, 1], [1], [0, 0, 0, 1, 1, 1], [], []>} : vector<16x16x128xbf16>, vector<128x128xbf16>, vector<16x16x128xf32> -> vector<16x16x128xf32>
    "tpu.trace_stop"() : () -> ()
    %c0_164 = arith.constant 0 : index
    %c0_165 = arith.constant 0 : index
    %c0_166 = arith.constant 0 : index
    %102 = vector.load %arg11[%c0_164, %c0_165, %c0_166] : memref<16x16x128xf32, #tpu.memory_space<vmem>>, vector<16x16x128xf32>
    %103 = arith.addf %102, %101 : vector<16x16x128xf32>
    %c0_167 = arith.constant 0 : index
    %c0_168 = arith.constant 0 : index
    %c0_169 = arith.constant 0 : index
    %104 = vector.load %arg11[%c0_167, %c0_168, %c0_169] : memref<16x16x128xf32, #tpu.memory_space<vmem>>, vector<16x16x128xf32>
    tpu.vector_store %arg11[%c0_167, %c0_168, %c0_169], %103 {strides = array<i32>} : memref<16x16x128xf32, #tpu.memory_space<vmem>>, vector<16x16x128xf32>,
    %c0_170 = arith.constant 0 : index
    %c2_171 = arith.constant 2 : index
    %c0_172 = arith.constant 0 : index
    %105 = vector.load %arg10[%c0_170, %c2_171, %c0_172] : memref<18x18x128xf32, #tpu.memory_space<vmem>>, vector<16x16x128xf32>
    %106 = arith.truncf %105 : vector<16x16x128xf32> to vector<16x16x128xbf16>
    %c0_173 = arith.constant 0 : index
    %c2_174 = arith.constant 2 : index
    %c0_175 = arith.constant 0 : index
    %c0_176 = arith.constant 0 : index
    %107 = vector.load %arg5[%c0_173, %c2_174, %c0_175, %c0_176] : memref<3x3x128x128xbf16, #tpu.memory_space<vmem>>, vector<1x1x128x128xbf16>
    %108 = vector.shape_cast %107 : vector<1x1x128x128xbf16> to vector<128x128xbf16>
    "tpu.trace_start"() <{level = 10 : i32, message = "hwc,co->hwo"}> : () -> ()
    %cst_177 = arith.constant dense<0.000000e+00> : vector<16x16x128xf32>
    %109 = tpu.matmul %106, %108, %cst_177 {dimension_numbers = #tpu.dot_dimension_numbers<[2], [0], [0, 1], [1], [0, 0, 0, 1, 1, 1], [], []>} : vector<16x16x128xbf16>, vector<128x128xbf16>, vector<16x16x128xf32> -> vector<16x16x128xf32>
    "tpu.trace_stop"() : () -> ()
    %c0_178 = arith.constant 0 : index
    %c0_179 = arith.constant 0 : index
    %c0_180 = arith.constant 0 : index
    %110 = vector.load %arg11[%c0_178, %c0_179, %c0_180] : memref<16x16x128xf32, #tpu.memory_space<vmem>>, vector<16x16x128xf32>
    %111 = arith.addf %110, %109 : vector<16x16x128xf32>
    %c0_181 = arith.constant 0 : index
    %c0_182 = arith.constant 0 : index
    %c0_183 = arith.constant 0 : index
    %112 = vector.load %arg11[%c0_181, %c0_182, %c0_183] : memref<16x16x128xf32, #tpu.memory_space<vmem>>, vector<16x16x128xf32>
    tpu.vector_store %arg11[%c0_181, %c0_182, %c0_183], %111 {strides = array<i32>} : memref<16x16x128xf32, #tpu.memory_space<vmem>>, vector<16x16x128xf32>,
    %c1_184 = arith.constant 1 : index
    %c0_185 = arith.constant 0 : index
    %c0_186 = arith.constant 0 : index
    %113 = vector.load %arg10[%c1_184, %c0_185, %c0_186] : memref<18x18x128xf32, #tpu.memory_space<vmem>>, vector<16x16x128xf32>
    %114 = arith.truncf %113 : vector<16x16x128xf32> to vector<16x16x128xbf16>
    %c1_187 = arith.constant 1 : index
    %c0_188 = arith.constant 0 : index
    %c0_189 = arith.constant 0 : index
    %c0_190 = arith.constant 0 : index
    %115 = vector.load %arg5[%c1_187, %c0_188, %c0_189, %c0_190] : memref<3x3x128x128xbf16, #tpu.memory_space<vmem>>, vector<1x1x128x128xbf16>
    %116 = vector.shape_cast %115 : vector<1x1x128x128xbf16> to vector<128x128xbf16>
    "tpu.trace_start"() <{level = 10 : i32, message = "hwc,co->hwo"}> : () -> ()
    %cst_191 = arith.constant dense<0.000000e+00> : vector<16x16x128xf32>
    %117 = tpu.matmul %114, %116, %cst_191 {dimension_numbers = #tpu.dot_dimension_numbers<[2], [0], [0, 1], [1], [0, 0, 0, 1, 1, 1], [], []>} : vector<16x16x128xbf16>, vector<128x128xbf16>, vector<16x16x128xf32> -> vector<16x16x128xf32>
    "tpu.trace_stop"() : () -> ()
    %c0_192 = arith.constant 0 : index
    %c0_193 = arith.constant 0 : index
    %c0_194 = arith.constant 0 : index
    %118 = vector.load %arg11[%c0_192, %c0_193, %c0_194] : memref<16x16x128xf32, #tpu.memory_space<vmem>>, vector<16x16x128xf32>
    %119 = arith.addf %118, %117 : vector<16x16x128xf32>
    %c0_195 = arith.constant 0 : index
    %c0_196 = arith.constant 0 : index
    %c0_197 = arith.constant 0 : index
    %120 = vector.load %arg11[%c0_195, %c0_196, %c0_197] : memref<16x16x128xf32, #tpu.memory_space<vmem>>, vector<16x16x128xf32>
    tpu.vector_store %arg11[%c0_195, %c0_196, %c0_197], %119 {strides = array<i32>} : memref<16x16x128xf32, #tpu.memory_space<vmem>>, vector<16x16x128xf32>,
    %c1_198 = arith.constant 1 : index
    %c1_199 = arith.constant 1 : index
    %c0_200 = arith.constant 0 : index
    %121 = vector.load %arg10[%c1_198, %c1_199, %c0_200] : memref<18x18x128xf32, #tpu.memory_space<vmem>>, vector<16x16x128xf32>
    %122 = arith.truncf %121 : vector<16x16x128xf32> to vector<16x16x128xbf16>
    %c1_201 = arith.constant 1 : index
    %c1_202 = arith.constant 1 : index
    %c0_203 = arith.constant 0 : index
    %c0_204 = arith.constant 0 : index
    %123 = vector.load %arg5[%c1_201, %c1_202, %c0_203, %c0_204] : memref<3x3x128x128xbf16, #tpu.memory_space<vmem>>, vector<1x1x128x128xbf16>
    %124 = vector.shape_cast %123 : vector<1x1x128x128xbf16> to vector<128x128xbf16>
    "tpu.trace_start"() <{level = 10 : i32, message = "hwc,co->hwo"}> : () -> ()
    %cst_205 = arith.constant dense<0.000000e+00> : vector<16x16x128xf32>
    %125 = tpu.matmul %122, %124, %cst_205 {dimension_numbers = #tpu.dot_dimension_numbers<[2], [0], [0, 1], [1], [0, 0, 0, 1, 1, 1], [], []>} : vector<16x16x128xbf16>, vector<128x128xbf16>, vector<16x16x128xf32> -> vector<16x16x128xf32>
    "tpu.trace_stop"() : () -> ()
    %c0_206 = arith.constant 0 : index
    %c0_207 = arith.constant 0 : index
    %c0_208 = arith.constant 0 : index
    %126 = vector.load %arg11[%c0_206, %c0_207, %c0_208] : memref<16x16x128xf32, #tpu.memory_space<vmem>>, vector<16x16x128xf32>
    %127 = arith.addf %126, %125 : vector<16x16x128xf32>
    %c0_209 = arith.constant 0 : index
    %c0_210 = arith.constant 0 : index
    %c0_211 = arith.constant 0 : index
    %128 = vector.load %arg11[%c0_209, %c0_210, %c0_211] : memref<16x16x128xf32, #tpu.memory_space<vmem>>, vector<16x16x128xf32>
    tpu.vector_store %arg11[%c0_209, %c0_210, %c0_211], %127 {strides = array<i32>} : memref<16x16x128xf32, #tpu.memory_space<vmem>>, vector<16x16x128xf32>,
    %c1_212 = arith.constant 1 : index
    %c2_213 = arith.constant 2 : index
    %c0_214 = arith.constant 0 : index
    %129 = vector.load %arg10[%c1_212, %c2_213, %c0_214] : memref<18x18x128xf32, #tpu.memory_space<vmem>>, vector<16x16x128xf32>
    %130 = arith.truncf %129 : vector<16x16x128xf32> to vector<16x16x128xbf16>
    %c1_215 = arith.constant 1 : index
    %c2_216 = arith.constant 2 : index
    %c0_217 = arith.constant 0 : index
    %c0_218 = arith.constant 0 : index
    %131 = vector.load %arg5[%c1_215, %c2_216, %c0_217, %c0_218] : memref<3x3x128x128xbf16, #tpu.memory_space<vmem>>, vector<1x1x128x128xbf16>
    %132 = vector.shape_cast %131 : vector<1x1x128x128xbf16> to vector<128x128xbf16>
    "tpu.trace_start"() <{level = 10 : i32, message = "hwc,co->hwo"}> : () -> ()
    %cst_219 = arith.constant dense<0.000000e+00> : vector<16x16x128xf32>
    %133 = tpu.matmul %130, %132, %cst_219 {dimension_numbers = #tpu.dot_dimension_numbers<[2], [0], [0, 1], [1], [0, 0, 0, 1, 1, 1], [], []>} : vector<16x16x128xbf16>, vector<128x128xbf16>, vector<16x16x128xf32> -> vector<16x16x128xf32>
    "tpu.trace_stop"() : () -> ()
    %c0_220 = arith.constant 0 : index
    %c0_221 = arith.constant 0 : index
    %c0_222 = arith.constant 0 : index
    %134 = vector.load %arg11[%c0_220, %c0_221, %c0_222] : memref<16x16x128xf32, #tpu.memory_space<vmem>>, vector<16x16x128xf32>
    %135 = arith.addf %134, %133 : vector<16x16x128xf32>
    %c0_223 = arith.constant 0 : index
    %c0_224 = arith.constant 0 : index
    %c0_225 = arith.constant 0 : index
    %136 = vector.load %arg11[%c0_223, %c0_224, %c0_225] : memref<16x16x128xf32, #tpu.memory_space<vmem>>, vector<16x16x128xf32>
    tpu.vector_store %arg11[%c0_223, %c0_224, %c0_225], %135 {strides = array<i32>} : memref<16x16x128xf32, #tpu.memory_space<vmem>>, vector<16x16x128xf32>,
    %c2_226 = arith.constant 2 : index
    %c0_227 = arith.constant 0 : index
    %c0_228 = arith.constant 0 : index
    %137 = vector.load %arg10[%c2_226, %c0_227, %c0_228] : memref<18x18x128xf32, #tpu.memory_space<vmem>>, vector<16x16x128xf32>
    %138 = arith.truncf %137 : vector<16x16x128xf32> to vector<16x16x128xbf16>
    %c2_229 = arith.constant 2 : index
    %c0_230 = arith.constant 0 : index
    %c0_231 = arith.constant 0 : index
    %c0_232 = arith.constant 0 : index
    %139 = vector.load %arg5[%c2_229, %c0_230, %c0_231, %c0_232] : memref<3x3x128x128xbf16, #tpu.memory_space<vmem>>, vector<1x1x128x128xbf16>
    %140 = vector.shape_cast %139 : vector<1x1x128x128xbf16> to vector<128x128xbf16>
    "tpu.trace_start"() <{level = 10 : i32, message = "hwc,co->hwo"}> : () -> ()
    %cst_233 = arith.constant dense<0.000000e+00> : vector<16x16x128xf32>
    %141 = tpu.matmul %138, %140, %cst_233 {dimension_numbers = #tpu.dot_dimension_numbers<[2], [0], [0, 1], [1], [0, 0, 0, 1, 1, 1], [], []>} : vector<16x16x128xbf16>, vector<128x128xbf16>, vector<16x16x128xf32> -> vector<16x16x128xf32>
    "tpu.trace_stop"() : () -> ()
    %c0_234 = arith.constant 0 : index
    %c0_235 = arith.constant 0 : index
    %c0_236 = arith.constant 0 : index
    %142 = vector.load %arg11[%c0_234, %c0_235, %c0_236] : memref<16x16x128xf32, #tpu.memory_space<vmem>>, vector<16x16x128xf32>
    %143 = arith.addf %142, %141 : vector<16x16x128xf32>
    %c0_237 = arith.constant 0 : index
    %c0_238 = arith.constant 0 : index
    %c0_239 = arith.constant 0 : index
    %144 = vector.load %arg11[%c0_237, %c0_238, %c0_239] : memref<16x16x128xf32, #tpu.memory_space<vmem>>, vector<16x16x128xf32>
    tpu.vector_store %arg11[%c0_237, %c0_238, %c0_239], %143 {strides = array<i32>} : memref<16x16x128xf32, #tpu.memory_space<vmem>>, vector<16x16x128xf32>,
    %c2_240 = arith.constant 2 : index
    %c1_241 = arith.constant 1 : index
    %c0_242 = arith.constant 0 : index
    %145 = vector.load %arg10[%c2_240, %c1_241, %c0_242] : memref<18x18x128xf32, #tpu.memory_space<vmem>>, vector<16x16x128xf32>
    %146 = arith.truncf %145 : vector<16x16x128xf32> to vector<16x16x128xbf16>
    %c2_243 = arith.constant 2 : index
    %c1_244 = arith.constant 1 : index
    %c0_245 = arith.constant 0 : index
    %c0_246 = arith.constant 0 : index
    %147 = vector.load %arg5[%c2_243, %c1_244, %c0_245, %c0_246] : memref<3x3x128x128xbf16, #tpu.memory_space<vmem>>, vector<1x1x128x128xbf16>
    %148 = vector.shape_cast %147 : vector<1x1x128x128xbf16> to vector<128x128xbf16>
    "tpu.trace_start"() <{level = 10 : i32, message = "hwc,co->hwo"}> : () -> ()
    %cst_247 = arith.constant dense<0.000000e+00> : vector<16x16x128xf32>
    %149 = tpu.matmul %146, %148, %cst_247 {dimension_numbers = #tpu.dot_dimension_numbers<[2], [0], [0, 1], [1], [0, 0, 0, 1, 1, 1], [], []>} : vector<16x16x128xbf16>, vector<128x128xbf16>, vector<16x16x128xf32> -> vector<16x16x128xf32>
    "tpu.trace_stop"() : () -> ()
    %c0_248 = arith.constant 0 : index
    %c0_249 = arith.constant 0 : index
    %c0_250 = arith.constant 0 : index
    %150 = vector.load %arg11[%c0_248, %c0_249, %c0_250] : memref<16x16x128xf32, #tpu.memory_space<vmem>>, vector<16x16x128xf32>
    %151 = arith.addf %150, %149 : vector<16x16x128xf32>
    %c0_251 = arith.constant 0 : index
    %c0_252 = arith.constant 0 : index
    %c0_253 = arith.constant 0 : index
    %152 = vector.load %arg11[%c0_251, %c0_252, %c0_253] : memref<16x16x128xf32, #tpu.memory_space<vmem>>, vector<16x16x128xf32>
    tpu.vector_store %arg11[%c0_251, %c0_252, %c0_253], %151 {strides = array<i32>} : memref<16x16x128xf32, #tpu.memory_space<vmem>>, vector<16x16x128xf32>,
    %c2_254 = arith.constant 2 : index
    %c2_255 = arith.constant 2 : index
    %c0_256 = arith.constant 0 : index
    %153 = vector.load %arg10[%c2_254, %c2_255, %c0_256] : memref<18x18x128xf32, #tpu.memory_space<vmem>>, vector<16x16x128xf32>
    %154 = arith.truncf %153 : vector<16x16x128xf32> to vector<16x16x128xbf16>
    %c2_257 = arith.constant 2 : index
    %c2_258 = arith.constant 2 : index
    %c0_259 = arith.constant 0 : index
    %c0_260 = arith.constant 0 : index
    %155 = vector.load %arg5[%c2_257, %c2_258, %c0_259, %c0_260] : memref<3x3x128x128xbf16, #tpu.memory_space<vmem>>, vector<1x1x128x128xbf16>
    %156 = vector.shape_cast %155 : vector<1x1x128x128xbf16> to vector<128x128xbf16>
    "tpu.trace_start"() <{level = 10 : i32, message = "hwc,co->hwo"}> : () -> ()
    %cst_261 = arith.constant dense<0.000000e+00> : vector<16x16x128xf32>
    %157 = tpu.matmul %154, %156, %cst_261 {dimension_numbers = #tpu.dot_dimension_numbers<[2], [0], [0, 1], [1], [0, 0, 0, 1, 1, 1], [], []>} : vector<16x16x128xbf16>, vector<128x128xbf16>, vector<16x16x128xf32> -> vector<16x16x128xf32>
    "tpu.trace_stop"() : () -> ()
    %c0_262 = arith.constant 0 : index
    %c0_263 = arith.constant 0 : index
    %c0_264 = arith.constant 0 : index
    %158 = vector.load %arg11[%c0_262, %c0_263, %c0_264] : memref<16x16x128xf32, #tpu.memory_space<vmem>>, vector<16x16x128xf32>
    %159 = arith.addf %158, %157 : vector<16x16x128xf32>
    %c0_265 = arith.constant 0 : index
    %c0_266 = arith.constant 0 : index
    %c0_267 = arith.constant 0 : index
    %160 = vector.load %arg11[%c0_265, %c0_266, %c0_267] : memref<16x16x128xf32, #tpu.memory_space<vmem>>, vector<16x16x128xf32>
    tpu.vector_store %arg11[%c0_265, %c0_266, %c0_267], %159 {strides = array<i32>} : memref<16x16x128xf32, #tpu.memory_space<vmem>>, vector<16x16x128xf32>,
    %c0_268 = arith.constant 0 : index
    %c0_269 = arith.constant 0 : index
    %c0_270 = arith.constant 0 : index
    %161 = vector.load %arg11[%c0_268, %c0_269, %c0_270] : memref<16x16x128xf32, #tpu.memory_space<vmem>>, vector<16x16x128xf32>
    %c0_271 = arith.constant 0 : index
    %c0_272 = arith.constant 0 : index
    %162 = vector.load %arg6[%c0_271, %c0_272] : memref<1x128xf32, #tpu.memory_space<vmem>>, vector<1x128xf32>
    %163 = vector.shape_cast %162 : vector<1x128xf32> to vector<128xf32>
    %164 = vector.shape_cast %163 : vector<128xf32> to vector<1x1x128xf32>
    %165 = vector.broadcast %164 : vector<1x1x128xf32> to vector<16x16x128xf32>
    %166 = arith.mulf %161, %165 : vector<16x16x128xf32>
    %c0_273 = arith.constant 0 : index
    %c0_274 = arith.constant 0 : index
    %167 = vector.load %arg7[%c0_273, %c0_274] : memref<1x128xf32, #tpu.memory_space<vmem>>, vector<1x128xf32>
    %168 = vector.shape_cast %167 : vector<1x128xf32> to vector<128xf32>
    %169 = vector.shape_cast %168 : vector<128xf32> to vector<1x1x128xf32>
    %170 = vector.broadcast %169 : vector<1x1x128xf32> to vector<16x16x128xf32>
    %171 = arith.addf %166, %170 : vector<16x16x128xf32>
    %172 = arith.addf %89, %171 : vector<16x16x128xf32>
    %cst_275 = arith.constant 0.000000e+00 : f32
    %173 = vector.broadcast %cst_275 : f32 to vector<16x16x128xf32>
    %174 = arith.maximumf %172, %173 : vector<16x16x128xf32>
    %c0_276 = arith.constant 0 : index
    %c0_277 = arith.constant 0 : index
    %c0_278 = arith.constant 0 : index
    %c0_279 = arith.constant 0 : index
    %175 = vector.load %arg8[%c0_276, %c0_277, %c0_278, %c0_279] : memref<1x16x16x128xf32, #tpu.memory_space<vmem>>, vector<1x16x16x128xf32>
    %176 = vector.shape_cast %175 : vector<1x16x16x128xf32> to vector<16x16x128xf32>
    %177 = vector.shape_cast %174 : vector<16x16x128xf32> to vector<1x16x16x128xf32>
    tpu.vector_store %arg8[%c0_276, %c0_277, %c0_278, %c0_279], %177 {strides = array<i32>} : memref<1x16x16x128xf32, #tpu.memory_space<vmem>>, vector<1x16x16x128xf32>,
    return
  }
  func.func @transform_0(%arg0: i32) -> (i32, i32, i32, i32) {
    %c0_i32 = arith.constant 0 : i32
    %c0_i32_0 = arith.constant 0 : i32
    %c0_i32_1 = arith.constant 0 : i32
    %c0_i32_2 = arith.constant 0 : i32
    return %arg0, %c0_i32, %c0_i32_0, %c0_i32_1 : i32, i32, i32, i32
  }
  func.func @transform_1(%arg0: i32) -> (i32, i32, i32, i32) {
    %c0_i32 = arith.constant 0 : i32
    %c0_i32_0 = arith.constant 0 : i32
    %c0_i32_1 = arith.constant 0 : i32
    %c0_i32_2 = arith.constant 0 : i32
    %c0_i32_3 = arith.constant 0 : i32
    return %c0_i32, %c0_i32_0, %c0_i32_1, %c0_i32_2 : i32, i32, i32, i32
  }
  func.func @transform_2(%arg0: i32) -> (i32, i32) {
    %c0_i32 = arith.constant 0 : i32
    %c0_i32_0 = arith.constant 0 : i32
    %c0_i32_1 = arith.constant 0 : i32
    return %c0_i32, %c0_i32_0 : i32, i32
  }
  func.func @transform_3(%arg0: i32) -> (i32, i32) {
    %c0_i32 = arith.constant 0 : i32
    %c0_i32_0 = arith.constant 0 : i32
    %c0_i32_1 = arith.constant 0 : i32
    return %c0_i32, %c0_i32_0 : i32, i32
  }
  func.func @transform_4(%arg0: i32) -> (i32, i32, i32, i32) {
    %c0_i32 = arith.constant 0 : i32
    %c0_i32_0 = arith.constant 0 : i32
    %c0_i32_1 = arith.constant 0 : i32
    %c0_i32_2 = arith.constant 0 : i32
    %c0_i32_3 = arith.constant 0 : i32
    return %c0_i32, %c0_i32_0, %c0_i32_1, %c0_i32_2 : i32, i32, i32, i32
  }
  func.func @transform_5(%arg0: i32) -> (i32, i32) {
    %c0_i32 = arith.constant 0 : i32
    %c0_i32_0 = arith.constant 0 : i32
    %c0_i32_1 = arith.constant 0 : i32
    return %c0_i32, %c0_i32_0 : i32, i32
  }
  func.func @transform_6(%arg0: i32) -> (i32, i32) {
    %c0_i32 = arith.constant 0 : i32
    %c0_i32_0 = arith.constant 0 : i32
    %c0_i32_1 = arith.constant 0 : i32
    return %c0_i32, %c0_i32_0 : i32, i32
  }
  func.func @transform_7(%arg0: i32) -> (i32, i32, i32, i32) {
    %c0_i32 = arith.constant 0 : i32
    %c0_i32_0 = arith.constant 0 : i32
    %c0_i32_1 = arith.constant 0 : i32
    %c0_i32_2 = arith.constant 0 : i32
    return %arg0, %c0_i32, %c0_i32_0, %c0_i32_1 : i32, i32, i32, i32
  }
}

</mosaic_0001>

<llo_original>
// kernel: simple_res_block.1
$region0: #{simple_res_block.1}
  #allocation0 [shape = 'u32[]', space=smem, size = 0x4, offset = 0x4, fixed_abs, tag = 'smem constant byte address 0x4 - core index']
  #allocation1 [shape = 'u32[72,128]{1,0:T(1,128)}', space=vmem, size = 0x9000, scoped, tag = 'internal scratch']
  #allocation2 [shape = 'f32[18,18,4]{2,1,0:T(8,128)}', space=vmem, size = 0x36000, scoped, tag = 'scratch operand']
  #allocation3 [shape = 'f32[18,18,128]{2,1,0:T(8,128)}', space=vmem, size = 0x36000, scoped, tag = 'scratch operand']
  #allocation4 [shape = 'f32[16,16,128]{2,1,0:T(8,128)}', space=vmem, size = 0x20000, scoped, tag = 'scratch operand']
  %s0 = inlined_call_operand.vmem [shape: f32[2,16,16,4], index: 0, kind: input, shape index: {}]
  %s1 = inlined_call_operand.vmem [shape: bf16[3,3,4,128], index: 1, kind: input, shape index: {}]
  %s2 = inlined_call_operand.vmem [shape: f32[1,128], index: 2, kind: input, shape index: {}]
  %s3 = inlined_call_operand.vmem [shape: f32[1,128], index: 3, kind: input, shape index: {}]
  %s4 = inlined_call_operand.vmem [shape: bf16[3,3,128,128], index: 4, kind: input, shape index: {}]
  %s5 = inlined_call_operand.vmem [shape: f32[1,128], index: 5, kind: input, shape index: {}]
  %s6 = inlined_call_operand.vmem [shape: f32[1,128], index: 6, kind: input, shape index: {}]
  %s7 = inlined_call_operand.vmem [shape: f32[2,16,16,128], index: 7, kind: output, shape index: {}]
  %s8 = sld [smem:[#allocation0]]
  $region61: #{simple_res_block.1} parent=0
    _
  %s10 = ssub.s32 1, %s8
  %s11 = scalar_select 0, %s10, %s8
  loop: start=0, step=1, limit=4
  $region2: #{simple_res_block.1} parent=0 // loop_pre_header
    _
  $region3: #{simple_res_block.1} parent=0 // loop_header
    %s13 = sphi 0, %s17
    %p14 = scmp.ge.s32.totalorder %s13, 4
    %s23 = sphi 0, %s25
    %s26 = sphi 0, %s23
    %s27 = sphi 0, %s26
    %s43 = sphi 0, %s27
    %s47 = sphi 0, %s47
    %s49 = sphi 0, %s47
    %s50 = sphi 0, %s49
    %s64 = sphi 0, %s50
    %s68 = sphi 0, %s68
    %s70 = sphi 0, %s68
    %s71 = sphi 0, %s70
    %s85 = sphi 0, %s71
    %s89 = sphi 0, %s89
    %s91 = sphi 0, %s89
    %s92 = sphi 0, %s91
    %s106 = sphi 0, %s92
    %s110 = sphi 0, %s110
    %s112 = sphi 0, %s110
    %s113 = sphi 0, %s112
    %s127 = sphi 0, %s113
    %s131 = sphi 0, %s131
    %s133 = sphi 0, %s131
    %s134 = sphi 0, %s133
    %s148 = sphi 0, %s134
    %s152 = sphi 0, %s152
    %s154 = sphi 0, %s152
    %s155 = sphi 0, %s154
    %s169 = sphi 0, %s155
    %s175 = sphi 0, %s177
    %s178 = sphi 0, %s175
    %s179 = sphi 0, %s178
    %s195 = sphi 0, %s179
  $region4: #{simple_res_block.1} parent=0 // loop_header_branch
    %16 = sbr.rel (%p14) target = $region8
  $region5: #{simple_res_block.1} parent=0 // loop_body
    %s18 = ssub.s32 %s13, 1
    %s19 = ssub.s32 %s13, 2
    %s20 = sadd.s32 %s13, 1
    %s21 = ssub.s32 %s13, %s20
    %p22 = scmp.eq.s32.totalorder %s21, 0
    %s24 = sadd.s32 %s23, 1
    %s25 = scalar_select %p22, %s23, %s24
    %p28 = pneg %p22
    %p29 = scmp.eq.s32.totalorder %s13, 1
    %p30 = por %p28, %p29
    %p31 = scmp.ne.s32.totalorder %s23, %s26
    %p32 = scmp.eq.s32.totalorder %s13, 0
    %p33 = por %p31, %p32
    %p34 = scmp.ne.s32.totalorder %s23, %s26
    %p35 = scmp.eq.s32.totalorder %s18, 1
    %p36 = por %p34, %p35
    %p37 = scmp.ne.s32.totalorder %s26, %s27
    %p38 = scmp.eq.s32.totalorder %s18, 0
    %p39 = por %p37, %p38
    %p40 = scmp.ne.s32.totalorder %s26, %s27
    %p41 = scmp.eq.s32.totalorder %s19, 1
    %p42 = por %p40, %p41
    %p44 = scmp.ne.s32.totalorder %s27, %s43
    %p45 = scmp.eq.s32.totalorder %s19, 0
    %p46 = por %p44, %p45
    %s48 = sadd.s32 %s47, 1
    %p51 = scmp.eq.s32.totalorder %s13, 1
    %p52 = scmp.ne.s32.totalorder %s47, %s49
    %p53 = scmp.eq.s32.totalorder %s13, 0
    %p54 = por %p52, %p53
    %p55 = scmp.ne.s32.totalorder %s47, %s49
    %p56 = scmp.eq.s32.totalorder %s18, 1
    %p57 = por %p55, %p56
    %p58 = scmp.ne.s32.totalorder %s49, %s50
    %p59 = scmp.eq.s32.totalorder %s18, 0
    %p60 = por %p58, %p59
    %p61 = scmp.ne.s32.totalorder %s49, %s50
    %p62 = scmp.eq.s32.totalorder %s19, 1
    %p63 = por %p61, %p62
    %p65 = scmp.ne.s32.totalorder %s50, %s64
    %p66 = scmp.eq.s32.totalorder %s19, 0
    %p67 = por %p65, %p66
    %s69 = sadd.s32 %s68, 1
    %p72 = scmp.eq.s32.totalorder %s13, 1
    %p73 = scmp.ne.s32.totalorder %s68, %s70
    %p74 = scmp.eq.s32.totalorder %s13, 0
    %p75 = por %p73, %p74
    %p76 = scmp.ne.s32.totalorder %s68, %s70
    %p77 = scmp.eq.s32.totalorder %s18, 1
    %p78 = por %p76, %p77
    %p79 = scmp.ne.s32.totalorder %s70, %s71
    %p80 = scmp.eq.s32.totalorder %s18, 0
    %p81 = por %p79, %p80
    %p82 = scmp.ne.s32.totalorder %s70, %s71
    %p83 = scmp.eq.s32.totalorder %s19, 1
    %p84 = por %p82, %p83
    %p86 = scmp.ne.s32.totalorder %s71, %s85
    %p87 = scmp.eq.s32.totalorder %s19, 0
    %p88 = por %p86, %p87
    %s90 = sadd.s32 %s89, 1
    %p93 = scmp.eq.s32.totalorder %s13, 1
    %p94 = scmp.ne.s32.totalorder %s89, %s91
    %p95 = scmp.eq.s32.totalorder %s13, 0
    %p96 = por %p94, %p95
    %p97 = scmp.ne.s32.totalorder %s89, %s91
    %p98 = scmp.eq.s32.totalorder %s18, 1
    %p99 = por %p97, %p98
    %p100 = scmp.ne.s32.totalorder %s91, %s92
    %p101 = scmp.eq.s32.totalorder %s18, 0
    %p102 = por %p100, %p101
    %p103 = scmp.ne.s32.totalorder %s91, %s92
    %p104 = scmp.eq.s32.totalorder %s19, 1
    %p105 = por %p103, %p104
    %p107 = scmp.ne.s32.totalorder %s92, %s106
    %p108 = scmp.eq.s32.totalorder %s19, 0
    %p109 = por %p107, %p108
    %s111 = sadd.s32 %s110, 1
    %p114 = scmp.eq.s32.totalorder %s13, 1
    %p115 = scmp.ne.s32.totalorder %s110, %s112
    %p116 = scmp.eq.s32.totalorder %s13, 0
    %p117 = por %p115, %p116
    %p118 = scmp.ne.s32.totalorder %s110, %s112
    %p119 = scmp.eq.s32.totalorder %s18, 1
    %p120 = por %p118, %p119
    %p121 = scmp.ne.s32.totalorder %s112, %s113
    %p122 = scmp.eq.s32.totalorder %s18, 0
    %p123 = por %p121, %p122
    %p124 = scmp.ne.s32.totalorder %s112, %s113
    %p125 = scmp.eq.s32.totalorder %s19, 1
    %p126 = por %p124, %p125
    %p128 = scmp.ne.s32.totalorder %s113, %s127
    %p129 = scmp.eq.s32.totalorder %s19, 0
    %p130 = por %p128, %p129
    %s132 = sadd.s32 %s131, 1
    %p135 = scmp.eq.s32.totalorder %s13, 1
    %p136 = scmp.ne.s32.totalorder %s131, %s133
    %p137 = scmp.eq.s32.totalorder %s13, 0
    %p138 = por %p136, %p137
    %p139 = scmp.ne.s32.totalorder %s131, %s133
    %p140 = scmp.eq.s32.totalorder %s18, 1
    %p141 = por %p139, %p140
    %p142 = scmp.ne.s32.totalorder %s133, %s134
    %p143 = scmp.eq.s32.totalorder %s18, 0
    %p144 = por %p142, %p143
    %p145 = scmp.ne.s32.totalorder %s133, %s134
    %p146 = scmp.eq.s32.totalorder %s19, 1
    %p147 = por %p145, %p146
    %p149 = scmp.ne.s32.totalorder %s134, %s148
    %p150 = scmp.eq.s32.totalorder %s19, 0
    %p151 = por %p149, %p150
    %s153 = sadd.s32 %s152, 1
    %p156 = scmp.eq.s32.totalorder %s13, 1
    %p157 = scmp.ne.s32.totalorder %s152, %s154
    %p158 = scmp.eq.s32.totalorder %s13, 0
    %p159 = por %p157, %p158
    %p160 = scmp.ne.s32.totalorder %s152, %s154
    %p161 = scmp.eq.s32.totalorder %s18, 1
    %p162 = por %p160, %p161
    %p163 = scmp.ne.s32.totalorder %s154, %s155
    %p164 = scmp.eq.s32.totalorder %s18, 0
    %p165 = por %p163, %p164
    %p166 = scmp.ne.s32.totalorder %s154, %s155
    %p167 = scmp.eq.s32.totalorder %s19, 1
    %p168 = por %p166, %p167
    %p170 = scmp.ne.s32.totalorder %s155, %s169
    %p171 = scmp.eq.s32.totalorder %s19, 0
    %p172 = por %p170, %p171
    %s173 = ssub.s32 %s13, %s20
    %p174 = scmp.eq.s32.totalorder %s173, 0
    %s176 = sadd.s32 %s175, 1
    %s177 = scalar_select %p174, %s175, %s176
    %p180 = pneg %p174
    %p181 = scmp.eq.s32.totalorder %s13, 1
    %p182 = por %p180, %p181
    %p183 = scmp.ne.s32.totalorder %s175, %s178
    %p184 = scmp.eq.s32.totalorder %s13, 0
    %p185 = por %p183, %p184
    %p186 = scmp.ne.s32.totalorder %s175, %s178
    %p187 = scmp.eq.s32.totalorder %s18, 1
    %p188 = por %p186, %p187
    %p189 = scmp.ne.s32.totalorder %s178, %s179
    %p190 = scmp.eq.s32.totalorder %s18, 0
    %p191 = por %p189, %p190
    %p192 = scmp.ne.s32.totalorder %s178, %s179
    %p193 = scmp.eq.s32.totalorder %s19, 1
    %p194 = por %p192, %p193
    %p196 = scmp.ne.s32.totalorder %s179, %s195
    %p197 = scmp.eq.s32.totalorder %s19, 0
    %p198 = por %p196, %p197
    %p199 = scmp.le.s32.totalorder 1, %s13
    %p200 = scmp.lt.s32.totalorder %s13, 3
    %p201 = pnand %p199, %p200
    %p202 = pneg %p201
    // Predicated region
    $region9: #{simple_res_block.1} parent=5 // pred_check
      _
    $region10: #{simple_res_block.1} parent=5 // pred_check_branch
      %204 = sbr.rel (%p201) target = $region12
    $region11: #{simple_res_block.1} parent=5 // pred_region
      %s205 = ssub.s32 %s13, 1
      // Predicated region
      $region13: #{simple_res_block.1} parent=11 // pred_check
        %p206 = pneg %p60
      $region14: #{simple_res_block.1} parent=11 // pred_check_branch
        %208 = sbr.rel (%p206) target = $region16
      $region15: #{simple_res_block.1} parent=11 // pred_region
        _
      $region16: #{simple_res_block.1} parent=11 // pred_fallthru
        _
      // Predicated region
      $region17: #{simple_res_block.1} parent=11 // pred_check
        %p209 = pneg %p81
      $region18: #{simple_res_block.1} parent=11 // pred_check_branch
        %211 = sbr.rel (%p209) target = $region20
      $region19: #{simple_res_block.1} parent=11 // pred_region
        _
      $region20: #{simple_res_block.1} parent=11 // pred_fallthru
        _
      // Predicated region
      $region21: #{simple_res_block.1} parent=11 // pred_check
        %p212 = pneg %p102
      $region22: #{simple_res_block.1} parent=11 // pred_check_branch
        %214 = sbr.rel (%p212) target = $region24
      $region23: #{simple_res_block.1} parent=11 // pred_region
        _
      $region24: #{simple_res_block.1} parent=11 // pred_fallthru
        _
      // Predicated region
      $region25: #{simple_res_block.1} parent=11 // pred_check
        %p215 = pneg %p123
      $region26: #{simple_res_block.1} parent=11 // pred_check_branch
        %217 = sbr.rel (%p215) target = $region28
      $region27: #{simple_res_block.1} parent=11 // pred_region
        _
      $region28: #{simple_res_block.1} parent=11 // pred_fallthru
        _
      // Predicated region
      $region29: #{simple_res_block.1} parent=11 // pred_check
        %p218 = pneg %p144
      $region30: #{simple_res_block.1} parent=11 // pred_check_branch
        %220 = sbr.rel (%p218) target = $region32
      $region31: #{simple_res_block.1} parent=11 // pred_region
        _
      $region32: #{simple_res_block.1} parent=11 // pred_fallthru
        _
      // Predicated region
      $region33: #{simple_res_block.1} parent=11 // pred_check
        %p221 = pneg %p165
      $region34: #{simple_res_block.1} parent=11 // pred_check_branch
        %223 = sbr.rel (%p221) target = $region36
      $region35: #{simple_res_block.1} parent=11 // pred_region
        _
      $region36: #{simple_res_block.1} parent=11 // pred_fallthru
        _
    $region12: #{simple_res_block.1} parent=5 // pred_fallthru
      _
    %p224 = scmp.lt.s32.totalorder %s13, 2
    // Predicated region
    $region37: #{simple_res_block.1} parent=5 // pred_check
      %p225 = pneg %p224
    $region38: #{simple_res_block.1} parent=5 // pred_check_branch
      %227 = sbr.rel (%p225) target = $region40
    $region39: #{simple_res_block.1} parent=5 // pred_region
      // Predicated region
      $region41: #{simple_res_block.1} parent=39 // pred_check
        %p228 = pneg %p33
      $region42: #{simple_res_block.1} parent=39 // pred_check_branch
        %230 = sbr.rel (%p228) target = $region44
      $region43: #{simple_res_block.1} parent=39 // pred_region
        %p231 = scmp.lt.s32.totalorder %s13, 1
        %s232 = scalar_select %p231, %s13, 1
        %s233 = smul.addr %s232, 32
        %s234 = smul.addr %s233, 8
        %s235 = scalar_lea.vmem %s0, %s234
      $region44: #{simple_res_block.1} parent=39 // pred_fallthru
        _
    $region40: #{simple_res_block.1} parent=5 // pred_fallthru
      _
    %p236 = scmp.le.s32.totalorder 1, %s13
    %p237 = scmp.lt.s32.totalorder %s13, 3
    %p238 = pnand %p236, %p237
    %p239 = pneg %p238
    // Predicated region
    $region45: #{simple_res_block.1} parent=5 // pred_check
      _
    $region46: #{simple_res_block.1} parent=5 // pred_check_branch
      %241 = sbr.rel (%p238) target = $region48
    $region47: #{simple_res_block.1} parent=5 // pred_region
      %s242 = ssub.s32 %s13, 1
      %p243 = scmp.lt.s32.totalorder %s18, 1
      %s244 = scalar_select %p243, %s18, 1
      %s245 = smul.addr %s244, 32
      %s246 = smul.addr %s245, 8
      %s247 = scalar_lea.vmem %s0, %s246
      %p248 = pneg %p39
      %p249 = pneg %p36
      %p250 = pneg %p60
      %p251 = pneg %p57
      %p252 = pneg %p81
      %p253 = pneg %p78
      %p254 = pneg %p102
      %p255 = pneg %p99
      %p256 = pneg %p123
      %p257 = pneg %p120
      %p258 = pneg %p144
      %p259 = pneg %p141
      %p260 = pneg %p165
      %p261 = pneg %p162
      %p262 = pneg %p191
      %p263 = pneg %p188
      %p264 = scmp.lt.s32.totalorder %s18, 1
      %s265 = scalar_select %p264, %s18, 1
      %s266 = smul.addr %s265, 32
      %s267 = smul.addr %s266, 8
      %s268 = scalar_lea.vmem %s7, %s267
      %p269 = scmp.lt.s32.totalorder %s18, 1
      %s270 = scalar_select %p269, %s18, 1
      %s271 = smul.addr %s270, 32
      %s272 = smul.addr %s271, 8
      %s273 = scalar_lea.vmem %s0, %s272
      %p274 = scmp.lt.s32.totalorder %s18, 1
      %s275 = scalar_select %p274, %s18, 1
      %s276 = smul.addr %s275, 32
      %s277 = smul.addr %s276, 8
      %s278 = scalar_lea.vmem %s7, %s277
      %vm280 = vcmask 31744
      %281 = vst.msk [vmem:[#allocation2] sm:$0xff] %vm280, 0.0
      %282 = vst.msk [vmem:[#allocation2 + $0x8] sm:$0xff] %vm280, 0.0
      %vm283 = vcmask 25600
      %284 = vst.msk [vmem:[#allocation2 + $0x10] sm:$0x3] %vm283, 0.0
      %285 = vst.msk [vmem:[#allocation2 + $0x18] sm:$0xff] %vm280, 0.0
      %286 = vst.msk [vmem:[#allocation2 + $0x20] sm:$0xff] %vm280, 0.0
      %287 = vst.msk [vmem:[#allocation2 + $0x28] sm:$0x3] %vm283, 0.0
      %288 = vst.msk [vmem:[#allocation2 + $0x30] sm:$0xff] %vm280, 0.0
      %289 = vst.msk [vmem:[#allocation2 + $0x38] sm:$0xff] %vm280, 0.0
      %290 = vst.msk [vmem:[#allocation2 + $0x40] sm:$0x3] %vm283, 0.0
      %291 = vst.msk [vmem:[#allocation2 + $0x48] sm:$0xff] %vm280, 0.0
      %292 = vst.msk [vmem:[#allocation2 + $0x50] sm:$0xff] %vm280, 0.0
      %293 = vst.msk [vmem:[#allocation2 + $0x58] sm:$0x3] %vm283, 0.0
      %294 = vst.msk [vmem:[#allocation2 + $0x60] sm:$0xff] %vm280, 0.0
      %295 = vst.msk [vmem:[#allocation2 + $0x68] sm:$0xff] %vm280, 0.0
      %296 = vst.msk [vmem:[#allocation2 + $0x70] sm:$0x3] %vm283, 0.0
      %297 = vst.msk [vmem:[#allocation2 + $0x78] sm:$0xff] %vm280, 0.0
      %298 = vst.msk [vmem:[#allocation2 + $0x80] sm:$0xff] %vm280, 0.0
      %299 = vst.msk [vmem:[#allocation2 + $0x88] sm:$0x3] %vm283, 0.0
      %300 = vst.msk [vmem:[#allocation2 + $0x90] sm:$0xff] %vm280, 0.0
      %301 = vst.msk [vmem:[#allocation2 + $0x98] sm:$0xff] %vm280, 0.0
      %302 = vst.msk [vmem:[#allocation2 + $0xa0] sm:$0x3] %vm283, 0.0
      %303 = vst.msk [vmem:[#allocation2 + $0xa8] sm:$0xff] %vm280, 0.0
      %304 = vst.msk [vmem:[#allocation2 + $0xb0] sm:$0xff] %vm280, 0.0
      %305 = vst.msk [vmem:[#allocation2 + $0xb8] sm:$0x3] %vm283, 0.0
      %306 = vst.msk [vmem:[#allocation2 + $0xc0] sm:$0xff] %vm280, 0.0
      %307 = vst.msk [vmem:[#allocation2 + $0xc8] sm:$0xff] %vm280, 0.0
      %308 = vst.msk [vmem:[#allocation2 + $0xd0] sm:$0x3] %vm283, 0.0
      %309 = vst.msk [vmem:[#allocation2 + $0xd8] sm:$0xff] %vm280, 0.0
      %310 = vst.msk [vmem:[#allocation2 + $0xe0] sm:$0xff] %vm280, 0.0
      %311 = vst.msk [vmem:[#allocation2 + $0xe8] sm:$0x3] %vm283, 0.0
      %312 = vst.msk [vmem:[#allocation2 + $0xf0] sm:$0xff] %vm280, 0.0
      %313 = vst.msk [vmem:[#allocation2 + $0xf8] sm:$0xff] %vm280, 0.0
      %314 = vst.msk [vmem:[#allocation2 + $0x100] sm:$0x3] %vm283, 0.0
      %315 = vst.msk [vmem:[#allocation2 + $0x108] sm:$0xff] %vm280, 0.0
      %316 = vst.msk [vmem:[#allocation2 + $0x110] sm:$0xff] %vm280, 0.0
      %317 = vst.msk [vmem:[#allocation2 + $0x118] sm:$0x3] %vm283, 0.0
      %318 = vst.msk [vmem:[#allocation2 + $0x120] sm:$0xff] %vm280, 0.0
      %319 = vst.msk [vmem:[#allocation2 + $0x128] sm:$0xff] %vm280, 0.0
      %320 = vst.msk [vmem:[#allocation2 + $0x130] sm:$0x3] %vm283, 0.0
      %321 = vst.msk [vmem:[#allocation2 + $0x138] sm:$0xff] %vm280, 0.0
      %322 = vst.msk [vmem:[#allocation2 + $0x140] sm:$0xff] %vm280, 0.0
      %323 = vst.msk [vmem:[#allocation2 + $0x148] sm:$0x3] %vm283, 0.0
      %324 = vst.msk [vmem:[#allocation2 + $0x150] sm:$0xff] %vm280, 0.0
      %325 = vst.msk [vmem:[#allocation2 + $0x158] sm:$0xff] %vm280, 0.0
      %326 = vst.msk [vmem:[#allocation2 + $0x160] sm:$0x3] %vm283, 0.0
      %327 = vst.msk [vmem:[#allocation2 + $0x168] sm:$0xff] %vm280, 0.0
      %328 = vst.msk [vmem:[#allocation2 + $0x170] sm:$0xff] %vm280, 0.0
      %329 = vst.msk [vmem:[#allocation2 + $0x178] sm:$0x3] %vm283, 0.0
      %330 = vst.msk [vmem:[#allocation2 + $0x180] sm:$0xff] %vm280, 0.0
      %331 = vst.msk [vmem:[#allocation2 + $0x188] sm:$0xff] %vm280, 0.0
      %332 = vst.msk [vmem:[#allocation2 + $0x190] sm:$0x3] %vm283, 0.0
      %333 = vst.msk [vmem:[#allocation2 + $0x198] sm:$0xff] %vm280, 0.0
      %334 = vst.msk [vmem:[#allocation2 + $0x1a0] sm:$0xff] %vm280, 0.0
      %335 = vst.msk [vmem:[#allocation2 + $0x1a8] sm:$0x3] %vm283, 0.0
      %336 = vst [vmem:[#allocation3] sm:$0xff] 0.0
      %337 = vst [vmem:[#allocation3 + $0x8] sm:$0xff] 0.0
      %338 = vst [vmem:[#allocation3 + $0x10] sm:$0x3] 0.0
      %339 = vst [vmem:[#allocation3 + $0x18] sm:$0xff] 0.0
      %340 = vst [vmem:[#allocation3 + $0x20] sm:$0xff] 0.0
      %341 = vst [vmem:[#allocation3 + $0x28] sm:$0x3] 0.0
      %342 = vst [vmem:[#allocation3 + $0x30] sm:$0xff] 0.0
      %343 = vst [vmem:[#allocation3 + $0x38] sm:$0xff] 0.0
      %344 = vst [vmem:[#allocation3 + $0x40] sm:$0x3] 0.0
      %345 = vst [vmem:[#allocation3 + $0x48] sm:$0xff] 0.0
      %346 = vst [vmem:[#allocation3 + $0x50] sm:$0xff] 0.0
      %347 = vst [vmem:[#allocation3 + $0x58] sm:$0x3] 0.0
      %348 = vst [vmem:[#allocation3 + $0x60] sm:$0xff] 0.0
      %349 = vst [vmem:[#allocation3 + $0x68] sm:$0xff] 0.0
      %350 = vst [vmem:[#allocation3 + $0x70] sm:$0x3] 0.0
      %351 = vst [vmem:[#allocation3 + $0x78] sm:$0xff] 0.0
      %352 = vst [vmem:[#allocation3 + $0x80] sm:$0xff] 0.0
      %353 = vst [vmem:[#allocation3 + $0x88] sm:$0x3] 0.0
      %354 = vst [vmem:[#allocation3 + $0x90] sm:$0xff] 0.0
      %355 = vst [vmem:[#allocation3 + $0x98] sm:$0xff] 0.0
      %356 = vst [vmem:[#allocation3 + $0xa0] sm:$0x3] 0.0
      %357 = vst [vmem:[#allocation3 + $0xa8] sm:$0xff] 0.0
      %358 = vst [vmem:[#allocation3 + $0xb0] sm:$0xff] 0.0
      %359 = vst [vmem:[#allocation3 + $0xb8] sm:$0x3] 0.0
      %360 = vst [vmem:[#allocation3 + $0xc0] sm:$0xff] 0.0
      %361 = vst [vmem:[#allocation3 + $0xc8] sm:$0xff] 0.0
      %362 = vst [vmem:[#allocation3 + $0xd0] sm:$0x3] 0.0
      %363 = vst [vmem:[#allocation3 + $0xd8] sm:$0xff] 0.0
      %364 = vst [vmem:[#allocation3 + $0xe0] sm:$0xff] 0.0
      %365 = vst [vmem:[#allocation3 + $0xe8] sm:$0x3] 0.0
      %366 = vst [vmem:[#allocation3 + $0xf0] sm:$0xff] 0.0
      %367 = vst [vmem:[#allocation3 + $0xf8] sm:$0xff] 0.0
      %368 = vst [vmem:[#allocation3 + $0x100] sm:$0x3] 0.0
      %369 = vst [vmem:[#allocation3 + $0x108] sm:$0xff] 0.0
      %370 = vst [vmem:[#allocation3 + $0x110] sm:$0xff] 0.0
      %371 = vst [vmem:[#allocation3 + $0x118] sm:$0x3] 0.0
      %372 = vst [vmem:[#allocation3 + $0x120] sm:$0xff] 0.0
      %373 = vst [vmem:[#allocation3 + $0x128] sm:$0xff] 0.0
      %374 = vst [vmem:[#allocation3 + $0x130] sm:$0x3] 0.0
      %375 = vst [vmem:[#allocation3 + $0x138] sm:$0xff] 0.0
      %376 = vst [vmem:[#allocation3 + $0x140] sm:$0xff] 0.0
      %377 = vst [vmem:[#allocation3 + $0x148] sm:$0x3] 0.0
      %378 = vst [vmem:[#allocation3 + $0x150] sm:$0xff] 0.0
      %379 = vst [vmem:[#allocation3 + $0x158] sm:$0xff] 0.0
      %380 = vst [vmem:[#allocation3 + $0x160] sm:$0x3] 0.0
      %381 = vst [vmem:[#allocation3 + $0x168] sm:$0xff] 0.0
      %382 = vst [vmem:[#allocation3 + $0x170] sm:$0xff] 0.0
      %383 = vst [vmem:[#allocation3 + $0x178] sm:$0x3] 0.0
      %384 = vst [vmem:[#allocation3 + $0x180] sm:$0xff] 0.0
      %385 = vst [vmem:[#allocation3 + $0x188] sm:$0xff] 0.0
      %386 = vst [vmem:[#allocation3 + $0x190] sm:$0x3] 0.0
      %387 = vst [vmem:[#allocation3 + $0x198] sm:$0xff] 0.0
      %388 = vst [vmem:[#allocation3 + $0x1a0] sm:$0xff] 0.0
      %389 = vst [vmem:[#allocation3 + $0x1a8] sm:$0x3] 0.0
      %v390 = vld [vmem:[%s273] sm:$0xff]
      %v391 = vld [vmem:[%s273 + $0x8] sm:$0xff]
      %v392 = vld [vmem:[%s273 + $0x10] sm:$0xff]
      %v393 = vld [vmem:[%s273 + $0x18] sm:$0xff]
      %v394 = vld [vmem:[%s273 + $0x20] sm:$0xff]
      %v395 = vld [vmem:[%s273 + $0x28] sm:$0xff]
      %v396 = vld [vmem:[%s273 + $0x30] sm:$0xff]
      %v397 = vld [vmem:[%s273 + $0x38] sm:$0xff]
      %v398 = vld [vmem:[%s273 + $0x40] sm:$0xff]
      %v399 = vld [vmem:[%s273 + $0x48] sm:$0xff]
      %v400 = vld [vmem:[%s273 + $0x50] sm:$0xff]
      %v401 = vld [vmem:[%s273 + $0x58] sm:$0xff]
      %v402 = vld [vmem:[%s273 + $0x60] sm:$0xff]
      %v403 = vld [vmem:[%s273 + $0x68] sm:$0xff]
      %v404 = vld [vmem:[%s273 + $0x70] sm:$0xff]
      %v405 = vld [vmem:[%s273 + $0x78] sm:$0xff]
      %v406 = vld [vmem:[%s273 + $0x80] sm:$0xff]
      %v407 = vld [vmem:[%s273 + $0x88] sm:$0xff]
      %v408 = vld [vmem:[%s273 + $0x90] sm:$0xff]
      %v409 = vld [vmem:[%s273 + $0x98] sm:$0xff]
      %v410 = vld [vmem:[%s273 + $0xa0] sm:$0xff]
      %v411 = vld [vmem:[%s273 + $0xa8] sm:$0xff]
      %v412 = vld [vmem:[%s273 + $0xb0] sm:$0xff]
      %v413 = vld [vmem:[%s273 + $0xb8] sm:$0xff]
      %v414 = vld [vmem:[%s273 + $0xc0] sm:$0xff]
      %v415 = vld [vmem:[%s273 + $0xc8] sm:$0xff]
      %v416 = vld [vmem:[%s273 + $0xd0] sm:$0xff]
      %v417 = vld [vmem:[%s273 + $0xd8] sm:$0xff]
      %v418 = vld [vmem:[%s273 + $0xe0] sm:$0xff]
      %v419 = vld [vmem:[%s273 + $0xe8] sm:$0xff]
      %v420 = vld [vmem:[%s273 + $0xf0] sm:$0xff]
      %v421 = vld [vmem:[%s273 + $0xf8] sm:$0xff]
      %s422 = scalar_lea.vmem [#allocation2], 24
      %423 = vst.msk [vmem:[%s422 + $0x1] sm:$0xff] %vm280, %v390
      %424 = vst.msk [vmem:[%s422 + $0x9] sm:$0xff] %vm280, %v391
      %425 = vst.msk [vmem:[%s422 + $0x19] sm:$0xff] %vm280, %v392
      %426 = vst.msk [vmem:[%s422 + $0x21] sm:$0xff] %vm280, %v393
      %427 = vst.msk [vmem:[%s422 + $0x31] sm:$0xff] %vm280, %v394
      %428 = vst.msk [vmem:[%s422 + $0x39] sm:$0xff] %vm280, %v395
      %429 = vst.msk [vmem:[%s422 + $0x49] sm:$0xff] %vm280, %v396
      %430 = vst.msk [vmem:[%s422 + $0x51] sm:$0xff] %vm280, %v397
      %431 = vst.msk [vmem:[%s422 + $0x61] sm:$0xff] %vm280, %v398
      %432 = vst.msk [vmem:[%s422 + $0x69] sm:$0xff] %vm280, %v399
      %433 = vst.msk [vmem:[%s422 + $0x79] sm:$0xff] %vm280, %v400
      %434 = vst.msk [vmem:[%s422 + $0x81] sm:$0xff] %vm280, %v401
      %435 = vst.msk [vmem:[%s422 + $0x91] sm:$0xff] %vm280, %v402
      %436 = vst.msk [vmem:[%s422 + $0x99] sm:$0xff] %vm280, %v403
      %437 = vst.msk [vmem:[%s422 + $0xa9] sm:$0xff] %vm280, %v404
      %438 = vst.msk [vmem:[%s422 + $0xb1] sm:$0xff] %vm280, %v405
      %439 = vst.msk [vmem:[%s422 + $0xc1] sm:$0xff] %vm280, %v406
      %440 = vst.msk [vmem:[%s422 + $0xc9] sm:$0xff] %vm280, %v407
      %441 = vst.msk [vmem:[%s422 + $0xd9] sm:$0xff] %vm280, %v408
      %442 = vst.msk [vmem:[%s422 + $0xe1] sm:$0xff] %vm280, %v409
      %443 = vst.msk [vmem:[%s422 + $0xf1] sm:$0xff] %vm280, %v410
      %444 = vst.msk [vmem:[%s422 + $0xf9] sm:$0xff] %vm280, %v411
      %445 = vst.msk [vmem:[%s422 + $0x109] sm:$0xff] %vm280, %v412
      %446 = vst.msk [vmem:[%s422 + $0x111] sm:$0xff] %vm280, %v413
      %447 = vst.msk [vmem:[%s422 + $0x121] sm:$0xff] %vm280, %v414
      %448 = vst.msk [vmem:[%s422 + $0x129] sm:$0xff] %vm280, %v415
      %449 = vst.msk [vmem:[%s422 + $0x139] sm:$0xff] %vm280, %v416
      %450 = vst.msk [vmem:[%s422 + $0x141] sm:$0xff] %vm280, %v417
      %451 = vst.msk [vmem:[%s422 + $0x151] sm:$0xff] %vm280, %v418
      %452 = vst.msk [vmem:[%s422 + $0x159] sm:$0xff] %vm280, %v419
      %453 = vst.msk [vmem:[%s422 + $0x169] sm:$0xff] %vm280, %v420
      %454 = vst.msk [vmem:[%s422 + $0x171] sm:$0xff] %vm280, %v421
      %v455 = vld [vmem:[#allocation2] sm:$0xff]
      %v456 = vld [vmem:[#allocation2 + $0x8] sm:$0xff]
      %v457 = vld [vmem:[#allocation2 + $0x18] sm:$0xff]
      %v458 = vld [vmem:[#allocation2 + $0x20] sm:$0xff]
      %v459 = vld [vmem:[#allocation2 + $0x30] sm:$0xff]
      %v460 = vld [vmem:[#allocation2 + $0x38] sm:$0xff]
      %v461 = vld [vmem:[#allocation2 + $0x48] sm:$0xff]
      %v462 = vld [vmem:[#allocation2 + $0x50] sm:$0xff]
      %v463 = vld [vmem:[#allocation2 + $0x60] sm:$0xff]
      %v464 = vld [vmem:[#allocation2 + $0x68] sm:$0xff]
      %v465 = vld [vmem:[#allocation2 + $0x78] sm:$0xff]
      %v466 = vld [vmem:[#allocation2 + $0x80] sm:$0xff]
      %v467 = vld [vmem:[#allocation2 + $0x90] sm:$0xff]
      %v468 = vld [vmem:[#allocation2 + $0x98] sm:$0xff]
      %v469 = vld [vmem:[#allocation2 + $0xa8] sm:$0xff]
      %v470 = vld [vmem:[#allocation2 + $0xb0] sm:$0xff]
      %v471 = vld [vmem:[#allocation2 + $0xc0] sm:$0xff]
      %v472 = vld [vmem:[#allocation2 + $0xc8] sm:$0xff]
      %v473 = vld [vmem:[#allocation2 + $0xd8] sm:$0xff]
      %v474 = vld [vmem:[#allocation2 + $0xe0] sm:$0xff]
      %v475 = vld [vmem:[#allocation2 + $0xf0] sm:$0xff]
      %v476 = vld [vmem:[#allocation2 + $0xf8] sm:$0xff]
      %v477 = vld [vmem:[#allocation2 + $0x108] sm:$0xff]
      %v478 = vld [vmem:[#allocation2 + $0x110] sm:$0xff]
      %v479 = vld [vmem:[#allocation2 + $0x120] sm:$0xff]
      %v480 = vld [vmem:[#allocation2 + $0x128] sm:$0xff]
      %v481 = vld [vmem:[#allocation2 + $0x138] sm:$0xff]
      %v482 = vld [vmem:[#allocation2 + $0x140] sm:$0xff]
      %v483 = vld [vmem:[#allocation2 + $0x150] sm:$0xff]
      %v484 = vld [vmem:[#allocation2 + $0x158] sm:$0xff]
      %v485 = vld [vmem:[#allocation2 + $0x168] sm:$0xff]
      %v486 = vld [vmem:[#allocation2 + $0x170] sm:$0xff]
      %v487 = vpack.c.bf16 %v455, %v455
      %v488 = vpack.c.bf16 %v456, %v456
      %v489 = vpack.c.bf16 %v457, %v457
      %v490 = vpack.c.bf16 %v458, %v458
      %v491 = vpack.c.bf16 %v459, %v459
      %v492 = vpack.c.bf16 %v460, %v460
      %v493 = vpack.c.bf16 %v461, %v461
      %v494 = vpack.c.bf16 %v462, %v462
      %v495 = vpack.c.bf16 %v463, %v463
      %v496 = vpack.c.bf16 %v464, %v464
      %v497 = vpack.c.bf16 %v465, %v465
      %v498 = vpack.c.bf16 %v466, %v466
      %v499 = vpack.c.bf16 %v467, %v467
      %v500 = vpack.c.bf16 %v468, %v468
      %v501 = vpack.c.bf16 %v469, %v469
      %v502 = vpack.c.bf16 %v470, %v470
      %v503 = vpack.c.bf16 %v471, %v471
      %v504 = vpack.c.bf16 %v472, %v472
      %v505 = vpack.c.bf16 %v473, %v473
      %v506 = vpack.c.bf16 %v474, %v474
      %v507 = vpack.c.bf16 %v475, %v475
      %v508 = vpack.c.bf16 %v476, %v476
      %v509 = vpack.c.bf16 %v477, %v477
      %v510 = vpack.c.bf16 %v478, %v478
      %v511 = vpack.c.bf16 %v479, %v479
      %v512 = vpack.c.bf16 %v480, %v480
      %v513 = vpack.c.bf16 %v481, %v481
      %v514 = vpack.c.bf16 %v482, %v482
      %v515 = vpack.c.bf16 %v483, %v483
      %v516 = vpack.c.bf16 %v484, %v484
      %v517 = vpack.c.bf16 %v485, %v485
      %v518 = vpack.c.bf16 %v486, %v486
      %v519 = vld [vmem:[%s1] sm:$0x3]
      %v552 = vunpack.c.l.b16 %v487
      %v553 = vunpack.c.l.b16 %v488
      %v554 = vunpack.c.l.b16 %v489
      %v555 = vunpack.c.l.b16 %v490
      %v556 = vunpack.c.l.b16 %v491
      %v557 = vunpack.c.l.b16 %v492
      %v558 = vunpack.c.l.b16 %v493
      %v559 = vunpack.c.l.b16 %v494
      %v560 = vunpack.c.l.b16 %v495
      %v561 = vunpack.c.l.b16 %v496
      %v562 = vunpack.c.l.b16 %v497
      %v563 = vunpack.c.l.b16 %v498
      %v564 = vunpack.c.l.b16 %v499
      %v565 = vunpack.c.l.b16 %v500
      %v566 = vunpack.c.l.b16 %v501
      %v567 = vunpack.c.l.b16 %v502
      %v568 = vunpack.c.l.b16 %v503
      %v569 = vunpack.c.l.b16 %v504
      %v570 = vunpack.c.l.b16 %v505
      %v571 = vunpack.c.l.b16 %v506
      %v572 = vunpack.c.l.b16 %v507
      %v573 = vunpack.c.l.b16 %v508
      %v574 = vunpack.c.l.b16 %v509
      %v575 = vunpack.c.l.b16 %v510
      %v576 = vunpack.c.l.b16 %v511
      %v577 = vunpack.c.l.b16 %v512
      %v578 = vunpack.c.l.b16 %v513
      %v579 = vunpack.c.l.b16 %v514
      %v580 = vunpack.c.l.b16 %v515
      %v581 = vunpack.c.l.b16 %v516
      %v582 = vunpack.c.l.b16 %v517
      %v583 = vunpack.c.l.b16 %v518
      %v584 = vpack.c.b16 %v553, %v552
      %v585 = vpack.c.b16 %v555, %v554
      %v586 = vpack.c.b16 %v557, %v556
      %v587 = vpack.c.b16 %v559, %v558
      %v588 = vpack.c.b16 %v561, %v560
      %v589 = vpack.c.b16 %v563, %v562
      %v590 = vpack.c.b16 %v565, %v564
      %v591 = vpack.c.b16 %v567, %v566
      %v592 = vpack.c.b16 %v569, %v568
      %v593 = vpack.c.b16 %v571, %v570
      %v594 = vpack.c.b16 %v573, %v572
      %v595 = vpack.c.b16 %v575, %v574
      %v596 = vpack.c.b16 %v577, %v576
      %v597 = vpack.c.b16 %v579, %v578
      %v598 = vpack.c.b16 %v581, %v580
      %v599 = vpack.c.b16 %v583, %v582
      %v601 = vsel %vm280, %v584, 0
      %v604 = vsel %vm280, %v585, 0
      %v607 = vsel %vm280, %v586, 0
      %v610 = vsel %vm280, %v587, 0
      %v613 = vsel %vm280, %v588, 0
      %v616 = vsel %vm280, %v589, 0
      %v619 = vsel %vm280, %v590, 0
      %v622 = vsel %vm280, %v591, 0
      %v625 = vsel %vm280, %v592, 0
      %v628 = vsel %vm280, %v593, 0
      %v631 = vsel %vm280, %v594, 0
      %v634 = vsel %vm280, %v595, 0
      %v637 = vsel %vm280, %v596, 0
      %v640 = vsel %vm280, %v597, 0
      %v643 = vsel %vm280, %v598, 0
      %v646 = vsel %vm280, %v599, 0
      %vm648 = vcmask 1041408
      %v650 = vsel %vm648, %v519, 0
      %652 = vmatpush.bf16.msra.mxu0 0
      %653 = vmatpush.bf16.msra.mxu0 0
      %654 = vmatpush.bf16.msra.mxu0 0
      %655 = vmatpush.bf16.msra.mxu0 0
      %656 = vmatpush.bf16.msra.mxu0 0
      %657 = vmatpush.bf16.msra.mxu0 0
      %658 = vmatpush.bf16.msra.mxu0 0
      %659 = vmatpush.bf16.msra.mxu0 %v650
      %660 = vmatmul.bf16.gmra.mxu0 %v601
      %v661 = vpop.f32.mrf.mxu0
      %v662 = vadd.f32 0.0, %v661
      %v663 = vpop.f32.mrf.mxu0
      %v664 = vadd.f32 0.0, %v663
      %665 = vmatmul.bf16.gmra.mxu0 %v604
      %v666 = vpop.f32.mrf.mxu0
      %v667 = vadd.f32 0.0, %v666
      %v668 = vpop.f32.mrf.mxu0
      %v669 = vadd.f32 0.0, %v668
      %670 = vmatmul.bf16.gmra.mxu0 %v607
      %v671 = vpop.f32.mrf.mxu0
      %v672 = vadd.f32 0.0, %v671
      %v673 = vpop.f32.mrf.mxu0
      %v674 = vadd.f32 0.0, %v673
      %675 = vmatmul.bf16.gmra.mxu0 %v610
      %v676 = vpop.f32.mrf.mxu0
      %v677 = vadd.f32 0.0, %v676
      %v678 = vpop.f32.mrf.mxu0
      %v679 = vadd.f32 0.0, %v678
      %680 = vmatmul.bf16.gmra.mxu0 %v613
      %v681 = vpop.f32.mrf.mxu0
      %v682 = vadd.f32 0.0, %v681
      %v683 = vpop.f32.mrf.mxu0
      %v684 = vadd.f32 0.0, %v683
      %685 = vmatmul.bf16.gmra.mxu0 %v616
      %v686 = vpop.f32.mrf.mxu0
      %v687 = vadd.f32 0.0, %v686
      %v688 = vpop.f32.mrf.mxu0
      %v689 = vadd.f32 0.0, %v688
      %690 = vmatmul.bf16.gmra.mxu0 %v619
      %v691 = vpop.f32.mrf.mxu0
      %v692 = vadd.f32 0.0, %v691
      %v693 = vpop.f32.mrf.mxu0
      %v694 = vadd.f32 0.0, %v693
      %695 = vmatmul.bf16.gmra.mxu0 %v622
      %v696 = vpop.f32.mrf.mxu0
      %v697 = vadd.f32 0.0, %v696
      %v698 = vpop.f32.mrf.mxu0
      %v699 = vadd.f32 0.0, %v698
      %700 = vmatmul.bf16.gmra.mxu0 %v625
      %v701 = vpop.f32.mrf.mxu0
      %v702 = vadd.f32 0.0, %v701
      %v703 = vpop.f32.mrf.mxu0
      %v704 = vadd.f32 0.0, %v703
      %705 = vmatmul.bf16.gmra.mxu0 %v628
      %v706 = vpop.f32.mrf.mxu0
      %v707 = vadd.f32 0.0, %v706
      %v708 = vpop.f32.mrf.mxu0
      %v709 = vadd.f32 0.0, %v708
      %710 = vmatmul.bf16.gmra.mxu0 %v631
      %v711 = vpop.f32.mrf.mxu0
      %v712 = vadd.f32 0.0, %v711
      %v713 = vpop.f32.mrf.mxu0
      %v714 = vadd.f32 0.0, %v713
      %715 = vmatmul.bf16.gmra.mxu0 %v634
      %v716 = vpop.f32.mrf.mxu0
      %v717 = vadd.f32 0.0, %v716
      %v718 = vpop.f32.mrf.mxu0
      %v719 = vadd.f32 0.0, %v718
      %720 = vmatmul.bf16.gmra.mxu0 %v637
      %v721 = vpop.f32.mrf.mxu0
      %v722 = vadd.f32 0.0, %v721
      %v723 = vpop.f32.mrf.mxu0
      %v724 = vadd.f32 0.0, %v723
      %725 = vmatmul.bf16.gmra.mxu0 %v640
      %v726 = vpop.f32.mrf.mxu0
      %v727 = vadd.f32 0.0, %v726
      %v728 = vpop.f32.mrf.mxu0
      %v729 = vadd.f32 0.0, %v728
      %730 = vmatmul.bf16.gmra.mxu0 %v643
      %v731 = vpop.f32.mrf.mxu0
      %v732 = vadd.f32 0.0, %v731
      %v733 = vpop.f32.mrf.mxu0
      %v734 = vadd.f32 0.0, %v733
      %735 = vmatmul.bf16.gmra.mxu0 %v646
      %v736 = vpop.f32.mrf.mxu0
      %v737 = vadd.f32 0.0, %v736
      %v738 = vpop.f32.mrf.mxu0
      %v739 = vadd.f32 0.0, %v738
      %740 = vdwg.mxu0
      %741 = vst [vmem:[#allocation4] sm:$0xff] %v662
      %742 = vst [vmem:[#allocation4 + $0x8] sm:$0xff] %v664
      %743 = vst [vmem:[#allocation4 + $0x10] sm:$0xff] %v667
      %744 = vst [vmem:[#allocation4 + $0x18] sm:$0xff] %v669
      %745 = vst [vmem:[#allocation4 + $0x20] sm:$0xff] %v672
      %746 = vst [vmem:[#allocation4 + $0x28] sm:$0xff] %v674
      %747 = vst [vmem:[#allocation4 + $0x30] sm:$0xff] %v677
      %748 = vst [vmem:[#allocation4 + $0x38] sm:$0xff] %v679
      %749 = vst [vmem:[#allocation4 + $0x40] sm:$0xff] %v682
      %750 = vst [vmem:[#allocation4 + $0x48] sm:$0xff] %v684
      %751 = vst [vmem:[#allocation4 + $0x50] sm:$0xff] %v687
      %752 = vst [vmem:[#allocation4 + $0x58] sm:$0xff] %v689
      %753 = vst [vmem:[#allocation4 + $0x60] sm:$0xff] %v692
      %754 = vst [vmem:[#allocation4 + $0x68] sm:$0xff] %v694
      %755 = vst [vmem:[#allocation4 + $0x70] sm:$0xff] %v697
      %756 = vst [vmem:[#allocation4 + $0x78] sm:$0xff] %v699
      %757 = vst [vmem:[#allocation4 + $0x80] sm:$0xff] %v702
      %758 = vst [vmem:[#allocation4 + $0x88] sm:$0xff] %v704
      %759 = vst [vmem:[#allocation4 + $0x90] sm:$0xff] %v707
      %760 = vst [vmem:[#allocation4 + $0x98] sm:$0xff] %v709
      %761 = vst [vmem:[#allocation4 + $0xa0] sm:$0xff] %v712
      %762 = vst [vmem:[#allocation4 + $0xa8] sm:$0xff] %v714
      %763 = vst [vmem:[#allocation4 + $0xb0] sm:$0xff] %v717
      %764 = vst [vmem:[#allocation4 + $0xb8] sm:$0xff] %v719
      %765 = vst [vmem:[#allocation4 + $0xc0] sm:$0xff] %v722
      %766 = vst [vmem:[#allocation4 + $0xc8] sm:$0xff] %v724
      %767 = vst [vmem:[#allocation4 + $0xd0] sm:$0xff] %v727
      %768 = vst [vmem:[#allocation4 + $0xd8] sm:$0xff] %v729
      %769 = vst [vmem:[#allocation4 + $0xe0] sm:$0xff] %v732
      %770 = vst [vmem:[#allocation4 + $0xe8] sm:$0xff] %v734
      %771 = vst [vmem:[#allocation4 + $0xf0] sm:$0xff] %v737
      %772 = vst [vmem:[#allocation4 + $0xf8] sm:$0xff] %v739
      %v773 = vld [vmem:[#allocation2 + $0x1] sm:$0xff]
      %v774 = vld [vmem:[#allocation2 + $0x9] sm:$0xff]
      %v775 = vld [vmem:[#allocation2 + $0x19] sm:$0xff]
      %v776 = vld [vmem:[#allocation2 + $0x21] sm:$0xff]
      %v777 = vld [vmem:[#allocation2 + $0x31] sm:$0xff]
      %v778 = vld [vmem:[#allocation2 + $0x39] sm:$0xff]
      %v779 = vld [vmem:[#allocation2 + $0x49] sm:$0xff]
      %v780 = vld [vmem:[#allocation2 + $0x51] sm:$0xff]
      %v781 = vld [vmem:[#allocation2 + $0x61] sm:$0xff]
      %v782 = vld [vmem:[#allocation2 + $0x69] sm:$0xff]
      %v783 = vld [vmem:[#allocation2 + $0x79] sm:$0xff]
      %v784 = vld [vmem:[#allocation2 + $0x81] sm:$0xff]
      %v785 = vld [vmem:[#allocation2 + $0x91] sm:$0xff]
      %v786 = vld [vmem:[#allocation2 + $0x99] sm:$0xff]
      %v787 = vld [vmem:[#allocation2 + $0xa9] sm:$0xff]
      %v788 = vld [vmem:[#allocation2 + $0xb1] sm:$0xff]
      %v789 = vld [vmem:[#allocation2 + $0xc1] sm:$0xff]
      %v790 = vld [vmem:[#allocation2 + $0xc9] sm:$0xff]
      %v791 = vld [vmem:[#allocation2 + $0xd9] sm:$0xff]
      %v792 = vld [vmem:[#allocation2 + $0xe1] sm:$0xff]
      %v793 = vld [vmem:[#allocation2 + $0xf1] sm:$0xff]
      %v794 = vld [vmem:[#allocation2 + $0xf9] sm:$0xff]
      %v795 = vld [vmem:[#allocation2 + $0x109] sm:$0xff]
      %v796 = vld [vmem:[#allocation2 + $0x111] sm:$0xff]
      %v797 = vld [vmem:[#allocation2 + $0x121] sm:$0xff]
      %v798 = vld [vmem:[#allocation2 + $0x129] sm:$0xff]
      %v799 = vld [vmem:[#allocation2 + $0x139] sm:$0xff]
      %v800 = vld [vmem:[#allocation2 + $0x141] sm:$0xff]
      %v801 = vld [vmem:[#allocation2 + $0x151] sm:$0xff]
      %v802 = vld [vmem:[#allocation2 + $0x159] sm:$0xff]
      %v803 = vld [vmem:[#allocation2 + $0x169] sm:$0xff]
      %v804 = vld [vmem:[#allocation2 + $0x171] sm:$0xff]
      %v805 = vpack.c.bf16 %v773, %v773
      %v806 = vpack.c.bf16 %v774, %v774
      %v807 = vpack.c.bf16 %v775, %v775
      %v808 = vpack.c.bf16 %v776, %v776
      %v809 = vpack.c.bf16 %v777, %v777
      %v810 = vpack.c.bf16 %v778, %v778
      %v811 = vpack.c.bf16 %v779, %v779
      %v812 = vpack.c.bf16 %v780, %v780
      %v813 = vpack.c.bf16 %v781, %v781
      %v814 = vpack.c.bf16 %v782, %v782
      %v815 = vpack.c.bf16 %v783, %v783
      %v816 = vpack.c.bf16 %v784, %v784
      %v817 = vpack.c.bf16 %v785, %v785
      %v818 = vpack.c.bf16 %v786, %v786
      %v819 = vpack.c.bf16 %v787, %v787
      %v820 = vpack.c.bf16 %v788, %v788
      %v821 = vpack.c.bf16 %v789, %v789
      %v822 = vpack.c.bf16 %v790, %v790
      %v823 = vpack.c.bf16 %v791, %v791
      %v824 = vpack.c.bf16 %v792, %v792
      %v825 = vpack.c.bf16 %v793, %v793
      %v826 = vpack.c.bf16 %v794, %v794
      %v827 = vpack.c.bf16 %v795, %v795
      %v828 = vpack.c.bf16 %v796, %v796
      %v829 = vpack.c.bf16 %v797, %v797
      %v830 = vpack.c.bf16 %v798, %v798
      %v831 = vpack.c.bf16 %v799, %v799
      %v832 = vpack.c.bf16 %v800, %v800
      %v833 = vpack.c.bf16 %v801, %v801
      %v834 = vpack.c.bf16 %v802, %v802
      %v835 = vpack.c.bf16 %v803, %v803
      %v836 = vpack.c.bf16 %v804, %v804
      %s837 = scalar_lea.vmem %s1, 2
      %v838 = vld [vmem:[%s837] sm:$0x3]
      %v871 = vunpack.c.l.b16 %v805
      %v872 = vunpack.c.l.b16 %v806
      %v873 = vunpack.c.l.b16 %v807
      %v874 = vunpack.c.l.b16 %v808
      %v875 = vunpack.c.l.b16 %v809
      %v876 = vunpack.c.l.b16 %v810
      %v877 = vunpack.c.l.b16 %v811
      %v878 = vunpack.c.l.b16 %v812
      %v879 = vunpack.c.l.b16 %v813
      %v880 = vunpack.c.l.b16 %v814
      %v881 = vunpack.c.l.b16 %v815
      %v882 = vunpack.c.l.b16 %v816
      %v883 = vunpack.c.l.b16 %v817
      %v884 = vunpack.c.l.b16 %v818
      %v885 = vunpack.c.l.b16 %v819
      %v886 = vunpack.c.l.b16 %v820
      %v887 = vunpack.c.l.b16 %v821
      %v888 = vunpack.c.l.b16 %v822
      %v889 = vunpack.c.l.b16 %v823
      %v890 = vunpack.c.l.b16 %v824
      %v891 = vunpack.c.l.b16 %v825
      %v892 = vunpack.c.l.b16 %v826
      %v893 = vunpack.c.l.b16 %v827
      %v894 = vunpack.c.l.b16 %v828
      %v895 = vunpack.c.l.b16 %v829
      %v896 = vunpack.c.l.b16 %v830
      %v897 = vunpack.c.l.b16 %v831
      %v898 = vunpack.c.l.b16 %v832
      %v899 = vunpack.c.l.b16 %v833
      %v900 = vunpack.c.l.b16 %v834
      %v901 = vunpack.c.l.b16 %v835
      %v902 = vunpack.c.l.b16 %v836
      %v903 = vpack.c.b16 %v872, %v871
      %v904 = vpack.c.b16 %v874, %v873
      %v905 = vpack.c.b16 %v876, %v875
      %v906 = vpack.c.b16 %v878, %v877
      %v907 = vpack.c.b16 %v880, %v879
      %v908 = vpack.c.b16 %v882, %v881
      %v909 = vpack.c.b16 %v884, %v883
      %v910 = vpack.c.b16 %v886, %v885
      %v911 = vpack.c.b16 %v888, %v887
      %v912 = vpack.c.b16 %v890, %v889
      %v913 = vpack.c.b16 %v892, %v891
      %v914 = vpack.c.b16 %v894, %v893
      %v915 = vpack.c.b16 %v896, %v895
      %v916 = vpack.c.b16 %v898, %v897
      %v917 = vpack.c.b16 %v900, %v899
      %v918 = vpack.c.b16 %v902, %v901
      %v920 = vsel %vm280, %v903, 0
      %v923 = vsel %vm280, %v904, 0
      %v926 = vsel %vm280, %v905, 0
      %v929 = vsel %vm280, %v906, 0
      %v932 = vsel %vm280, %v907, 0
      %v935 = vsel %vm280, %v908, 0
      %v938 = vsel %vm280, %v909, 0
      %v941 = vsel %vm280, %v910, 0
      %v944 = vsel %vm280, %v911, 0
      %v947 = vsel %vm280, %v912, 0
      %v950 = vsel %vm280, %v913, 0
      %v953 = vsel %vm280, %v914, 0
      %v956 = vsel %vm280, %v915, 0
      %v959 = vsel %vm280, %v916, 0
      %v962 = vsel %vm280, %v917, 0
      %v965 = vsel %vm280, %v918, 0
      %v968 = vsel %vm648, %v838, 0
      %970 = vmatpush.bf16.msra.mxu0 0
      %971 = vmatpush.bf16.msra.mxu0 0
      %972 = vmatpush.bf16.msra.mxu0 0
      %973 = vmatpush.bf16.msra.mxu0 0
      %974 = vmatpush.bf16.msra.mxu0 0
      %975 = vmatpush.bf16.msra.mxu0 0
      %976 = vmatpush.bf16.msra.mxu0 0
      %977 = vmatpush.bf16.msra.mxu0 %v968
      %978 = vmatmul.bf16.gmra.mxu0 %v920
      %v979 = vpop.f32.mrf.mxu0
      %v980 = vadd.f32 0.0, %v979
      %v981 = vpop.f32.mrf.mxu0
      %v982 = vadd.f32 0.0, %v981
      %983 = vmatmul.bf16.gmra.mxu0 %v923
      %v984 = vpop.f32.mrf.mxu0
      %v985 = vadd.f32 0.0, %v984
      %v986 = vpop.f32.mrf.mxu0
      %v987 = vadd.f32 0.0, %v986
      %988 = vmatmul.bf16.gmra.mxu0 %v926
      %v989 = vpop.f32.mrf.mxu0
      %v990 = vadd.f32 0.0, %v989
      %v991 = vpop.f32.mrf.mxu0
      %v992 = vadd.f32 0.0, %v991
      %993 = vmatmul.bf16.gmra.mxu0 %v929
      %v994 = vpop.f32.mrf.mxu0
      %v995 = vadd.f32 0.0, %v994
      %v996 = vpop.f32.mrf.mxu0
      %v997 = vadd.f32 0.0, %v996
      %998 = vmatmul.bf16.gmra.mxu0 %v932
      %v999 = vpop.f32.mrf.mxu0
      %v1000 = vadd.f32 0.0, %v999
      %v1001 = vpop.f32.mrf.mxu0
      %v1002 = vadd.f32 0.0, %v1001
      %1003 = vmatmul.bf16.gmra.mxu0 %v935
      %v1004 = vpop.f32.mrf.mxu0
      %v1005 = vadd.f32 0.0, %v1004
      %v1006 = vpop.f32.mrf.mxu0
      %v1007 = vadd.f32 0.0, %v1006
      %1008 = vmatmul.bf16.gmra.mxu0 %v938
      %v1009 = vpop.f32.mrf.mxu0
      %v1010 = vadd.f32 0.0, %v1009
      %v1011 = vpop.f32.mrf.mxu0
      %v1012 = vadd.f32 0.0, %v1011
      %1013 = vmatmul.bf16.gmra.mxu0 %v941
      %v1014 = vpop.f32.mrf.mxu0
      %v1015 = vadd.f32 0.0, %v1014
      %v1016 = vpop.f32.mrf.mxu0
      %v1017 = vadd.f32 0.0, %v1016
      %1018 = vmatmul.bf16.gmra.mxu0 %v944
      %v1019 = vpop.f32.mrf.mxu0
      %v1020 = vadd.f32 0.0, %v1019
      %v1021 = vpop.f32.mrf.mxu0
      %v1022 = vadd.f32 0.0, %v1021
      %1023 = vmatmul.bf16.gmra.mxu0 %v947
      %v1024 = vpop.f32.mrf.mxu0
      %v1025 = vadd.f32 0.0, %v1024
      %v1026 = vpop.f32.mrf.mxu0
      %v1027 = vadd.f32 0.0, %v1026
      %1028 = vmatmul.bf16.gmra.mxu0 %v950
      %v1029 = vpop.f32.mrf.mxu0
      %v1030 = vadd.f32 0.0, %v1029
      %v1031 = vpop.f32.mrf.mxu0
      %v1032 = vadd.f32 0.0, %v1031
      %1033 = vmatmul.bf16.gmra.mxu0 %v953
      %v1034 = vpop.f32.mrf.mxu0
      %v1035 = vadd.f32 0.0, %v1034
      %v1036 = vpop.f32.mrf.mxu0
      %v1037 = vadd.f32 0.0, %v1036
      %1038 = vmatmul.bf16.gmra.mxu0 %v956
      %v1039 = vpop.f32.mrf.mxu0
      %v1040 = vadd.f32 0.0, %v1039
      %v1041 = vpop.f32.mrf.mxu0
      %v1042 = vadd.f32 0.0, %v1041
      %1043 = vmatmul.bf16.gmra.mxu0 %v959
      %v1044 = vpop.f32.mrf.mxu0
      %v1045 = vadd.f32 0.0, %v1044
      %v1046 = vpop.f32.mrf.mxu0
      %v1047 = vadd.f32 0.0, %v1046
      %1048 = vmatmul.bf16.gmra.mxu0 %v962
      %v1049 = vpop.f32.mrf.mxu0
      %v1050 = vadd.f32 0.0, %v1049
      %v1051 = vpop.f32.mrf.mxu0
      %v1052 = vadd.f32 0.0, %v1051
      %1053 = vmatmul.bf16.gmra.mxu0 %v965
      %v1054 = vpop.f32.mrf.mxu0
      %v1055 = vadd.f32 0.0, %v1054
      %v1056 = vpop.f32.mrf.mxu0
      %v1057 = vadd.f32 0.0, %v1056
      %1058 = vdwg.mxu0
      %v1059 = vld [vmem:[#allocation4] sm:$0xff]
      %v1060 = vld [vmem:[#allocation4 + $0x8] sm:$0xff]
      %v1061 = vld [vmem:[#allocation4 + $0x10] sm:$0xff]
      %v1062 = vld [vmem:[#allocation4 + $0x18] sm:$0xff]
      %v1063 = vld [vmem:[#allocation4 + $0x20] sm:$0xff]
      %v1064 = vld [vmem:[#allocation4 + $0x28] sm:$0xff]
      %v1065 = vld [vmem:[#allocation4 + $0x30] sm:$0xff]
      %v1066 = vld [vmem:[#allocation4 + $0x38] sm:$0xff]
      %v1067 = vld [vmem:[#allocation4 + $0x40] sm:$0xff]
      %v1068 = vld [vmem:[#allocation4 + $0x48] sm:$0xff]
      %v1069 = vld [vmem:[#allocation4 + $0x50] sm:$0xff]
      %v1070 = vld [vmem:[#allocation4 + $0x58] sm:$0xff]
      %v1071 = vld [vmem:[#allocation4 + $0x60] sm:$0xff]
      %v1072 = vld [vmem:[#allocation4 + $0x68] sm:$0xff]
      %v1073 = vld [vmem:[#allocation4 + $0x70] sm:$0xff]
      %v1074 = vld [vmem:[#allocation4 + $0x78] sm:$0xff]
      %v1075 = vld [vmem:[#allocation4 + $0x80] sm:$0xff]
      %v1076 = vld [vmem:[#allocation4 + $0x88] sm:$0xff]
      %v1077 = vld [vmem:[#allocation4 + $0x90] sm:$0xff]
      %v1078 = vld [vmem:[#allocation4 + $0x98] sm:$0xff]
      %v1079 = vld [vmem:[#allocation4 + $0xa0] sm:$0xff]
      %v1080 = vld [vmem:[#allocation4 + $0xa8] sm:$0xff]
      %v1081 = vld [vmem:[#allocation4 + $0xb0] sm:$0xff]
      %v1082 = vld [vmem:[#allocation4 + $0xb8] sm:$0xff]
      %v1083 = vld [vmem:[#allocation4 + $0xc0] sm:$0xff]
      %v1084 = vld [vmem:[#allocation4 + $0xc8] sm:$0xff]
      %v1085 = vld [vmem:[#allocation4 + $0xd0] sm:$0xff]
      %v1086 = vld [vmem:[#allocation4 + $0xd8] sm:$0xff]
      %v1087 = vld [vmem:[#allocation4 + $0xe0] sm:$0xff]
      %v1088 = vld [vmem:[#allocation4 + $0xe8] sm:$0xff]
      %v1089 = vld [vmem:[#allocation4 + $0xf0] sm:$0xff]
      %v1090 = vld [vmem:[#allocation4 + $0xf8] sm:$0xff]
      %v1091 = vadd.f32 %v1059, %v980
      %v1092 = vadd.f32 %v1060, %v982
      %v1093 = vadd.f32 %v1061, %v985
      %v1094 = vadd.f32 %v1062, %v987
      %v1095 = vadd.f32 %v1063, %v990
      %v1096 = vadd.f32 %v1064, %v992
      %v1097 = vadd.f32 %v1065, %v995
      %v1098 = vadd.f32 %v1066, %v997
      %v1099 = vadd.f32 %v1067, %v1000
      %v1100 = vadd.f32 %v1068, %v1002
      %v1101 = vadd.f32 %v1069, %v1005
      %v1102 = vadd.f32 %v1070, %v1007
      %v1103 = vadd.f32 %v1071, %v1010
      %v1104 = vadd.f32 %v1072, %v1012
      %v1105 = vadd.f32 %v1073, %v1015
      %v1106 = vadd.f32 %v1074, %v1017
      %v1107 = vadd.f32 %v1075, %v1020
      %v1108 = vadd.f32 %v1076, %v1022
      %v1109 = vadd.f32 %v1077, %v1025
      %v1110 = vadd.f32 %v1078, %v1027
      %v1111 = vadd.f32 %v1079, %v1030
      %v1112 = vadd.f32 %v1080, %v1032
      %v1113 = vadd.f32 %v1081, %v1035
      %v1114 = vadd.f32 %v1082, %v1037
      %v1115 = vadd.f32 %v1083, %v1040
      %v1116 = vadd.f32 %v1084, %v1042
      %v1117 = vadd.f32 %v1085, %v1045
      %v1118 = vadd.f32 %v1086, %v1047
      %v1119 = vadd.f32 %v1087, %v1050
      %v1120 = vadd.f32 %v1088, %v1052
      %v1121 = vadd.f32 %v1089, %v1055
      %v1122 = vadd.f32 %v1090, %v1057
      %1123 = vst [vmem:[#allocation4] sm:$0xff] %v1091
      %1124 = vst [vmem:[#allocation4 + $0x8] sm:$0xff] %v1092
      %1125 = vst [vmem:[#allocation4 + $0x10] sm:$0xff] %v1093
      %1126 = vst [vmem:[#allocation4 + $0x18] sm:$0xff] %v1094
      %1127 = vst [vmem:[#allocation4 + $0x20] sm:$0xff] %v1095
      %1128 = vst [vmem:[#allocation4 + $0x28] sm:$0xff] %v1096
      %1129 = vst [vmem:[#allocation4 + $0x30] sm:$0xff] %v1097
      %1130 = vst [vmem:[#allocation4 + $0x38] sm:$0xff] %v1098
      %1131 = vst [vmem:[#allocation4 + $0x40] sm:$0xff] %v1099
      %1132 = vst [vmem:[#allocation4 + $0x48] sm:$0xff] %v1100
      %1133 = vst [vmem:[#allocation4 + $0x50] sm:$0xff] %v1101
      %1134 = vst [vmem:[#allocation4 + $0x58] sm:$0xff] %v1102
      %1135 = vst [vmem:[#allocation4 + $0x60] sm:$0xff] %v1103
      %1136 = vst [vmem:[#allocation4 + $0x68] sm:$0xff] %v1104
      %1137 = vst [vmem:[#allocation4 + $0x70] sm:$0xff] %v1105
      %1138 = vst [vmem:[#allocation4 + $0x78] sm:$0xff] %v1106
      %1139 = vst [vmem:[#allocation4 + $0x80] sm:$0xff] %v1107
      %1140 = vst [vmem:[#allocation4 + $0x88] sm:$0xff] %v1108
      %1141 = vst [vmem:[#allocation4 + $0x90] sm:$0xff] %v1109
      %1142 = vst [vmem:[#allocation4 + $0x98] sm:$0xff] %v1110
      %1143 = vst [vmem:[#allocation4 + $0xa0] sm:$0xff] %v1111
      %1144 = vst [vmem:[#allocation4 + $0xa8] sm:$0xff] %v1112
      %1145 = vst [vmem:[#allocation4 + $0xb0] sm:$0xff] %v1113
      %1146 = vst [vmem:[#allocation4 + $0xb8] sm:$0xff] %v1114
      %1147 = vst [vmem:[#allocation4 + $0xc0] sm:$0xff] %v1115
      %1148 = vst [vmem:[#allocation4 + $0xc8] sm:$0xff] %v1116
      %1149 = vst [vmem:[#allocation4 + $0xd0] sm:$0xff] %v1117
      %1150 = vst [vmem:[#allocation4 + $0xd8] sm:$0xff] %v1118
      %1151 = vst [vmem:[#allocation4 + $0xe0] sm:$0xff] %v1119
      %1152 = vst [vmem:[#allocation4 + $0xe8] sm:$0xff] %v1120
      %1153 = vst [vmem:[#allocation4 + $0xf0] sm:$0xff] %v1121
      %1154 = vst [vmem:[#allocation4 + $0xf8] sm:$0xff] %v1122
      %v1155 = vld [vmem:[#allocation2 + $0x2] sm:$0xff]
      %v1156 = vld [vmem:[#allocation2 + $0xa] sm:$0xff]
      %v1157 = vld [vmem:[#allocation2 + $0x1a] sm:$0xff]
      %v1158 = vld [vmem:[#allocation2 + $0x22] sm:$0xff]
      %v1159 = vld [vmem:[#allocation2 + $0x32] sm:$0xff]
      %v1160 = vld [vmem:[#allocation2 + $0x3a] sm:$0xff]
      %v1161 = vld [vmem:[#allocation2 + $0x4a] sm:$0xff]
      %v1162 = vld [vmem:[#allocation2 + $0x52] sm:$0xff]
      %v1163 = vld [vmem:[#allocation2 + $0x62] sm:$0xff]
      %v1164 = vld [vmem:[#allocation2 + $0x6a] sm:$0xff]
      %v1165 = vld [vmem:[#allocation2 + $0x7a] sm:$0xff]
      %v1166 = vld [vmem:[#allocation2 + $0x82] sm:$0xff]
      %v1167 = vld [vmem:[#allocation2 + $0x92] sm:$0xff]
      %v1168 = vld [vmem:[#allocation2 + $0x9a] sm:$0xff]
      %v1169 = vld [vmem:[#allocation2 + $0xaa] sm:$0xff]
      %v1170 = vld [vmem:[#allocation2 + $0xb2] sm:$0xff]
      %v1171 = vld [vmem:[#allocation2 + $0xc2] sm:$0xff]
      %v1172 = vld [vmem:[#allocation2 + $0xca] sm:$0xff]
      %v1173 = vld [vmem:[#allocation2 + $0xda] sm:$0xff]
      %v1174 = vld [vmem:[#allocation2 + $0xe2] sm:$0xff]
      %v1175 = vld [vmem:[#allocation2 + $0xf2] sm:$0xff]
      %v1176 = vld [vmem:[#allocation2 + $0xfa] sm:$0xff]
      %v1177 = vld [vmem:[#allocation2 + $0x10a] sm:$0xff]
      %v1178 = vld [vmem:[#allocation2 + $0x112] sm:$0xff]
      %v1179 = vld [vmem:[#allocation2 + $0x122] sm:$0xff]
      %v1180 = vld [vmem:[#allocation2 + $0x12a] sm:$0xff]
      %v1181 = vld [vmem:[#allocation2 + $0x13a] sm:$0xff]
      %v1182 = vld [vmem:[#allocation2 + $0x142] sm:$0xff]
      %v1183 = vld [vmem:[#allocation2 + $0x152] sm:$0xff]
      %v1184 = vld [vmem:[#allocation2 + $0x15a] sm:$0xff]
      %v1185 = vld [vmem:[#allocation2 + $0x16a] sm:$0xff]
      %v1186 = vld [vmem:[#allocation2 + $0x172] sm:$0xff]
      %v1187 = vpack.c.bf16 %v1155, %v1155
      %v1188 = vpack.c.bf16 %v1156, %v1156
      %v1189 = vpack.c.bf16 %v1157, %v1157
      %v1190 = vpack.c.bf16 %v1158, %v1158
      %v1191 = vpack.c.bf16 %v1159, %v1159
      %v1192 = vpack.c.bf16 %v1160, %v1160
      %v1193 = vpack.c.bf16 %v1161, %v1161
      %v1194 = vpack.c.bf16 %v1162, %v1162
      %v1195 = vpack.c.bf16 %v1163, %v1163
      %v1196 = vpack.c.bf16 %v1164, %v1164
      %v1197 = vpack.c.bf16 %v1165, %v1165
      %v1198 = vpack.c.bf16 %v1166, %v1166
      %v1199 = vpack.c.bf16 %v1167, %v1167
      %v1200 = vpack.c.bf16 %v1168, %v1168
      %v1201 = vpack.c.bf16 %v1169, %v1169
      %v1202 = vpack.c.bf16 %v1170, %v1170
      %v1203 = vpack.c.bf16 %v1171, %v1171
      %v1204 = vpack.c.bf16 %v1172, %v1172
      %v1205 = vpack.c.bf16 %v1173, %v1173
      %v1206 = vpack.c.bf16 %v1174, %v1174
      %v1207 = vpack.c.bf16 %v1175, %v1175
      %v1208 = vpack.c.bf16 %v1176, %v1176
      %v1209 = vpack.c.bf16 %v1177, %v1177
      %v1210 = vpack.c.bf16 %v1178, %v1178
      %v1211 = vpack.c.bf16 %v1179, %v1179
      %v1212 = vpack.c.bf16 %v1180, %v1180
      %v1213 = vpack.c.bf16 %v1181, %v1181
      %v1214 = vpack.c.bf16 %v1182, %v1182
      %v1215 = vpack.c.bf16 %v1183, %v1183
      %v1216 = vpack.c.bf16 %v1184, %v1184
      %v1217 = vpack.c.bf16 %v1185, %v1185
      %v1218 = vpack.c.bf16 %v1186, %v1186
      %s1219 = scalar_lea.vmem %s1, 4
      %v1220 = vld [vmem:[%s1219] sm:$0x3]
      %v1253 = vunpack.c.l.b16 %v1187
      %v1254 = vunpack.c.l.b16 %v1188
      %v1255 = vunpack.c.l.b16 %v1189
      %v1256 = vunpack.c.l.b16 %v1190
      %v1257 = vunpack.c.l.b16 %v1191
      %v1258 = vunpack.c.l.b16 %v1192
      %v1259 = vunpack.c.l.b16 %v1193
      %v1260 = vunpack.c.l.b16 %v1194
      %v1261 = vunpack.c.l.b16 %v1195
      %v1262 = vunpack.c.l.b16 %v1196
      %v1263 = vunpack.c.l.b16 %v1197
      %v1264 = vunpack.c.l.b16 %v1198
      %v1265 = vunpack.c.l.b16 %v1199
      %v1266 = vunpack.c.l.b16 %v1200
      %v1267 = vunpack.c.l.b16 %v1201
      %v1268 = vunpack.c.l.b16 %v1202
      %v1269 = vunpack.c.l.b16 %v1203
      %v1270 = vunpack.c.l.b16 %v1204
      %v1271 = vunpack.c.l.b16 %v1205
      %v1272 = vunpack.c.l.b16 %v1206
      %v1273 = vunpack.c.l.b16 %v1207
      %v1274 = vunpack.c.l.b16 %v1208
      %v1275 = vunpack.c.l.b16 %v1209
      %v1276 = vunpack.c.l.b16 %v1210
      %v1277 = vunpack.c.l.b16 %v1211
      %v1278 = vunpack.c.l.b16 %v1212
      %v1279 = vunpack.c.l.b16 %v1213
      %v1280 = vunpack.c.l.b16 %v1214
      %v1281 = vunpack.c.l.b16 %v1215
      %v1282 = vunpack.c.l.b16 %v1216
      %v1283 = vunpack.c.l.b16 %v1217
      %v1284 = vunpack.c.l.b16 %v1218
      %v1285 = vpack.c.b16 %v1254, %v1253
      %v1286 = vpack.c.b16 %v1256, %v1255
      %v1287 = vpack.c.b16 %v1258, %v1257
      %v1288 = vpack.c.b16 %v1260, %v1259
      %v1289 = vpack.c.b16 %v1262, %v1261
      %v1290 = vpack.c.b16 %v1264, %v1263
      %v1291 = vpack.c.b16 %v1266, %v1265
      %v1292 = vpack.c.b16 %v1268, %v1267
      %v1293 = vpack.c.b16 %v1270, %v1269
      %v1294 = vpack.c.b16 %v1272, %v1271
      %v1295 = vpack.c.b16 %v1274, %v1273
      %v1296 = vpack.c.b16 %v1276, %v1275
      %v1297 = vpack.c.b16 %v1278, %v1277
      %v1298 = vpack.c.b16 %v1280, %v1279
      %v1299 = vpack.c.b16 %v1282, %v1281
      %v1300 = vpack.c.b16 %v1284, %v1283
      %v1302 = vsel %vm280, %v1285, 0
      %v1305 = vsel %vm280, %v1286, 0
      %v1308 = vsel %vm280, %v1287, 0
      %v1311 = vsel %vm280, %v1288, 0
      %v1314 = vsel %vm280, %v1289, 0
      %v1317 = vsel %vm280, %v1290, 0
      %v1320 = vsel %vm280, %v1291, 0
      %v1323 = vsel %vm280, %v1292, 0
      %v1326 = vsel %vm280, %v1293, 0
      %v1329 = vsel %vm280, %v1294, 0
      %v1332 = vsel %vm280, %v1295, 0
      %v1335 = vsel %vm280, %v1296, 0
      %v1338 = vsel %vm280, %v1297, 0
      %v1341 = vsel %vm280, %v1298, 0
      %v1344 = vsel %vm280, %v1299, 0
      %v1347 = vsel %vm280, %v1300, 0
      %v1350 = vsel %vm648, %v1220, 0
      %1352 = vmatpush.bf16.msra.mxu0 0
      %1353 = vmatpush.bf16.msra.mxu0 0
      %1354 = vmatpush.bf16.msra.mxu0 0
      %1355 = vmatpush.bf16.msra.mxu0 0
      %1356 = vmatpush.bf16.msra.mxu0 0
      %1357 = vmatpush.bf16.msra.mxu0 0
      %1358 = vmatpush.bf16.msra.mxu0 0
      %1359 = vmatpush.bf16.msra.mxu0 %v1350
      %1360 = vmatmul.bf16.gmra.mxu0 %v1302
      %v1361 = vpop.f32.mrf.mxu0
      %v1362 = vadd.f32 0.0, %v1361
      %v1363 = vpop.f32.mrf.mxu0
      %v1364 = vadd.f32 0.0, %v1363
      %1365 = vmatmul.bf16.gmra.mxu0 %v1305
      %v1366 = vpop.f32.mrf.mxu0
      %v1367 = vadd.f32 0.0, %v1366
      %v1368 = vpop.f32.mrf.mxu0
      %v1369 = vadd.f32 0.0, %v1368
      %1370 = vmatmul.bf16.gmra.mxu0 %v1308
      %v1371 = vpop.f32.mrf.mxu0
      %v1372 = vadd.f32 0.0, %v1371
      %v1373 = vpop.f32.mrf.mxu0
      %v1374 = vadd.f32 0.0, %v1373
      %1375 = vmatmul.bf16.gmra.mxu0 %v1311
      %v1376 = vpop.f32.mrf.mxu0
      %v1377 = vadd.f32 0.0, %v1376
      %v1378 = vpop.f32.mrf.mxu0
      %v1379 = vadd.f32 0.0, %v1378
      %1380 = vmatmul.bf16.gmra.mxu0 %v1314
      %v1381 = vpop.f32.mrf.mxu0
      %v1382 = vadd.f32 0.0, %v1381
      %v1383 = vpop.f32.mrf.mxu0
      %v1384 = vadd.f32 0.0, %v1383
      %1385 = vmatmul.bf16.gmra.mxu0 %v1317
      %v1386 = vpop.f32.mrf.mxu0
      %v1387 = vadd.f32 0.0, %v1386
      %v1388 = vpop.f32.mrf.mxu0
      %v1389 = vadd.f32 0.0, %v1388
      %1390 = vmatmul.bf16.gmra.mxu0 %v1320
      %v1391 = vpop.f32.mrf.mxu0
      %v1392 = vadd.f32 0.0, %v1391
      %v1393 = vpop.f32.mrf.mxu0
      %v1394 = vadd.f32 0.0, %v1393
      %1395 = vmatmul.bf16.gmra.mxu0 %v1323
      %v1396 = vpop.f32.mrf.mxu0
      %v1397 = vadd.f32 0.0, %v1396
      %v1398 = vpop.f32.mrf.mxu0
      %v1399 = vadd.f32 0.0, %v1398
      %1400 = vmatmul.bf16.gmra.mxu0 %v1326
      %v1401 = vpop.f32.mrf.mxu0
      %v1402 = vadd.f32 0.0, %v1401
      %v1403 = vpop.f32.mrf.mxu0
      %v1404 = vadd.f32 0.0, %v1403
      %1405 = vmatmul.bf16.gmra.mxu0 %v1329
      %v1406 = vpop.f32.mrf.mxu0
      %v1407 = vadd.f32 0.0, %v1406
      %v1408 = vpop.f32.mrf.mxu0
      %v1409 = vadd.f32 0.0, %v1408
      %1410 = vmatmul.bf16.gmra.mxu0 %v1332
      %v1411 = vpop.f32.mrf.mxu0
      %v1412 = vadd.f32 0.0, %v1411
      %v1413 = vpop.f32.mrf.mxu0
      %v1414 = vadd.f32 0.0, %v1413
      %1415 = vmatmul.bf16.gmra.mxu0 %v1335
      %v1416 = vpop.f32.mrf.mxu0
      %v1417 = vadd.f32 0.0, %v1416
      %v1418 = vpop.f32.mrf.mxu0
      %v1419 = vadd.f32 0.0, %v1418
      %1420 = vmatmul.bf16.gmra.mxu0 %v1338
      %v1421 = vpop.f32.mrf.mxu0
      %v1422 = vadd.f32 0.0, %v1421
      %v1423 = vpop.f32.mrf.mxu0
      %v1424 = vadd.f32 0.0, %v1423
      %1425 = vmatmul.bf16.gmra.mxu0 %v1341
      %v1426 = vpop.f32.mrf.mxu0
      %v1427 = vadd.f32 0.0, %v1426
      %v1428 = vpop.f32.mrf.mxu0
      %v1429 = vadd.f32 0.0, %v1428
      %1430 = vmatmul.bf16.gmra.mxu0 %v1344
      %v1431 = vpop.f32.mrf.mxu0
      %v1432 = vadd.f32 0.0, %v1431
      %v1433 = vpop.f32.mrf.mxu0
      %v1434 = vadd.f32 0.0, %v1433
      %1435 = vmatmul.bf16.gmra.mxu0 %v1347
      %v1436 = vpop.f32.mrf.mxu0
      %v1437 = vadd.f32 0.0, %v1436
      %v1438 = vpop.f32.mrf.mxu0
      %v1439 = vadd.f32 0.0, %v1438
      %1440 = vdwg.mxu0
      %v1441 = vld [vmem:[#allocation4] sm:$0xff]
      %v1442 = vld [vmem:[#allocation4 + $0x8] sm:$0xff]
      %v1443 = vld [vmem:[#allocation4 + $0x10] sm:$0xff]
      %v1444 = vld [vmem:[#allocation4 + $0x18] sm:$0xff]
      %v1445 = vld [vmem:[#allocation4 + $0x20] sm:$0xff]
      %v1446 = vld [vmem:[#allocation4 + $0x28] sm:$0xff]
      %v1447 = vld [vmem:[#allocation4 + $0x30] sm:$0xff]
      %v1448 = vld [vmem:[#allocation4 + $0x38] sm:$0xff]
      %v1449 = vld [vmem:[#allocation4 + $0x40] sm:$0xff]
      %v1450 = vld [vmem:[#allocation4 + $0x48] sm:$0xff]
      %v1451 = vld [vmem:[#allocation4 + $0x50] sm:$0xff]
      %v1452 = vld [vmem:[#allocation4 + $0x58] sm:$0xff]
      %v1453 = vld [vmem:[#allocation4 + $0x60] sm:$0xff]
      %v1454 = vld [vmem:[#allocation4 + $0x68] sm:$0xff]
      %v1455 = vld [vmem:[#allocation4 + $0x70] sm:$0xff]
      %v1456 = vld [vmem:[#allocation4 + $0x78] sm:$0xff]
      %v1457 = vld [vmem:[#allocation4 + $0x80] sm:$0xff]
      %v1458 = vld [vmem:[#allocation4 + $0x88] sm:$0xff]
      %v1459 = vld [vmem:[#allocation4 + $0x90] sm:$0xff]
      %v1460 = vld [vmem:[#allocation4 + $0x98] sm:$0xff]
      %v1461 = vld [vmem:[#allocation4 + $0xa0] sm:$0xff]
      %v1462 = vld [vmem:[#allocation4 + $0xa8] sm:$0xff]
      %v1463 = vld [vmem:[#allocation4 + $0xb0] sm:$0xff]
      %v1464 = vld [vmem:[#allocation4 + $0xb8] sm:$0xff]
      %v1465 = vld [vmem:[#allocation4 + $0xc0] sm:$0xff]
      %v1466 = vld [vmem:[#allocation4 + $0xc8] sm:$0xff]
      %v1467 = vld [vmem:[#allocation4 + $0xd0] sm:$0xff]
      %v1468 = vld [vmem:[#allocation4 + $0xd8] sm:$0xff]
      %v1469 = vld [vmem:[#allocation4 + $0xe0] sm:$0xff]
      %v1470 = vld [vmem:[#allocation4 + $0xe8] sm:$0xff]
      %v1471 = vld [vmem:[#allocation4 + $0xf0] sm:$0xff]
      %v1472 = vld [vmem:[#allocation4 + $0xf8] sm:$0xff]
      %v1473 = vadd.f32 %v1441, %v1362
      %v1474 = vadd.f32 %v1442, %v1364
      %v1475 = vadd.f32 %v1443, %v1367
      %v1476 = vadd.f32 %v1444, %v1369
      %v1477 = vadd.f32 %v1445, %v1372
      %v1478 = vadd.f32 %v1446, %v1374
      %v1479 = vadd.f32 %v1447, %v1377
      %v1480 = vadd.f32 %v1448, %v1379
      %v1481 = vadd.f32 %v1449, %v1382
      %v1482 = vadd.f32 %v1450, %v1384
      %v1483 = vadd.f32 %v1451, %v1387
      %v1484 = vadd.f32 %v1452, %v1389
      %v1485 = vadd.f32 %v1453, %v1392
      %v1486 = vadd.f32 %v1454, %v1394
      %v1487 = vadd.f32 %v1455, %v1397
      %v1488 = vadd.f32 %v1456, %v1399
      %v1489 = vadd.f32 %v1457, %v1402
      %v1490 = vadd.f32 %v1458, %v1404
      %v1491 = vadd.f32 %v1459, %v1407
      %v1492 = vadd.f32 %v1460, %v1409
      %v1493 = vadd.f32 %v1461, %v1412
      %v1494 = vadd.f32 %v1462, %v1414
      %v1495 = vadd.f32 %v1463, %v1417
      %v1496 = vadd.f32 %v1464, %v1419
      %v1497 = vadd.f32 %v1465, %v1422
      %v1498 = vadd.f32 %v1466, %v1424
      %v1499 = vadd.f32 %v1467, %v1427
      %v1500 = vadd.f32 %v1468, %v1429
      %v1501 = vadd.f32 %v1469, %v1432
      %v1502 = vadd.f32 %v1470, %v1434
      %v1503 = vadd.f32 %v1471, %v1437
      %v1504 = vadd.f32 %v1472, %v1439
      %1505 = vst [vmem:[#allocation4] sm:$0xff] %v1473
      %1506 = vst [vmem:[#allocation4 + $0x8] sm:$0xff] %v1474
      %1507 = vst [vmem:[#allocation4 + $0x10] sm:$0xff] %v1475
      %1508 = vst [vmem:[#allocation4 + $0x18] sm:$0xff] %v1476
      %1509 = vst [vmem:[#allocation4 + $0x20] sm:$0xff] %v1477
      %1510 = vst [vmem:[#allocation4 + $0x28] sm:$0xff] %v1478
      %1511 = vst [vmem:[#allocation4 + $0x30] sm:$0xff] %v1479
      %1512 = vst [vmem:[#allocation4 + $0x38] sm:$0xff] %v1480
      %1513 = vst [vmem:[#allocation4 + $0x40] sm:$0xff] %v1481
      %1514 = vst [vmem:[#allocation4 + $0x48] sm:$0xff] %v1482
      %1515 = vst [vmem:[#allocation4 + $0x50] sm:$0xff] %v1483
      %1516 = vst [vmem:[#allocation4 + $0x58] sm:$0xff] %v1484
      %1517 = vst [vmem:[#allocation4 + $0x60] sm:$0xff] %v1485
      %1518 = vst [vmem:[#allocation4 + $0x68] sm:$0xff] %v1486
      %1519 = vst [vmem:[#allocation4 + $0x70] sm:$0xff] %v1487
      %1520 = vst [vmem:[#allocation4 + $0x78] sm:$0xff] %v1488
      %1521 = vst [vmem:[#allocation4 + $0x80] sm:$0xff] %v1489
      %1522 = vst [vmem:[#allocation4 + $0x88] sm:$0xff] %v1490
      %1523 = vst [vmem:[#allocation4 + $0x90] sm:$0xff] %v1491
      %1524 = vst [vmem:[#allocation4 + $0x98] sm:$0xff] %v1492
      %1525 = vst [vmem:[#allocation4 + $0xa0] sm:$0xff] %v1493
      %1526 = vst [vmem:[#allocation4 + $0xa8] sm:$0xff] %v1494
      %1527 = vst [vmem:[#allocation4 + $0xb0] sm:$0xff] %v1495
      %1528 = vst [vmem:[#allocation4 + $0xb8] sm:$0xff] %v1496
      %1529 = vst [vmem:[#allocation4 + $0xc0] sm:$0xff] %v1497
      %1530 = vst [vmem:[#allocation4 + $0xc8] sm:$0xff] %v1498
      %1531 = vst [vmem:[#allocation4 + $0xd0] sm:$0xff] %v1499
      %1532 = vst [vmem:[#allocation4 + $0xd8] sm:$0xff] %v1500
      %1533 = vst [vmem:[#allocation4 + $0xe0] sm:$0xff] %v1501
      %1534 = vst [vmem:[#allocation4 + $0xe8] sm:$0xff] %v1502
      %1535 = vst [vmem:[#allocation4 + $0xf0] sm:$0xff] %v1503
      %1536 = vst [vmem:[#allocation4 + $0xf8] sm:$0xff] %v1504
      %v1537 = vld [vmem:[%s422] sm:$0xff]
      %v1538 = vld [vmem:[%s422 + $0x8] sm:$0xff]
      %v1539 = vld [vmem:[%s422 + $0x18] sm:$0xff]
      %v1540 = vld [vmem:[%s422 + $0x20] sm:$0xff]
      %v1541 = vld [vmem:[%s422 + $0x30] sm:$0xff]
      %v1542 = vld [vmem:[%s422 + $0x38] sm:$0xff]
      %v1543 = vld [vmem:[%s422 + $0x48] sm:$0xff]
      %v1544 = vld [vmem:[%s422 + $0x50] sm:$0xff]
      %v1545 = vld [vmem:[%s422 + $0x60] sm:$0xff]
      %v1546 = vld [vmem:[%s422 + $0x68] sm:$0xff]
      %v1547 = vld [vmem:[%s422 + $0x78] sm:$0xff]
      %v1548 = vld [vmem:[%s422 + $0x80] sm:$0xff]
      %v1549 = vld [vmem:[%s422 + $0x90] sm:$0xff]
      %v1550 = vld [vmem:[%s422 + $0x98] sm:$0xff]
      %v1551 = vld [vmem:[%s422 + $0xa8] sm:$0xff]
      %v1552 = vld [vmem:[%s422 + $0xb0] sm:$0xff]
      %v1553 = vld [vmem:[%s422 + $0xc0] sm:$0xff]
      %v1554 = vld [vmem:[%s422 + $0xc8] sm:$0xff]
      %v1555 = vld [vmem:[%s422 + $0xd8] sm:$0xff]
      %v1556 = vld [vmem:[%s422 + $0xe0] sm:$0xff]
      %v1557 = vld [vmem:[%s422 + $0xf0] sm:$0xff]
      %v1558 = vld [vmem:[%s422 + $0xf8] sm:$0xff]
      %v1559 = vld [vmem:[%s422 + $0x108] sm:$0xff]
      %v1560 = vld [vmem:[%s422 + $0x110] sm:$0xff]
      %v1561 = vld [vmem:[%s422 + $0x120] sm:$0xff]
      %v1562 = vld [vmem:[%s422 + $0x128] sm:$0xff]
      %v1563 = vld [vmem:[%s422 + $0x138] sm:$0xff]
      %v1564 = vld [vmem:[%s422 + $0x140] sm:$0xff]
      %v1565 = vld [vmem:[%s422 + $0x150] sm:$0xff]
      %v1566 = vld [vmem:[%s422 + $0x158] sm:$0xff]
      %v1567 = vld [vmem:[%s422 + $0x168] sm:$0xff]
      %v1568 = vld [vmem:[%s422 + $0x170] sm:$0xff]
      %v1569 = vpack.c.bf16 %v1537, %v1537
      %v1570 = vpack.c.bf16 %v1538, %v1538
      %v1571 = vpack.c.bf16 %v1539, %v1539
      %v1572 = vpack.c.bf16 %v1540, %v1540
      %v1573 = vpack.c.bf16 %v1541, %v1541
      %v1574 = vpack.c.bf16 %v1542, %v1542
      %v1575 = vpack.c.bf16 %v1543, %v1543
      %v1576 = vpack.c.bf16 %v1544, %v1544
      %v1577 = vpack.c.bf16 %v1545, %v1545
      %v1578 = vpack.c.bf16 %v1546, %v1546
      %v1579 = vpack.c.bf16 %v1547, %v1547
      %v1580 = vpack.c.bf16 %v1548, %v1548
      %v1581 = vpack.c.bf16 %v1549, %v1549
      %v1582 = vpack.c.bf16 %v1550, %v1550
      %v1583 = vpack.c.bf16 %v1551, %v1551
      %v1584 = vpack.c.bf16 %v1552, %v1552
      %v1585 = vpack.c.bf16 %v1553, %v1553
      %v1586 = vpack.c.bf16 %v1554, %v1554
      %v1587 = vpack.c.bf16 %v1555, %v1555
      %v1588 = vpack.c.bf16 %v1556, %v1556
      %v1589 = vpack.c.bf16 %v1557, %v1557
      %v1590 = vpack.c.bf16 %v1558, %v1558
      %v1591 = vpack.c.bf16 %v1559, %v1559
      %v1592 = vpack.c.bf16 %v1560, %v1560
      %v1593 = vpack.c.bf16 %v1561, %v1561
      %v1594 = vpack.c.bf16 %v1562, %v1562
      %v1595 = vpack.c.bf16 %v1563, %v1563
      %v1596 = vpack.c.bf16 %v1564, %v1564
      %v1597 = vpack.c.bf16 %v1565, %v1565
      %v1598 = vpack.c.bf16 %v1566, %v1566
      %v1599 = vpack.c.bf16 %v1567, %v1567
      %v1600 = vpack.c.bf16 %v1568, %v1568
      %s1601 = scalar_lea.vmem %s1, 6
      %v1602 = vld [vmem:[%s1601] sm:$0x3]
      %v1635 = vunpack.c.l.b16 %v1569
      %v1636 = vunpack.c.l.b16 %v1570
      %v1637 = vunpack.c.l.b16 %v1571
      %v1638 = vunpack.c.l.b16 %v1572
      %v1639 = vunpack.c.l.b16 %v1573
      %v1640 = vunpack.c.l.b16 %v1574
      %v1641 = vunpack.c.l.b16 %v1575
      %v1642 = vunpack.c.l.b16 %v1576
      %v1643 = vunpack.c.l.b16 %v1577
      %v1644 = vunpack.c.l.b16 %v1578
      %v1645 = vunpack.c.l.b16 %v1579
      %v1646 = vunpack.c.l.b16 %v1580
      %v1647 = vunpack.c.l.b16 %v1581
      %v1648 = vunpack.c.l.b16 %v1582
      %v1649 = vunpack.c.l.b16 %v1583
      %v1650 = vunpack.c.l.b16 %v1584
      %v1651 = vunpack.c.l.b16 %v1585
      %v1652 = vunpack.c.l.b16 %v1586
      %v1653 = vunpack.c.l.b16 %v1587
      %v1654 = vunpack.c.l.b16 %v1588
      %v1655 = vunpack.c.l.b16 %v1589
      %v1656 = vunpack.c.l.b16 %v1590
      %v1657 = vunpack.c.l.b16 %v1591
      %v1658 = vunpack.c.l.b16 %v1592
      %v1659 = vunpack.c.l.b16 %v1593
      %v1660 = vunpack.c.l.b16 %v1594
      %v1661 = vunpack.c.l.b16 %v1595
      %v1662 = vunpack.c.l.b16 %v1596
      %v1663 = vunpack.c.l.b16 %v1597
      %v1664 = vunpack.c.l.b16 %v1598
      %v1665 = vunpack.c.l.b16 %v1599
      %v1666 = vunpack.c.l.b16 %v1600
      %v1667 = vpack.c.b16 %v1636, %v1635
      %v1668 = vpack.c.b16 %v1638, %v1637
      %v1669 = vpack.c.b16 %v1640, %v1639
      %v1670 = vpack.c.b16 %v1642, %v1641
      %v1671 = vpack.c.b16 %v1644, %v1643
      %v1672 = vpack.c.b16 %v1646, %v1645
      %v1673 = vpack.c.b16 %v1648, %v1647
      %v1674 = vpack.c.b16 %v1650, %v1649
      %v1675 = vpack.c.b16 %v1652, %v1651
      %v1676 = vpack.c.b16 %v1654, %v1653
      %v1677 = vpack.c.b16 %v1656, %v1655
      %v1678 = vpack.c.b16 %v1658, %v1657
      %v1679 = vpack.c.b16 %v1660, %v1659
      %v1680 = vpack.c.b16 %v1662, %v1661
      %v1681 = vpack.c.b16 %v1664, %v1663
      %v1682 = vpack.c.b16 %v1666, %v1665
      %v1684 = vsel %vm280, %v1667, 0
      %v1687 = vsel %vm280, %v1668, 0
      %v1690 = vsel %vm280, %v1669, 0
      %v1693 = vsel %vm280, %v1670, 0
      %v1696 = vsel %vm280, %v1671, 0
      %v1699 = vsel %vm280, %v1672, 0
      %v1702 = vsel %vm280, %v1673, 0
      %v1705 = vsel %vm280, %v1674, 0
      %v1708 = vsel %vm280, %v1675, 0
      %v1711 = vsel %vm280, %v1676, 0
      %v1714 = vsel %vm280, %v1677, 0
      %v1717 = vsel %vm280, %v1678, 0
      %v1720 = vsel %vm280, %v1679, 0
      %v1723 = vsel %vm280, %v1680, 0
      %v1726 = vsel %vm280, %v1681, 0
      %v1729 = vsel %vm280, %v1682, 0
      %v1732 = vsel %vm648, %v1602, 0
      %1734 = vmatpush.bf16.msra.mxu0 0
      %1735 = vmatpush.bf16.msra.mxu0 0
      %1736 = vmatpush.bf16.msra.mxu0 0
      %1737 = vmatpush.bf16.msra.mxu0 0
      %1738 = vmatpush.bf16.msra.mxu0 0
      %1739 = vmatpush.bf16.msra.mxu0 0
      %1740 = vmatpush.bf16.msra.mxu0 0
      %1741 = vmatpush.bf16.msra.mxu0 %v1732
      %1742 = vmatmul.bf16.gmra.mxu0 %v1684
      %v1743 = vpop.f32.mrf.mxu0
      %v1744 = vadd.f32 0.0, %v1743
      %v1745 = vpop.f32.mrf.mxu0
      %v1746 = vadd.f32 0.0, %v1745
      %1747 = vmatmul.bf16.gmra.mxu0 %v1687
      %v1748 = vpop.f32.mrf.mxu0
      %v1749 = vadd.f32 0.0, %v1748
      %v1750 = vpop.f32.mrf.mxu0
      %v1751 = vadd.f32 0.0, %v1750
      %1752 = vmatmul.bf16.gmra.mxu0 %v1690
      %v1753 = vpop.f32.mrf.mxu0
      %v1754 = vadd.f32 0.0, %v1753
      %v1755 = vpop.f32.mrf.mxu0
      %v1756 = vadd.f32 0.0, %v1755
      %1757 = vmatmul.bf16.gmra.mxu0 %v1693
      %v1758 = vpop.f32.mrf.mxu0
      %v1759 = vadd.f32 0.0, %v1758
      %v1760 = vpop.f32.mrf.mxu0
      %v1761 = vadd.f32 0.0, %v1760
      %1762 = vmatmul.bf16.gmra.mxu0 %v1696
      %v1763 = vpop.f32.mrf.mxu0
      %v1764 = vadd.f32 0.0, %v1763
      %v1765 = vpop.f32.mrf.mxu0
      %v1766 = vadd.f32 0.0, %v1765
      %1767 = vmatmul.bf16.gmra.mxu0 %v1699
      %v1768 = vpop.f32.mrf.mxu0
      %v1769 = vadd.f32 0.0, %v1768
      %v1770 = vpop.f32.mrf.mxu0
      %v1771 = vadd.f32 0.0, %v1770
      %1772 = vmatmul.bf16.gmra.mxu0 %v1702
      %v1773 = vpop.f32.mrf.mxu0
      %v1774 = vadd.f32 0.0, %v1773
      %v1775 = vpop.f32.mrf.mxu0
      %v1776 = vadd.f32 0.0, %v1775
      %1777 = vmatmul.bf16.gmra.mxu0 %v1705
      %v1778 = vpop.f32.mrf.mxu0
      %v1779 = vadd.f32 0.0, %v1778
      %v1780 = vpop.f32.mrf.mxu0
      %v1781 = vadd.f32 0.0, %v1780
      %1782 = vmatmul.bf16.gmra.mxu0 %v1708
      %v1783 = vpop.f32.mrf.mxu0
      %v1784 = vadd.f32 0.0, %v1783
      %v1785 = vpop.f32.mrf.mxu0
      %v1786 = vadd.f32 0.0, %v1785
      %1787 = vmatmul.bf16.gmra.mxu0 %v1711
      %v1788 = vpop.f32.mrf.mxu0
      %v1789 = vadd.f32 0.0, %v1788
      %v1790 = vpop.f32.mrf.mxu0
      %v1791 = vadd.f32 0.0, %v1790
      %1792 = vmatmul.bf16.gmra.mxu0 %v1714
      %v1793 = vpop.f32.mrf.mxu0
      %v1794 = vadd.f32 0.0, %v1793
      %v1795 = vpop.f32.mrf.mxu0
      %v1796 = vadd.f32 0.0, %v1795
      %1797 = vmatmul.bf16.gmra.mxu0 %v1717
      %v1798 = vpop.f32.mrf.mxu0
      %v1799 = vadd.f32 0.0, %v1798
      %v1800 = vpop.f32.mrf.mxu0
      %v1801 = vadd.f32 0.0, %v1800
      %1802 = vmatmul.bf16.gmra.mxu0 %v1720
      %v1803 = vpop.f32.mrf.mxu0
      %v1804 = vadd.f32 0.0, %v1803
      %v1805 = vpop.f32.mrf.mxu0
      %v1806 = vadd.f32 0.0, %v1805
      %1807 = vmatmul.bf16.gmra.mxu0 %v1723
      %v1808 = vpop.f32.mrf.mxu0
      %v1809 = vadd.f32 0.0, %v1808
      %v1810 = vpop.f32.mrf.mxu0
      %v1811 = vadd.f32 0.0, %v1810
      %1812 = vmatmul.bf16.gmra.mxu0 %v1726
      %v1813 = vpop.f32.mrf.mxu0
      %v1814 = vadd.f32 0.0, %v1813
      %v1815 = vpop.f32.mrf.mxu0
      %v1816 = vadd.f32 0.0, %v1815
      %1817 = vmatmul.bf16.gmra.mxu0 %v1729
      %v1818 = vpop.f32.mrf.mxu0
      %v1819 = vadd.f32 0.0, %v1818
      %v1820 = vpop.f32.mrf.mxu0
      %v1821 = vadd.f32 0.0, %v1820
      %1822 = vdwg.mxu0
      %v1823 = vld [vmem:[#allocation4] sm:$0xff]
      %v1824 = vld [vmem:[#allocation4 + $0x8] sm:$0xff]
      %v1825 = vld [vmem:[#allocation4 + $0x10] sm:$0xff]
      %v1826 = vld [vmem:[#allocation4 + $0x18] sm:$0xff]
      %v1827 = vld [vmem:[#allocation4 + $0x20] sm:$0xff]
      %v1828 = vld [vmem:[#allocation4 + $0x28] sm:$0xff]
      %v1829 = vld [vmem:[#allocation4 + $0x30] sm:$0xff]
      %v1830 = vld [vmem:[#allocation4 + $0x38] sm:$0xff]
      %v1831 = vld [vmem:[#allocation4 + $0x40] sm:$0xff]
      %v1832 = vld [vmem:[#allocation4 + $0x48] sm:$0xff]
      %v1833 = vld [vmem:[#allocation4 + $0x50] sm:$0xff]
      %v1834 = vld [vmem:[#allocation4 + $0x58] sm:$0xff]
      %v1835 = vld [vmem:[#allocation4 + $0x60] sm:$0xff]
      %v1836 = vld [vmem:[#allocation4 + $0x68] sm:$0xff]
      %v1837 = vld [vmem:[#allocation4 + $0x70] sm:$0xff]
      %v1838 = vld [vmem:[#allocation4 + $0x78] sm:$0xff]
      %v1839 = vld [vmem:[#allocation4 + $0x80] sm:$0xff]
      %v1840 = vld [vmem:[#allocation4 + $0x88] sm:$0xff]
      %v1841 = vld [vmem:[#allocation4 + $0x90] sm:$0xff]
      %v1842 = vld [vmem:[#allocation4 + $0x98] sm:$0xff]
      %v1843 = vld [vmem:[#allocation4 + $0xa0] sm:$0xff]
      %v1844 = vld [vmem:[#allocation4 + $0xa8] sm:$0xff]
      %v1845 = vld [vmem:[#allocation4 + $0xb0] sm:$0xff]
      %v1846 = vld [vmem:[#allocation4 + $0xb8] sm:$0xff]
      %v1847 = vld [vmem:[#allocation4 + $0xc0] sm:$0xff]
      %v1848 = vld [vmem:[#allocation4 + $0xc8] sm:$0xff]
      %v1849 = vld [vmem:[#allocation4 + $0xd0] sm:$0xff]
      %v1850 = vld [vmem:[#allocation4 + $0xd8] sm:$0xff]
      %v1851 = vld [vmem:[#allocation4 + $0xe0] sm:$0xff]
      %v1852 = vld [vmem:[#allocation4 + $0xe8] sm:$0xff]
      %v1853 = vld [vmem:[#allocation4 + $0xf0] sm:$0xff]
      %v1854 = vld [vmem:[#allocation4 + $0xf8] sm:$0xff]
      %v1855 = vadd.f32 %v1823, %v1744
      %v1856 = vadd.f32 %v1824, %v1746
      %v1857 = vadd.f32 %v1825, %v1749
      %v1858 = vadd.f32 %v1826, %v1751
      %v1859 = vadd.f32 %v1827, %v1754
      %v1860 = vadd.f32 %v1828, %v1756
      %v1861 = vadd.f32 %v1829, %v1759
      %v1862 = vadd.f32 %v1830, %v1761
      %v1863 = vadd.f32 %v1831, %v1764
      %v1864 = vadd.f32 %v1832, %v1766
      %v1865 = vadd.f32 %v1833, %v1769
      %v1866 = vadd.f32 %v1834, %v1771
      %v1867 = vadd.f32 %v1835, %v1774
      %v1868 = vadd.f32 %v1836, %v1776
      %v1869 = vadd.f32 %v1837, %v1779
      %v1870 = vadd.f32 %v1838, %v1781
      %v1871 = vadd.f32 %v1839, %v1784
      %v1872 = vadd.f32 %v1840, %v1786
      %v1873 = vadd.f32 %v1841, %v1789
      %v1874 = vadd.f32 %v1842, %v1791
      %v1875 = vadd.f32 %v1843, %v1794
      %v1876 = vadd.f32 %v1844, %v1796
      %v1877 = vadd.f32 %v1845, %v1799
      %v1878 = vadd.f32 %v1846, %v1801
      %v1879 = vadd.f32 %v1847, %v1804
      %v1880 = vadd.f32 %v1848, %v1806
      %v1881 = vadd.f32 %v1849, %v1809
      %v1882 = vadd.f32 %v1850, %v1811
      %v1883 = vadd.f32 %v1851, %v1814
      %v1884 = vadd.f32 %v1852, %v1816
      %v1885 = vadd.f32 %v1853, %v1819
      %v1886 = vadd.f32 %v1854, %v1821
      %1887 = vst [vmem:[#allocation4] sm:$0xff] %v1855
      %1888 = vst [vmem:[#allocation4 + $0x8] sm:$0xff] %v1856
      %1889 = vst [vmem:[#allocation4 + $0x10] sm:$0xff] %v1857
      %1890 = vst [vmem:[#allocation4 + $0x18] sm:$0xff] %v1858
      %1891 = vst [vmem:[#allocation4 + $0x20] sm:$0xff] %v1859
      %1892 = vst [vmem:[#allocation4 + $0x28] sm:$0xff] %v1860
      %1893 = vst [vmem:[#allocation4 + $0x30] sm:$0xff] %v1861
      %1894 = vst [vmem:[#allocation4 + $0x38] sm:$0xff] %v1862
      %1895 = vst [vmem:[#allocation4 + $0x40] sm:$0xff] %v1863
      %1896 = vst [vmem:[#allocation4 + $0x48] sm:$0xff] %v1864
      %1897 = vst [vmem:[#allocation4 + $0x50] sm:$0xff] %v1865
      %1898 = vst [vmem:[#allocation4 + $0x58] sm:$0xff] %v1866
      %1899 = vst [vmem:[#allocation4 + $0x60] sm:$0xff] %v1867
      %1900 = vst [vmem:[#allocation4 + $0x68] sm:$0xff] %v1868
      %1901 = vst [vmem:[#allocation4 + $0x70] sm:$0xff] %v1869
      %1902 = vst [vmem:[#allocation4 + $0x78] sm:$0xff] %v1870
      %1903 = vst [vmem:[#allocation4 + $0x80] sm:$0xff] %v1871
      %1904 = vst [vmem:[#allocation4 + $0x88] sm:$0xff] %v1872
      %1905 = vst [vmem:[#allocation4 + $0x90] sm:$0xff] %v1873
      %1906 = vst [vmem:[#allocation4 + $0x98] sm:$0xff] %v1874
      %1907 = vst [vmem:[#allocation4 + $0xa0] sm:$0xff] %v1875
      %1908 = vst [vmem:[#allocation4 + $0xa8] sm:$0xff] %v1876
      %1909 = vst [vmem:[#allocation4 + $0xb0] sm:$0xff] %v1877
      %1910 = vst [vmem:[#allocation4 + $0xb8] sm:$0xff] %v1878
      %1911 = vst [vmem:[#allocation4 + $0xc0] sm:$0xff] %v1879
      %1912 = vst [vmem:[#allocation4 + $0xc8] sm:$0xff] %v1880
      %1913 = vst [vmem:[#allocation4 + $0xd0] sm:$0xff] %v1881
      %1914 = vst [vmem:[#allocation4 + $0xd8] sm:$0xff] %v1882
      %1915 = vst [vmem:[#allocation4 + $0xe0] sm:$0xff] %v1883
      %1916 = vst [vmem:[#allocation4 + $0xe8] sm:$0xff] %v1884
      %1917 = vst [vmem:[#allocation4 + $0xf0] sm:$0xff] %v1885
      %1918 = vst [vmem:[#allocation4 + $0xf8] sm:$0xff] %v1886
      %v1919 = vld [vmem:[%s422 + $0x1] sm:$0xff]
      %v1920 = vld [vmem:[%s422 + $0x9] sm:$0xff]
      %v1921 = vld [vmem:[%s422 + $0x19] sm:$0xff]
      %v1922 = vld [vmem:[%s422 + $0x21] sm:$0xff]
      %v1923 = vld [vmem:[%s422 + $0x31] sm:$0xff]
      %v1924 = vld [vmem:[%s422 + $0x39] sm:$0xff]
      %v1925 = vld [vmem:[%s422 + $0x49] sm:$0xff]
      %v1926 = vld [vmem:[%s422 + $0x51] sm:$0xff]
      %v1927 = vld [vmem:[%s422 + $0x61] sm:$0xff]
      %v1928 = vld [vmem:[%s422 + $0x69] sm:$0xff]
      %v1929 = vld [vmem:[%s422 + $0x79] sm:$0xff]
      %v1930 = vld [vmem:[%s422 + $0x81] sm:$0xff]
      %v1931 = vld [vmem:[%s422 + $0x91] sm:$0xff]
      %v1932 = vld [vmem:[%s422 + $0x99] sm:$0xff]
      %v1933 = vld [vmem:[%s422 + $0xa9] sm:$0xff]
      %v1934 = vld [vmem:[%s422 + $0xb1] sm:$0xff]
      %v1935 = vld [vmem:[%s422 + $0xc1] sm:$0xff]
      %v1936 = vld [vmem:[%s422 + $0xc9] sm:$0xff]
      %v1937 = vld [vmem:[%s422 + $0xd9] sm:$0xff]
      %v1938 = vld [vmem:[%s422 + $0xe1] sm:$0xff]
      %v1939 = vld [vmem:[%s422 + $0xf1] sm:$0xff]
      %v1940 = vld [vmem:[%s422 + $0xf9] sm:$0xff]
      %v1941 = vld [vmem:[%s422 + $0x109] sm:$0xff]
      %v1942 = vld [vmem:[%s422 + $0x111] sm:$0xff]
      %v1943 = vld [vmem:[%s422 + $0x121] sm:$0xff]
      %v1944 = vld [vmem:[%s422 + $0x129] sm:$0xff]
      %v1945 = vld [vmem:[%s422 + $0x139] sm:$0xff]
      %v1946 = vld [vmem:[%s422 + $0x141] sm:$0xff]
      %v1947 = vld [vmem:[%s422 + $0x151] sm:$0xff]
      %v1948 = vld [vmem:[%s422 + $0x159] sm:$0xff]
      %v1949 = vld [vmem:[%s422 + $0x169] sm:$0xff]
      %v1950 = vld [vmem:[%s422 + $0x171] sm:$0xff]
      %v1951 = vpack.c.bf16 %v1919, %v1919
      %v1952 = vpack.c.bf16 %v1920, %v1920
      %v1953 = vpack.c.bf16 %v1921, %v1921
      %v1954 = vpack.c.bf16 %v1922, %v1922
      %v1955 = vpack.c.bf16 %v1923, %v1923
      %v1956 = vpack.c.bf16 %v1924, %v1924
      %v1957 = vpack.c.bf16 %v1925, %v1925
      %v1958 = vpack.c.bf16 %v1926, %v1926
      %v1959 = vpack.c.bf16 %v1927, %v1927
      %v1960 = vpack.c.bf16 %v1928, %v1928
      %v1961 = vpack.c.bf16 %v1929, %v1929
      %v1962 = vpack.c.bf16 %v1930, %v1930
      %v1963 = vpack.c.bf16 %v1931, %v1931
      %v1964 = vpack.c.bf16 %v1932, %v1932
      %v1965 = vpack.c.bf16 %v1933, %v1933
      %v1966 = vpack.c.bf16 %v1934, %v1934
      %v1967 = vpack.c.bf16 %v1935, %v1935
      %v1968 = vpack.c.bf16 %v1936, %v1936
      %v1969 = vpack.c.bf16 %v1937, %v1937
      %v1970 = vpack.c.bf16 %v1938, %v1938
      %v1971 = vpack.c.bf16 %v1939, %v1939
      %v1972 = vpack.c.bf16 %v1940, %v1940
      %v1973 = vpack.c.bf16 %v1941, %v1941
      %v1974 = vpack.c.bf16 %v1942, %v1942
      %v1975 = vpack.c.bf16 %v1943, %v1943
      %v1976 = vpack.c.bf16 %v1944, %v1944
      %v1977 = vpack.c.bf16 %v1945, %v1945
      %v1978 = vpack.c.bf16 %v1946, %v1946
      %v1979 = vpack.c.bf16 %v1947, %v1947
      %v1980 = vpack.c.bf16 %v1948, %v1948
      %v1981 = vpack.c.bf16 %v1949, %v1949
      %v1982 = vpack.c.bf16 %v1950, %v1950
      %s1983 = scalar_lea.vmem %s1, 8
      %v1984 = vld [vmem:[%s1983] sm:$0x3]
      %v2017 = vunpack.c.l.b16 %v1951
      %v2018 = vunpack.c.l.b16 %v1952
      %v2019 = vunpack.c.l.b16 %v1953
      %v2020 = vunpack.c.l.b16 %v1954
      %v2021 = vunpack.c.l.b16 %v1955
      %v2022 = vunpack.c.l.b16 %v1956
      %v2023 = vunpack.c.l.b16 %v1957
      %v2024 = vunpack.c.l.b16 %v1958
      %v2025 = vunpack.c.l.b16 %v1959
      %v2026 = vunpack.c.l.b16 %v1960
      %v2027 = vunpack.c.l.b16 %v1961
      %v2028 = vunpack.c.l.b16 %v1962
      %v2029 = vunpack.c.l.b16 %v1963
      %v2030 = vunpack.c.l.b16 %v1964
      %v2031 = vunpack.c.l.b16 %v1965
      %v2032 = vunpack.c.l.b16 %v1966
      %v2033 = vunpack.c.l.b16 %v1967
      %v2034 = vunpack.c.l.b16 %v1968
      %v2035 = vunpack.c.l.b16 %v1969
      %v2036 = vunpack.c.l.b16 %v1970
      %v2037 = vunpack.c.l.b16 %v1971
      %v2038 = vunpack.c.l.b16 %v1972
      %v2039 = vunpack.c.l.b16 %v1973
      %v2040 = vunpack.c.l.b16 %v1974
      %v2041 = vunpack.c.l.b16 %v1975
      %v2042 = vunpack.c.l.b16 %v1976
      %v2043 = vunpack.c.l.b16 %v1977
      %v2044 = vunpack.c.l.b16 %v1978
      %v2045 = vunpack.c.l.b16 %v1979
      %v2046 = vunpack.c.l.b16 %v1980
      %v2047 = vunpack.c.l.b16 %v1981
      %v2048 = vunpack.c.l.b16 %v1982
      %v2049 = vpack.c.b16 %v2018, %v2017
      %v2050 = vpack.c.b16 %v2020, %v2019
      %v2051 = vpack.c.b16 %v2022, %v2021
      %v2052 = vpack.c.b16 %v2024, %v2023
      %v2053 = vpack.c.b16 %v2026, %v2025
      %v2054 = vpack.c.b16 %v2028, %v2027
      %v2055 = vpack.c.b16 %v2030, %v2029
      %v2056 = vpack.c.b16 %v2032, %v2031
      %v2057 = vpack.c.b16 %v2034, %v2033
      %v2058 = vpack.c.b16 %v2036, %v2035
      %v2059 = vpack.c.b16 %v2038, %v2037
      %v2060 = vpack.c.b16 %v2040, %v2039
      %v2061 = vpack.c.b16 %v2042, %v2041
      %v2062 = vpack.c.b16 %v2044, %v2043
      %v2063 = vpack.c.b16 %v2046, %v2045
      %v2064 = vpack.c.b16 %v2048, %v2047
      %v2066 = vsel %vm280, %v2049, 0
      %v2069 = vsel %vm280, %v2050, 0
      %v2072 = vsel %vm280, %v2051, 0
      %v2075 = vsel %vm280, %v2052, 0
      %v2078 = vsel %vm280, %v2053, 0
      %v2081 = vsel %vm280, %v2054, 0
      %v2084 = vsel %vm280, %v2055, 0
      %v2087 = vsel %vm280, %v2056, 0
      %v2090 = vsel %vm280, %v2057, 0
      %v2093 = vsel %vm280, %v2058, 0
      %v2096 = vsel %vm280, %v2059, 0
      %v2099 = vsel %vm280, %v2060, 0
      %v2102 = vsel %vm280, %v2061, 0
      %v2105 = vsel %vm280, %v2062, 0
      %v2108 = vsel %vm280, %v2063, 0
      %v2111 = vsel %vm280, %v2064, 0
      %v2114 = vsel %vm648, %v1984, 0
      %2116 = vmatpush.bf16.msra.mxu0 0
      %2117 = vmatpush.bf16.msra.mxu0 0
      %2118 = vmatpush.bf16.msra.mxu0 0
      %2119 = vmatpush.bf16.msra.mxu0 0
      %2120 = vmatpush.bf16.msra.mxu0 0
      %2121 = vmatpush.bf16.msra.mxu0 0
      %2122 = vmatpush.bf16.msra.mxu0 0
      %2123 = vmatpush.bf16.msra.mxu0 %v2114
      %2124 = vmatmul.bf16.gmra.mxu0 %v2066
      %v2125 = vpop.f32.mrf.mxu0
      %v2126 = vadd.f32 0.0, %v2125
      %v2127 = vpop.f32.mrf.mxu0
      %v2128 = vadd.f32 0.0, %v2127
      %2129 = vmatmul.bf16.gmra.mxu0 %v2069
      %v2130 = vpop.f32.mrf.mxu0
      %v2131 = vadd.f32 0.0, %v2130
      %v2132 = vpop.f32.mrf.mxu0
      %v2133 = vadd.f32 0.0, %v2132
      %2134 = vmatmul.bf16.gmra.mxu0 %v2072
      %v2135 = vpop.f32.mrf.mxu0
      %v2136 = vadd.f32 0.0, %v2135
      %v2137 = vpop.f32.mrf.mxu0
      %v2138 = vadd.f32 0.0, %v2137
      %2139 = vmatmul.bf16.gmra.mxu0 %v2075
      %v2140 = vpop.f32.mrf.mxu0
      %v2141 = vadd.f32 0.0, %v2140
      %v2142 = vpop.f32.mrf.mxu0
      %v2143 = vadd.f32 0.0, %v2142
      %2144 = vmatmul.bf16.gmra.mxu0 %v2078
      %v2145 = vpop.f32.mrf.mxu0
      %v2146 = vadd.f32 0.0, %v2145
      %v2147 = vpop.f32.mrf.mxu0
      %v2148 = vadd.f32 0.0, %v2147
      %2149 = vmatmul.bf16.gmra.mxu0 %v2081
      %v2150 = vpop.f32.mrf.mxu0
      %v2151 = vadd.f32 0.0, %v2150
      %v2152 = vpop.f32.mrf.mxu0
      %v2153 = vadd.f32 0.0, %v2152
      %2154 = vmatmul.bf16.gmra.mxu0 %v2084
      %v2155 = vpop.f32.mrf.mxu0
      %v2156 = vadd.f32 0.0, %v2155
      %v2157 = vpop.f32.mrf.mxu0
      %v2158 = vadd.f32 0.0, %v2157
      %2159 = vmatmul.bf16.gmra.mxu0 %v2087
      %v2160 = vpop.f32.mrf.mxu0
      %v2161 = vadd.f32 0.0, %v2160
      %v2162 = vpop.f32.mrf.mxu0
      %v2163 = vadd.f32 0.0, %v2162
      %2164 = vmatmul.bf16.gmra.mxu0 %v2090
      %v2165 = vpop.f32.mrf.mxu0
      %v2166 = vadd.f32 0.0, %v2165
      %v2167 = vpop.f32.mrf.mxu0
      %v2168 = vadd.f32 0.0, %v2167
      %2169 = vmatmul.bf16.gmra.mxu0 %v2093
      %v2170 = vpop.f32.mrf.mxu0
      %v2171 = vadd.f32 0.0, %v2170
      %v2172 = vpop.f32.mrf.mxu0
      %v2173 = vadd.f32 0.0, %v2172
      %2174 = vmatmul.bf16.gmra.mxu0 %v2096
      %v2175 = vpop.f32.mrf.mxu0
      %v2176 = vadd.f32 0.0, %v2175
      %v2177 = vpop.f32.mrf.mxu0
      %v2178 = vadd.f32 0.0, %v2177
      %2179 = vmatmul.bf16.gmra.mxu0 %v2099
      %v2180 = vpop.f32.mrf.mxu0
      %v2181 = vadd.f32 0.0, %v2180
      %v2182 = vpop.f32.mrf.mxu0
      %v2183 = vadd.f32 0.0, %v2182
      %2184 = vmatmul.bf16.gmra.mxu0 %v2102
      %v2185 = vpop.f32.mrf.mxu0
      %v2186 = vadd.f32 0.0, %v2185
      %v2187 = vpop.f32.mrf.mxu0
      %v2188 = vadd.f32 0.0, %v2187
      %2189 = vmatmul.bf16.gmra.mxu0 %v2105
      %v2190 = vpop.f32.mrf.mxu0
      %v2191 = vadd.f32 0.0, %v2190
      %v2192 = vpop.f32.mrf.mxu0
      %v2193 = vadd.f32 0.0, %v2192
      %2194 = vmatmul.bf16.gmra.mxu0 %v2108
      %v2195 = vpop.f32.mrf.mxu0
      %v2196 = vadd.f32 0.0, %v2195
      %v2197 = vpop.f32.mrf.mxu0
      %v2198 = vadd.f32 0.0, %v2197
      %2199 = vmatmul.bf16.gmra.mxu0 %v2111
      %v2200 = vpop.f32.mrf.mxu0
      %v2201 = vadd.f32 0.0, %v2200
      %v2202 = vpop.f32.mrf.mxu0
      %v2203 = vadd.f32 0.0, %v2202
      %2204 = vdwg.mxu0
      %v2205 = vld [vmem:[#allocation4] sm:$0xff]
      %v2206 = vld [vmem:[#allocation4 + $0x8] sm:$0xff]
      %v2207 = vld [vmem:[#allocation4 + $0x10] sm:$0xff]
      %v2208 = vld [vmem:[#allocation4 + $0x18] sm:$0xff]
      %v2209 = vld [vmem:[#allocation4 + $0x20] sm:$0xff]
      %v2210 = vld [vmem:[#allocation4 + $0x28] sm:$0xff]
      %v2211 = vld [vmem:[#allocation4 + $0x30] sm:$0xff]
      %v2212 = vld [vmem:[#allocation4 + $0x38] sm:$0xff]
      %v2213 = vld [vmem:[#allocation4 + $0x40] sm:$0xff]
      %v2214 = vld [vmem:[#allocation4 + $0x48] sm:$0xff]
      %v2215 = vld [vmem:[#allocation4 + $0x50] sm:$0xff]
      %v2216 = vld [vmem:[#allocation4 + $0x58] sm:$0xff]
      %v2217 = vld [vmem:[#allocation4 + $0x60] sm:$0xff]
      %v2218 = vld [vmem:[#allocation4 + $0x68] sm:$0xff]
      %v2219 = vld [vmem:[#allocation4 + $0x70] sm:$0xff]
      %v2220 = vld [vmem:[#allocation4 + $0x78] sm:$0xff]
      %v2221 = vld [vmem:[#allocation4 + $0x80] sm:$0xff]
      %v2222 = vld [vmem:[#allocation4 + $0x88] sm:$0xff]
      %v2223 = vld [vmem:[#allocation4 + $0x90] sm:$0xff]
      %v2224 = vld [vmem:[#allocation4 + $0x98] sm:$0xff]
      %v2225 = vld [vmem:[#allocation4 + $0xa0] sm:$0xff]
      %v2226 = vld [vmem:[#allocation4 + $0xa8] sm:$0xff]
      %v2227 = vld [vmem:[#allocation4 + $0xb0] sm:$0xff]
      %v2228 = vld [vmem:[#allocation4 + $0xb8] sm:$0xff]
      %v2229 = vld [vmem:[#allocation4 + $0xc0] sm:$0xff]
      %v2230 = vld [vmem:[#allocation4 + $0xc8] sm:$0xff]
      %v2231 = vld [vmem:[#allocation4 + $0xd0] sm:$0xff]
      %v2232 = vld [vmem:[#allocation4 + $0xd8] sm:$0xff]
      %v2233 = vld [vmem:[#allocation4 + $0xe0] sm:$0xff]
      %v2234 = vld [vmem:[#allocation4 + $0xe8] sm:$0xff]
      %v2235 = vld [vmem:[#allocation4 + $0xf0] sm:$0xff]
      %v2236 = vld [vmem:[#allocation4 + $0xf8] sm:$0xff]
      %v2237 = vadd.f32 %v2205, %v2126
      %v2238 = vadd.f32 %v2206, %v2128
      %v2239 = vadd.f32 %v2207, %v2131
      %v2240 = vadd.f32 %v2208, %v2133
      %v2241 = vadd.f32 %v2209, %v2136
      %v2242 = vadd.f32 %v2210, %v2138
      %v2243 = vadd.f32 %v2211, %v2141
      %v2244 = vadd.f32 %v2212, %v2143
      %v2245 = vadd.f32 %v2213, %v2146
      %v2246 = vadd.f32 %v2214, %v2148
      %v2247 = vadd.f32 %v2215, %v2151
      %v2248 = vadd.f32 %v2216, %v2153
      %v2249 = vadd.f32 %v2217, %v2156
      %v2250 = vadd.f32 %v2218, %v2158
      %v2251 = vadd.f32 %v2219, %v2161
      %v2252 = vadd.f32 %v2220, %v2163
      %v2253 = vadd.f32 %v2221, %v2166
      %v2254 = vadd.f32 %v2222, %v2168
      %v2255 = vadd.f32 %v2223, %v2171
      %v2256 = vadd.f32 %v2224, %v2173
      %v2257 = vadd.f32 %v2225, %v2176
      %v2258 = vadd.f32 %v2226, %v2178
      %v2259 = vadd.f32 %v2227, %v2181
      %v2260 = vadd.f32 %v2228, %v2183
      %v2261 = vadd.f32 %v2229, %v2186
      %v2262 = vadd.f32 %v2230, %v2188
      %v2263 = vadd.f32 %v2231, %v2191
      %v2264 = vadd.f32 %v2232, %v2193
      %v2265 = vadd.f32 %v2233, %v2196
      %v2266 = vadd.f32 %v2234, %v2198
      %v2267 = vadd.f32 %v2235, %v2201
      %v2268 = vadd.f32 %v2236, %v2203
      %2269 = vst [vmem:[#allocation4] sm:$0xff] %v2237
      %2270 = vst [vmem:[#allocation4 + $0x8] sm:$0xff] %v2238
      %2271 = vst [vmem:[#allocation4 + $0x10] sm:$0xff] %v2239
      %2272 = vst [vmem:[#allocation4 + $0x18] sm:$0xff] %v2240
      %2273 = vst [vmem:[#allocation4 + $0x20] sm:$0xff] %v2241
      %2274 = vst [vmem:[#allocation4 + $0x28] sm:$0xff] %v2242
      %2275 = vst [vmem:[#allocation4 + $0x30] sm:$0xff] %v2243
      %2276 = vst [vmem:[#allocation4 + $0x38] sm:$0xff] %v2244
      %2277 = vst [vmem:[#allocation4 + $0x40] sm:$0xff] %v2245
      %2278 = vst [vmem:[#allocation4 + $0x48] sm:$0xff] %v2246
      %2279 = vst [vmem:[#allocation4 + $0x50] sm:$0xff] %v2247
      %2280 = vst [vmem:[#allocation4 + $0x58] sm:$0xff] %v2248
      %2281 = vst [vmem:[#allocation4 + $0x60] sm:$0xff] %v2249
      %2282 = vst [vmem:[#allocation4 + $0x68] sm:$0xff] %v2250
      %2283 = vst [vmem:[#allocation4 + $0x70] sm:$0xff] %v2251
      %2284 = vst [vmem:[#allocation4 + $0x78] sm:$0xff] %v2252
      %2285 = vst [vmem:[#allocation4 + $0x80] sm:$0xff] %v2253
      %2286 = vst [vmem:[#allocation4 + $0x88] sm:$0xff] %v2254
      %2287 = vst [vmem:[#allocation4 + $0x90] sm:$0xff] %v2255
      %2288 = vst [vmem:[#allocation4 + $0x98] sm:$0xff] %v2256
      %2289 = vst [vmem:[#allocation4 + $0xa0] sm:$0xff] %v2257
      %2290 = vst [vmem:[#allocation4 + $0xa8] sm:$0xff] %v2258
      %2291 = vst [vmem:[#allocation4 + $0xb0] sm:$0xff] %v2259
      %2292 = vst [vmem:[#allocation4 + $0xb8] sm:$0xff] %v2260
      %2293 = vst [vmem:[#allocation4 + $0xc0] sm:$0xff] %v2261
      %2294 = vst [vmem:[#allocation4 + $0xc8] sm:$0xff] %v2262
      %2295 = vst [vmem:[#allocation4 + $0xd0] sm:$0xff] %v2263
      %2296 = vst [vmem:[#allocation4 + $0xd8] sm:$0xff] %v2264
      %2297 = vst [vmem:[#allocation4 + $0xe0] sm:$0xff] %v2265
      %2298 = vst [vmem:[#allocation4 + $0xe8] sm:$0xff] %v2266
      %2299 = vst [vmem:[#allocation4 + $0xf0] sm:$0xff] %v2267
      %2300 = vst [vmem:[#allocation4 + $0xf8] sm:$0xff] %v2268
      %v2301 = vld [vmem:[%s422 + $0x2] sm:$0xff]
      %v2302 = vld [vmem:[%s422 + $0xa] sm:$0xff]
      %v2303 = vld [vmem:[%s422 + $0x1a] sm:$0xff]
      %v2304 = vld [vmem:[%s422 + $0x22] sm:$0xff]
      %v2305 = vld [vmem:[%s422 + $0x32] sm:$0xff]
      %v2306 = vld [vmem:[%s422 + $0x3a] sm:$0xff]
      %v2307 = vld [vmem:[%s422 + $0x4a] sm:$0xff]
      %v2308 = vld [vmem:[%s422 + $0x52] sm:$0xff]
      %v2309 = vld [vmem:[%s422 + $0x62] sm:$0xff]
      %v2310 = vld [vmem:[%s422 + $0x6a] sm:$0xff]
      %v2311 = vld [vmem:[%s422 + $0x7a] sm:$0xff]
      %v2312 = vld [vmem:[%s422 + $0x82] sm:$0xff]
      %v2313 = vld [vmem:[%s422 + $0x92] sm:$0xff]
      %v2314 = vld [vmem:[%s422 + $0x9a] sm:$0xff]
      %v2315 = vld [vmem:[%s422 + $0xaa] sm:$0xff]
      %v2316 = vld [vmem:[%s422 + $0xb2] sm:$0xff]
      %v2317 = vld [vmem:[%s422 + $0xc2] sm:$0xff]
      %v2318 = vld [vmem:[%s422 + $0xca] sm:$0xff]
      %v2319 = vld [vmem:[%s422 + $0xda] sm:$0xff]
      %v2320 = vld [vmem:[%s422 + $0xe2] sm:$0xff]
      %v2321 = vld [vmem:[%s422 + $0xf2] sm:$0xff]
      %v2322 = vld [vmem:[%s422 + $0xfa] sm:$0xff]
      %v2323 = vld [vmem:[%s422 + $0x10a] sm:$0xff]
      %v2324 = vld [vmem:[%s422 + $0x112] sm:$0xff]
      %v2325 = vld [vmem:[%s422 + $0x122] sm:$0xff]
      %v2326 = vld [vmem:[%s422 + $0x12a] sm:$0xff]
      %v2327 = vld [vmem:[%s422 + $0x13a] sm:$0xff]
      %v2328 = vld [vmem:[%s422 + $0x142] sm:$0xff]
      %v2329 = vld [vmem:[%s422 + $0x152] sm:$0xff]
      %v2330 = vld [vmem:[%s422 + $0x15a] sm:$0xff]
      %v2331 = vld [vmem:[%s422 + $0x16a] sm:$0xff]
      %v2332 = vld [vmem:[%s422 + $0x172] sm:$0xff]
      %v2333 = vpack.c.bf16 %v2301, %v2301
      %v2334 = vpack.c.bf16 %v2302, %v2302
      %v2335 = vpack.c.bf16 %v2303, %v2303
      %v2336 = vpack.c.bf16 %v2304, %v2304
      %v2337 = vpack.c.bf16 %v2305, %v2305
      %v2338 = vpack.c.bf16 %v2306, %v2306
      %v2339 = vpack.c.bf16 %v2307, %v2307
      %v2340 = vpack.c.bf16 %v2308, %v2308
      %v2341 = vpack.c.bf16 %v2309, %v2309
      %v2342 = vpack.c.bf16 %v2310, %v2310
      %v2343 = vpack.c.bf16 %v2311, %v2311
      %v2344 = vpack.c.bf16 %v2312, %v2312
      %v2345 = vpack.c.bf16 %v2313, %v2313
      %v2346 = vpack.c.bf16 %v2314, %v2314
      %v2347 = vpack.c.bf16 %v2315, %v2315
      %v2348 = vpack.c.bf16 %v2316, %v2316
      %v2349 = vpack.c.bf16 %v2317, %v2317
      %v2350 = vpack.c.bf16 %v2318, %v2318
      %v2351 = vpack.c.bf16 %v2319, %v2319
      %v2352 = vpack.c.bf16 %v2320, %v2320
      %v2353 = vpack.c.bf16 %v2321, %v2321
      %v2354 = vpack.c.bf16 %v2322, %v2322
      %v2355 = vpack.c.bf16 %v2323, %v2323
      %v2356 = vpack.c.bf16 %v2324, %v2324
      %v2357 = vpack.c.bf16 %v2325, %v2325
      %v2358 = vpack.c.bf16 %v2326, %v2326
      %v2359 = vpack.c.bf16 %v2327, %v2327
      %v2360 = vpack.c.bf16 %v2328, %v2328
      %v2361 = vpack.c.bf16 %v2329, %v2329
      %v2362 = vpack.c.bf16 %v2330, %v2330
      %v2363 = vpack.c.bf16 %v2331, %v2331
      %v2364 = vpack.c.bf16 %v2332, %v2332
      %s2365 = scalar_lea.vmem %s1, 10
      %v2366 = vld [vmem:[%s2365] sm:$0x3]
      %v2399 = vunpack.c.l.b16 %v2333
      %v2400 = vunpack.c.l.b16 %v2334
      %v2401 = vunpack.c.l.b16 %v2335
      %v2402 = vunpack.c.l.b16 %v2336
      %v2403 = vunpack.c.l.b16 %v2337
      %v2404 = vunpack.c.l.b16 %v2338
      %v2405 = vunpack.c.l.b16 %v2339
      %v2406 = vunpack.c.l.b16 %v2340
      %v2407 = vunpack.c.l.b16 %v2341
      %v2408 = vunpack.c.l.b16 %v2342
      %v2409 = vunpack.c.l.b16 %v2343
      %v2410 = vunpack.c.l.b16 %v2344
      %v2411 = vunpack.c.l.b16 %v2345
      %v2412 = vunpack.c.l.b16 %v2346
      %v2413 = vunpack.c.l.b16 %v2347
      %v2414 = vunpack.c.l.b16 %v2348
      %v2415 = vunpack.c.l.b16 %v2349
      %v2416 = vunpack.c.l.b16 %v2350
      %v2417 = vunpack.c.l.b16 %v2351
      %v2418 = vunpack.c.l.b16 %v2352
      %v2419 = vunpack.c.l.b16 %v2353
      %v2420 = vunpack.c.l.b16 %v2354
      %v2421 = vunpack.c.l.b16 %v2355
      %v2422 = vunpack.c.l.b16 %v2356
      %v2423 = vunpack.c.l.b16 %v2357
      %v2424 = vunpack.c.l.b16 %v2358
      %v2425 = vunpack.c.l.b16 %v2359
      %v2426 = vunpack.c.l.b16 %v2360
      %v2427 = vunpack.c.l.b16 %v2361
      %v2428 = vunpack.c.l.b16 %v2362
      %v2429 = vunpack.c.l.b16 %v2363
      %v2430 = vunpack.c.l.b16 %v2364
      %v2431 = vpack.c.b16 %v2400, %v2399
      %v2432 = vpack.c.b16 %v2402, %v2401
      %v2433 = vpack.c.b16 %v2404, %v2403
      %v2434 = vpack.c.b16 %v2406, %v2405
      %v2435 = vpack.c.b16 %v2408, %v2407
      %v2436 = vpack.c.b16 %v2410, %v2409
      %v2437 = vpack.c.b16 %v2412, %v2411
      %v2438 = vpack.c.b16 %v2414, %v2413
      %v2439 = vpack.c.b16 %v2416, %v2415
      %v2440 = vpack.c.b16 %v2418, %v2417
      %v2441 = vpack.c.b16 %v2420, %v2419
      %v2442 = vpack.c.b16 %v2422, %v2421
      %v2443 = vpack.c.b16 %v2424, %v2423
      %v2444 = vpack.c.b16 %v2426, %v2425
      %v2445 = vpack.c.b16 %v2428, %v2427
      %v2446 = vpack.c.b16 %v2430, %v2429
      %v2448 = vsel %vm280, %v2431, 0
      %v2451 = vsel %vm280, %v2432, 0
      %v2454 = vsel %vm280, %v2433, 0
      %v2457 = vsel %vm280, %v2434, 0
      %v2460 = vsel %vm280, %v2435, 0
      %v2463 = vsel %vm280, %v2436, 0
      %v2466 = vsel %vm280, %v2437, 0
      %v2469 = vsel %vm280, %v2438, 0
      %v2472 = vsel %vm280, %v2439, 0
      %v2475 = vsel %vm280, %v2440, 0
      %v2478 = vsel %vm280, %v2441, 0
      %v2481 = vsel %vm280, %v2442, 0
      %v2484 = vsel %vm280, %v2443, 0
      %v2487 = vsel %vm280, %v2444, 0
      %v2490 = vsel %vm280, %v2445, 0
      %v2493 = vsel %vm280, %v2446, 0
      %v2496 = vsel %vm648, %v2366, 0
      %2498 = vmatpush.bf16.msra.mxu0 0
      %2499 = vmatpush.bf16.msra.mxu0 0
      %2500 = vmatpush.bf16.msra.mxu0 0
      %2501 = vmatpush.bf16.msra.mxu0 0
      %2502 = vmatpush.bf16.msra.mxu0 0
      %2503 = vmatpush.bf16.msra.mxu0 0
      %2504 = vmatpush.bf16.msra.mxu0 0
      %2505 = vmatpush.bf16.msra.mxu0 %v2496
      %2506 = vmatmul.bf16.gmra.mxu0 %v2448
      %v2507 = vpop.f32.mrf.mxu0
      %v2508 = vadd.f32 0.0, %v2507
      %v2509 = vpop.f32.mrf.mxu0
      %v2510 = vadd.f32 0.0, %v2509
      %2511 = vmatmul.bf16.gmra.mxu0 %v2451
      %v2512 = vpop.f32.mrf.mxu0
      %v2513 = vadd.f32 0.0, %v2512
      %v2514 = vpop.f32.mrf.mxu0
      %v2515 = vadd.f32 0.0, %v2514
      %2516 = vmatmul.bf16.gmra.mxu0 %v2454
      %v2517 = vpop.f32.mrf.mxu0
      %v2518 = vadd.f32 0.0, %v2517
      %v2519 = vpop.f32.mrf.mxu0
      %v2520 = vadd.f32 0.0, %v2519
      %2521 = vmatmul.bf16.gmra.mxu0 %v2457
      %v2522 = vpop.f32.mrf.mxu0
      %v2523 = vadd.f32 0.0, %v2522
      %v2524 = vpop.f32.mrf.mxu0
      %v2525 = vadd.f32 0.0, %v2524
      %2526 = vmatmul.bf16.gmra.mxu0 %v2460
      %v2527 = vpop.f32.mrf.mxu0
      %v2528 = vadd.f32 0.0, %v2527
      %v2529 = vpop.f32.mrf.mxu0
      %v2530 = vadd.f32 0.0, %v2529
      %2531 = vmatmul.bf16.gmra.mxu0 %v2463
      %v2532 = vpop.f32.mrf.mxu0
      %v2533 = vadd.f32 0.0, %v2532
      %v2534 = vpop.f32.mrf.mxu0
      %v2535 = vadd.f32 0.0, %v2534
      %2536 = vmatmul.bf16.gmra.mxu0 %v2466
      %v2537 = vpop.f32.mrf.mxu0
      %v2538 = vadd.f32 0.0, %v2537
      %v2539 = vpop.f32.mrf.mxu0
      %v2540 = vadd.f32 0.0, %v2539
      %2541 = vmatmul.bf16.gmra.mxu0 %v2469
      %v2542 = vpop.f32.mrf.mxu0
      %v2543 = vadd.f32 0.0, %v2542
      %v2544 = vpop.f32.mrf.mxu0
      %v2545 = vadd.f32 0.0, %v2544
      %2546 = vmatmul.bf16.gmra.mxu0 %v2472
      %v2547 = vpop.f32.mrf.mxu0
      %v2548 = vadd.f32 0.0, %v2547
      %v2549 = vpop.f32.mrf.mxu0
      %v2550 = vadd.f32 0.0, %v2549
      %2551 = vmatmul.bf16.gmra.mxu0 %v2475
      %v2552 = vpop.f32.mrf.mxu0
      %v2553 = vadd.f32 0.0, %v2552
      %v2554 = vpop.f32.mrf.mxu0
      %v2555 = vadd.f32 0.0, %v2554
      %2556 = vmatmul.bf16.gmra.mxu0 %v2478
      %v2557 = vpop.f32.mrf.mxu0
      %v2558 = vadd.f32 0.0, %v2557
      %v2559 = vpop.f32.mrf.mxu0
      %v2560 = vadd.f32 0.0, %v2559
      %2561 = vmatmul.bf16.gmra.mxu0 %v2481
      %v2562 = vpop.f32.mrf.mxu0
      %v2563 = vadd.f32 0.0, %v2562
      %v2564 = vpop.f32.mrf.mxu0
      %v2565 = vadd.f32 0.0, %v2564
      %2566 = vmatmul.bf16.gmra.mxu0 %v2484
      %v2567 = vpop.f32.mrf.mxu0
      %v2568 = vadd.f32 0.0, %v2567
      %v2569 = vpop.f32.mrf.mxu0
      %v2570 = vadd.f32 0.0, %v2569
      %2571 = vmatmul.bf16.gmra.mxu0 %v2487
      %v2572 = vpop.f32.mrf.mxu0
      %v2573 = vadd.f32 0.0, %v2572
      %v2574 = vpop.f32.mrf.mxu0
      %v2575 = vadd.f32 0.0, %v2574
      %2576 = vmatmul.bf16.gmra.mxu0 %v2490
      %v2577 = vpop.f32.mrf.mxu0
      %v2578 = vadd.f32 0.0, %v2577
      %v2579 = vpop.f32.mrf.mxu0
      %v2580 = vadd.f32 0.0, %v2579
      %2581 = vmatmul.bf16.gmra.mxu0 %v2493
      %v2582 = vpop.f32.mrf.mxu0
      %v2583 = vadd.f32 0.0, %v2582
      %v2584 = vpop.f32.mrf.mxu0
      %v2585 = vadd.f32 0.0, %v2584
      %2586 = vdwg.mxu0
      %v2587 = vld [vmem:[#allocation4] sm:$0xff]
      %v2588 = vld [vmem:[#allocation4 + $0x8] sm:$0xff]
      %v2589 = vld [vmem:[#allocation4 + $0x10] sm:$0xff]
      %v2590 = vld [vmem:[#allocation4 + $0x18] sm:$0xff]
      %v2591 = vld [vmem:[#allocation4 + $0x20] sm:$0xff]
      %v2592 = vld [vmem:[#allocation4 + $0x28] sm:$0xff]
      %v2593 = vld [vmem:[#allocation4 + $0x30] sm:$0xff]
      %v2594 = vld [vmem:[#allocation4 + $0x38] sm:$0xff]
      %v2595 = vld [vmem:[#allocation4 + $0x40] sm:$0xff]
      %v2596 = vld [vmem:[#allocation4 + $0x48] sm:$0xff]
      %v2597 = vld [vmem:[#allocation4 + $0x50] sm:$0xff]
      %v2598 = vld [vmem:[#allocation4 + $0x58] sm:$0xff]
      %v2599 = vld [vmem:[#allocation4 + $0x60] sm:$0xff]
      %v2600 = vld [vmem:[#allocation4 + $0x68] sm:$0xff]
      %v2601 = vld [vmem:[#allocation4 + $0x70] sm:$0xff]
      %v2602 = vld [vmem:[#allocation4 + $0x78] sm:$0xff]
      %v2603 = vld [vmem:[#allocation4 + $0x80] sm:$0xff]
      %v2604 = vld [vmem:[#allocation4 + $0x88] sm:$0xff]
      %v2605 = vld [vmem:[#allocation4 + $0x90] sm:$0xff]
      %v2606 = vld [vmem:[#allocation4 + $0x98] sm:$0xff]
      %v2607 = vld [vmem:[#allocation4 + $0xa0] sm:$0xff]
      %v2608 = vld [vmem:[#allocation4 + $0xa8] sm:$0xff]
      %v2609 = vld [vmem:[#allocation4 + $0xb0] sm:$0xff]
      %v2610 = vld [vmem:[#allocation4 + $0xb8] sm:$0xff]
      %v2611 = vld [vmem:[#allocation4 + $0xc0] sm:$0xff]
      %v2612 = vld [vmem:[#allocation4 + $0xc8] sm:$0xff]
      %v2613 = vld [vmem:[#allocation4 + $0xd0] sm:$0xff]
      %v2614 = vld [vmem:[#allocation4 + $0xd8] sm:$0xff]
      %v2615 = vld [vmem:[#allocation4 + $0xe0] sm:$0xff]
      %v2616 = vld [vmem:[#allocation4 + $0xe8] sm:$0xff]
      %v2617 = vld [vmem:[#allocation4 + $0xf0] sm:$0xff]
      %v2618 = vld [vmem:[#allocation4 + $0xf8] sm:$0xff]
      %v2619 = vadd.f32 %v2587, %v2508
      %v2620 = vadd.f32 %v2588, %v2510
      %v2621 = vadd.f32 %v2589, %v2513
      %v2622 = vadd.f32 %v2590, %v2515
      %v2623 = vadd.f32 %v2591, %v2518
      %v2624 = vadd.f32 %v2592, %v2520
      %v2625 = vadd.f32 %v2593, %v2523
      %v2626 = vadd.f32 %v2594, %v2525
      %v2627 = vadd.f32 %v2595, %v2528
      %v2628 = vadd.f32 %v2596, %v2530
      %v2629 = vadd.f32 %v2597, %v2533
      %v2630 = vadd.f32 %v2598, %v2535
      %v2631 = vadd.f32 %v2599, %v2538
      %v2632 = vadd.f32 %v2600, %v2540
      %v2633 = vadd.f32 %v2601, %v2543
      %v2634 = vadd.f32 %v2602, %v2545
      %v2635 = vadd.f32 %v2603, %v2548
      %v2636 = vadd.f32 %v2604, %v2550
      %v2637 = vadd.f32 %v2605, %v2553
      %v2638 = vadd.f32 %v2606, %v2555
      %v2639 = vadd.f32 %v2607, %v2558
      %v2640 = vadd.f32 %v2608, %v2560
      %v2641 = vadd.f32 %v2609, %v2563
      %v2642 = vadd.f32 %v2610, %v2565
      %v2643 = vadd.f32 %v2611, %v2568
      %v2644 = vadd.f32 %v2612, %v2570
      %v2645 = vadd.f32 %v2613, %v2573
      %v2646 = vadd.f32 %v2614, %v2575
      %v2647 = vadd.f32 %v2615, %v2578
      %v2648 = vadd.f32 %v2616, %v2580
      %v2649 = vadd.f32 %v2617, %v2583
      %v2650 = vadd.f32 %v2618, %v2585
      %2651 = vst [vmem:[#allocation4] sm:$0xff] %v2619
      %2652 = vst [vmem:[#allocation4 + $0x8] sm:$0xff] %v2620
      %2653 = vst [vmem:[#allocation4 + $0x10] sm:$0xff] %v2621
      %2654 = vst [vmem:[#allocation4 + $0x18] sm:$0xff] %v2622
      %2655 = vst [vmem:[#allocation4 + $0x20] sm:$0xff] %v2623
      %2656 = vst [vmem:[#allocation4 + $0x28] sm:$0xff] %v2624
      %2657 = vst [vmem:[#allocation4 + $0x30] sm:$0xff] %v2625
      %2658 = vst [vmem:[#allocation4 + $0x38] sm:$0xff] %v2626
      %2659 = vst [vmem:[#allocation4 + $0x40] sm:$0xff] %v2627
      %2660 = vst [vmem:[#allocation4 + $0x48] sm:$0xff] %v2628
      %2661 = vst [vmem:[#allocation4 + $0x50] sm:$0xff] %v2629
      %2662 = vst [vmem:[#allocation4 + $0x58] sm:$0xff] %v2630
      %2663 = vst [vmem:[#allocation4 + $0x60] sm:$0xff] %v2631
      %2664 = vst [vmem:[#allocation4 + $0x68] sm:$0xff] %v2632
      %2665 = vst [vmem:[#allocation4 + $0x70] sm:$0xff] %v2633
      %2666 = vst [vmem:[#allocation4 + $0x78] sm:$0xff] %v2634
      %2667 = vst [vmem:[#allocation4 + $0x80] sm:$0xff] %v2635
      %2668 = vst [vmem:[#allocation4 + $0x88] sm:$0xff] %v2636
      %2669 = vst [vmem:[#allocation4 + $0x90] sm:$0xff] %v2637
      %2670 = vst [vmem:[#allocation4 + $0x98] sm:$0xff] %v2638
      %2671 = vst [vmem:[#allocation4 + $0xa0] sm:$0xff] %v2639
      %2672 = vst [vmem:[#allocation4 + $0xa8] sm:$0xff] %v2640
      %2673 = vst [vmem:[#allocation4 + $0xb0] sm:$0xff] %v2641
      %2674 = vst [vmem:[#allocation4 + $0xb8] sm:$0xff] %v2642
      %2675 = vst [vmem:[#allocation4 + $0xc0] sm:$0xff] %v2643
      %2676 = vst [vmem:[#allocation4 + $0xc8] sm:$0xff] %v2644
      %2677 = vst [vmem:[#allocation4 + $0xd0] sm:$0xff] %v2645
      %2678 = vst [vmem:[#allocation4 + $0xd8] sm:$0xff] %v2646
      %2679 = vst [vmem:[#allocation4 + $0xe0] sm:$0xff] %v2647
      %2680 = vst [vmem:[#allocation4 + $0xe8] sm:$0xff] %v2648
      %2681 = vst [vmem:[#allocation4 + $0xf0] sm:$0xff] %v2649
      %2682 = vst [vmem:[#allocation4 + $0xf8] sm:$0xff] %v2650
      %s2683 = scalar_lea.vmem [#allocation2], 48
      %v2684 = vld [vmem:[%s2683] sm:$0xff]
      %v2685 = vld [vmem:[%s2683 + $0x8] sm:$0xff]
      %v2686 = vld [vmem:[%s2683 + $0x18] sm:$0xff]
      %v2687 = vld [vmem:[%s2683 + $0x20] sm:$0xff]
      %v2688 = vld [vmem:[%s2683 + $0x30] sm:$0xff]
      %v2689 = vld [vmem:[%s2683 + $0x38] sm:$0xff]
      %v2690 = vld [vmem:[%s2683 + $0x48] sm:$0xff]
      %v2691 = vld [vmem:[%s2683 + $0x50] sm:$0xff]
      %v2692 = vld [vmem:[%s2683 + $0x60] sm:$0xff]
      %v2693 = vld [vmem:[%s2683 + $0x68] sm:$0xff]
      %v2694 = vld [vmem:[%s2683 + $0x78] sm:$0xff]
      %v2695 = vld [vmem:[%s2683 + $0x80] sm:$0xff]
      %v2696 = vld [vmem:[%s2683 + $0x90] sm:$0xff]
      %v2697 = vld [vmem:[%s2683 + $0x98] sm:$0xff]
      %v2698 = vld [vmem:[%s2683 + $0xa8] sm:$0xff]
      %v2699 = vld [vmem:[%s2683 + $0xb0] sm:$0xff]
      %v2700 = vld [vmem:[%s2683 + $0xc0] sm:$0xff]
      %v2701 = vld [vmem:[%s2683 + $0xc8] sm:$0xff]
      %v2702 = vld [vmem:[%s2683 + $0xd8] sm:$0xff]
      %v2703 = vld [vmem:[%s2683 + $0xe0] sm:$0xff]
      %v2704 = vld [vmem:[%s2683 + $0xf0] sm:$0xff]
      %v2705 = vld [vmem:[%s2683 + $0xf8] sm:$0xff]
      %v2706 = vld [vmem:[%s2683 + $0x108] sm:$0xff]
      %v2707 = vld [vmem:[%s2683 + $0x110] sm:$0xff]
      %v2708 = vld [vmem:[%s2683 + $0x120] sm:$0xff]
      %v2709 = vld [vmem:[%s2683 + $0x128] sm:$0xff]
      %v2710 = vld [vmem:[%s2683 + $0x138] sm:$0xff]
      %v2711 = vld [vmem:[%s2683 + $0x140] sm:$0xff]
      %v2712 = vld [vmem:[%s2683 + $0x150] sm:$0xff]
      %v2713 = vld [vmem:[%s2683 + $0x158] sm:$0xff]
      %v2714 = vld [vmem:[%s2683 + $0x168] sm:$0xff]
      %v2715 = vld [vmem:[%s2683 + $0x170] sm:$0xff]
      %v2716 = vpack.c.bf16 %v2684, %v2684
      %v2717 = vpack.c.bf16 %v2685, %v2685
      %v2718 = vpack.c.bf16 %v2686, %v2686
      %v2719 = vpack.c.bf16 %v2687, %v2687
      %v2720 = vpack.c.bf16 %v2688, %v2688
      %v2721 = vpack.c.bf16 %v2689, %v2689
      %v2722 = vpack.c.bf16 %v2690, %v2690
      %v2723 = vpack.c.bf16 %v2691, %v2691
      %v2724 = vpack.c.bf16 %v2692, %v2692
      %v2725 = vpack.c.bf16 %v2693, %v2693
      %v2726 = vpack.c.bf16 %v2694, %v2694
      %v2727 = vpack.c.bf16 %v2695, %v2695
      %v2728 = vpack.c.bf16 %v2696, %v2696
      %v2729 = vpack.c.bf16 %v2697, %v2697
      %v2730 = vpack.c.bf16 %v2698, %v2698
      %v2731 = vpack.c.bf16 %v2699, %v2699
      %v2732 = vpack.c.bf16 %v2700, %v2700
      %v2733 = vpack.c.bf16 %v2701, %v2701
      %v2734 = vpack.c.bf16 %v2702, %v2702
      %v2735 = vpack.c.bf16 %v2703, %v2703
      %v2736 = vpack.c.bf16 %v2704, %v2704
      %v2737 = vpack.c.bf16 %v2705, %v2705
      %v2738 = vpack.c.bf16 %v2706, %v2706
      %v2739 = vpack.c.bf16 %v2707, %v2707
      %v2740 = vpack.c.bf16 %v2708, %v2708
      %v2741 = vpack.c.bf16 %v2709, %v2709
      %v2742 = vpack.c.bf16 %v2710, %v2710
      %v2743 = vpack.c.bf16 %v2711, %v2711
      %v2744 = vpack.c.bf16 %v2712, %v2712
      %v2745 = vpack.c.bf16 %v2713, %v2713
      %v2746 = vpack.c.bf16 %v2714, %v2714
      %v2747 = vpack.c.bf16 %v2715, %v2715
      %s2748 = scalar_lea.vmem %s1, 12
      %v2749 = vld [vmem:[%s2748] sm:$0x3]
      %v2782 = vunpack.c.l.b16 %v2716
      %v2783 = vunpack.c.l.b16 %v2717
      %v2784 = vunpack.c.l.b16 %v2718
      %v2785 = vunpack.c.l.b16 %v2719
      %v2786 = vunpack.c.l.b16 %v2720
      %v2787 = vunpack.c.l.b16 %v2721
      %v2788 = vunpack.c.l.b16 %v2722
      %v2789 = vunpack.c.l.b16 %v2723
      %v2790 = vunpack.c.l.b16 %v2724
      %v2791 = vunpack.c.l.b16 %v2725
      %v2792 = vunpack.c.l.b16 %v2726
      %v2793 = vunpack.c.l.b16 %v2727
      %v2794 = vunpack.c.l.b16 %v2728
      %v2795 = vunpack.c.l.b16 %v2729
      %v2796 = vunpack.c.l.b16 %v2730
      %v2797 = vunpack.c.l.b16 %v2731
      %v2798 = vunpack.c.l.b16 %v2732
      %v2799 = vunpack.c.l.b16 %v2733
      %v2800 = vunpack.c.l.b16 %v2734
      %v2801 = vunpack.c.l.b16 %v2735
      %v2802 = vunpack.c.l.b16 %v2736
      %v2803 = vunpack.c.l.b16 %v2737
      %v2804 = vunpack.c.l.b16 %v2738
      %v2805 = vunpack.c.l.b16 %v2739
      %v2806 = vunpack.c.l.b16 %v2740
      %v2807 = vunpack.c.l.b16 %v2741
      %v2808 = vunpack.c.l.b16 %v2742
      %v2809 = vunpack.c.l.b16 %v2743
      %v2810 = vunpack.c.l.b16 %v2744
      %v2811 = vunpack.c.l.b16 %v2745
      %v2812 = vunpack.c.l.b16 %v2746
      %v2813 = vunpack.c.l.b16 %v2747
      %v2814 = vpack.c.b16 %v2783, %v2782
      %v2815 = vpack.c.b16 %v2785, %v2784
      %v2816 = vpack.c.b16 %v2787, %v2786
      %v2817 = vpack.c.b16 %v2789, %v2788
      %v2818 = vpack.c.b16 %v2791, %v2790
      %v2819 = vpack.c.b16 %v2793, %v2792
      %v2820 = vpack.c.b16 %v2795, %v2794
      %v2821 = vpack.c.b16 %v2797, %v2796
      %v2822 = vpack.c.b16 %v2799, %v2798
      %v2823 = vpack.c.b16 %v2801, %v2800
      %v2824 = vpack.c.b16 %v2803, %v2802
      %v2825 = vpack.c.b16 %v2805, %v2804
      %v2826 = vpack.c.b16 %v2807, %v2806
      %v2827 = vpack.c.b16 %v2809, %v2808
      %v2828 = vpack.c.b16 %v2811, %v2810
      %v2829 = vpack.c.b16 %v2813, %v2812
      %v2831 = vsel %vm280, %v2814, 0
      %v2834 = vsel %vm280, %v2815, 0
      %v2837 = vsel %vm280, %v2816, 0
      %v2840 = vsel %vm280, %v2817, 0
      %v2843 = vsel %vm280, %v2818, 0
      %v2846 = vsel %vm280, %v2819, 0
      %v2849 = vsel %vm280, %v2820, 0
      %v2852 = vsel %vm280, %v2821, 0
      %v2855 = vsel %vm280, %v2822, 0
      %v2858 = vsel %vm280, %v2823, 0
      %v2861 = vsel %vm280, %v2824, 0
      %v2864 = vsel %vm280, %v2825, 0
      %v2867 = vsel %vm280, %v2826, 0
      %v2870 = vsel %vm280, %v2827, 0
      %v2873 = vsel %vm280, %v2828, 0
      %v2876 = vsel %vm280, %v2829, 0
      %v2879 = vsel %vm648, %v2749, 0
      %2881 = vmatpush.bf16.msra.mxu0 0
      %2882 = vmatpush.bf16.msra.mxu0 0
      %2883 = vmatpush.bf16.msra.mxu0 0
      %2884 = vmatpush.bf16.msra.mxu0 0
      %2885 = vmatpush.bf16.msra.mxu0 0
      %2886 = vmatpush.bf16.msra.mxu0 0
      %2887 = vmatpush.bf16.msra.mxu0 0
      %2888 = vmatpush.bf16.msra.mxu0 %v2879
      %2889 = vmatmul.bf16.gmra.mxu0 %v2831
      %v2890 = vpop.f32.mrf.mxu0
      %v2891 = vadd.f32 0.0, %v2890
      %v2892 = vpop.f32.mrf.mxu0
      %v2893 = vadd.f32 0.0, %v2892
      %2894 = vmatmul.bf16.gmra.mxu0 %v2834
      %v2895 = vpop.f32.mrf.mxu0
      %v2896 = vadd.f32 0.0, %v2895
      %v2897 = vpop.f32.mrf.mxu0
      %v2898 = vadd.f32 0.0, %v2897
      %2899 = vmatmul.bf16.gmra.mxu0 %v2837
      %v2900 = vpop.f32.mrf.mxu0
      %v2901 = vadd.f32 0.0, %v2900
      %v2902 = vpop.f32.mrf.mxu0
      %v2903 = vadd.f32 0.0, %v2902
      %2904 = vmatmul.bf16.gmra.mxu0 %v2840
      %v2905 = vpop.f32.mrf.mxu0
      %v2906 = vadd.f32 0.0, %v2905
      %v2907 = vpop.f32.mrf.mxu0
      %v2908 = vadd.f32 0.0, %v2907
      %2909 = vmatmul.bf16.gmra.mxu0 %v2843
      %v2910 = vpop.f32.mrf.mxu0
      %v2911 = vadd.f32 0.0, %v2910
      %v2912 = vpop.f32.mrf.mxu0
      %v2913 = vadd.f32 0.0, %v2912
      %2914 = vmatmul.bf16.gmra.mxu0 %v2846
      %v2915 = vpop.f32.mrf.mxu0
      %v2916 = vadd.f32 0.0, %v2915
      %v2917 = vpop.f32.mrf.mxu0
      %v2918 = vadd.f32 0.0, %v2917
      %2919 = vmatmul.bf16.gmra.mxu0 %v2849
      %v2920 = vpop.f32.mrf.mxu0
      %v2921 = vadd.f32 0.0, %v2920
      %v2922 = vpop.f32.mrf.mxu0
      %v2923 = vadd.f32 0.0, %v2922
      %2924 = vmatmul.bf16.gmra.mxu0 %v2852
      %v2925 = vpop.f32.mrf.mxu0
      %v2926 = vadd.f32 0.0, %v2925
      %v2927 = vpop.f32.mrf.mxu0
      %v2928 = vadd.f32 0.0, %v2927
      %2929 = vmatmul.bf16.gmra.mxu0 %v2855
      %v2930 = vpop.f32.mrf.mxu0
      %v2931 = vadd.f32 0.0, %v2930
      %v2932 = vpop.f32.mrf.mxu0
      %v2933 = vadd.f32 0.0, %v2932
      %2934 = vmatmul.bf16.gmra.mxu0 %v2858
      %v2935 = vpop.f32.mrf.mxu0
      %v2936 = vadd.f32 0.0, %v2935
      %v2937 = vpop.f32.mrf.mxu0
      %v2938 = vadd.f32 0.0, %v2937
      %2939 = vmatmul.bf16.gmra.mxu0 %v2861
      %v2940 = vpop.f32.mrf.mxu0
      %v2941 = vadd.f32 0.0, %v2940
      %v2942 = vpop.f32.mrf.mxu0
      %v2943 = vadd.f32 0.0, %v2942
      %2944 = vmatmul.bf16.gmra.mxu0 %v2864
      %v2945 = vpop.f32.mrf.mxu0
      %v2946 = vadd.f32 0.0, %v2945
      %v2947 = vpop.f32.mrf.mxu0
      %v2948 = vadd.f32 0.0, %v2947
      %2949 = vmatmul.bf16.gmra.mxu0 %v2867
      %v2950 = vpop.f32.mrf.mxu0
      %v2951 = vadd.f32 0.0, %v2950
      %v2952 = vpop.f32.mrf.mxu0
      %v2953 = vadd.f32 0.0, %v2952
      %2954 = vmatmul.bf16.gmra.mxu0 %v2870
      %v2955 = vpop.f32.mrf.mxu0
      %v2956 = vadd.f32 0.0, %v2955
      %v2957 = vpop.f32.mrf.mxu0
      %v2958 = vadd.f32 0.0, %v2957
      %2959 = vmatmul.bf16.gmra.mxu0 %v2873
      %v2960 = vpop.f32.mrf.mxu0
      %v2961 = vadd.f32 0.0, %v2960
      %v2962 = vpop.f32.mrf.mxu0
      %v2963 = vadd.f32 0.0, %v2962
      %2964 = vmatmul.bf16.gmra.mxu0 %v2876
      %v2965 = vpop.f32.mrf.mxu0
      %v2966 = vadd.f32 0.0, %v2965
      %v2967 = vpop.f32.mrf.mxu0
      %v2968 = vadd.f32 0.0, %v2967
      %2969 = vdwg.mxu0
      %v2970 = vld [vmem:[#allocation4] sm:$0xff]
      %v2971 = vld [vmem:[#allocation4 + $0x8] sm:$0xff]
      %v2972 = vld [vmem:[#allocation4 + $0x10] sm:$0xff]
      %v2973 = vld [vmem:[#allocation4 + $0x18] sm:$0xff]
      %v2974 = vld [vmem:[#allocation4 + $0x20] sm:$0xff]
      %v2975 = vld [vmem:[#allocation4 + $0x28] sm:$0xff]
      %v2976 = vld [vmem:[#allocation4 + $0x30] sm:$0xff]
      %v2977 = vld [vmem:[#allocation4 + $0x38] sm:$0xff]
      %v2978 = vld [vmem:[#allocation4 + $0x40] sm:$0xff]
      %v2979 = vld [vmem:[#allocation4 + $0x48] sm:$0xff]
      %v2980 = vld [vmem:[#allocation4 + $0x50] sm:$0xff]
      %v2981 = vld [vmem:[#allocation4 + $0x58] sm:$0xff]
      %v2982 = vld [vmem:[#allocation4 + $0x60] sm:$0xff]
      %v2983 = vld [vmem:[#allocation4 + $0x68] sm:$0xff]
      %v2984 = vld [vmem:[#allocation4 + $0x70] sm:$0xff]
      %v2985 = vld [vmem:[#allocation4 + $0x78] sm:$0xff]
      %v2986 = vld [vmem:[#allocation4 + $0x80] sm:$0xff]
      %v2987 = vld [vmem:[#allocation4 + $0x88] sm:$0xff]
      %v2988 = vld [vmem:[#allocation4 + $0x90] sm:$0xff]
      %v2989 = vld [vmem:[#allocation4 + $0x98] sm:$0xff]
      %v2990 = vld [vmem:[#allocation4 + $0xa0] sm:$0xff]
      %v2991 = vld [vmem:[#allocation4 + $0xa8] sm:$0xff]
      %v2992 = vld [vmem:[#allocation4 + $0xb0] sm:$0xff]
      %v2993 = vld [vmem:[#allocation4 + $0xb8] sm:$0xff]
      %v2994 = vld [vmem:[#allocation4 + $0xc0] sm:$0xff]
      %v2995 = vld [vmem:[#allocation4 + $0xc8] sm:$0xff]
      %v2996 = vld [vmem:[#allocation4 + $0xd0] sm:$0xff]
      %v2997 = vld [vmem:[#allocation4 + $0xd8] sm:$0xff]
      %v2998 = vld [vmem:[#allocation4 + $0xe0] sm:$0xff]
      %v2999 = vld [vmem:[#allocation4 + $0xe8] sm:$0xff]
      %v3000 = vld [vmem:[#allocation4 + $0xf0] sm:$0xff]
      %v3001 = vld [vmem:[#allocation4 + $0xf8] sm:$0xff]
      %v3002 = vadd.f32 %v2970, %v2891
      %v3003 = vadd.f32 %v2971, %v2893
      %v3004 = vadd.f32 %v2972, %v2896
      %v3005 = vadd.f32 %v2973, %v2898
      %v3006 = vadd.f32 %v2974, %v2901
      %v3007 = vadd.f32 %v2975, %v2903
      %v3008 = vadd.f32 %v2976, %v2906
      %v3009 = vadd.f32 %v2977, %v2908
      %v3010 = vadd.f32 %v2978, %v2911
      %v3011 = vadd.f32 %v2979, %v2913
      %v3012 = vadd.f32 %v2980, %v2916
      %v3013 = vadd.f32 %v2981, %v2918
      %v3014 = vadd.f32 %v2982, %v2921
      %v3015 = vadd.f32 %v2983, %v2923
      %v3016 = vadd.f32 %v2984, %v2926
      %v3017 = vadd.f32 %v2985, %v2928
      %v3018 = vadd.f32 %v2986, %v2931
      %v3019 = vadd.f32 %v2987, %v2933
      %v3020 = vadd.f32 %v2988, %v2936
      %v3021 = vadd.f32 %v2989, %v2938
      %v3022 = vadd.f32 %v2990, %v2941
      %v3023 = vadd.f32 %v2991, %v2943
      %v3024 = vadd.f32 %v2992, %v2946
      %v3025 = vadd.f32 %v2993, %v2948
      %v3026 = vadd.f32 %v2994, %v2951
      %v3027 = vadd.f32 %v2995, %v2953
      %v3028 = vadd.f32 %v2996, %v2956
      %v3029 = vadd.f32 %v2997, %v2958
      %v3030 = vadd.f32 %v2998, %v2961
      %v3031 = vadd.f32 %v2999, %v2963
      %v3032 = vadd.f32 %v3000, %v2966
      %v3033 = vadd.f32 %v3001, %v2968
      %3034 = vst [vmem:[#allocation4] sm:$0xff] %v3002
      %3035 = vst [vmem:[#allocation4 + $0x8] sm:$0xff] %v3003
      %3036 = vst [vmem:[#allocation4 + $0x10] sm:$0xff] %v3004
      %3037 = vst [vmem:[#allocation4 + $0x18] sm:$0xff] %v3005
      %3038 = vst [vmem:[#allocation4 + $0x20] sm:$0xff] %v3006
      %3039 = vst [vmem:[#allocation4 + $0x28] sm:$0xff] %v3007
      %3040 = vst [vmem:[#allocation4 + $0x30] sm:$0xff] %v3008
      %3041 = vst [vmem:[#allocation4 + $0x38] sm:$0xff] %v3009
      %3042 = vst [vmem:[#allocation4 + $0x40] sm:$0xff] %v3010
      %3043 = vst [vmem:[#allocation4 + $0x48] sm:$0xff] %v3011
      %3044 = vst [vmem:[#allocation4 + $0x50] sm:$0xff] %v3012
      %3045 = vst [vmem:[#allocation4 + $0x58] sm:$0xff] %v3013
      %3046 = vst [vmem:[#allocation4 + $0x60] sm:$0xff] %v3014
      %3047 = vst [vmem:[#allocation4 + $0x68] sm:$0xff] %v3015
      %3048 = vst [vmem:[#allocation4 + $0x70] sm:$0xff] %v3016
      %3049 = vst [vmem:[#allocation4 + $0x78] sm:$0xff] %v3017
      %3050 = vst [vmem:[#allocation4 + $0x80] sm:$0xff] %v3018
      %3051 = vst [vmem:[#allocation4 + $0x88] sm:$0xff] %v3019
      %3052 = vst [vmem:[#allocation4 + $0x90] sm:$0xff] %v3020
      %3053 = vst [vmem:[#allocation4 + $0x98] sm:$0xff] %v3021
      %3054 = vst [vmem:[#allocation4 + $0xa0] sm:$0xff] %v3022
      %3055 = vst [vmem:[#allocation4 + $0xa8] sm:$0xff] %v3023
      %3056 = vst [vmem:[#allocation4 + $0xb0] sm:$0xff] %v3024
      %3057 = vst [vmem:[#allocation4 + $0xb8] sm:$0xff] %v3025
      %3058 = vst [vmem:[#allocation4 + $0xc0] sm:$0xff] %v3026
      %3059 = vst [vmem:[#allocation4 + $0xc8] sm:$0xff] %v3027
      %3060 = vst [vmem:[#allocation4 + $0xd0] sm:$0xff] %v3028
      %3061 = vst [vmem:[#allocation4 + $0xd8] sm:$0xff] %v3029
      %3062 = vst [vmem:[#allocation4 + $0xe0] sm:$0xff] %v3030
      %3063 = vst [vmem:[#allocation4 + $0xe8] sm:$0xff] %v3031
      %3064 = vst [vmem:[#allocation4 + $0xf0] sm:$0xff] %v3032
      %3065 = vst [vmem:[#allocation4 + $0xf8] sm:$0xff] %v3033
      %v3066 = vld [vmem:[%s2683 + $0x1] sm:$0xff]
      %v3067 = vld [vmem:[%s2683 + $0x9] sm:$0xff]
      %v3068 = vld [vmem:[%s2683 + $0x19] sm:$0xff]
      %v3069 = vld [vmem:[%s2683 + $0x21] sm:$0xff]
      %v3070 = vld [vmem:[%s2683 + $0x31] sm:$0xff]
      %v3071 = vld [vmem:[%s2683 + $0x39] sm:$0xff]
      %v3072 = vld [vmem:[%s2683 + $0x49] sm:$0xff]
      %v3073 = vld [vmem:[%s2683 + $0x51] sm:$0xff]
      %v3074 = vld [vmem:[%s2683 + $0x61] sm:$0xff]
      %v3075 = vld [vmem:[%s2683 + $0x69] sm:$0xff]
      %v3076 = vld [vmem:[%s2683 + $0x79] sm:$0xff]
      %v3077 = vld [vmem:[%s2683 + $0x81] sm:$0xff]
      %v3078 = vld [vmem:[%s2683 + $0x91] sm:$0xff]
      %v3079 = vld [vmem:[%s2683 + $0x99] sm:$0xff]
      %v3080 = vld [vmem:[%s2683 + $0xa9] sm:$0xff]
      %v3081 = vld [vmem:[%s2683 + $0xb1] sm:$0xff]
      %v3082 = vld [vmem:[%s2683 + $0xc1] sm:$0xff]
      %v3083 = vld [vmem:[%s2683 + $0xc9] sm:$0xff]
      %v3084 = vld [vmem:[%s2683 + $0xd9] sm:$0xff]
      %v3085 = vld [vmem:[%s2683 + $0xe1] sm:$0xff]
      %v3086 = vld [vmem:[%s2683 + $0xf1] sm:$0xff]
      %v3087 = vld [vmem:[%s2683 + $0xf9] sm:$0xff]
      %v3088 = vld [vmem:[%s2683 + $0x109] sm:$0xff]
      %v3089 = vld [vmem:[%s2683 + $0x111] sm:$0xff]
      %v3090 = vld [vmem:[%s2683 + $0x121] sm:$0xff]
      %v3091 = vld [vmem:[%s2683 + $0x129] sm:$0xff]
      %v3092 = vld [vmem:[%s2683 + $0x139] sm:$0xff]
      %v3093 = vld [vmem:[%s2683 + $0x141] sm:$0xff]
      %v3094 = vld [vmem:[%s2683 + $0x151] sm:$0xff]
      %v3095 = vld [vmem:[%s2683 + $0x159] sm:$0xff]
      %v3096 = vld [vmem:[%s2683 + $0x169] sm:$0xff]
      %v3097 = vld [vmem:[%s2683 + $0x171] sm:$0xff]
      %v3098 = vpack.c.bf16 %v3066, %v3066
      %v3099 = vpack.c.bf16 %v3067, %v3067
      %v3100 = vpack.c.bf16 %v3068, %v3068
      %v3101 = vpack.c.bf16 %v3069, %v3069
      %v3102 = vpack.c.bf16 %v3070, %v3070
      %v3103 = vpack.c.bf16 %v3071, %v3071
      %v3104 = vpack.c.bf16 %v3072, %v3072
      %v3105 = vpack.c.bf16 %v3073, %v3073
      %v3106 = vpack.c.bf16 %v3074, %v3074
      %v3107 = vpack.c.bf16 %v3075, %v3075
      %v3108 = vpack.c.bf16 %v3076, %v3076
      %v3109 = vpack.c.bf16 %v3077, %v3077
      %v3110 = vpack.c.bf16 %v3078, %v3078
      %v3111 = vpack.c.bf16 %v3079, %v3079
      %v3112 = vpack.c.bf16 %v3080, %v3080
      %v3113 = vpack.c.bf16 %v3081, %v3081
      %v3114 = vpack.c.bf16 %v3082, %v3082
      %v3115 = vpack.c.bf16 %v3083, %v3083
      %v3116 = vpack.c.bf16 %v3084, %v3084
      %v3117 = vpack.c.bf16 %v3085, %v3085
      %v3118 = vpack.c.bf16 %v3086, %v3086
      %v3119 = vpack.c.bf16 %v3087, %v3087
      %v3120 = vpack.c.bf16 %v3088, %v3088
      %v3121 = vpack.c.bf16 %v3089, %v3089
      %v3122 = vpack.c.bf16 %v3090, %v3090
      %v3123 = vpack.c.bf16 %v3091, %v3091
      %v3124 = vpack.c.bf16 %v3092, %v3092
      %v3125 = vpack.c.bf16 %v3093, %v3093
      %v3126 = vpack.c.bf16 %v3094, %v3094
      %v3127 = vpack.c.bf16 %v3095, %v3095
      %v3128 = vpack.c.bf16 %v3096, %v3096
      %v3129 = vpack.c.bf16 %v3097, %v3097
      %s3130 = scalar_lea.vmem %s1, 14
      %v3131 = vld [vmem:[%s3130] sm:$0x3]
      %v3164 = vunpack.c.l.b16 %v3098
      %v3165 = vunpack.c.l.b16 %v3099
      %v3166 = vunpack.c.l.b16 %v3100
      %v3167 = vunpack.c.l.b16 %v3101
      %v3168 = vunpack.c.l.b16 %v3102
      %v3169 = vunpack.c.l.b16 %v3103
      %v3170 = vunpack.c.l.b16 %v3104
      %v3171 = vunpack.c.l.b16 %v3105
      %v3172 = vunpack.c.l.b16 %v3106
      %v3173 = vunpack.c.l.b16 %v3107
      %v3174 = vunpack.c.l.b16 %v3108
      %v3175 = vunpack.c.l.b16 %v3109
      %v3176 = vunpack.c.l.b16 %v3110
      %v3177 = vunpack.c.l.b16 %v3111
      %v3178 = vunpack.c.l.b16 %v3112
      %v3179 = vunpack.c.l.b16 %v3113
      %v3180 = vunpack.c.l.b16 %v3114
      %v3181 = vunpack.c.l.b16 %v3115
      %v3182 = vunpack.c.l.b16 %v3116
      %v3183 = vunpack.c.l.b16 %v3117
      %v3184 = vunpack.c.l.b16 %v3118
      %v3185 = vunpack.c.l.b16 %v3119
      %v3186 = vunpack.c.l.b16 %v3120
      %v3187 = vunpack.c.l.b16 %v3121
      %v3188 = vunpack.c.l.b16 %v3122
      %v3189 = vunpack.c.l.b16 %v3123
      %v3190 = vunpack.c.l.b16 %v3124
      %v3191 = vunpack.c.l.b16 %v3125
      %v3192 = vunpack.c.l.b16 %v3126
      %v3193 = vunpack.c.l.b16 %v3127
      %v3194 = vunpack.c.l.b16 %v3128
      %v3195 = vunpack.c.l.b16 %v3129
      %v3196 = vpack.c.b16 %v3165, %v3164
      %v3197 = vpack.c.b16 %v3167, %v3166
      %v3198 = vpack.c.b16 %v3169, %v3168
      %v3199 = vpack.c.b16 %v3171, %v3170
      %v3200 = vpack.c.b16 %v3173, %v3172
      %v3201 = vpack.c.b16 %v3175, %v3174
      %v3202 = vpack.c.b16 %v3177, %v3176
      %v3203 = vpack.c.b16 %v3179, %v3178
      %v3204 = vpack.c.b16 %v3181, %v3180
      %v3205 = vpack.c.b16 %v3183, %v3182
      %v3206 = vpack.c.b16 %v3185, %v3184
      %v3207 = vpack.c.b16 %v3187, %v3186
      %v3208 = vpack.c.b16 %v3189, %v3188
      %v3209 = vpack.c.b16 %v3191, %v3190
      %v3210 = vpack.c.b16 %v3193, %v3192
      %v3211 = vpack.c.b16 %v3195, %v3194
      %v3213 = vsel %vm280, %v3196, 0
      %v3216 = vsel %vm280, %v3197, 0
      %v3219 = vsel %vm280, %v3198, 0
      %v3222 = vsel %vm280, %v3199, 0
      %v3225 = vsel %vm280, %v3200, 0
      %v3228 = vsel %vm280, %v3201, 0
      %v3231 = vsel %vm280, %v3202, 0
      %v3234 = vsel %vm280, %v3203, 0
      %v3237 = vsel %vm280, %v3204, 0
      %v3240 = vsel %vm280, %v3205, 0
      %v3243 = vsel %vm280, %v3206, 0
      %v3246 = vsel %vm280, %v3207, 0
      %v3249 = vsel %vm280, %v3208, 0
      %v3252 = vsel %vm280, %v3209, 0
      %v3255 = vsel %vm280, %v3210, 0
      %v3258 = vsel %vm280, %v3211, 0
      %v3261 = vsel %vm648, %v3131, 0
      %3263 = vmatpush.bf16.msra.mxu0 0
      %3264 = vmatpush.bf16.msra.mxu0 0
      %3265 = vmatpush.bf16.msra.mxu0 0
      %3266 = vmatpush.bf16.msra.mxu0 0
      %3267 = vmatpush.bf16.msra.mxu0 0
      %3268 = vmatpush.bf16.msra.mxu0 0
      %3269 = vmatpush.bf16.msra.mxu0 0
      %3270 = vmatpush.bf16.msra.mxu0 %v3261
      %3271 = vmatmul.bf16.gmra.mxu0 %v3213
      %v3272 = vpop.f32.mrf.mxu0
      %v3273 = vadd.f32 0.0, %v3272
      %v3274 = vpop.f32.mrf.mxu0
      %v3275 = vadd.f32 0.0, %v3274
      %3276 = vmatmul.bf16.gmra.mxu0 %v3216
      %v3277 = vpop.f32.mrf.mxu0
      %v3278 = vadd.f32 0.0, %v3277
      %v3279 = vpop.f32.mrf.mxu0
      %v3280 = vadd.f32 0.0, %v3279
      %3281 = vmatmul.bf16.gmra.mxu0 %v3219
      %v3282 = vpop.f32.mrf.mxu0
      %v3283 = vadd.f32 0.0, %v3282
      %v3284 = vpop.f32.mrf.mxu0
      %v3285 = vadd.f32 0.0, %v3284
      %3286 = vmatmul.bf16.gmra.mxu0 %v3222
      %v3287 = vpop.f32.mrf.mxu0
      %v3288 = vadd.f32 0.0, %v3287
      %v3289 = vpop.f32.mrf.mxu0
      %v3290 = vadd.f32 0.0, %v3289
      %3291 = vmatmul.bf16.gmra.mxu0 %v3225
      %v3292 = vpop.f32.mrf.mxu0
      %v3293 = vadd.f32 0.0, %v3292
      %v3294 = vpop.f32.mrf.mxu0
      %v3295 = vadd.f32 0.0, %v3294
      %3296 = vmatmul.bf16.gmra.mxu0 %v3228
      %v3297 = vpop.f32.mrf.mxu0
      %v3298 = vadd.f32 0.0, %v3297
      %v3299 = vpop.f32.mrf.mxu0
      %v3300 = vadd.f32 0.0, %v3299
      %3301 = vmatmul.bf16.gmra.mxu0 %v3231
      %v3302 = vpop.f32.mrf.mxu0
      %v3303 = vadd.f32 0.0, %v3302
      %v3304 = vpop.f32.mrf.mxu0
      %v3305 = vadd.f32 0.0, %v3304
      %3306 = vmatmul.bf16.gmra.mxu0 %v3234
      %v3307 = vpop.f32.mrf.mxu0
      %v3308 = vadd.f32 0.0, %v3307
      %v3309 = vpop.f32.mrf.mxu0
      %v3310 = vadd.f32 0.0, %v3309
      %3311 = vmatmul.bf16.gmra.mxu0 %v3237
      %v3312 = vpop.f32.mrf.mxu0
      %v3313 = vadd.f32 0.0, %v3312
      %v3314 = vpop.f32.mrf.mxu0
      %v3315 = vadd.f32 0.0, %v3314
      %3316 = vmatmul.bf16.gmra.mxu0 %v3240
      %v3317 = vpop.f32.mrf.mxu0
      %v3318 = vadd.f32 0.0, %v3317
      %v3319 = vpop.f32.mrf.mxu0
      %v3320 = vadd.f32 0.0, %v3319
      %3321 = vmatmul.bf16.gmra.mxu0 %v3243
      %v3322 = vpop.f32.mrf.mxu0
      %v3323 = vadd.f32 0.0, %v3322
      %v3324 = vpop.f32.mrf.mxu0
      %v3325 = vadd.f32 0.0, %v3324
      %3326 = vmatmul.bf16.gmra.mxu0 %v3246
      %v3327 = vpop.f32.mrf.mxu0
      %v3328 = vadd.f32 0.0, %v3327
      %v3329 = vpop.f32.mrf.mxu0
      %v3330 = vadd.f32 0.0, %v3329
      %3331 = vmatmul.bf16.gmra.mxu0 %v3249
      %v3332 = vpop.f32.mrf.mxu0
      %v3333 = vadd.f32 0.0, %v3332
      %v3334 = vpop.f32.mrf.mxu0
      %v3335 = vadd.f32 0.0, %v3334
      %3336 = vmatmul.bf16.gmra.mxu0 %v3252
      %v3337 = vpop.f32.mrf.mxu0
      %v3338 = vadd.f32 0.0, %v3337
      %v3339 = vpop.f32.mrf.mxu0
      %v3340 = vadd.f32 0.0, %v3339
      %3341 = vmatmul.bf16.gmra.mxu0 %v3255
      %v3342 = vpop.f32.mrf.mxu0
      %v3343 = vadd.f32 0.0, %v3342
      %v3344 = vpop.f32.mrf.mxu0
      %v3345 = vadd.f32 0.0, %v3344
      %3346 = vmatmul.bf16.gmra.mxu0 %v3258
      %v3347 = vpop.f32.mrf.mxu0
      %v3348 = vadd.f32 0.0, %v3347
      %v3349 = vpop.f32.mrf.mxu0
      %v3350 = vadd.f32 0.0, %v3349
      %3351 = vdwg.mxu0
      %v3352 = vld [vmem:[#allocation4] sm:$0xff]
      %v3353 = vld [vmem:[#allocation4 + $0x8] sm:$0xff]
      %v3354 = vld [vmem:[#allocation4 + $0x10] sm:$0xff]
      %v3355 = vld [vmem:[#allocation4 + $0x18] sm:$0xff]
      %v3356 = vld [vmem:[#allocation4 + $0x20] sm:$0xff]
      %v3357 = vld [vmem:[#allocation4 + $0x28] sm:$0xff]
      %v3358 = vld [vmem:[#allocation4 + $0x30] sm:$0xff]
      %v3359 = vld [vmem:[#allocation4 + $0x38] sm:$0xff]
      %v3360 = vld [vmem:[#allocation4 + $0x40] sm:$0xff]
      %v3361 = vld [vmem:[#allocation4 + $0x48] sm:$0xff]
      %v3362 = vld [vmem:[#allocation4 + $0x50] sm:$0xff]
      %v3363 = vld [vmem:[#allocation4 + $0x58] sm:$0xff]
      %v3364 = vld [vmem:[#allocation4 + $0x60] sm:$0xff]
      %v3365 = vld [vmem:[#allocation4 + $0x68] sm:$0xff]
      %v3366 = vld [vmem:[#allocation4 + $0x70] sm:$0xff]
      %v3367 = vld [vmem:[#allocation4 + $0x78] sm:$0xff]
      %v3368 = vld [vmem:[#allocation4 + $0x80] sm:$0xff]
      %v3369 = vld [vmem:[#allocation4 + $0x88] sm:$0xff]
      %v3370 = vld [vmem:[#allocation4 + $0x90] sm:$0xff]
      %v3371 = vld [vmem:[#allocation4 + $0x98] sm:$0xff]
      %v3372 = vld [vmem:[#allocation4 + $0xa0] sm:$0xff]
      %v3373 = vld [vmem:[#allocation4 + $0xa8] sm:$0xff]
      %v3374 = vld [vmem:[#allocation4 + $0xb0] sm:$0xff]
      %v3375 = vld [vmem:[#allocation4 + $0xb8] sm:$0xff]
      %v3376 = vld [vmem:[#allocation4 + $0xc0] sm:$0xff]
      %v3377 = vld [vmem:[#allocation4 + $0xc8] sm:$0xff]
      %v3378 = vld [vmem:[#allocation4 + $0xd0] sm:$0xff]
      %v3379 = vld [vmem:[#allocation4 + $0xd8] sm:$0xff]
      %v3380 = vld [vmem:[#allocation4 + $0xe0] sm:$0xff]
      %v3381 = vld [vmem:[#allocation4 + $0xe8] sm:$0xff]
      %v3382 = vld [vmem:[#allocation4 + $0xf0] sm:$0xff]
      %v3383 = vld [vmem:[#allocation4 + $0xf8] sm:$0xff]
      %v3384 = vadd.f32 %v3352, %v3273
      %v3385 = vadd.f32 %v3353, %v3275
      %v3386 = vadd.f32 %v3354, %v3278
      %v3387 = vadd.f32 %v3355, %v3280
      %v3388 = vadd.f32 %v3356, %v3283
      %v3389 = vadd.f32 %v3357, %v3285
      %v3390 = vadd.f32 %v3358, %v3288
      %v3391 = vadd.f32 %v3359, %v3290
      %v3392 = vadd.f32 %v3360, %v3293
      %v3393 = vadd.f32 %v3361, %v3295
      %v3394 = vadd.f32 %v3362, %v3298
      %v3395 = vadd.f32 %v3363, %v3300
      %v3396 = vadd.f32 %v3364, %v3303
      %v3397 = vadd.f32 %v3365, %v3305
      %v3398 = vadd.f32 %v3366, %v3308
      %v3399 = vadd.f32 %v3367, %v3310
      %v3400 = vadd.f32 %v3368, %v3313
      %v3401 = vadd.f32 %v3369, %v3315
      %v3402 = vadd.f32 %v3370, %v3318
      %v3403 = vadd.f32 %v3371, %v3320
      %v3404 = vadd.f32 %v3372, %v3323
      %v3405 = vadd.f32 %v3373, %v3325
      %v3406 = vadd.f32 %v3374, %v3328
      %v3407 = vadd.f32 %v3375, %v3330
      %v3408 = vadd.f32 %v3376, %v3333
      %v3409 = vadd.f32 %v3377, %v3335
      %v3410 = vadd.f32 %v3378, %v3338
      %v3411 = vadd.f32 %v3379, %v3340
      %v3412 = vadd.f32 %v3380, %v3343
      %v3413 = vadd.f32 %v3381, %v3345
      %v3414 = vadd.f32 %v3382, %v3348
      %v3415 = vadd.f32 %v3383, %v3350
      %3416 = vst [vmem:[#allocation4] sm:$0xff] %v3384
      %3417 = vst [vmem:[#allocation4 + $0x8] sm:$0xff] %v3385
      %3418 = vst [vmem:[#allocation4 + $0x10] sm:$0xff] %v3386
      %3419 = vst [vmem:[#allocation4 + $0x18] sm:$0xff] %v3387
      %3420 = vst [vmem:[#allocation4 + $0x20] sm:$0xff] %v3388
      %3421 = vst [vmem:[#allocation4 + $0x28] sm:$0xff] %v3389
      %3422 = vst [vmem:[#allocation4 + $0x30] sm:$0xff] %v3390
      %3423 = vst [vmem:[#allocation4 + $0x38] sm:$0xff] %v3391
      %3424 = vst [vmem:[#allocation4 + $0x40] sm:$0xff] %v3392
      %3425 = vst [vmem:[#allocation4 + $0x48] sm:$0xff] %v3393
      %3426 = vst [vmem:[#allocation4 + $0x50] sm:$0xff] %v3394
      %3427 = vst [vmem:[#allocation4 + $0x58] sm:$0xff] %v3395
      %3428 = vst [vmem:[#allocation4 + $0x60] sm:$0xff] %v3396
      %3429 = vst [vmem:[#allocation4 + $0x68] sm:$0xff] %v3397
      %3430 = vst [vmem:[#allocation4 + $0x70] sm:$0xff] %v3398
      %3431 = vst [vmem:[#allocation4 + $0x78] sm:$0xff] %v3399
      %3432 = vst [vmem:[#allocation4 + $0x80] sm:$0xff] %v3400
      %3433 = vst [vmem:[#allocation4 + $0x88] sm:$0xff] %v3401
      %3434 = vst [vmem:[#allocation4 + $0x90] sm:$0xff] %v3402
      %3435 = vst [vmem:[#allocation4 + $0x98] sm:$0xff] %v3403
      %3436 = vst [vmem:[#allocation4 + $0xa0] sm:$0xff] %v3404
      %3437 = vst [vmem:[#allocation4 + $0xa8] sm:$0xff] %v3405
      %3438 = vst [vmem:[#allocation4 + $0xb0] sm:$0xff] %v3406
      %3439 = vst [vmem:[#allocation4 + $0xb8] sm:$0xff] %v3407
      %3440 = vst [vmem:[#allocation4 + $0xc0] sm:$0xff] %v3408
      %3441 = vst [vmem:[#allocation4 + $0xc8] sm:$0xff] %v3409
      %3442 = vst [vmem:[#allocation4 + $0xd0] sm:$0xff] %v3410
      %3443 = vst [vmem:[#allocation4 + $0xd8] sm:$0xff] %v3411
      %3444 = vst [vmem:[#allocation4 + $0xe0] sm:$0xff] %v3412
      %3445 = vst [vmem:[#allocation4 + $0xe8] sm:$0xff] %v3413
      %3446 = vst [vmem:[#allocation4 + $0xf0] sm:$0xff] %v3414
      %3447 = vst [vmem:[#allocation4 + $0xf8] sm:$0xff] %v3415
      %v3448 = vld [vmem:[%s2683 + $0x2] sm:$0xff]
      %v3449 = vld [vmem:[%s2683 + $0xa] sm:$0xff]
      %v3450 = vld [vmem:[%s2683 + $0x1a] sm:$0xff]
      %v3451 = vld [vmem:[%s2683 + $0x22] sm:$0xff]
      %v3452 = vld [vmem:[%s2683 + $0x32] sm:$0xff]
      %v3453 = vld [vmem:[%s2683 + $0x3a] sm:$0xff]
      %v3454 = vld [vmem:[%s2683 + $0x4a] sm:$0xff]
      %v3455 = vld [vmem:[%s2683 + $0x52] sm:$0xff]
      %v3456 = vld [vmem:[%s2683 + $0x62] sm:$0xff]
      %v3457 = vld [vmem:[%s2683 + $0x6a] sm:$0xff]
      %v3458 = vld [vmem:[%s2683 + $0x7a] sm:$0xff]
      %v3459 = vld [vmem:[%s2683 + $0x82] sm:$0xff]
      %v3460 = vld [vmem:[%s2683 + $0x92] sm:$0xff]
      %v3461 = vld [vmem:[%s2683 + $0x9a] sm:$0xff]
      %v3462 = vld [vmem:[%s2683 + $0xaa] sm:$0xff]
      %v3463 = vld [vmem:[%s2683 + $0xb2] sm:$0xff]
      %v3464 = vld [vmem:[%s2683 + $0xc2] sm:$0xff]
      %v3465 = vld [vmem:[%s2683 + $0xca] sm:$0xff]
      %v3466 = vld [vmem:[%s2683 + $0xda] sm:$0xff]
      %v3467 = vld [vmem:[%s2683 + $0xe2] sm:$0xff]
      %v3468 = vld [vmem:[%s2683 + $0xf2] sm:$0xff]
      %v3469 = vld [vmem:[%s2683 + $0xfa] sm:$0xff]
      %v3470 = vld [vmem:[%s2683 + $0x10a] sm:$0xff]
      %v3471 = vld [vmem:[%s2683 + $0x112] sm:$0xff]
      %v3472 = vld [vmem:[%s2683 + $0x122] sm:$0xff]
      %v3473 = vld [vmem:[%s2683 + $0x12a] sm:$0xff]
      %v3474 = vld [vmem:[%s2683 + $0x13a] sm:$0xff]
      %v3475 = vld [vmem:[%s2683 + $0x142] sm:$0xff]
      %v3476 = vld [vmem:[%s2683 + $0x152] sm:$0xff]
      %v3477 = vld [vmem:[%s2683 + $0x15a] sm:$0xff]
      %v3478 = vld [vmem:[%s2683 + $0x16a] sm:$0xff]
      %v3479 = vld [vmem:[%s2683 + $0x172] sm:$0xff]
      %v3480 = vpack.c.bf16 %v3448, %v3448
      %v3481 = vpack.c.bf16 %v3449, %v3449
      %v3482 = vpack.c.bf16 %v3450, %v3450
      %v3483 = vpack.c.bf16 %v3451, %v3451
      %v3484 = vpack.c.bf16 %v3452, %v3452
      %v3485 = vpack.c.bf16 %v3453, %v3453
      %v3486 = vpack.c.bf16 %v3454, %v3454
      %v3487 = vpack.c.bf16 %v3455, %v3455
      %v3488 = vpack.c.bf16 %v3456, %v3456
      %v3489 = vpack.c.bf16 %v3457, %v3457
      %v3490 = vpack.c.bf16 %v3458, %v3458
      %v3491 = vpack.c.bf16 %v3459, %v3459
      %v3492 = vpack.c.bf16 %v3460, %v3460
      %v3493 = vpack.c.bf16 %v3461, %v3461
      %v3494 = vpack.c.bf16 %v3462, %v3462
      %v3495 = vpack.c.bf16 %v3463, %v3463
      %v3496 = vpack.c.bf16 %v3464, %v3464
      %v3497 = vpack.c.bf16 %v3465, %v3465
      %v3498 = vpack.c.bf16 %v3466, %v3466
      %v3499 = vpack.c.bf16 %v3467, %v3467
      %v3500 = vpack.c.bf16 %v3468, %v3468
      %v3501 = vpack.c.bf16 %v3469, %v3469
      %v3502 = vpack.c.bf16 %v3470, %v3470
      %v3503 = vpack.c.bf16 %v3471, %v3471
      %v3504 = vpack.c.bf16 %v3472, %v3472
      %v3505 = vpack.c.bf16 %v3473, %v3473
      %v3506 = vpack.c.bf16 %v3474, %v3474
      %v3507 = vpack.c.bf16 %v3475, %v3475
      %v3508 = vpack.c.bf16 %v3476, %v3476
      %v3509 = vpack.c.bf16 %v3477, %v3477
      %v3510 = vpack.c.bf16 %v3478, %v3478
      %v3511 = vpack.c.bf16 %v3479, %v3479
      %s3512 = scalar_lea.vmem %s1, 16
      %v3513 = vld [vmem:[%s3512] sm:$0x3]
      %v3546 = vunpack.c.l.b16 %v3480
      %v3547 = vunpack.c.l.b16 %v3481
      %v3548 = vunpack.c.l.b16 %v3482
      %v3549 = vunpack.c.l.b16 %v3483
      %v3550 = vunpack.c.l.b16 %v3484
      %v3551 = vunpack.c.l.b16 %v3485
      %v3552 = vunpack.c.l.b16 %v3486
      %v3553 = vunpack.c.l.b16 %v3487
      %v3554 = vunpack.c.l.b16 %v3488
      %v3555 = vunpack.c.l.b16 %v3489
      %v3556 = vunpack.c.l.b16 %v3490
      %v3557 = vunpack.c.l.b16 %v3491
      %v3558 = vunpack.c.l.b16 %v3492
      %v3559 = vunpack.c.l.b16 %v3493
      %v3560 = vunpack.c.l.b16 %v3494
      %v3561 = vunpack.c.l.b16 %v3495
      %v3562 = vunpack.c.l.b16 %v3496
      %v3563 = vunpack.c.l.b16 %v3497
      %v3564 = vunpack.c.l.b16 %v3498
      %v3565 = vunpack.c.l.b16 %v3499
      %v3566 = vunpack.c.l.b16 %v3500
      %v3567 = vunpack.c.l.b16 %v3501
      %v3568 = vunpack.c.l.b16 %v3502
      %v3569 = vunpack.c.l.b16 %v3503
      %v3570 = vunpack.c.l.b16 %v3504
      %v3571 = vunpack.c.l.b16 %v3505
      %v3572 = vunpack.c.l.b16 %v3506
      %v3573 = vunpack.c.l.b16 %v3507
      %v3574 = vunpack.c.l.b16 %v3508
      %v3575 = vunpack.c.l.b16 %v3509
      %v3576 = vunpack.c.l.b16 %v3510
      %v3577 = vunpack.c.l.b16 %v3511
      %v3578 = vpack.c.b16 %v3547, %v3546
      %v3579 = vpack.c.b16 %v3549, %v3548
      %v3580 = vpack.c.b16 %v3551, %v3550
      %v3581 = vpack.c.b16 %v3553, %v3552
      %v3582 = vpack.c.b16 %v3555, %v3554
      %v3583 = vpack.c.b16 %v3557, %v3556
      %v3584 = vpack.c.b16 %v3559, %v3558
      %v3585 = vpack.c.b16 %v3561, %v3560
      %v3586 = vpack.c.b16 %v3563, %v3562
      %v3587 = vpack.c.b16 %v3565, %v3564
      %v3588 = vpack.c.b16 %v3567, %v3566
      %v3589 = vpack.c.b16 %v3569, %v3568
      %v3590 = vpack.c.b16 %v3571, %v3570
      %v3591 = vpack.c.b16 %v3573, %v3572
      %v3592 = vpack.c.b16 %v3575, %v3574
      %v3593 = vpack.c.b16 %v3577, %v3576
      %v3595 = vsel %vm280, %v3578, 0
      %v3598 = vsel %vm280, %v3579, 0
      %v3601 = vsel %vm280, %v3580, 0
      %v3604 = vsel %vm280, %v3581, 0
      %v3607 = vsel %vm280, %v3582, 0
      %v3610 = vsel %vm280, %v3583, 0
      %v3613 = vsel %vm280, %v3584, 0
      %v3616 = vsel %vm280, %v3585, 0
      %v3619 = vsel %vm280, %v3586, 0
      %v3622 = vsel %vm280, %v3587, 0
      %v3625 = vsel %vm280, %v3588, 0
      %v3628 = vsel %vm280, %v3589, 0
      %v3631 = vsel %vm280, %v3590, 0
      %v3634 = vsel %vm280, %v3591, 0
      %v3637 = vsel %vm280, %v3592, 0
      %v3640 = vsel %vm280, %v3593, 0
      %v3643 = vsel %vm648, %v3513, 0
      %3645 = vmatpush.bf16.msra.mxu0 0
      %3646 = vmatpush.bf16.msra.mxu0 0
      %3647 = vmatpush.bf16.msra.mxu0 0
      %3648 = vmatpush.bf16.msra.mxu0 0
      %3649 = vmatpush.bf16.msra.mxu0 0
      %3650 = vmatpush.bf16.msra.mxu0 0
      %3651 = vmatpush.bf16.msra.mxu0 0
      %3652 = vmatpush.bf16.msra.mxu0 %v3643
      %3653 = vmatmul.bf16.gmra.mxu0 %v3595
      %v3654 = vpop.f32.mrf.mxu0
      %v3655 = vadd.f32 0.0, %v3654
      %v3656 = vpop.f32.mrf.mxu0
      %v3657 = vadd.f32 0.0, %v3656
      %3658 = vmatmul.bf16.gmra.mxu0 %v3598
      %v3659 = vpop.f32.mrf.mxu0
      %v3660 = vadd.f32 0.0, %v3659
      %v3661 = vpop.f32.mrf.mxu0
      %v3662 = vadd.f32 0.0, %v3661
      %3663 = vmatmul.bf16.gmra.mxu0 %v3601
      %v3664 = vpop.f32.mrf.mxu0
      %v3665 = vadd.f32 0.0, %v3664
      %v3666 = vpop.f32.mrf.mxu0
      %v3667 = vadd.f32 0.0, %v3666
      %3668 = vmatmul.bf16.gmra.mxu0 %v3604
      %v3669 = vpop.f32.mrf.mxu0
      %v3670 = vadd.f32 0.0, %v3669
      %v3671 = vpop.f32.mrf.mxu0
      %v3672 = vadd.f32 0.0, %v3671
      %3673 = vmatmul.bf16.gmra.mxu0 %v3607
      %v3674 = vpop.f32.mrf.mxu0
      %v3675 = vadd.f32 0.0, %v3674
      %v3676 = vpop.f32.mrf.mxu0
      %v3677 = vadd.f32 0.0, %v3676
      %3678 = vmatmul.bf16.gmra.mxu0 %v3610
      %v3679 = vpop.f32.mrf.mxu0
      %v3680 = vadd.f32 0.0, %v3679
      %v3681 = vpop.f32.mrf.mxu0
      %v3682 = vadd.f32 0.0, %v3681
      %3683 = vmatmul.bf16.gmra.mxu0 %v3613
      %v3684 = vpop.f32.mrf.mxu0
      %v3685 = vadd.f32 0.0, %v3684
      %v3686 = vpop.f32.mrf.mxu0
      %v3687 = vadd.f32 0.0, %v3686
      %3688 = vmatmul.bf16.gmra.mxu0 %v3616
      %v3689 = vpop.f32.mrf.mxu0
      %v3690 = vadd.f32 0.0, %v3689
      %v3691 = vpop.f32.mrf.mxu0
      %v3692 = vadd.f32 0.0, %v3691
      %3693 = vmatmul.bf16.gmra.mxu0 %v3619
      %v3694 = vpop.f32.mrf.mxu0
      %v3695 = vadd.f32 0.0, %v3694
      %v3696 = vpop.f32.mrf.mxu0
      %v3697 = vadd.f32 0.0, %v3696
      %3698 = vmatmul.bf16.gmra.mxu0 %v3622
      %v3699 = vpop.f32.mrf.mxu0
      %v3700 = vadd.f32 0.0, %v3699
      %v3701 = vpop.f32.mrf.mxu0
      %v3702 = vadd.f32 0.0, %v3701
      %3703 = vmatmul.bf16.gmra.mxu0 %v3625
      %v3704 = vpop.f32.mrf.mxu0
      %v3705 = vadd.f32 0.0, %v3704
      %v3706 = vpop.f32.mrf.mxu0
      %v3707 = vadd.f32 0.0, %v3706
      %3708 = vmatmul.bf16.gmra.mxu0 %v3628
      %v3709 = vpop.f32.mrf.mxu0
      %v3710 = vadd.f32 0.0, %v3709
      %v3711 = vpop.f32.mrf.mxu0
      %v3712 = vadd.f32 0.0, %v3711
      %3713 = vmatmul.bf16.gmra.mxu0 %v3631
      %v3714 = vpop.f32.mrf.mxu0
      %v3715 = vadd.f32 0.0, %v3714
      %v3716 = vpop.f32.mrf.mxu0
      %v3717 = vadd.f32 0.0, %v3716
      %3718 = vmatmul.bf16.gmra.mxu0 %v3634
      %v3719 = vpop.f32.mrf.mxu0
      %v3720 = vadd.f32 0.0, %v3719
      %v3721 = vpop.f32.mrf.mxu0
      %v3722 = vadd.f32 0.0, %v3721
      %3723 = vmatmul.bf16.gmra.mxu0 %v3637
      %v3724 = vpop.f32.mrf.mxu0
      %v3725 = vadd.f32 0.0, %v3724
      %v3726 = vpop.f32.mrf.mxu0
      %v3727 = vadd.f32 0.0, %v3726
      %3728 = vmatmul.bf16.gmra.mxu0 %v3640
      %v3729 = vpop.f32.mrf.mxu0
      %v3730 = vadd.f32 0.0, %v3729
      %v3731 = vpop.f32.mrf.mxu0
      %v3732 = vadd.f32 0.0, %v3731
      %3733 = vdwg.mxu0
      %v3734 = vld [vmem:[#allocation4] sm:$0xff]
      %v3735 = vld [vmem:[#allocation4 + $0x8] sm:$0xff]
      %v3736 = vld [vmem:[#allocation4 + $0x10] sm:$0xff]
      %v3737 = vld [vmem:[#allocation4 + $0x18] sm:$0xff]
      %v3738 = vld [vmem:[#allocation4 + $0x20] sm:$0xff]
      %v3739 = vld [vmem:[#allocation4 + $0x28] sm:$0xff]
      %v3740 = vld [vmem:[#allocation4 + $0x30] sm:$0xff]
      %v3741 = vld [vmem:[#allocation4 + $0x38] sm:$0xff]
      %v3742 = vld [vmem:[#allocation4 + $0x40] sm:$0xff]
      %v3743 = vld [vmem:[#allocation4 + $0x48] sm:$0xff]
      %v3744 = vld [vmem:[#allocation4 + $0x50] sm:$0xff]
      %v3745 = vld [vmem:[#allocation4 + $0x58] sm:$0xff]
      %v3746 = vld [vmem:[#allocation4 + $0x60] sm:$0xff]
      %v3747 = vld [vmem:[#allocation4 + $0x68] sm:$0xff]
      %v3748 = vld [vmem:[#allocation4 + $0x70] sm:$0xff]
      %v3749 = vld [vmem:[#allocation4 + $0x78] sm:$0xff]
      %v3750 = vld [vmem:[#allocation4 + $0x80] sm:$0xff]
      %v3751 = vld [vmem:[#allocation4 + $0x88] sm:$0xff]
      %v3752 = vld [vmem:[#allocation4 + $0x90] sm:$0xff]
      %v3753 = vld [vmem:[#allocation4 + $0x98] sm:$0xff]
      %v3754 = vld [vmem:[#allocation4 + $0xa0] sm:$0xff]
      %v3755 = vld [vmem:[#allocation4 + $0xa8] sm:$0xff]
      %v3756 = vld [vmem:[#allocation4 + $0xb0] sm:$0xff]
      %v3757 = vld [vmem:[#allocation4 + $0xb8] sm:$0xff]
      %v3758 = vld [vmem:[#allocation4 + $0xc0] sm:$0xff]
      %v3759 = vld [vmem:[#allocation4 + $0xc8] sm:$0xff]
      %v3760 = vld [vmem:[#allocation4 + $0xd0] sm:$0xff]
      %v3761 = vld [vmem:[#allocation4 + $0xd8] sm:$0xff]
      %v3762 = vld [vmem:[#allocation4 + $0xe0] sm:$0xff]
      %v3763 = vld [vmem:[#allocation4 + $0xe8] sm:$0xff]
      %v3764 = vld [vmem:[#allocation4 + $0xf0] sm:$0xff]
      %v3765 = vld [vmem:[#allocation4 + $0xf8] sm:$0xff]
      %v3766 = vadd.f32 %v3734, %v3655
      %v3767 = vadd.f32 %v3735, %v3657
      %v3768 = vadd.f32 %v3736, %v3660
      %v3769 = vadd.f32 %v3737, %v3662
      %v3770 = vadd.f32 %v3738, %v3665
      %v3771 = vadd.f32 %v3739, %v3667
      %v3772 = vadd.f32 %v3740, %v3670
      %v3773 = vadd.f32 %v3741, %v3672
      %v3774 = vadd.f32 %v3742, %v3675
      %v3775 = vadd.f32 %v3743, %v3677
      %v3776 = vadd.f32 %v3744, %v3680
      %v3777 = vadd.f32 %v3745, %v3682
      %v3778 = vadd.f32 %v3746, %v3685
      %v3779 = vadd.f32 %v3747, %v3687
      %v3780 = vadd.f32 %v3748, %v3690
      %v3781 = vadd.f32 %v3749, %v3692
      %v3782 = vadd.f32 %v3750, %v3695
      %v3783 = vadd.f32 %v3751, %v3697
      %v3784 = vadd.f32 %v3752, %v3700
      %v3785 = vadd.f32 %v3753, %v3702
      %v3786 = vadd.f32 %v3754, %v3705
      %v3787 = vadd.f32 %v3755, %v3707
      %v3788 = vadd.f32 %v3756, %v3710
      %v3789 = vadd.f32 %v3757, %v3712
      %v3790 = vadd.f32 %v3758, %v3715
      %v3791 = vadd.f32 %v3759, %v3717
      %v3792 = vadd.f32 %v3760, %v3720
      %v3793 = vadd.f32 %v3761, %v3722
      %v3794 = vadd.f32 %v3762, %v3725
      %v3795 = vadd.f32 %v3763, %v3727
      %v3796 = vadd.f32 %v3764, %v3730
      %v3797 = vadd.f32 %v3765, %v3732
      %3798 = vst [vmem:[#allocation4] sm:$0xff] %v3766
      %3799 = vst [vmem:[#allocation4 + $0x8] sm:$0xff] %v3767
      %3800 = vst [vmem:[#allocation4 + $0x10] sm:$0xff] %v3768
      %3801 = vst [vmem:[#allocation4 + $0x18] sm:$0xff] %v3769
      %3802 = vst [vmem:[#allocation4 + $0x20] sm:$0xff] %v3770
      %3803 = vst [vmem:[#allocation4 + $0x28] sm:$0xff] %v3771
      %3804 = vst [vmem:[#allocation4 + $0x30] sm:$0xff] %v3772
      %3805 = vst [vmem:[#allocation4 + $0x38] sm:$0xff] %v3773
      %3806 = vst [vmem:[#allocation4 + $0x40] sm:$0xff] %v3774
      %3807 = vst [vmem:[#allocation4 + $0x48] sm:$0xff] %v3775
      %3808 = vst [vmem:[#allocation4 + $0x50] sm:$0xff] %v3776
      %3809 = vst [vmem:[#allocation4 + $0x58] sm:$0xff] %v3777
      %3810 = vst [vmem:[#allocation4 + $0x60] sm:$0xff] %v3778
      %3811 = vst [vmem:[#allocation4 + $0x68] sm:$0xff] %v3779
      %3812 = vst [vmem:[#allocation4 + $0x70] sm:$0xff] %v3780
      %3813 = vst [vmem:[#allocation4 + $0x78] sm:$0xff] %v3781
      %3814 = vst [vmem:[#allocation4 + $0x80] sm:$0xff] %v3782
      %3815 = vst [vmem:[#allocation4 + $0x88] sm:$0xff] %v3783
      %3816 = vst [vmem:[#allocation4 + $0x90] sm:$0xff] %v3784
      %3817 = vst [vmem:[#allocation4 + $0x98] sm:$0xff] %v3785
      %3818 = vst [vmem:[#allocation4 + $0xa0] sm:$0xff] %v3786
      %3819 = vst [vmem:[#allocation4 + $0xa8] sm:$0xff] %v3787
      %3820 = vst [vmem:[#allocation4 + $0xb0] sm:$0xff] %v3788
      %3821 = vst [vmem:[#allocation4 + $0xb8] sm:$0xff] %v3789
      %3822 = vst [vmem:[#allocation4 + $0xc0] sm:$0xff] %v3790
      %3823 = vst [vmem:[#allocation4 + $0xc8] sm:$0xff] %v3791
      %3824 = vst [vmem:[#allocation4 + $0xd0] sm:$0xff] %v3792
      %3825 = vst [vmem:[#allocation4 + $0xd8] sm:$0xff] %v3793
      %3826 = vst [vmem:[#allocation4 + $0xe0] sm:$0xff] %v3794
      %3827 = vst [vmem:[#allocation4 + $0xe8] sm:$0xff] %v3795
      %3828 = vst [vmem:[#allocation4 + $0xf0] sm:$0xff] %v3796
      %3829 = vst [vmem:[#allocation4 + $0xf8] sm:$0xff] %v3797
      %v3830 = vld [vmem:[#allocation4] sm:$0xff]
      %v3831 = vld [vmem:[#allocation4 + $0x8] sm:$0xff]
      %v3832 = vld [vmem:[#allocation4 + $0x10] sm:$0xff]
      %v3833 = vld [vmem:[#allocation4 + $0x18] sm:$0xff]
      %v3834 = vld [vmem:[#allocation4 + $0x20] sm:$0xff]
      %v3835 = vld [vmem:[#allocation4 + $0x28] sm:$0xff]
      %v3836 = vld [vmem:[#allocation4 + $0x30] sm:$0xff]
      %v3837 = vld [vmem:[#allocation4 + $0x38] sm:$0xff]
      %v3838 = vld [vmem:[#allocation4 + $0x40] sm:$0xff]
      %v3839 = vld [vmem:[#allocation4 + $0x48] sm:$0xff]
      %v3840 = vld [vmem:[#allocation4 + $0x50] sm:$0xff]
      %v3841 = vld [vmem:[#allocation4 + $0x58] sm:$0xff]
      %v3842 = vld [vmem:[#allocation4 + $0x60] sm:$0xff]
      %v3843 = vld [vmem:[#allocation4 + $0x68] sm:$0xff]
      %v3844 = vld [vmem:[#allocation4 + $0x70] sm:$0xff]
      %v3845 = vld [vmem:[#allocation4 + $0x78] sm:$0xff]
      %v3846 = vld [vmem:[#allocation4 + $0x80] sm:$0xff]
      %v3847 = vld [vmem:[#allocation4 + $0x88] sm:$0xff]
      %v3848 = vld [vmem:[#allocation4 + $0x90] sm:$0xff]
      %v3849 = vld [vmem:[#allocation4 + $0x98] sm:$0xff]
      %v3850 = vld [vmem:[#allocation4 + $0xa0] sm:$0xff]
      %v3851 = vld [vmem:[#allocation4 + $0xa8] sm:$0xff]
      %v3852 = vld [vmem:[#allocation4 + $0xb0] sm:$0xff]
      %v3853 = vld [vmem:[#allocation4 + $0xb8] sm:$0xff]
      %v3854 = vld [vmem:[#allocation4 + $0xc0] sm:$0xff]
      %v3855 = vld [vmem:[#allocation4 + $0xc8] sm:$0xff]
      %v3856 = vld [vmem:[#allocation4 + $0xd0] sm:$0xff]
      %v3857 = vld [vmem:[#allocation4 + $0xd8] sm:$0xff]
      %v3858 = vld [vmem:[#allocation4 + $0xe0] sm:$0xff]
      %v3859 = vld [vmem:[#allocation4 + $0xe8] sm:$0xff]
      %v3860 = vld [vmem:[#allocation4 + $0xf0] sm:$0xff]
      %v3861 = vld [vmem:[#allocation4 + $0xf8] sm:$0xff]
      %v3862 = vld [vmem:[%s2] sm:$0x1]
      %v3864 = vperm.slane %v3862, 0
      %v3866 = vmul.f32 %v3830, %v3864
      %v3867 = vmul.f32 %v3831, %v3864
      %v3868 = vmul.f32 %v3832, %v3864
      %v3869 = vmul.f32 %v3833, %v3864
      %v3870 = vmul.f32 %v3834, %v3864
      %v3871 = vmul.f32 %v3835, %v3864
      %v3872 = vmul.f32 %v3836, %v3864
      %v3873 = vmul.f32 %v3837, %v3864
      %v3874 = vmul.f32 %v3838, %v3864
      %v3875 = vmul.f32 %v3839, %v3864
      %v3876 = vmul.f32 %v3840, %v3864
      %v3877 = vmul.f32 %v3841, %v3864
      %v3878 = vmul.f32 %v3842, %v3864
      %v3879 = vmul.f32 %v3843, %v3864
      %v3880 = vmul.f32 %v3844, %v3864
      %v3881 = vmul.f32 %v3845, %v3864
      %v3882 = vmul.f32 %v3846, %v3864
      %v3883 = vmul.f32 %v3847, %v3864
      %v3884 = vmul.f32 %v3848, %v3864
      %v3885 = vmul.f32 %v3849, %v3864
      %v3886 = vmul.f32 %v3850, %v3864
      %v3887 = vmul.f32 %v3851, %v3864
      %v3888 = vmul.f32 %v3852, %v3864
      %v3889 = vmul.f32 %v3853, %v3864
      %v3890 = vmul.f32 %v3854, %v3864
      %v3891 = vmul.f32 %v3855, %v3864
      %v3892 = vmul.f32 %v3856, %v3864
      %v3893 = vmul.f32 %v3857, %v3864
      %v3894 = vmul.f32 %v3858, %v3864
      %v3895 = vmul.f32 %v3859, %v3864
      %v3896 = vmul.f32 %v3860, %v3864
      %v3897 = vmul.f32 %v3861, %v3864
      %v3898 = vld [vmem:[%s3] sm:$0x1]
      %v3900 = vperm.slane %v3898, 0
      %v3902 = vadd.f32 %v3866, %v3900
      %v3903 = vadd.f32 %v3867, %v3900
      %v3904 = vadd.f32 %v3868, %v3900
      %v3905 = vadd.f32 %v3869, %v3900
      %v3906 = vadd.f32 %v3870, %v3900
      %v3907 = vadd.f32 %v3871, %v3900
      %v3908 = vadd.f32 %v3872, %v3900
      %v3909 = vadd.f32 %v3873, %v3900
      %v3910 = vadd.f32 %v3874, %v3900
      %v3911 = vadd.f32 %v3875, %v3900
      %v3912 = vadd.f32 %v3876, %v3900
      %v3913 = vadd.f32 %v3877, %v3900
      %v3914 = vadd.f32 %v3878, %v3900
      %v3915 = vadd.f32 %v3879, %v3900
      %v3916 = vadd.f32 %v3880, %v3900
      %v3917 = vadd.f32 %v3881, %v3900
      %v3918 = vadd.f32 %v3882, %v3900
      %v3919 = vadd.f32 %v3883, %v3900
      %v3920 = vadd.f32 %v3884, %v3900
      %v3921 = vadd.f32 %v3885, %v3900
      %v3922 = vadd.f32 %v3886, %v3900
      %v3923 = vadd.f32 %v3887, %v3900
      %v3924 = vadd.f32 %v3888, %v3900
      %v3925 = vadd.f32 %v3889, %v3900
      %v3926 = vadd.f32 %v3890, %v3900
      %v3927 = vadd.f32 %v3891, %v3900
      %v3928 = vadd.f32 %v3892, %v3900
      %v3929 = vadd.f32 %v3893, %v3900
      %v3930 = vadd.f32 %v3894, %v3900
      %v3931 = vadd.f32 %v3895, %v3900
      %v3932 = vadd.f32 %v3896, %v3900
      %v3933 = vadd.f32 %v3897, %v3900
      %v3934 = vmax.f32 %v3902, 0.0
      %v3935 = vmax.f32 %v3903, 0.0
      %v3936 = vmax.f32 %v3904, 0.0
      %v3937 = vmax.f32 %v3905, 0.0
      %v3938 = vmax.f32 %v3906, 0.0
      %v3939 = vmax.f32 %v3907, 0.0
      %v3940 = vmax.f32 %v3908, 0.0
      %v3941 = vmax.f32 %v3909, 0.0
      %v3942 = vmax.f32 %v3910, 0.0
      %v3943 = vmax.f32 %v3911, 0.0
      %v3944 = vmax.f32 %v3912, 0.0
      %v3945 = vmax.f32 %v3913, 0.0
      %v3946 = vmax.f32 %v3914, 0.0
      %v3947 = vmax.f32 %v3915, 0.0
      %v3948 = vmax.f32 %v3916, 0.0
      %v3949 = vmax.f32 %v3917, 0.0
      %v3950 = vmax.f32 %v3918, 0.0
      %v3951 = vmax.f32 %v3919, 0.0
      %v3952 = vmax.f32 %v3920, 0.0
      %v3953 = vmax.f32 %v3921, 0.0
      %v3954 = vmax.f32 %v3922, 0.0
      %v3955 = vmax.f32 %v3923, 0.0
      %v3956 = vmax.f32 %v3924, 0.0
      %v3957 = vmax.f32 %v3925, 0.0
      %v3958 = vmax.f32 %v3926, 0.0
      %v3959 = vmax.f32 %v3927, 0.0
      %v3960 = vmax.f32 %v3928, 0.0
      %v3961 = vmax.f32 %v3929, 0.0
      %v3962 = vmax.f32 %v3930, 0.0
      %v3963 = vmax.f32 %v3931, 0.0
      %v3964 = vmax.f32 %v3932, 0.0
      %v3965 = vmax.f32 %v3933, 0.0
      %s3966 = scalar_lea.vmem [#allocation3], 24
      %3967 = vst [vmem:[%s3966 + $0x1] sm:$0xff] %v3934
      %3968 = vst [vmem:[%s3966 + $0x9] sm:$0xff] %v3935
      %3969 = vst [vmem:[%s3966 + $0x19] sm:$0xff] %v3936
      %3970 = vst [vmem:[%s3966 + $0x21] sm:$0xff] %v3937
      %3971 = vst [vmem:[%s3966 + $0x31] sm:$0xff] %v3938
      %3972 = vst [vmem:[%s3966 + $0x39] sm:$0xff] %v3939
      %3973 = vst [vmem:[%s3966 + $0x49] sm:$0xff] %v3940
      %3974 = vst [vmem:[%s3966 + $0x51] sm:$0xff] %v3941
      %3975 = vst [vmem:[%s3966 + $0x61] sm:$0xff] %v3942
      %3976 = vst [vmem:[%s3966 + $0x69] sm:$0xff] %v3943
      %3977 = vst [vmem:[%s3966 + $0x79] sm:$0xff] %v3944
      %3978 = vst [vmem:[%s3966 + $0x81] sm:$0xff] %v3945
      %3979 = vst [vmem:[%s3966 + $0x91] sm:$0xff] %v3946
      %3980 = vst [vmem:[%s3966 + $0x99] sm:$0xff] %v3947
      %3981 = vst [vmem:[%s3966 + $0xa9] sm:$0xff] %v3948
      %3982 = vst [vmem:[%s3966 + $0xb1] sm:$0xff] %v3949
      %3983 = vst [vmem:[%s3966 + $0xc1] sm:$0xff] %v3950
      %3984 = vst [vmem:[%s3966 + $0xc9] sm:$0xff] %v3951
      %3985 = vst [vmem:[%s3966 + $0xd9] sm:$0xff] %v3952
      %3986 = vst [vmem:[%s3966 + $0xe1] sm:$0xff] %v3953
      %3987 = vst [vmem:[%s3966 + $0xf1] sm:$0xff] %v3954
      %3988 = vst [vmem:[%s3966 + $0xf9] sm:$0xff] %v3955
      %3989 = vst [vmem:[%s3966 + $0x109] sm:$0xff] %v3956
      %3990 = vst [vmem:[%s3966 + $0x111] sm:$0xff] %v3957
      %3991 = vst [vmem:[%s3966 + $0x121] sm:$0xff] %v3958
      %3992 = vst [vmem:[%s3966 + $0x129] sm:$0xff] %v3959
      %3993 = vst [vmem:[%s3966 + $0x139] sm:$0xff] %v3960
      %3994 = vst [vmem:[%s3966 + $0x141] sm:$0xff] %v3961
      %3995 = vst [vmem:[%s3966 + $0x151] sm:$0xff] %v3962
      %3996 = vst [vmem:[%s3966 + $0x159] sm:$0xff] %v3963
      %3997 = vst [vmem:[%s3966 + $0x169] sm:$0xff] %v3964
      %3998 = vst [vmem:[%s3966 + $0x171] sm:$0xff] %v3965
      %v3999 = vld [vmem:[#allocation3] sm:$0xff]
      %v4000 = vld [vmem:[#allocation3 + $0x8] sm:$0xff]
      %v4001 = vld [vmem:[#allocation3 + $0x18] sm:$0xff]
      %v4002 = vld [vmem:[#allocation3 + $0x20] sm:$0xff]
      %v4003 = vld [vmem:[#allocation3 + $0x30] sm:$0xff]
      %v4004 = vld [vmem:[#allocation3 + $0x38] sm:$0xff]
      %v4005 = vld [vmem:[#allocation3 + $0x48] sm:$0xff]
      %v4006 = vld [vmem:[#allocation3 + $0x50] sm:$0xff]
      %v4007 = vld [vmem:[#allocation3 + $0x60] sm:$0xff]
      %v4008 = vld [vmem:[#allocation3 + $0x68] sm:$0xff]
      %v4009 = vld [vmem:[#allocation3 + $0x78] sm:$0xff]
      %v4010 = vld [vmem:[#allocation3 + $0x80] sm:$0xff]
      %v4011 = vld [vmem:[#allocation3 + $0x90] sm:$0xff]
      %v4012 = vld [vmem:[#allocation3 + $0x98] sm:$0xff]
      %v4013 = vld [vmem:[#allocation3 + $0xa8] sm:$0xff]
      %v4014 = vld [vmem:[#allocation3 + $0xb0] sm:$0xff]
      %v4015 = vld [vmem:[#allocation3 + $0xc0] sm:$0xff]
      %v4016 = vld [vmem:[#allocation3 + $0xc8] sm:$0xff]
      %v4017 = vld [vmem:[#allocation3 + $0xd8] sm:$0xff]
      %v4018 = vld [vmem:[#allocation3 + $0xe0] sm:$0xff]
      %v4019 = vld [vmem:[#allocation3 + $0xf0] sm:$0xff]
      %v4020 = vld [vmem:[#allocation3 + $0xf8] sm:$0xff]
      %v4021 = vld [vmem:[#allocation3 + $0x108] sm:$0xff]
      %v4022 = vld [vmem:[#allocation3 + $0x110] sm:$0xff]
      %v4023 = vld [vmem:[#allocation3 + $0x120] sm:$0xff]
      %v4024 = vld [vmem:[#allocation3 + $0x128] sm:$0xff]
      %v4025 = vld [vmem:[#allocation3 + $0x138] sm:$0xff]
      %v4026 = vld [vmem:[#allocation3 + $0x140] sm:$0xff]
      %v4027 = vld [vmem:[#allocation3 + $0x150] sm:$0xff]
      %v4028 = vld [vmem:[#allocation3 + $0x158] sm:$0xff]
      %v4029 = vld [vmem:[#allocation3 + $0x168] sm:$0xff]
      %v4030 = vld [vmem:[#allocation3 + $0x170] sm:$0xff]
      %v4031 = vpack.c.bf16 %v3999, %v3999
      %v4032 = vpack.c.bf16 %v4000, %v4000
      %v4033 = vpack.c.bf16 %v4001, %v4001
      %v4034 = vpack.c.bf16 %v4002, %v4002
      %v4035 = vpack.c.bf16 %v4003, %v4003
      %v4036 = vpack.c.bf16 %v4004, %v4004
      %v4037 = vpack.c.bf16 %v4005, %v4005
      %v4038 = vpack.c.bf16 %v4006, %v4006
      %v4039 = vpack.c.bf16 %v4007, %v4007
      %v4040 = vpack.c.bf16 %v4008, %v4008
      %v4041 = vpack.c.bf16 %v4009, %v4009
      %v4042 = vpack.c.bf16 %v4010, %v4010
      %v4043 = vpack.c.bf16 %v4011, %v4011
      %v4044 = vpack.c.bf16 %v4012, %v4012
      %v4045 = vpack.c.bf16 %v4013, %v4013
      %v4046 = vpack.c.bf16 %v4014, %v4014
      %v4047 = vpack.c.bf16 %v4015, %v4015
      %v4048 = vpack.c.bf16 %v4016, %v4016
      %v4049 = vpack.c.bf16 %v4017, %v4017
      %v4050 = vpack.c.bf16 %v4018, %v4018
      %v4051 = vpack.c.bf16 %v4019, %v4019
      %v4052 = vpack.c.bf16 %v4020, %v4020
      %v4053 = vpack.c.bf16 %v4021, %v4021
      %v4054 = vpack.c.bf16 %v4022, %v4022
      %v4055 = vpack.c.bf16 %v4023, %v4023
      %v4056 = vpack.c.bf16 %v4024, %v4024
      %v4057 = vpack.c.bf16 %v4025, %v4025
      %v4058 = vpack.c.bf16 %v4026, %v4026
      %v4059 = vpack.c.bf16 %v4027, %v4027
      %v4060 = vpack.c.bf16 %v4028, %v4028
      %v4061 = vpack.c.bf16 %v4029, %v4029
      %v4062 = vpack.c.bf16 %v4030, %v4030
      %v4063 = vld [vmem:[%s4] sm:$0xf]
      %v4064 = vld [vmem:[%s4 + $0x4] sm:$0xf]
      %v4065 = vld [vmem:[%s4 + $0x8] sm:$0xf]
      %v4066 = vld [vmem:[%s4 + $0xc] sm:$0xf]
      %v4067 = vld [vmem:[%s4 + $0x10] sm:$0xf]
      %v4068 = vld [vmem:[%s4 + $0x14] sm:$0xf]
      %v4069 = vld [vmem:[%s4 + $0x18] sm:$0xf]
      %v4070 = vld [vmem:[%s4 + $0x1c] sm:$0xf]
      %v4071 = vld [vmem:[%s4 + $0x20] sm:$0xf]
      %v4072 = vld [vmem:[%s4 + $0x24] sm:$0xf]
      %v4073 = vld [vmem:[%s4 + $0x28] sm:$0xf]
      %v4074 = vld [vmem:[%s4 + $0x2c] sm:$0xf]
      %v4075 = vld [vmem:[%s4 + $0x30] sm:$0xf]
      %v4076 = vld [vmem:[%s4 + $0x34] sm:$0xf]
      %v4077 = vld [vmem:[%s4 + $0x38] sm:$0xf]
      %v4078 = vld [vmem:[%s4 + $0x3c] sm:$0xf]
      %v4111 = vunpack.c.l.b16 %v4031
      %v4112 = vunpack.c.l.b16 %v4032
      %v4113 = vunpack.c.l.b16 %v4033
      %v4114 = vunpack.c.l.b16 %v4034
      %v4115 = vunpack.c.l.b16 %v4035
      %v4116 = vunpack.c.l.b16 %v4036
      %v4117 = vunpack.c.l.b16 %v4037
      %v4118 = vunpack.c.l.b16 %v4038
      %v4119 = vunpack.c.l.b16 %v4039
      %v4120 = vunpack.c.l.b16 %v4040
      %v4121 = vunpack.c.l.b16 %v4041
      %v4122 = vunpack.c.l.b16 %v4042
      %v4123 = vunpack.c.l.b16 %v4043
      %v4124 = vunpack.c.l.b16 %v4044
      %v4125 = vunpack.c.l.b16 %v4045
      %v4126 = vunpack.c.l.b16 %v4046
      %v4127 = vunpack.c.l.b16 %v4047
      %v4128 = vunpack.c.l.b16 %v4048
      %v4129 = vunpack.c.l.b16 %v4049
      %v4130 = vunpack.c.l.b16 %v4050
      %v4131 = vunpack.c.l.b16 %v4051
      %v4132 = vunpack.c.l.b16 %v4052
      %v4133 = vunpack.c.l.b16 %v4053
      %v4134 = vunpack.c.l.b16 %v4054
      %v4135 = vunpack.c.l.b16 %v4055
      %v4136 = vunpack.c.l.b16 %v4056
      %v4137 = vunpack.c.l.b16 %v4057
      %v4138 = vunpack.c.l.b16 %v4058
      %v4139 = vunpack.c.l.b16 %v4059
      %v4140 = vunpack.c.l.b16 %v4060
      %v4141 = vunpack.c.l.b16 %v4061
      %v4142 = vunpack.c.l.b16 %v4062
      %v4143 = vpack.c.b16 %v4112, %v4111
      %v4144 = vpack.c.b16 %v4114, %v4113
      %v4145 = vpack.c.b16 %v4116, %v4115
      %v4146 = vpack.c.b16 %v4118, %v4117
      %v4147 = vpack.c.b16 %v4120, %v4119
      %v4148 = vpack.c.b16 %v4122, %v4121
      %v4149 = vpack.c.b16 %v4124, %v4123
      %v4150 = vpack.c.b16 %v4126, %v4125
      %v4151 = vpack.c.b16 %v4128, %v4127
      %v4152 = vpack.c.b16 %v4130, %v4129
      %v4153 = vpack.c.b16 %v4132, %v4131
      %v4154 = vpack.c.b16 %v4134, %v4133
      %v4155 = vpack.c.b16 %v4136, %v4135
      %v4156 = vpack.c.b16 %v4138, %v4137
      %v4157 = vpack.c.b16 %v4140, %v4139
      %v4158 = vpack.c.b16 %v4142, %v4141
      %v4191 = vunpack.c.l.b16 %v4063
      %v4192 = vunpack.c.l.b16 %v4064
      %v4193 = vunpack.c.l.b16 %v4065
      %v4194 = vunpack.c.l.b16 %v4066
      %v4195 = vunpack.c.l.b16 %v4067
      %v4196 = vunpack.c.l.b16 %v4068
      %v4197 = vunpack.c.l.b16 %v4069
      %v4198 = vunpack.c.l.b16 %v4070
      %v4199 = vunpack.c.l.b16 %v4071
      %v4200 = vunpack.c.l.b16 %v4072
      %v4201 = vunpack.c.l.b16 %v4073
      %v4202 = vunpack.c.l.b16 %v4074
      %v4203 = vunpack.c.l.b16 %v4075
      %v4204 = vunpack.c.l.b16 %v4076
      %v4205 = vunpack.c.l.b16 %v4077
      %v4206 = vunpack.c.l.b16 %v4078
      %v4207 = vpack.c.b16 %v4192, %v4191
      %v4208 = vpack.c.b16 %v4194, %v4193
      %v4209 = vpack.c.b16 %v4196, %v4195
      %v4210 = vpack.c.b16 %v4198, %v4197
      %v4211 = vpack.c.b16 %v4200, %v4199
      %v4212 = vpack.c.b16 %v4202, %v4201
      %v4213 = vpack.c.b16 %v4204, %v4203
      %v4214 = vpack.c.b16 %v4206, %v4205
      %4223 = vmatpush.bf16.msra.mxu0 %v4214
      %4224 = vmatpush.bf16.msra.mxu0 %v4213
      %4225 = vmatpush.bf16.msra.mxu0 %v4212
      %4226 = vmatpush.bf16.msra.mxu0 %v4211
      %4227 = vmatpush.bf16.msra.mxu0 %v4210
      %4228 = vmatpush.bf16.msra.mxu0 %v4209
      %4229 = vmatpush.bf16.msra.mxu0 %v4208
      %4230 = vmatpush.bf16.msra.mxu0 %v4207
      %4231 = vmatmul.bf16.gmra.mxu0 %v4143
      %v4232 = vpop.f32.mrf.mxu0
      %v4233 = vadd.f32 0.0, %v4232
      %v4234 = vpop.f32.mrf.mxu0
      %v4235 = vadd.f32 0.0, %v4234
      %4236 = vmatmul.bf16.gmra.mxu0 %v4144
      %v4237 = vpop.f32.mrf.mxu0
      %v4238 = vadd.f32 0.0, %v4237
      %v4239 = vpop.f32.mrf.mxu0
      %v4240 = vadd.f32 0.0, %v4239
      %4241 = vmatmul.bf16.gmra.mxu0 %v4145
      %v4242 = vpop.f32.mrf.mxu0
      %v4243 = vadd.f32 0.0, %v4242
      %v4244 = vpop.f32.mrf.mxu0
      %v4245 = vadd.f32 0.0, %v4244
      %4246 = vmatmul.bf16.gmra.mxu0 %v4146
      %v4247 = vpop.f32.mrf.mxu0
      %v4248 = vadd.f32 0.0, %v4247
      %v4249 = vpop.f32.mrf.mxu0
      %v4250 = vadd.f32 0.0, %v4249
      %4251 = vmatmul.bf16.gmra.mxu0 %v4147
      %v4252 = vpop.f32.mrf.mxu0
      %v4253 = vadd.f32 0.0, %v4252
      %v4254 = vpop.f32.mrf.mxu0
      %v4255 = vadd.f32 0.0, %v4254
      %4256 = vmatmul.bf16.gmra.mxu0 %v4148
      %v4257 = vpop.f32.mrf.mxu0
      %v4258 = vadd.f32 0.0, %v4257
      %v4259 = vpop.f32.mrf.mxu0
      %v4260 = vadd.f32 0.0, %v4259
      %4261 = vmatmul.bf16.gmra.mxu0 %v4149
      %v4262 = vpop.f32.mrf.mxu0
      %v4263 = vadd.f32 0.0, %v4262
      %v4264 = vpop.f32.mrf.mxu0
      %v4265 = vadd.f32 0.0, %v4264
      %4266 = vmatmul.bf16.gmra.mxu0 %v4150
      %v4267 = vpop.f32.mrf.mxu0
      %v4268 = vadd.f32 0.0, %v4267
      %v4269 = vpop.f32.mrf.mxu0
      %v4270 = vadd.f32 0.0, %v4269
      %4271 = vmatmul.bf16.gmra.mxu0 %v4151
      %v4272 = vpop.f32.mrf.mxu0
      %v4273 = vadd.f32 0.0, %v4272
      %v4274 = vpop.f32.mrf.mxu0
      %v4275 = vadd.f32 0.0, %v4274
      %4276 = vmatmul.bf16.gmra.mxu0 %v4152
      %v4277 = vpop.f32.mrf.mxu0
      %v4278 = vadd.f32 0.0, %v4277
      %v4279 = vpop.f32.mrf.mxu0
      %v4280 = vadd.f32 0.0, %v4279
      %4281 = vmatmul.bf16.gmra.mxu0 %v4153
      %v4282 = vpop.f32.mrf.mxu0
      %v4283 = vadd.f32 0.0, %v4282
      %v4284 = vpop.f32.mrf.mxu0
      %v4285 = vadd.f32 0.0, %v4284
      %4286 = vmatmul.bf16.gmra.mxu0 %v4154
      %v4287 = vpop.f32.mrf.mxu0
      %v4288 = vadd.f32 0.0, %v4287
      %v4289 = vpop.f32.mrf.mxu0
      %v4290 = vadd.f32 0.0, %v4289
      %4291 = vmatmul.bf16.gmra.mxu0 %v4155
      %v4292 = vpop.f32.mrf.mxu0
      %v4293 = vadd.f32 0.0, %v4292
      %v4294 = vpop.f32.mrf.mxu0
      %v4295 = vadd.f32 0.0, %v4294
      %4296 = vmatmul.bf16.gmra.mxu0 %v4156
      %v4297 = vpop.f32.mrf.mxu0
      %v4298 = vadd.f32 0.0, %v4297
      %v4299 = vpop.f32.mrf.mxu0
      %v4300 = vadd.f32 0.0, %v4299
      %4301 = vmatmul.bf16.gmra.mxu0 %v4157
      %v4302 = vpop.f32.mrf.mxu0
      %v4303 = vadd.f32 0.0, %v4302
      %v4304 = vpop.f32.mrf.mxu0
      %v4305 = vadd.f32 0.0, %v4304
      %4306 = vmatmul.bf16.gmra.mxu0 %v4158
      %v4307 = vpop.f32.mrf.mxu0
      %v4308 = vadd.f32 0.0, %v4307
      %v4309 = vpop.f32.mrf.mxu0
      %v4310 = vadd.f32 0.0, %v4309
      %4311 = vdwg.mxu0
      %4312 = vst [vmem:[#allocation4] sm:$0xff] %v4233
      %4313 = vst [vmem:[#allocation4 + $0x8] sm:$0xff] %v4235
      %4314 = vst [vmem:[#allocation4 + $0x10] sm:$0xff] %v4238
      %4315 = vst [vmem:[#allocation4 + $0x18] sm:$0xff] %v4240
      %4316 = vst [vmem:[#allocation4 + $0x20] sm:$0xff] %v4243
      %4317 = vst [vmem:[#allocation4 + $0x28] sm:$0xff] %v4245
      %4318 = vst [vmem:[#allocation4 + $0x30] sm:$0xff] %v4248
      %4319 = vst [vmem:[#allocation4 + $0x38] sm:$0xff] %v4250
      %4320 = vst [vmem:[#allocation4 + $0x40] sm:$0xff] %v4253
      %4321 = vst [vmem:[#allocation4 + $0x48] sm:$0xff] %v4255
      %4322 = vst [vmem:[#allocation4 + $0x50] sm:$0xff] %v4258
      %4323 = vst [vmem:[#allocation4 + $0x58] sm:$0xff] %v4260
      %4324 = vst [vmem:[#allocation4 + $0x60] sm:$0xff] %v4263
      %4325 = vst [vmem:[#allocation4 + $0x68] sm:$0xff] %v4265
      %4326 = vst [vmem:[#allocation4 + $0x70] sm:$0xff] %v4268
      %4327 = vst [vmem:[#allocation4 + $0x78] sm:$0xff] %v4270
      %4328 = vst [vmem:[#allocation4 + $0x80] sm:$0xff] %v4273
      %4329 = vst [vmem:[#allocation4 + $0x88] sm:$0xff] %v4275
      %4330 = vst [vmem:[#allocation4 + $0x90] sm:$0xff] %v4278
      %4331 = vst [vmem:[#allocation4 + $0x98] sm:$0xff] %v4280
      %4332 = vst [vmem:[#allocation4 + $0xa0] sm:$0xff] %v4283
      %4333 = vst [vmem:[#allocation4 + $0xa8] sm:$0xff] %v4285
      %4334 = vst [vmem:[#allocation4 + $0xb0] sm:$0xff] %v4288
      %4335 = vst [vmem:[#allocation4 + $0xb8] sm:$0xff] %v4290
      %4336 = vst [vmem:[#allocation4 + $0xc0] sm:$0xff] %v4293
      %4337 = vst [vmem:[#allocation4 + $0xc8] sm:$0xff] %v4295
      %4338 = vst [vmem:[#allocation4 + $0xd0] sm:$0xff] %v4298
      %4339 = vst [vmem:[#allocation4 + $0xd8] sm:$0xff] %v4300
      %4340 = vst [vmem:[#allocation4 + $0xe0] sm:$0xff] %v4303
      %4341 = vst [vmem:[#allocation4 + $0xe8] sm:$0xff] %v4305
      %4342 = vst [vmem:[#allocation4 + $0xf0] sm:$0xff] %v4308
      %4343 = vst [vmem:[#allocation4 + $0xf8] sm:$0xff] %v4310
      %v4344 = vld [vmem:[#allocation3 + $0x1] sm:$0xff]
      %v4345 = vld [vmem:[#allocation3 + $0x9] sm:$0xff]
      %v4346 = vld [vmem:[#allocation3 + $0x19] sm:$0xff]
      %v4347 = vld [vmem:[#allocation3 + $0x21] sm:$0xff]
      %v4348 = vld [vmem:[#allocation3 + $0x31] sm:$0xff]
      %v4349 = vld [vmem:[#allocation3 + $0x39] sm:$0xff]
      %v4350 = vld [vmem:[#allocation3 + $0x49] sm:$0xff]
      %v4351 = vld [vmem:[#allocation3 + $0x51] sm:$0xff]
      %v4352 = vld [vmem:[#allocation3 + $0x61] sm:$0xff]
      %v4353 = vld [vmem:[#allocation3 + $0x69] sm:$0xff]
      %v4354 = vld [vmem:[#allocation3 + $0x79] sm:$0xff]
      %v4355 = vld [vmem:[#allocation3 + $0x81] sm:$0xff]
      %v4356 = vld [vmem:[#allocation3 + $0x91] sm:$0xff]
      %v4357 = vld [vmem:[#allocation3 + $0x99] sm:$0xff]
      %v4358 = vld [vmem:[#allocation3 + $0xa9] sm:$0xff]
      %v4359 = vld [vmem:[#allocation3 + $0xb1] sm:$0xff]
      %v4360 = vld [vmem:[#allocation3 + $0xc1] sm:$0xff]
      %v4361 = vld [vmem:[#allocation3 + $0xc9] sm:$0xff]
      %v4362 = vld [vmem:[#allocation3 + $0xd9] sm:$0xff]
      %v4363 = vld [vmem:[#allocation3 + $0xe1] sm:$0xff]
      %v4364 = vld [vmem:[#allocation3 + $0xf1] sm:$0xff]
      %v4365 = vld [vmem:[#allocation3 + $0xf9] sm:$0xff]
      %v4366 = vld [vmem:[#allocation3 + $0x109] sm:$0xff]
      %v4367 = vld [vmem:[#allocation3 + $0x111] sm:$0xff]
      %v4368 = vld [vmem:[#allocation3 + $0x121] sm:$0xff]
      %v4369 = vld [vmem:[#allocation3 + $0x129] sm:$0xff]
      %v4370 = vld [vmem:[#allocation3 + $0x139] sm:$0xff]
      %v4371 = vld [vmem:[#allocation3 + $0x141] sm:$0xff]
      %v4372 = vld [vmem:[#allocation3 + $0x151] sm:$0xff]
      %v4373 = vld [vmem:[#allocation3 + $0x159] sm:$0xff]
      %v4374 = vld [vmem:[#allocation3 + $0x169] sm:$0xff]
      %v4375 = vld [vmem:[#allocation3 + $0x171] sm:$0xff]
      %v4376 = vpack.c.bf16 %v4344, %v4344
      %v4377 = vpack.c.bf16 %v4345, %v4345
      %v4378 = vpack.c.bf16 %v4346, %v4346
      %v4379 = vpack.c.bf16 %v4347, %v4347
      %v4380 = vpack.c.bf16 %v4348, %v4348
      %v4381 = vpack.c.bf16 %v4349, %v4349
      %v4382 = vpack.c.bf16 %v4350, %v4350
      %v4383 = vpack.c.bf16 %v4351, %v4351
      %v4384 = vpack.c.bf16 %v4352, %v4352
      %v4385 = vpack.c.bf16 %v4353, %v4353
      %v4386 = vpack.c.bf16 %v4354, %v4354
      %v4387 = vpack.c.bf16 %v4355, %v4355
      %v4388 = vpack.c.bf16 %v4356, %v4356
      %v4389 = vpack.c.bf16 %v4357, %v4357
      %v4390 = vpack.c.bf16 %v4358, %v4358
      %v4391 = vpack.c.bf16 %v4359, %v4359
      %v4392 = vpack.c.bf16 %v4360, %v4360
      %v4393 = vpack.c.bf16 %v4361, %v4361
      %v4394 = vpack.c.bf16 %v4362, %v4362
      %v4395 = vpack.c.bf16 %v4363, %v4363
      %v4396 = vpack.c.bf16 %v4364, %v4364
      %v4397 = vpack.c.bf16 %v4365, %v4365
      %v4398 = vpack.c.bf16 %v4366, %v4366
      %v4399 = vpack.c.bf16 %v4367, %v4367
      %v4400 = vpack.c.bf16 %v4368, %v4368
      %v4401 = vpack.c.bf16 %v4369, %v4369
      %v4402 = vpack.c.bf16 %v4370, %v4370
      %v4403 = vpack.c.bf16 %v4371, %v4371
      %v4404 = vpack.c.bf16 %v4372, %v4372
      %v4405 = vpack.c.bf16 %v4373, %v4373
      %v4406 = vpack.c.bf16 %v4374, %v4374
      %v4407 = vpack.c.bf16 %v4375, %v4375
      %s4408 = scalar_lea.vmem %s4, 64
      %v4409 = vld [vmem:[%s4408] sm:$0xf]
      %v4410 = vld [vmem:[%s4408 + $0x4] sm:$0xf]
      %v4411 = vld [vmem:[%s4408 + $0x8] sm:$0xf]
      %v4412 = vld [vmem:[%s4408 + $0xc] sm:$0xf]
      %v4413 = vld [vmem:[%s4408 + $0x10] sm:$0xf]
      %v4414 = vld [vmem:[%s4408 + $0x14] sm:$0xf]
      %v4415 = vld [vmem:[%s4408 + $0x18] sm:$0xf]
      %v4416 = vld [vmem:[%s4408 + $0x1c] sm:$0xf]
      %v4417 = vld [vmem:[%s4408 + $0x20] sm:$0xf]
      %v4418 = vld [vmem:[%s4408 + $0x24] sm:$0xf]
      %v4419 = vld [vmem:[%s4408 + $0x28] sm:$0xf]
      %v4420 = vld [vmem:[%s4408 + $0x2c] sm:$0xf]
      %v4421 = vld [vmem:[%s4408 + $0x30] sm:$0xf]
      %v4422 = vld [vmem:[%s4408 + $0x34] sm:$0xf]
      %v4423 = vld [vmem:[%s4408 + $0x38] sm:$0xf]
      %v4424 = vld [vmem:[%s4408 + $0x3c] sm:$0xf]
      %v4457 = vunpack.c.l.b16 %v4376
      %v4458 = vunpack.c.l.b16 %v4377
      %v4459 = vunpack.c.l.b16 %v4378
      %v4460 = vunpack.c.l.b16 %v4379
      %v4461 = vunpack.c.l.b16 %v4380
      %v4462 = vunpack.c.l.b16 %v4381
      %v4463 = vunpack.c.l.b16 %v4382
      %v4464 = vunpack.c.l.b16 %v4383
      %v4465 = vunpack.c.l.b16 %v4384
      %v4466 = vunpack.c.l.b16 %v4385
      %v4467 = vunpack.c.l.b16 %v4386
      %v4468 = vunpack.c.l.b16 %v4387
      %v4469 = vunpack.c.l.b16 %v4388
      %v4470 = vunpack.c.l.b16 %v4389
      %v4471 = vunpack.c.l.b16 %v4390
      %v4472 = vunpack.c.l.b16 %v4391
      %v4473 = vunpack.c.l.b16 %v4392
      %v4474 = vunpack.c.l.b16 %v4393
      %v4475 = vunpack.c.l.b16 %v4394
      %v4476 = vunpack.c.l.b16 %v4395
      %v4477 = vunpack.c.l.b16 %v4396
      %v4478 = vunpack.c.l.b16 %v4397
      %v4479 = vunpack.c.l.b16 %v4398
      %v4480 = vunpack.c.l.b16 %v4399
      %v4481 = vunpack.c.l.b16 %v4400
      %v4482 = vunpack.c.l.b16 %v4401
      %v4483 = vunpack.c.l.b16 %v4402
      %v4484 = vunpack.c.l.b16 %v4403
      %v4485 = vunpack.c.l.b16 %v4404
      %v4486 = vunpack.c.l.b16 %v4405
      %v4487 = vunpack.c.l.b16 %v4406
      %v4488 = vunpack.c.l.b16 %v4407
      %v4489 = vpack.c.b16 %v4458, %v4457
      %v4490 = vpack.c.b16 %v4460, %v4459
      %v4491 = vpack.c.b16 %v4462, %v4461
      %v4492 = vpack.c.b16 %v4464, %v4463
      %v4493 = vpack.c.b16 %v4466, %v4465
      %v4494 = vpack.c.b16 %v4468, %v4467
      %v4495 = vpack.c.b16 %v4470, %v4469
      %v4496 = vpack.c.b16 %v4472, %v4471
      %v4497 = vpack.c.b16 %v4474, %v4473
      %v4498 = vpack.c.b16 %v4476, %v4475
      %v4499 = vpack.c.b16 %v4478, %v4477
      %v4500 = vpack.c.b16 %v4480, %v4479
      %v4501 = vpack.c.b16 %v4482, %v4481
      %v4502 = vpack.c.b16 %v4484, %v4483
      %v4503 = vpack.c.b16 %v4486, %v4485
      %v4504 = vpack.c.b16 %v4488, %v4487
      %v4537 = vunpack.c.l.b16 %v4409
      %v4538 = vunpack.c.l.b16 %v4410
      %v4539 = vunpack.c.l.b16 %v4411
      %v4540 = vunpack.c.l.b16 %v4412
      %v4541 = vunpack.c.l.b16 %v4413
      %v4542 = vunpack.c.l.b16 %v4414
      %v4543 = vunpack.c.l.b16 %v4415
      %v4544 = vunpack.c.l.b16 %v4416
      %v4545 = vunpack.c.l.b16 %v4417
      %v4546 = vunpack.c.l.b16 %v4418
      %v4547 = vunpack.c.l.b16 %v4419
      %v4548 = vunpack.c.l.b16 %v4420
      %v4549 = vunpack.c.l.b16 %v4421
      %v4550 = vunpack.c.l.b16 %v4422
      %v4551 = vunpack.c.l.b16 %v4423
      %v4552 = vunpack.c.l.b16 %v4424
      %v4553 = vpack.c.b16 %v4538, %v4537
      %v4554 = vpack.c.b16 %v4540, %v4539
      %v4555 = vpack.c.b16 %v4542, %v4541
      %v4556 = vpack.c.b16 %v4544, %v4543
      %v4557 = vpack.c.b16 %v4546, %v4545
      %v4558 = vpack.c.b16 %v4548, %v4547
      %v4559 = vpack.c.b16 %v4550, %v4549
      %v4560 = vpack.c.b16 %v4552, %v4551
      %4569 = vmatpush.bf16.msra.mxu0 %v4560
      %4570 = vmatpush.bf16.msra.mxu0 %v4559
      %4571 = vmatpush.bf16.msra.mxu0 %v4558
      %4572 = vmatpush.bf16.msra.mxu0 %v4557
      %4573 = vmatpush.bf16.msra.mxu0 %v4556
      %4574 = vmatpush.bf16.msra.mxu0 %v4555
      %4575 = vmatpush.bf16.msra.mxu0 %v4554
      %4576 = vmatpush.bf16.msra.mxu0 %v4553
      %4577 = vmatmul.bf16.gmra.mxu0 %v4489
      %v4578 = vpop.f32.mrf.mxu0
      %v4579 = vadd.f32 0.0, %v4578
      %v4580 = vpop.f32.mrf.mxu0
      %v4581 = vadd.f32 0.0, %v4580
      %4582 = vmatmul.bf16.gmra.mxu0 %v4490
      %v4583 = vpop.f32.mrf.mxu0
      %v4584 = vadd.f32 0.0, %v4583
      %v4585 = vpop.f32.mrf.mxu0
      %v4586 = vadd.f32 0.0, %v4585
      %4587 = vmatmul.bf16.gmra.mxu0 %v4491
      %v4588 = vpop.f32.mrf.mxu0
      %v4589 = vadd.f32 0.0, %v4588
      %v4590 = vpop.f32.mrf.mxu0
      %v4591 = vadd.f32 0.0, %v4590
      %4592 = vmatmul.bf16.gmra.mxu0 %v4492
      %v4593 = vpop.f32.mrf.mxu0
      %v4594 = vadd.f32 0.0, %v4593
      %v4595 = vpop.f32.mrf.mxu0
      %v4596 = vadd.f32 0.0, %v4595
      %4597 = vmatmul.bf16.gmra.mxu0 %v4493
      %v4598 = vpop.f32.mrf.mxu0
      %v4599 = vadd.f32 0.0, %v4598
      %v4600 = vpop.f32.mrf.mxu0
      %v4601 = vadd.f32 0.0, %v4600
      %4602 = vmatmul.bf16.gmra.mxu0 %v4494
      %v4603 = vpop.f32.mrf.mxu0
      %v4604 = vadd.f32 0.0, %v4603
      %v4605 = vpop.f32.mrf.mxu0
      %v4606 = vadd.f32 0.0, %v4605
      %4607 = vmatmul.bf16.gmra.mxu0 %v4495
      %v4608 = vpop.f32.mrf.mxu0
      %v4609 = vadd.f32 0.0, %v4608
      %v4610 = vpop.f32.mrf.mxu0
      %v4611 = vadd.f32 0.0, %v4610
      %4612 = vmatmul.bf16.gmra.mxu0 %v4496
      %v4613 = vpop.f32.mrf.mxu0
      %v4614 = vadd.f32 0.0, %v4613
      %v4615 = vpop.f32.mrf.mxu0
      %v4616 = vadd.f32 0.0, %v4615
      %4617 = vmatmul.bf16.gmra.mxu0 %v4497
      %v4618 = vpop.f32.mrf.mxu0
      %v4619 = vadd.f32 0.0, %v4618
      %v4620 = vpop.f32.mrf.mxu0
      %v4621 = vadd.f32 0.0, %v4620
      %4622 = vmatmul.bf16.gmra.mxu0 %v4498
      %v4623 = vpop.f32.mrf.mxu0
      %v4624 = vadd.f32 0.0, %v4623
      %v4625 = vpop.f32.mrf.mxu0
      %v4626 = vadd.f32 0.0, %v4625
      %4627 = vmatmul.bf16.gmra.mxu0 %v4499
      %v4628 = vpop.f32.mrf.mxu0
      %v4629 = vadd.f32 0.0, %v4628
      %v4630 = vpop.f32.mrf.mxu0
      %v4631 = vadd.f32 0.0, %v4630
      %4632 = vmatmul.bf16.gmra.mxu0 %v4500
      %v4633 = vpop.f32.mrf.mxu0
      %v4634 = vadd.f32 0.0, %v4633
      %v4635 = vpop.f32.mrf.mxu0
      %v4636 = vadd.f32 0.0, %v4635
      %4637 = vmatmul.bf16.gmra.mxu0 %v4501
      %v4638 = vpop.f32.mrf.mxu0
      %v4639 = vadd.f32 0.0, %v4638
      %v4640 = vpop.f32.mrf.mxu0
      %v4641 = vadd.f32 0.0, %v4640
      %4642 = vmatmul.bf16.gmra.mxu0 %v4502
      %v4643 = vpop.f32.mrf.mxu0
      %v4644 = vadd.f32 0.0, %v4643
      %v4645 = vpop.f32.mrf.mxu0
      %v4646 = vadd.f32 0.0, %v4645
      %4647 = vmatmul.bf16.gmra.mxu0 %v4503
      %v4648 = vpop.f32.mrf.mxu0
      %v4649 = vadd.f32 0.0, %v4648
      %v4650 = vpop.f32.mrf.mxu0
      %v4651 = vadd.f32 0.0, %v4650
      %4652 = vmatmul.bf16.gmra.mxu0 %v4504
      %v4653 = vpop.f32.mrf.mxu0
      %v4654 = vadd.f32 0.0, %v4653
      %v4655 = vpop.f32.mrf.mxu0
      %v4656 = vadd.f32 0.0, %v4655
      %4657 = vdwg.mxu0
      %v4658 = vld [vmem:[#allocation4] sm:$0xff]
      %v4659 = vld [vmem:[#allocation4 + $0x8] sm:$0xff]
      %v4660 = vld [vmem:[#allocation4 + $0x10] sm:$0xff]
      %v4661 = vld [vmem:[#allocation4 + $0x18] sm:$0xff]
      %v4662 = vld [vmem:[#allocation4 + $0x20] sm:$0xff]
      %v4663 = vld [vmem:[#allocation4 + $0x28] sm:$0xff]
      %v4664 = vld [vmem:[#allocation4 + $0x30] sm:$0xff]
      %v4665 = vld [vmem:[#allocation4 + $0x38] sm:$0xff]
      %v4666 = vld [vmem:[#allocation4 + $0x40] sm:$0xff]
      %v4667 = vld [vmem:[#allocation4 + $0x48] sm:$0xff]
      %v4668 = vld [vmem:[#allocation4 + $0x50] sm:$0xff]
      %v4669 = vld [vmem:[#allocation4 + $0x58] sm:$0xff]
      %v4670 = vld [vmem:[#allocation4 + $0x60] sm:$0xff]
      %v4671 = vld [vmem:[#allocation4 + $0x68] sm:$0xff]
      %v4672 = vld [vmem:[#allocation4 + $0x70] sm:$0xff]
      %v4673 = vld [vmem:[#allocation4 + $0x78] sm:$0xff]
      %v4674 = vld [vmem:[#allocation4 + $0x80] sm:$0xff]
      %v4675 = vld [vmem:[#allocation4 + $0x88] sm:$0xff]
      %v4676 = vld [vmem:[#allocation4 + $0x90] sm:$0xff]
      %v4677 = vld [vmem:[#allocation4 + $0x98] sm:$0xff]
      %v4678 = vld [vmem:[#allocation4 + $0xa0] sm:$0xff]
      %v4679 = vld [vmem:[#allocation4 + $0xa8] sm:$0xff]
      %v4680 = vld [vmem:[#allocation4 + $0xb0] sm:$0xff]
      %v4681 = vld [vmem:[#allocation4 + $0xb8] sm:$0xff]
      %v4682 = vld [vmem:[#allocation4 + $0xc0] sm:$0xff]
      %v4683 = vld [vmem:[#allocation4 + $0xc8] sm:$0xff]
      %v4684 = vld [vmem:[#allocation4 + $0xd0] sm:$0xff]
      %v4685 = vld [vmem:[#allocation4 + $0xd8] sm:$0xff]
      %v4686 = vld [vmem:[#allocation4 + $0xe0] sm:$0xff]
      %v4687 = vld [vmem:[#allocation4 + $0xe8] sm:$0xff]
      %v4688 = vld [vmem:[#allocation4 + $0xf0] sm:$0xff]
      %v4689 = vld [vmem:[#allocation4 + $0xf8] sm:$0xff]
      %v4690 = vadd.f32 %v4658, %v4579
      %v4691 = vadd.f32 %v4659, %v4581
      %v4692 = vadd.f32 %v4660, %v4584
      %v4693 = vadd.f32 %v4661, %v4586
      %v4694 = vadd.f32 %v4662, %v4589
      %v4695 = vadd.f32 %v4663, %v4591
      %v4696 = vadd.f32 %v4664, %v4594
      %v4697 = vadd.f32 %v4665, %v4596
      %v4698 = vadd.f32 %v4666, %v4599
      %v4699 = vadd.f32 %v4667, %v4601
      %v4700 = vadd.f32 %v4668, %v4604
      %v4701 = vadd.f32 %v4669, %v4606
      %v4702 = vadd.f32 %v4670, %v4609
      %v4703 = vadd.f32 %v4671, %v4611
      %v4704 = vadd.f32 %v4672, %v4614
      %v4705 = vadd.f32 %v4673, %v4616
      %v4706 = vadd.f32 %v4674, %v4619
      %v4707 = vadd.f32 %v4675, %v4621
      %v4708 = vadd.f32 %v4676, %v4624
      %v4709 = vadd.f32 %v4677, %v4626
      %v4710 = vadd.f32 %v4678, %v4629
      %v4711 = vadd.f32 %v4679, %v4631
      %v4712 = vadd.f32 %v4680, %v4634
      %v4713 = vadd.f32 %v4681, %v4636
      %v4714 = vadd.f32 %v4682, %v4639
      %v4715 = vadd.f32 %v4683, %v4641
      %v4716 = vadd.f32 %v4684, %v4644
      %v4717 = vadd.f32 %v4685, %v4646
      %v4718 = vadd.f32 %v4686, %v4649
      %v4719 = vadd.f32 %v4687, %v4651
      %v4720 = vadd.f32 %v4688, %v4654
      %v4721 = vadd.f32 %v4689, %v4656
      %4722 = vst [vmem:[#allocation4] sm:$0xff] %v4690
      %4723 = vst [vmem:[#allocation4 + $0x8] sm:$0xff] %v4691
      %4724 = vst [vmem:[#allocation4 + $0x10] sm:$0xff] %v4692
      %4725 = vst [vmem:[#allocation4 + $0x18] sm:$0xff] %v4693
      %4726 = vst [vmem:[#allocation4 + $0x20] sm:$0xff] %v4694
      %4727 = vst [vmem:[#allocation4 + $0x28] sm:$0xff] %v4695
      %4728 = vst [vmem:[#allocation4 + $0x30] sm:$0xff] %v4696
      %4729 = vst [vmem:[#allocation4 + $0x38] sm:$0xff] %v4697
      %4730 = vst [vmem:[#allocation4 + $0x40] sm:$0xff] %v4698
      %4731 = vst [vmem:[#allocation4 + $0x48] sm:$0xff] %v4699
      %4732 = vst [vmem:[#allocation4 + $0x50] sm:$0xff] %v4700
      %4733 = vst [vmem:[#allocation4 + $0x58] sm:$0xff] %v4701
      %4734 = vst [vmem:[#allocation4 + $0x60] sm:$0xff] %v4702
      %4735 = vst [vmem:[#allocation4 + $0x68] sm:$0xff] %v4703
      %4736 = vst [vmem:[#allocation4 + $0x70] sm:$0xff] %v4704
      %4737 = vst [vmem:[#allocation4 + $0x78] sm:$0xff] %v4705
      %4738 = vst [vmem:[#allocation4 + $0x80] sm:$0xff] %v4706
      %4739 = vst [vmem:[#allocation4 + $0x88] sm:$0xff] %v4707
      %4740 = vst [vmem:[#allocation4 + $0x90] sm:$0xff] %v4708
      %4741 = vst [vmem:[#allocation4 + $0x98] sm:$0xff] %v4709
      %4742 = vst [vmem:[#allocation4 + $0xa0] sm:$0xff] %v4710
      %4743 = vst [vmem:[#allocation4 + $0xa8] sm:$0xff] %v4711
      %4744 = vst [vmem:[#allocation4 + $0xb0] sm:$0xff] %v4712
      %4745 = vst [vmem:[#allocation4 + $0xb8] sm:$0xff] %v4713
      %4746 = vst [vmem:[#allocation4 + $0xc0] sm:$0xff] %v4714
      %4747 = vst [vmem:[#allocation4 + $0xc8] sm:$0xff] %v4715
      %4748 = vst [vmem:[#allocation4 + $0xd0] sm:$0xff] %v4716
      %4749 = vst [vmem:[#allocation4 + $0xd8] sm:$0xff] %v4717
      %4750 = vst [vmem:[#allocation4 + $0xe0] sm:$0xff] %v4718
      %4751 = vst [vmem:[#allocation4 + $0xe8] sm:$0xff] %v4719
      %4752 = vst [vmem:[#allocation4 + $0xf0] sm:$0xff] %v4720
      %4753 = vst [vmem:[#allocation4 + $0xf8] sm:$0xff] %v4721
      %v4754 = vld [vmem:[#allocation3 + $0x2] sm:$0xff]
      %v4755 = vld [vmem:[#allocation3 + $0xa] sm:$0xff]
      %v4756 = vld [vmem:[#allocation3 + $0x1a] sm:$0xff]
      %v4757 = vld [vmem:[#allocation3 + $0x22] sm:$0xff]
      %v4758 = vld [vmem:[#allocation3 + $0x32] sm:$0xff]
      %v4759 = vld [vmem:[#allocation3 + $0x3a] sm:$0xff]
      %v4760 = vld [vmem:[#allocation3 + $0x4a] sm:$0xff]
      %v4761 = vld [vmem:[#allocation3 + $0x52] sm:$0xff]
      %v4762 = vld [vmem:[#allocation3 + $0x62] sm:$0xff]
      %v4763 = vld [vmem:[#allocation3 + $0x6a] sm:$0xff]
      %v4764 = vld [vmem:[#allocation3 + $0x7a] sm:$0xff]
      %v4765 = vld [vmem:[#allocation3 + $0x82] sm:$0xff]
      %v4766 = vld [vmem:[#allocation3 + $0x92] sm:$0xff]
      %v4767 = vld [vmem:[#allocation3 + $0x9a] sm:$0xff]
      %v4768 = vld [vmem:[#allocation3 + $0xaa] sm:$0xff]
      %v4769 = vld [vmem:[#allocation3 + $0xb2] sm:$0xff]
      %v4770 = vld [vmem:[#allocation3 + $0xc2] sm:$0xff]
      %v4771 = vld [vmem:[#allocation3 + $0xca] sm:$0xff]
      %v4772 = vld [vmem:[#allocation3 + $0xda] sm:$0xff]
      %v4773 = vld [vmem:[#allocation3 + $0xe2] sm:$0xff]
      %v4774 = vld [vmem:[#allocation3 + $0xf2] sm:$0xff]
      %v4775 = vld [vmem:[#allocation3 + $0xfa] sm:$0xff]
      %v4776 = vld [vmem:[#allocation3 + $0x10a] sm:$0xff]
      %v4777 = vld [vmem:[#allocation3 + $0x112] sm:$0xff]
      %v4778 = vld [vmem:[#allocation3 + $0x122] sm:$0xff]
      %v4779 = vld [vmem:[#allocation3 + $0x12a] sm:$0xff]
      %v4780 = vld [vmem:[#allocation3 + $0x13a] sm:$0xff]
      %v4781 = vld [vmem:[#allocation3 + $0x142] sm:$0xff]
      %v4782 = vld [vmem:[#allocation3 + $0x152] sm:$0xff]
      %v4783 = vld [vmem:[#allocation3 + $0x15a] sm:$0xff]
      %v4784 = vld [vmem:[#allocation3 + $0x16a] sm:$0xff]
      %v4785 = vld [vmem:[#allocation3 + $0x172] sm:$0xff]
      %v4786 = vpack.c.bf16 %v4754, %v4754
      %v4787 = vpack.c.bf16 %v4755, %v4755
      %v4788 = vpack.c.bf16 %v4756, %v4756
      %v4789 = vpack.c.bf16 %v4757, %v4757
      %v4790 = vpack.c.bf16 %v4758, %v4758
      %v4791 = vpack.c.bf16 %v4759, %v4759
      %v4792 = vpack.c.bf16 %v4760, %v4760
      %v4793 = vpack.c.bf16 %v4761, %v4761
      %v4794 = vpack.c.bf16 %v4762, %v4762
      %v4795 = vpack.c.bf16 %v4763, %v4763
      %v4796 = vpack.c.bf16 %v4764, %v4764
      %v4797 = vpack.c.bf16 %v4765, %v4765
      %v4798 = vpack.c.bf16 %v4766, %v4766
      %v4799 = vpack.c.bf16 %v4767, %v4767
      %v4800 = vpack.c.bf16 %v4768, %v4768
      %v4801 = vpack.c.bf16 %v4769, %v4769
      %v4802 = vpack.c.bf16 %v4770, %v4770
      %v4803 = vpack.c.bf16 %v4771, %v4771
      %v4804 = vpack.c.bf16 %v4772, %v4772
      %v4805 = vpack.c.bf16 %v4773, %v4773
      %v4806 = vpack.c.bf16 %v4774, %v4774
      %v4807 = vpack.c.bf16 %v4775, %v4775
      %v4808 = vpack.c.bf16 %v4776, %v4776
      %v4809 = vpack.c.bf16 %v4777, %v4777
      %v4810 = vpack.c.bf16 %v4778, %v4778
      %v4811 = vpack.c.bf16 %v4779, %v4779
      %v4812 = vpack.c.bf16 %v4780, %v4780
      %v4813 = vpack.c.bf16 %v4781, %v4781
      %v4814 = vpack.c.bf16 %v4782, %v4782
      %v4815 = vpack.c.bf16 %v4783, %v4783
      %v4816 = vpack.c.bf16 %v4784, %v4784
      %v4817 = vpack.c.bf16 %v4785, %v4785
      %s4818 = scalar_lea.vmem %s4, 128
      %v4819 = vld [vmem:[%s4818] sm:$0xf]
      %v4820 = vld [vmem:[%s4818 + $0x4] sm:$0xf]
      %v4821 = vld [vmem:[%s4818 + $0x8] sm:$0xf]
      %v4822 = vld [vmem:[%s4818 + $0xc] sm:$0xf]
      %v4823 = vld [vmem:[%s4818 + $0x10] sm:$0xf]
      %v4824 = vld [vmem:[%s4818 + $0x14] sm:$0xf]
      %v4825 = vld [vmem:[%s4818 + $0x18] sm:$0xf]
      %v4826 = vld [vmem:[%s4818 + $0x1c] sm:$0xf]
      %v4827 = vld [vmem:[%s4818 + $0x20] sm:$0xf]
      %v4828 = vld [vmem:[%s4818 + $0x24] sm:$0xf]
      %v4829 = vld [vmem:[%s4818 + $0x28] sm:$0xf]
      %v4830 = vld [vmem:[%s4818 + $0x2c] sm:$0xf]
      %v4831 = vld [vmem:[%s4818 + $0x30] sm:$0xf]
      %v4832 = vld [vmem:[%s4818 + $0x34] sm:$0xf]
      %v4833 = vld [vmem:[%s4818 + $0x38] sm:$0xf]
      %v4834 = vld [vmem:[%s4818 + $0x3c] sm:$0xf]
      %v4867 = vunpack.c.l.b16 %v4786
      %v4868 = vunpack.c.l.b16 %v4787
      %v4869 = vunpack.c.l.b16 %v4788
      %v4870 = vunpack.c.l.b16 %v4789
      %v4871 = vunpack.c.l.b16 %v4790
      %v4872 = vunpack.c.l.b16 %v4791
      %v4873 = vunpack.c.l.b16 %v4792
      %v4874 = vunpack.c.l.b16 %v4793
      %v4875 = vunpack.c.l.b16 %v4794
      %v4876 = vunpack.c.l.b16 %v4795
      %v4877 = vunpack.c.l.b16 %v4796
      %v4878 = vunpack.c.l.b16 %v4797
      %v4879 = vunpack.c.l.b16 %v4798
      %v4880 = vunpack.c.l.b16 %v4799
      %v4881 = vunpack.c.l.b16 %v4800
      %v4882 = vunpack.c.l.b16 %v4801
      %v4883 = vunpack.c.l.b16 %v4802
      %v4884 = vunpack.c.l.b16 %v4803
      %v4885 = vunpack.c.l.b16 %v4804
      %v4886 = vunpack.c.l.b16 %v4805
      %v4887 = vunpack.c.l.b16 %v4806
      %v4888 = vunpack.c.l.b16 %v4807
      %v4889 = vunpack.c.l.b16 %v4808
      %v4890 = vunpack.c.l.b16 %v4809
      %v4891 = vunpack.c.l.b16 %v4810
      %v4892 = vunpack.c.l.b16 %v4811
      %v4893 = vunpack.c.l.b16 %v4812
      %v4894 = vunpack.c.l.b16 %v4813
      %v4895 = vunpack.c.l.b16 %v4814
      %v4896 = vunpack.c.l.b16 %v4815
      %v4897 = vunpack.c.l.b16 %v4816
      %v4898 = vunpack.c.l.b16 %v4817
      %v4899 = vpack.c.b16 %v4868, %v4867
      %v4900 = vpack.c.b16 %v4870, %v4869
      %v4901 = vpack.c.b16 %v4872, %v4871
      %v4902 = vpack.c.b16 %v4874, %v4873
      %v4903 = vpack.c.b16 %v4876, %v4875
      %v4904 = vpack.c.b16 %v4878, %v4877
      %v4905 = vpack.c.b16 %v4880, %v4879
      %v4906 = vpack.c.b16 %v4882, %v4881
      %v4907 = vpack.c.b16 %v4884, %v4883
      %v4908 = vpack.c.b16 %v4886, %v4885
      %v4909 = vpack.c.b16 %v4888, %v4887
      %v4910 = vpack.c.b16 %v4890, %v4889
      %v4911 = vpack.c.b16 %v4892, %v4891
      %v4912 = vpack.c.b16 %v4894, %v4893
      %v4913 = vpack.c.b16 %v4896, %v4895
      %v4914 = vpack.c.b16 %v4898, %v4897
      %v4947 = vunpack.c.l.b16 %v4819
      %v4948 = vunpack.c.l.b16 %v4820
      %v4949 = vunpack.c.l.b16 %v4821
      %v4950 = vunpack.c.l.b16 %v4822
      %v4951 = vunpack.c.l.b16 %v4823
      %v4952 = vunpack.c.l.b16 %v4824
      %v4953 = vunpack.c.l.b16 %v4825
      %v4954 = vunpack.c.l.b16 %v4826
      %v4955 = vunpack.c.l.b16 %v4827
      %v4956 = vunpack.c.l.b16 %v4828
      %v4957 = vunpack.c.l.b16 %v4829
      %v4958 = vunpack.c.l.b16 %v4830
      %v4959 = vunpack.c.l.b16 %v4831
      %v4960 = vunpack.c.l.b16 %v4832
      %v4961 = vunpack.c.l.b16 %v4833
      %v4962 = vunpack.c.l.b16 %v4834
      %v4963 = vpack.c.b16 %v4948, %v4947
      %v4964 = vpack.c.b16 %v4950, %v4949
      %v4965 = vpack.c.b16 %v4952, %v4951
      %v4966 = vpack.c.b16 %v4954, %v4953
      %v4967 = vpack.c.b16 %v4956, %v4955
      %v4968 = vpack.c.b16 %v4958, %v4957
      %v4969 = vpack.c.b16 %v4960, %v4959
      %v4970 = vpack.c.b16 %v4962, %v4961
      %4979 = vmatpush.bf16.msra.mxu0 %v4970
      %4980 = vmatpush.bf16.msra.mxu0 %v4969
      %4981 = vmatpush.bf16.msra.mxu0 %v4968
      %4982 = vmatpush.bf16.msra.mxu0 %v4967
      %4983 = vmatpush.bf16.msra.mxu0 %v4966
      %4984 = vmatpush.bf16.msra.mxu0 %v4965
      %4985 = vmatpush.bf16.msra.mxu0 %v4964
      %4986 = vmatpush.bf16.msra.mxu0 %v4963
      %4987 = vmatmul.bf16.gmra.mxu0 %v4899
      %v4988 = vpop.f32.mrf.mxu0
      %v4989 = vadd.f32 0.0, %v4988
      %v4990 = vpop.f32.mrf.mxu0
      %v4991 = vadd.f32 0.0, %v4990
      %4992 = vmatmul.bf16.gmra.mxu0 %v4900
      %v4993 = vpop.f32.mrf.mxu0
      %v4994 = vadd.f32 0.0, %v4993
      %v4995 = vpop.f32.mrf.mxu0
      %v4996 = vadd.f32 0.0, %v4995
      %4997 = vmatmul.bf16.gmra.mxu0 %v4901
      %v4998 = vpop.f32.mrf.mxu0
      %v4999 = vadd.f32 0.0, %v4998
      %v5000 = vpop.f32.mrf.mxu0
      %v5001 = vadd.f32 0.0, %v5000
      %5002 = vmatmul.bf16.gmra.mxu0 %v4902
      %v5003 = vpop.f32.mrf.mxu0
      %v5004 = vadd.f32 0.0, %v5003
      %v5005 = vpop.f32.mrf.mxu0
      %v5006 = vadd.f32 0.0, %v5005
      %5007 = vmatmul.bf16.gmra.mxu0 %v4903
      %v5008 = vpop.f32.mrf.mxu0
      %v5009 = vadd.f32 0.0, %v5008
      %v5010 = vpop.f32.mrf.mxu0
      %v5011 = vadd.f32 0.0, %v5010
      %5012 = vmatmul.bf16.gmra.mxu0 %v4904
      %v5013 = vpop.f32.mrf.mxu0
      %v5014 = vadd.f32 0.0, %v5013
      %v5015 = vpop.f32.mrf.mxu0
      %v5016 = vadd.f32 0.0, %v5015
      %5017 = vmatmul.bf16.gmra.mxu0 %v4905
      %v5018 = vpop.f32.mrf.mxu0
      %v5019 = vadd.f32 0.0, %v5018
      %v5020 = vpop.f32.mrf.mxu0
      %v5021 = vadd.f32 0.0, %v5020
      %5022 = vmatmul.bf16.gmra.mxu0 %v4906
      %v5023 = vpop.f32.mrf.mxu0
      %v5024 = vadd.f32 0.0, %v5023
      %v5025 = vpop.f32.mrf.mxu0
      %v5026 = vadd.f32 0.0, %v5025
      %5027 = vmatmul.bf16.gmra.mxu0 %v4907
      %v5028 = vpop.f32.mrf.mxu0
      %v5029 = vadd.f32 0.0, %v5028
      %v5030 = vpop.f32.mrf.mxu0
      %v5031 = vadd.f32 0.0, %v5030
      %5032 = vmatmul.bf16.gmra.mxu0 %v4908
      %v5033 = vpop.f32.mrf.mxu0
      %v5034 = vadd.f32 0.0, %v5033
      %v5035 = vpop.f32.mrf.mxu0
      %v5036 = vadd.f32 0.0, %v5035
      %5037 = vmatmul.bf16.gmra.mxu0 %v4909
      %v5038 = vpop.f32.mrf.mxu0
      %v5039 = vadd.f32 0.0, %v5038
      %v5040 = vpop.f32.mrf.mxu0
      %v5041 = vadd.f32 0.0, %v5040
      %5042 = vmatmul.bf16.gmra.mxu0 %v4910
      %v5043 = vpop.f32.mrf.mxu0
      %v5044 = vadd.f32 0.0, %v5043
      %v5045 = vpop.f32.mrf.mxu0
      %v5046 = vadd.f32 0.0, %v5045
      %5047 = vmatmul.bf16.gmra.mxu0 %v4911
      %v5048 = vpop.f32.mrf.mxu0
      %v5049 = vadd.f32 0.0, %v5048
      %v5050 = vpop.f32.mrf.mxu0
      %v5051 = vadd.f32 0.0, %v5050
      %5052 = vmatmul.bf16.gmra.mxu0 %v4912
      %v5053 = vpop.f32.mrf.mxu0
      %v5054 = vadd.f32 0.0, %v5053
      %v5055 = vpop.f32.mrf.mxu0
      %v5056 = vadd.f32 0.0, %v5055
      %5057 = vmatmul.bf16.gmra.mxu0 %v4913
      %v5058 = vpop.f32.mrf.mxu0
      %v5059 = vadd.f32 0.0, %v5058
      %v5060 = vpop.f32.mrf.mxu0
      %v5061 = vadd.f32 0.0, %v5060
      %5062 = vmatmul.bf16.gmra.mxu0 %v4914
      %v5063 = vpop.f32.mrf.mxu0
      %v5064 = vadd.f32 0.0, %v5063
      %v5065 = vpop.f32.mrf.mxu0
      %v5066 = vadd.f32 0.0, %v5065
      %5067 = vdwg.mxu0
      %v5068 = vld [vmem:[#allocation4] sm:$0xff]
      %v5069 = vld [vmem:[#allocation4 + $0x8] sm:$0xff]
      %v5070 = vld [vmem:[#allocation4 + $0x10] sm:$0xff]
      %v5071 = vld [vmem:[#allocation4 + $0x18] sm:$0xff]
      %v5072 = vld [vmem:[#allocation4 + $0x20] sm:$0xff]
      %v5073 = vld [vmem:[#allocation4 + $0x28] sm:$0xff]
      %v5074 = vld [vmem:[#allocation4 + $0x30] sm:$0xff]
      %v5075 = vld [vmem:[#allocation4 + $0x38] sm:$0xff]
      %v5076 = vld [vmem:[#allocation4 + $0x40] sm:$0xff]
      %v5077 = vld [vmem:[#allocation4 + $0x48] sm:$0xff]
      %v5078 = vld [vmem:[#allocation4 + $0x50] sm:$0xff]
      %v5079 = vld [vmem:[#allocation4 + $0x58] sm:$0xff]
      %v5080 = vld [vmem:[#allocation4 + $0x60] sm:$0xff]
      %v5081 = vld [vmem:[#allocation4 + $0x68] sm:$0xff]
      %v5082 = vld [vmem:[#allocation4 + $0x70] sm:$0xff]
      %v5083 = vld [vmem:[#allocation4 + $0x78] sm:$0xff]
      %v5084 = vld [vmem:[#allocation4 + $0x80] sm:$0xff]
      %v5085 = vld [vmem:[#allocation4 + $0x88] sm:$0xff]
      %v5086 = vld [vmem:[#allocation4 + $0x90] sm:$0xff]
      %v5087 = vld [vmem:[#allocation4 + $0x98] sm:$0xff]
      %v5088 = vld [vmem:[#allocation4 + $0xa0] sm:$0xff]
      %v5089 = vld [vmem:[#allocation4 + $0xa8] sm:$0xff]
      %v5090 = vld [vmem:[#allocation4 + $0xb0] sm:$0xff]
      %v5091 = vld [vmem:[#allocation4 + $0xb8] sm:$0xff]
      %v5092 = vld [vmem:[#allocation4 + $0xc0] sm:$0xff]
      %v5093 = vld [vmem:[#allocation4 + $0xc8] sm:$0xff]
      %v5094 = vld [vmem:[#allocation4 + $0xd0] sm:$0xff]
      %v5095 = vld [vmem:[#allocation4 + $0xd8] sm:$0xff]
      %v5096 = vld [vmem:[#allocation4 + $0xe0] sm:$0xff]
      %v5097 = vld [vmem:[#allocation4 + $0xe8] sm:$0xff]
      %v5098 = vld [vmem:[#allocation4 + $0xf0] sm:$0xff]
      %v5099 = vld [vmem:[#allocation4 + $0xf8] sm:$0xff]
      %v5100 = vadd.f32 %v5068, %v4989
      %v5101 = vadd.f32 %v5069, %v4991
      %v5102 = vadd.f32 %v5070, %v4994
      %v5103 = vadd.f32 %v5071, %v4996
      %v5104 = vadd.f32 %v5072, %v4999
      %v5105 = vadd.f32 %v5073, %v5001
      %v5106 = vadd.f32 %v5074, %v5004
      %v5107 = vadd.f32 %v5075, %v5006
      %v5108 = vadd.f32 %v5076, %v5009
      %v5109 = vadd.f32 %v5077, %v5011
      %v5110 = vadd.f32 %v5078, %v5014
      %v5111 = vadd.f32 %v5079, %v5016
      %v5112 = vadd.f32 %v5080, %v5019
      %v5113 = vadd.f32 %v5081, %v5021
      %v5114 = vadd.f32 %v5082, %v5024
      %v5115 = vadd.f32 %v5083, %v5026
      %v5116 = vadd.f32 %v5084, %v5029
      %v5117 = vadd.f32 %v5085, %v5031
      %v5118 = vadd.f32 %v5086, %v5034
      %v5119 = vadd.f32 %v5087, %v5036
      %v5120 = vadd.f32 %v5088, %v5039
      %v5121 = vadd.f32 %v5089, %v5041
      %v5122 = vadd.f32 %v5090, %v5044
      %v5123 = vadd.f32 %v5091, %v5046
      %v5124 = vadd.f32 %v5092, %v5049
      %v5125 = vadd.f32 %v5093, %v5051
      %v5126 = vadd.f32 %v5094, %v5054
      %v5127 = vadd.f32 %v5095, %v5056
      %v5128 = vadd.f32 %v5096, %v5059
      %v5129 = vadd.f32 %v5097, %v5061
      %v5130 = vadd.f32 %v5098, %v5064
      %v5131 = vadd.f32 %v5099, %v5066
      %5132 = vst [vmem:[#allocation4] sm:$0xff] %v5100
      %5133 = vst [vmem:[#allocation4 + $0x8] sm:$0xff] %v5101
      %5134 = vst [vmem:[#allocation4 + $0x10] sm:$0xff] %v5102
      %5135 = vst [vmem:[#allocation4 + $0x18] sm:$0xff] %v5103
      %5136 = vst [vmem:[#allocation4 + $0x20] sm:$0xff] %v5104
      %5137 = vst [vmem:[#allocation4 + $0x28] sm:$0xff] %v5105
      %5138 = vst [vmem:[#allocation4 + $0x30] sm:$0xff] %v5106
      %5139 = vst [vmem:[#allocation4 + $0x38] sm:$0xff] %v5107
      %5140 = vst [vmem:[#allocation4 + $0x40] sm:$0xff] %v5108
      %5141 = vst [vmem:[#allocation4 + $0x48] sm:$0xff] %v5109
      %5142 = vst [vmem:[#allocation4 + $0x50] sm:$0xff] %v5110
      %5143 = vst [vmem:[#allocation4 + $0x58] sm:$0xff] %v5111
      %5144 = vst [vmem:[#allocation4 + $0x60] sm:$0xff] %v5112
      %5145 = vst [vmem:[#allocation4 + $0x68] sm:$0xff] %v5113
      %5146 = vst [vmem:[#allocation4 + $0x70] sm:$0xff] %v5114
      %5147 = vst [vmem:[#allocation4 + $0x78] sm:$0xff] %v5115
      %5148 = vst [vmem:[#allocation4 + $0x80] sm:$0xff] %v5116
      %5149 = vst [vmem:[#allocation4 + $0x88] sm:$0xff] %v5117
      %5150 = vst [vmem:[#allocation4 + $0x90] sm:$0xff] %v5118
      %5151 = vst [vmem:[#allocation4 + $0x98] sm:$0xff] %v5119
      %5152 = vst [vmem:[#allocation4 + $0xa0] sm:$0xff] %v5120
      %5153 = vst [vmem:[#allocation4 + $0xa8] sm:$0xff] %v5121
      %5154 = vst [vmem:[#allocation4 + $0xb0] sm:$0xff] %v5122
      %5155 = vst [vmem:[#allocation4 + $0xb8] sm:$0xff] %v5123
      %5156 = vst [vmem:[#allocation4 + $0xc0] sm:$0xff] %v5124
      %5157 = vst [vmem:[#allocation4 + $0xc8] sm:$0xff] %v5125
      %5158 = vst [vmem:[#allocation4 + $0xd0] sm:$0xff] %v5126
      %5159 = vst [vmem:[#allocation4 + $0xd8] sm:$0xff] %v5127
      %5160 = vst [vmem:[#allocation4 + $0xe0] sm:$0xff] %v5128
      %5161 = vst [vmem:[#allocation4 + $0xe8] sm:$0xff] %v5129
      %5162 = vst [vmem:[#allocation4 + $0xf0] sm:$0xff] %v5130
      %5163 = vst [vmem:[#allocation4 + $0xf8] sm:$0xff] %v5131
      %v5164 = vld [vmem:[%s3966] sm:$0xff]
      %v5165 = vld [vmem:[%s3966 + $0x8] sm:$0xff]
      %v5166 = vld [vmem:[%s3966 + $0x18] sm:$0xff]
      %v5167 = vld [vmem:[%s3966 + $0x20] sm:$0xff]
      %v5168 = vld [vmem:[%s3966 + $0x30] sm:$0xff]
      %v5169 = vld [vmem:[%s3966 + $0x38] sm:$0xff]
      %v5170 = vld [vmem:[%s3966 + $0x48] sm:$0xff]
      %v5171 = vld [vmem:[%s3966 + $0x50] sm:$0xff]
      %v5172 = vld [vmem:[%s3966 + $0x60] sm:$0xff]
      %v5173 = vld [vmem:[%s3966 + $0x68] sm:$0xff]
      %v5174 = vld [vmem:[%s3966 + $0x78] sm:$0xff]
      %v5175 = vld [vmem:[%s3966 + $0x80] sm:$0xff]
      %v5176 = vld [vmem:[%s3966 + $0x90] sm:$0xff]
      %v5177 = vld [vmem:[%s3966 + $0x98] sm:$0xff]
      %v5178 = vld [vmem:[%s3966 + $0xa8] sm:$0xff]
      %v5179 = vld [vmem:[%s3966 + $0xb0] sm:$0xff]
      %v5180 = vld [vmem:[%s3966 + $0xc0] sm:$0xff]
      %v5181 = vld [vmem:[%s3966 + $0xc8] sm:$0xff]
      %v5182 = vld [vmem:[%s3966 + $0xd8] sm:$0xff]
      %v5183 = vld [vmem:[%s3966 + $0xe0] sm:$0xff]
      %v5184 = vld [vmem:[%s3966 + $0xf0] sm:$0xff]
      %v5185 = vld [vmem:[%s3966 + $0xf8] sm:$0xff]
      %v5186 = vld [vmem:[%s3966 + $0x108] sm:$0xff]
      %v5187 = vld [vmem:[%s3966 + $0x110] sm:$0xff]
      %v5188 = vld [vmem:[%s3966 + $0x120] sm:$0xff]
      %v5189 = vld [vmem:[%s3966 + $0x128] sm:$0xff]
      %v5190 = vld [vmem:[%s3966 + $0x138] sm:$0xff]
      %v5191 = vld [vmem:[%s3966 + $0x140] sm:$0xff]
      %v5192 = vld [vmem:[%s3966 + $0x150] sm:$0xff]
      %v5193 = vld [vmem:[%s3966 + $0x158] sm:$0xff]
      %v5194 = vld [vmem:[%s3966 + $0x168] sm:$0xff]
      %v5195 = vld [vmem:[%s3966 + $0x170] sm:$0xff]
      %v5196 = vpack.c.bf16 %v5164, %v5164
      %v5197 = vpack.c.bf16 %v5165, %v5165
      %v5198 = vpack.c.bf16 %v5166, %v5166
      %v5199 = vpack.c.bf16 %v5167, %v5167
      %v5200 = vpack.c.bf16 %v5168, %v5168
      %v5201 = vpack.c.bf16 %v5169, %v5169
      %v5202 = vpack.c.bf16 %v5170, %v5170
      %v5203 = vpack.c.bf16 %v5171, %v5171
      %v5204 = vpack.c.bf16 %v5172, %v5172
      %v5205 = vpack.c.bf16 %v5173, %v5173
      %v5206 = vpack.c.bf16 %v5174, %v5174
      %v5207 = vpack.c.bf16 %v5175, %v5175
      %v5208 = vpack.c.bf16 %v5176, %v5176
      %v5209 = vpack.c.bf16 %v5177, %v5177
      %v5210 = vpack.c.bf16 %v5178, %v5178
      %v5211 = vpack.c.bf16 %v5179, %v5179
      %v5212 = vpack.c.bf16 %v5180, %v5180
      %v5213 = vpack.c.bf16 %v5181, %v5181
      %v5214 = vpack.c.bf16 %v5182, %v5182
      %v5215 = vpack.c.bf16 %v5183, %v5183
      %v5216 = vpack.c.bf16 %v5184, %v5184
      %v5217 = vpack.c.bf16 %v5185, %v5185
      %v5218 = vpack.c.bf16 %v5186, %v5186
      %v5219 = vpack.c.bf16 %v5187, %v5187
      %v5220 = vpack.c.bf16 %v5188, %v5188
      %v5221 = vpack.c.bf16 %v5189, %v5189
      %v5222 = vpack.c.bf16 %v5190, %v5190
      %v5223 = vpack.c.bf16 %v5191, %v5191
      %v5224 = vpack.c.bf16 %v5192, %v5192
      %v5225 = vpack.c.bf16 %v5193, %v5193
      %v5226 = vpack.c.bf16 %v5194, %v5194
      %v5227 = vpack.c.bf16 %v5195, %v5195
      %s5228 = scalar_lea.vmem %s4, 192
      %v5229 = vld [vmem:[%s5228] sm:$0xf]
      %v5230 = vld [vmem:[%s5228 + $0x4] sm:$0xf]
      %v5231 = vld [vmem:[%s5228 + $0x8] sm:$0xf]
      %v5232 = vld [vmem:[%s5228 + $0xc] sm:$0xf]
      %v5233 = vld [vmem:[%s5228 + $0x10] sm:$0xf]
      %v5234 = vld [vmem:[%s5228 + $0x14] sm:$0xf]
      %v5235 = vld [vmem:[%s5228 + $0x18] sm:$0xf]
      %v5236 = vld [vmem:[%s5228 + $0x1c] sm:$0xf]
      %v5237 = vld [vmem:[%s5228 + $0x20] sm:$0xf]
      %v5238 = vld [vmem:[%s5228 + $0x24] sm:$0xf]
      %v5239 = vld [vmem:[%s5228 + $0x28] sm:$0xf]
      %v5240 = vld [vmem:[%s5228 + $0x2c] sm:$0xf]
      %v5241 = vld [vmem:[%s5228 + $0x30] sm:$0xf]
      %v5242 = vld [vmem:[%s5228 + $0x34] sm:$0xf]
      %v5243 = vld [vmem:[%s5228 + $0x38] sm:$0xf]
      %v5244 = vld [vmem:[%s5228 + $0x3c] sm:$0xf]
      %v5277 = vunpack.c.l.b16 %v5196
      %v5278 = vunpack.c.l.b16 %v5197
      %v5279 = vunpack.c.l.b16 %v5198
      %v5280 = vunpack.c.l.b16 %v5199
      %v5281 = vunpack.c.l.b16 %v5200
      %v5282 = vunpack.c.l.b16 %v5201
      %v5283 = vunpack.c.l.b16 %v5202
      %v5284 = vunpack.c.l.b16 %v5203
      %v5285 = vunpack.c.l.b16 %v5204
      %v5286 = vunpack.c.l.b16 %v5205
      %v5287 = vunpack.c.l.b16 %v5206
      %v5288 = vunpack.c.l.b16 %v5207
      %v5289 = vunpack.c.l.b16 %v5208
      %v5290 = vunpack.c.l.b16 %v5209
      %v5291 = vunpack.c.l.b16 %v5210
      %v5292 = vunpack.c.l.b16 %v5211
      %v5293 = vunpack.c.l.b16 %v5212
      %v5294 = vunpack.c.l.b16 %v5213
      %v5295 = vunpack.c.l.b16 %v5214
      %v5296 = vunpack.c.l.b16 %v5215
      %v5297 = vunpack.c.l.b16 %v5216
      %v5298 = vunpack.c.l.b16 %v5217
      %v5299 = vunpack.c.l.b16 %v5218
      %v5300 = vunpack.c.l.b16 %v5219
      %v5301 = vunpack.c.l.b16 %v5220
      %v5302 = vunpack.c.l.b16 %v5221
      %v5303 = vunpack.c.l.b16 %v5222
      %v5304 = vunpack.c.l.b16 %v5223
      %v5305 = vunpack.c.l.b16 %v5224
      %v5306 = vunpack.c.l.b16 %v5225
      %v5307 = vunpack.c.l.b16 %v5226
      %v5308 = vunpack.c.l.b16 %v5227
      %v5309 = vpack.c.b16 %v5278, %v5277
      %v5310 = vpack.c.b16 %v5280, %v5279
      %v5311 = vpack.c.b16 %v5282, %v5281
      %v5312 = vpack.c.b16 %v5284, %v5283
      %v5313 = vpack.c.b16 %v5286, %v5285
      %v5314 = vpack.c.b16 %v5288, %v5287
      %v5315 = vpack.c.b16 %v5290, %v5289
      %v5316 = vpack.c.b16 %v5292, %v5291
      %v5317 = vpack.c.b16 %v5294, %v5293
      %v5318 = vpack.c.b16 %v5296, %v5295
      %v5319 = vpack.c.b16 %v5298, %v5297
      %v5320 = vpack.c.b16 %v5300, %v5299
      %v5321 = vpack.c.b16 %v5302, %v5301
      %v5322 = vpack.c.b16 %v5304, %v5303
      %v5323 = vpack.c.b16 %v5306, %v5305
      %v5324 = vpack.c.b16 %v5308, %v5307
      %v5357 = vunpack.c.l.b16 %v5229
      %v5358 = vunpack.c.l.b16 %v5230
      %v5359 = vunpack.c.l.b16 %v5231
      %v5360 = vunpack.c.l.b16 %v5232
      %v5361 = vunpack.c.l.b16 %v5233
      %v5362 = vunpack.c.l.b16 %v5234
      %v5363 = vunpack.c.l.b16 %v5235
      %v5364 = vunpack.c.l.b16 %v5236
      %v5365 = vunpack.c.l.b16 %v5237
      %v5366 = vunpack.c.l.b16 %v5238
      %v5367 = vunpack.c.l.b16 %v5239
      %v5368 = vunpack.c.l.b16 %v5240
      %v5369 = vunpack.c.l.b16 %v5241
      %v5370 = vunpack.c.l.b16 %v5242
      %v5371 = vunpack.c.l.b16 %v5243
      %v5372 = vunpack.c.l.b16 %v5244
      %v5373 = vpack.c.b16 %v5358, %v5357
      %v5374 = vpack.c.b16 %v5360, %v5359
      %v5375 = vpack.c.b16 %v5362, %v5361
      %v5376 = vpack.c.b16 %v5364, %v5363
      %v5377 = vpack.c.b16 %v5366, %v5365
      %v5378 = vpack.c.b16 %v5368, %v5367
      %v5379 = vpack.c.b16 %v5370, %v5369
      %v5380 = vpack.c.b16 %v5372, %v5371
      %5389 = vmatpush.bf16.msra.mxu0 %v5380
      %5390 = vmatpush.bf16.msra.mxu0 %v5379
      %5391 = vmatpush.bf16.msra.mxu0 %v5378
      %5392 = vmatpush.bf16.msra.mxu0 %v5377
      %5393 = vmatpush.bf16.msra.mxu0 %v5376
      %5394 = vmatpush.bf16.msra.mxu0 %v5375
      %5395 = vmatpush.bf16.msra.mxu0 %v5374
      %5396 = vmatpush.bf16.msra.mxu0 %v5373
      %5397 = vmatmul.bf16.gmra.mxu0 %v5309
      %v5398 = vpop.f32.mrf.mxu0
      %v5399 = vadd.f32 0.0, %v5398
      %v5400 = vpop.f32.mrf.mxu0
      %v5401 = vadd.f32 0.0, %v5400
      %5402 = vmatmul.bf16.gmra.mxu0 %v5310
      %v5403 = vpop.f32.mrf.mxu0
      %v5404 = vadd.f32 0.0, %v5403
      %v5405 = vpop.f32.mrf.mxu0
      %v5406 = vadd.f32 0.0, %v5405
      %5407 = vmatmul.bf16.gmra.mxu0 %v5311
      %v5408 = vpop.f32.mrf.mxu0
      %v5409 = vadd.f32 0.0, %v5408
      %v5410 = vpop.f32.mrf.mxu0
      %v5411 = vadd.f32 0.0, %v5410
      %5412 = vmatmul.bf16.gmra.mxu0 %v5312
      %v5413 = vpop.f32.mrf.mxu0
      %v5414 = vadd.f32 0.0, %v5413
      %v5415 = vpop.f32.mrf.mxu0
      %v5416 = vadd.f32 0.0, %v5415
      %5417 = vmatmul.bf16.gmra.mxu0 %v5313
      %v5418 = vpop.f32.mrf.mxu0
      %v5419 = vadd.f32 0.0, %v5418
      %v5420 = vpop.f32.mrf.mxu0
      %v5421 = vadd.f32 0.0, %v5420
      %5422 = vmatmul.bf16.gmra.mxu0 %v5314
      %v5423 = vpop.f32.mrf.mxu0
      %v5424 = vadd.f32 0.0, %v5423
      %v5425 = vpop.f32.mrf.mxu0
      %v5426 = vadd.f32 0.0, %v5425
      %5427 = vmatmul.bf16.gmra.mxu0 %v5315
      %v5428 = vpop.f32.mrf.mxu0
      %v5429 = vadd.f32 0.0, %v5428
      %v5430 = vpop.f32.mrf.mxu0
      %v5431 = vadd.f32 0.0, %v5430
      %5432 = vmatmul.bf16.gmra.mxu0 %v5316
      %v5433 = vpop.f32.mrf.mxu0
      %v5434 = vadd.f32 0.0, %v5433
      %v5435 = vpop.f32.mrf.mxu0
      %v5436 = vadd.f32 0.0, %v5435
      %5437 = vmatmul.bf16.gmra.mxu0 %v5317
      %v5438 = vpop.f32.mrf.mxu0
      %v5439 = vadd.f32 0.0, %v5438
      %v5440 = vpop.f32.mrf.mxu0
      %v5441 = vadd.f32 0.0, %v5440
      %5442 = vmatmul.bf16.gmra.mxu0 %v5318
      %v5443 = vpop.f32.mrf.mxu0
      %v5444 = vadd.f32 0.0, %v5443
      %v5445 = vpop.f32.mrf.mxu0
      %v5446 = vadd.f32 0.0, %v5445
      %5447 = vmatmul.bf16.gmra.mxu0 %v5319
      %v5448 = vpop.f32.mrf.mxu0
      %v5449 = vadd.f32 0.0, %v5448
      %v5450 = vpop.f32.mrf.mxu0
      %v5451 = vadd.f32 0.0, %v5450
      %5452 = vmatmul.bf16.gmra.mxu0 %v5320
      %v5453 = vpop.f32.mrf.mxu0
      %v5454 = vadd.f32 0.0, %v5453
      %v5455 = vpop.f32.mrf.mxu0
      %v5456 = vadd.f32 0.0, %v5455
      %5457 = vmatmul.bf16.gmra.mxu0 %v5321
      %v5458 = vpop.f32.mrf.mxu0
      %v5459 = vadd.f32 0.0, %v5458
      %v5460 = vpop.f32.mrf.mxu0
      %v5461 = vadd.f32 0.0, %v5460
      %5462 = vmatmul.bf16.gmra.mxu0 %v5322
      %v5463 = vpop.f32.mrf.mxu0
      %v5464 = vadd.f32 0.0, %v5463
      %v5465 = vpop.f32.mrf.mxu0
      %v5466 = vadd.f32 0.0, %v5465
      %5467 = vmatmul.bf16.gmra.mxu0 %v5323
      %v5468 = vpop.f32.mrf.mxu0
      %v5469 = vadd.f32 0.0, %v5468
      %v5470 = vpop.f32.mrf.mxu0
      %v5471 = vadd.f32 0.0, %v5470
      %5472 = vmatmul.bf16.gmra.mxu0 %v5324
      %v5473 = vpop.f32.mrf.mxu0
      %v5474 = vadd.f32 0.0, %v5473
      %v5475 = vpop.f32.mrf.mxu0
      %v5476 = vadd.f32 0.0, %v5475
      %5477 = vdwg.mxu0
      %v5478 = vld [vmem:[#allocation4] sm:$0xff]
      %v5479 = vld [vmem:[#allocation4 + $0x8] sm:$0xff]
      %v5480 = vld [vmem:[#allocation4 + $0x10] sm:$0xff]
      %v5481 = vld [vmem:[#allocation4 + $0x18] sm:$0xff]
      %v5482 = vld [vmem:[#allocation4 + $0x20] sm:$0xff]
      %v5483 = vld [vmem:[#allocation4 + $0x28] sm:$0xff]
      %v5484 = vld [vmem:[#allocation4 + $0x30] sm:$0xff]
      %v5485 = vld [vmem:[#allocation4 + $0x38] sm:$0xff]
      %v5486 = vld [vmem:[#allocation4 + $0x40] sm:$0xff]
      %v5487 = vld [vmem:[#allocation4 + $0x48] sm:$0xff]
      %v5488 = vld [vmem:[#allocation4 + $0x50] sm:$0xff]
      %v5489 = vld [vmem:[#allocation4 + $0x58] sm:$0xff]
      %v5490 = vld [vmem:[#allocation4 + $0x60] sm:$0xff]
      %v5491 = vld [vmem:[#allocation4 + $0x68] sm:$0xff]
      %v5492 = vld [vmem:[#allocation4 + $0x70] sm:$0xff]
      %v5493 = vld [vmem:[#allocation4 + $0x78] sm:$0xff]
      %v5494 = vld [vmem:[#allocation4 + $0x80] sm:$0xff]
      %v5495 = vld [vmem:[#allocation4 + $0x88] sm:$0xff]
      %v5496 = vld [vmem:[#allocation4 + $0x90] sm:$0xff]
      %v5497 = vld [vmem:[#allocation4 + $0x98] sm:$0xff]
      %v5498 = vld [vmem:[#allocation4 + $0xa0] sm:$0xff]
      %v5499 = vld [vmem:[#allocation4 + $0xa8] sm:$0xff]
      %v5500 = vld [vmem:[#allocation4 + $0xb0] sm:$0xff]
      %v5501 = vld [vmem:[#allocation4 + $0xb8] sm:$0xff]
      %v5502 = vld [vmem:[#allocation4 + $0xc0] sm:$0xff]
      %v5503 = vld [vmem:[#allocation4 + $0xc8] sm:$0xff]
      %v5504 = vld [vmem:[#allocation4 + $0xd0] sm:$0xff]
      %v5505 = vld [vmem:[#allocation4 + $0xd8] sm:$0xff]
      %v5506 = vld [vmem:[#allocation4 + $0xe0] sm:$0xff]
      %v5507 = vld [vmem:[#allocation4 + $0xe8] sm:$0xff]
      %v5508 = vld [vmem:[#allocation4 + $0xf0] sm:$0xff]
      %v5509 = vld [vmem:[#allocation4 + $0xf8] sm:$0xff]
      %v5510 = vadd.f32 %v5478, %v5399
      %v5511 = vadd.f32 %v5479, %v5401
      %v5512 = vadd.f32 %v5480, %v5404
      %v5513 = vadd.f32 %v5481, %v5406
      %v5514 = vadd.f32 %v5482, %v5409
      %v5515 = vadd.f32 %v5483, %v5411
      %v5516 = vadd.f32 %v5484, %v5414
      %v5517 = vadd.f32 %v5485, %v5416
      %v5518 = vadd.f32 %v5486, %v5419
      %v5519 = vadd.f32 %v5487, %v5421
      %v5520 = vadd.f32 %v5488, %v5424
      %v5521 = vadd.f32 %v5489, %v5426
      %v5522 = vadd.f32 %v5490, %v5429
      %v5523 = vadd.f32 %v5491, %v5431
      %v5524 = vadd.f32 %v5492, %v5434
      %v5525 = vadd.f32 %v5493, %v5436
      %v5526 = vadd.f32 %v5494, %v5439
      %v5527 = vadd.f32 %v5495, %v5441
      %v5528 = vadd.f32 %v5496, %v5444
      %v5529 = vadd.f32 %v5497, %v5446
      %v5530 = vadd.f32 %v5498, %v5449
      %v5531 = vadd.f32 %v5499, %v5451
      %v5532 = vadd.f32 %v5500, %v5454
      %v5533 = vadd.f32 %v5501, %v5456
      %v5534 = vadd.f32 %v5502, %v5459
      %v5535 = vadd.f32 %v5503, %v5461
      %v5536 = vadd.f32 %v5504, %v5464
      %v5537 = vadd.f32 %v5505, %v5466
      %v5538 = vadd.f32 %v5506, %v5469
      %v5539 = vadd.f32 %v5507, %v5471
      %v5540 = vadd.f32 %v5508, %v5474
      %v5541 = vadd.f32 %v5509, %v5476
      %5542 = vst [vmem:[#allocation4] sm:$0xff] %v5510
      %5543 = vst [vmem:[#allocation4 + $0x8] sm:$0xff] %v5511
      %5544 = vst [vmem:[#allocation4 + $0x10] sm:$0xff] %v5512
      %5545 = vst [vmem:[#allocation4 + $0x18] sm:$0xff] %v5513
      %5546 = vst [vmem:[#allocation4 + $0x20] sm:$0xff] %v5514
      %5547 = vst [vmem:[#allocation4 + $0x28] sm:$0xff] %v5515
      %5548 = vst [vmem:[#allocation4 + $0x30] sm:$0xff] %v5516
      %5549 = vst [vmem:[#allocation4 + $0x38] sm:$0xff] %v5517
      %5550 = vst [vmem:[#allocation4 + $0x40] sm:$0xff] %v5518
      %5551 = vst [vmem:[#allocation4 + $0x48] sm:$0xff] %v5519
      %5552 = vst [vmem:[#allocation4 + $0x50] sm:$0xff] %v5520
      %5553 = vst [vmem:[#allocation4 + $0x58] sm:$0xff] %v5521
      %5554 = vst [vmem:[#allocation4 + $0x60] sm:$0xff] %v5522
      %5555 = vst [vmem:[#allocation4 + $0x68] sm:$0xff] %v5523
      %5556 = vst [vmem:[#allocation4 + $0x70] sm:$0xff] %v5524
      %5557 = vst [vmem:[#allocation4 + $0x78] sm:$0xff] %v5525
      %5558 = vst [vmem:[#allocation4 + $0x80] sm:$0xff] %v5526
      %5559 = vst [vmem:[#allocation4 + $0x88] sm:$0xff] %v5527
      %5560 = vst [vmem:[#allocation4 + $0x90] sm:$0xff] %v5528
      %5561 = vst [vmem:[#allocation4 + $0x98] sm:$0xff] %v5529
      %5562 = vst [vmem:[#allocation4 + $0xa0] sm:$0xff] %v5530
      %5563 = vst [vmem:[#allocation4 + $0xa8] sm:$0xff] %v5531
      %5564 = vst [vmem:[#allocation4 + $0xb0] sm:$0xff] %v5532
      %5565 = vst [vmem:[#allocation4 + $0xb8] sm:$0xff] %v5533
      %5566 = vst [vmem:[#allocation4 + $0xc0] sm:$0xff] %v5534
      %5567 = vst [vmem:[#allocation4 + $0xc8] sm:$0xff] %v5535
      %5568 = vst [vmem:[#allocation4 + $0xd0] sm:$0xff] %v5536
      %5569 = vst [vmem:[#allocation4 + $0xd8] sm:$0xff] %v5537
      %5570 = vst [vmem:[#allocation4 + $0xe0] sm:$0xff] %v5538
      %5571 = vst [vmem:[#allocation4 + $0xe8] sm:$0xff] %v5539
      %5572 = vst [vmem:[#allocation4 + $0xf0] sm:$0xff] %v5540
      %5573 = vst [vmem:[#allocation4 + $0xf8] sm:$0xff] %v5541
      %v5574 = vld [vmem:[%s3966 + $0x1] sm:$0xff]
      %v5575 = vld [vmem:[%s3966 + $0x9] sm:$0xff]
      %v5576 = vld [vmem:[%s3966 + $0x19] sm:$0xff]
      %v5577 = vld [vmem:[%s3966 + $0x21] sm:$0xff]
      %v5578 = vld [vmem:[%s3966 + $0x31] sm:$0xff]
      %v5579 = vld [vmem:[%s3966 + $0x39] sm:$0xff]
      %v5580 = vld [vmem:[%s3966 + $0x49] sm:$0xff]
      %v5581 = vld [vmem:[%s3966 + $0x51] sm:$0xff]
      %v5582 = vld [vmem:[%s3966 + $0x61] sm:$0xff]
      %v5583 = vld [vmem:[%s3966 + $0x69] sm:$0xff]
      %v5584 = vld [vmem:[%s3966 + $0x79] sm:$0xff]
      %v5585 = vld [vmem:[%s3966 + $0x81] sm:$0xff]
      %v5586 = vld [vmem:[%s3966 + $0x91] sm:$0xff]
      %v5587 = vld [vmem:[%s3966 + $0x99] sm:$0xff]
      %v5588 = vld [vmem:[%s3966 + $0xa9] sm:$0xff]
      %v5589 = vld [vmem:[%s3966 + $0xb1] sm:$0xff]
      %v5590 = vld [vmem:[%s3966 + $0xc1] sm:$0xff]
      %v5591 = vld [vmem:[%s3966 + $0xc9] sm:$0xff]
      %v5592 = vld [vmem:[%s3966 + $0xd9] sm:$0xff]
      %v5593 = vld [vmem:[%s3966 + $0xe1] sm:$0xff]
      %v5594 = vld [vmem:[%s3966 + $0xf1] sm:$0xff]
      %v5595 = vld [vmem:[%s3966 + $0xf9] sm:$0xff]
      %v5596 = vld [vmem:[%s3966 + $0x109] sm:$0xff]
      %v5597 = vld [vmem:[%s3966 + $0x111] sm:$0xff]
      %v5598 = vld [vmem:[%s3966 + $0x121] sm:$0xff]
      %v5599 = vld [vmem:[%s3966 + $0x129] sm:$0xff]
      %v5600 = vld [vmem:[%s3966 + $0x139] sm:$0xff]
      %v5601 = vld [vmem:[%s3966 + $0x141] sm:$0xff]
      %v5602 = vld [vmem:[%s3966 + $0x151] sm:$0xff]
      %v5603 = vld [vmem:[%s3966 + $0x159] sm:$0xff]
      %v5604 = vld [vmem:[%s3966 + $0x169] sm:$0xff]
      %v5605 = vld [vmem:[%s3966 + $0x171] sm:$0xff]
      %v5606 = vpack.c.bf16 %v5574, %v5574
      %v5607 = vpack.c.bf16 %v5575, %v5575
      %v5608 = vpack.c.bf16 %v5576, %v5576
      %v5609 = vpack.c.bf16 %v5577, %v5577
      %v5610 = vpack.c.bf16 %v5578, %v5578
      %v5611 = vpack.c.bf16 %v5579, %v5579
      %v5612 = vpack.c.bf16 %v5580, %v5580
      %v5613 = vpack.c.bf16 %v5581, %v5581
      %v5614 = vpack.c.bf16 %v5582, %v5582
      %v5615 = vpack.c.bf16 %v5583, %v5583
      %v5616 = vpack.c.bf16 %v5584, %v5584
      %v5617 = vpack.c.bf16 %v5585, %v5585
      %v5618 = vpack.c.bf16 %v5586, %v5586
      %v5619 = vpack.c.bf16 %v5587, %v5587
      %v5620 = vpack.c.bf16 %v5588, %v5588
      %v5621 = vpack.c.bf16 %v5589, %v5589
      %v5622 = vpack.c.bf16 %v5590, %v5590
      %v5623 = vpack.c.bf16 %v5591, %v5591
      %v5624 = vpack.c.bf16 %v5592, %v5592
      %v5625 = vpack.c.bf16 %v5593, %v5593
      %v5626 = vpack.c.bf16 %v5594, %v5594
      %v5627 = vpack.c.bf16 %v5595, %v5595
      %v5628 = vpack.c.bf16 %v5596, %v5596
      %v5629 = vpack.c.bf16 %v5597, %v5597
      %v5630 = vpack.c.bf16 %v5598, %v5598
      %v5631 = vpack.c.bf16 %v5599, %v5599
      %v5632 = vpack.c.bf16 %v5600, %v5600
      %v5633 = vpack.c.bf16 %v5601, %v5601
      %v5634 = vpack.c.bf16 %v5602, %v5602
      %v5635 = vpack.c.bf16 %v5603, %v5603
      %v5636 = vpack.c.bf16 %v5604, %v5604
      %v5637 = vpack.c.bf16 %v5605, %v5605
      %s5638 = scalar_lea.vmem %s4, 256
      %v5639 = vld [vmem:[%s5638] sm:$0xf]
      %v5640 = vld [vmem:[%s5638 + $0x4] sm:$0xf]
      %v5641 = vld [vmem:[%s5638 + $0x8] sm:$0xf]
      %v5642 = vld [vmem:[%s5638 + $0xc] sm:$0xf]
      %v5643 = vld [vmem:[%s5638 + $0x10] sm:$0xf]
      %v5644 = vld [vmem:[%s5638 + $0x14] sm:$0xf]
      %v5645 = vld [vmem:[%s5638 + $0x18] sm:$0xf]
      %v5646 = vld [vmem:[%s5638 + $0x1c] sm:$0xf]
      %v5647 = vld [vmem:[%s5638 + $0x20] sm:$0xf]
      %v5648 = vld [vmem:[%s5638 + $0x24] sm:$0xf]
      %v5649 = vld [vmem:[%s5638 + $0x28] sm:$0xf]
      %v5650 = vld [vmem:[%s5638 + $0x2c] sm:$0xf]
      %v5651 = vld [vmem:[%s5638 + $0x30] sm:$0xf]
      %v5652 = vld [vmem:[%s5638 + $0x34] sm:$0xf]
      %v5653 = vld [vmem:[%s5638 + $0x38] sm:$0xf]
      %v5654 = vld [vmem:[%s5638 + $0x3c] sm:$0xf]
      %v5687 = vunpack.c.l.b16 %v5606
      %v5688 = vunpack.c.l.b16 %v5607
      %v5689 = vunpack.c.l.b16 %v5608
      %v5690 = vunpack.c.l.b16 %v5609
      %v5691 = vunpack.c.l.b16 %v5610
      %v5692 = vunpack.c.l.b16 %v5611
      %v5693 = vunpack.c.l.b16 %v5612
      %v5694 = vunpack.c.l.b16 %v5613
      %v5695 = vunpack.c.l.b16 %v5614
      %v5696 = vunpack.c.l.b16 %v5615
      %v5697 = vunpack.c.l.b16 %v5616
      %v5698 = vunpack.c.l.b16 %v5617
      %v5699 = vunpack.c.l.b16 %v5618
      %v5700 = vunpack.c.l.b16 %v5619
      %v5701 = vunpack.c.l.b16 %v5620
      %v5702 = vunpack.c.l.b16 %v5621
      %v5703 = vunpack.c.l.b16 %v5622
      %v5704 = vunpack.c.l.b16 %v5623
      %v5705 = vunpack.c.l.b16 %v5624
      %v5706 = vunpack.c.l.b16 %v5625
      %v5707 = vunpack.c.l.b16 %v5626
      %v5708 = vunpack.c.l.b16 %v5627
      %v5709 = vunpack.c.l.b16 %v5628
      %v5710 = vunpack.c.l.b16 %v5629
      %v5711 = vunpack.c.l.b16 %v5630
      %v5712 = vunpack.c.l.b16 %v5631
      %v5713 = vunpack.c.l.b16 %v5632
      %v5714 = vunpack.c.l.b16 %v5633
      %v5715 = vunpack.c.l.b16 %v5634
      %v5716 = vunpack.c.l.b16 %v5635
      %v5717 = vunpack.c.l.b16 %v5636
      %v5718 = vunpack.c.l.b16 %v5637
      %v5719 = vpack.c.b16 %v5688, %v5687
      %v5720 = vpack.c.b16 %v5690, %v5689
      %v5721 = vpack.c.b16 %v5692, %v5691
      %v5722 = vpack.c.b16 %v5694, %v5693
      %v5723 = vpack.c.b16 %v5696, %v5695
      %v5724 = vpack.c.b16 %v5698, %v5697
      %v5725 = vpack.c.b16 %v5700, %v5699
      %v5726 = vpack.c.b16 %v5702, %v5701
      %v5727 = vpack.c.b16 %v5704, %v5703
      %v5728 = vpack.c.b16 %v5706, %v5705
      %v5729 = vpack.c.b16 %v5708, %v5707
      %v5730 = vpack.c.b16 %v5710, %v5709
      %v5731 = vpack.c.b16 %v5712, %v5711
      %v5732 = vpack.c.b16 %v5714, %v5713
      %v5733 = vpack.c.b16 %v5716, %v5715
      %v5734 = vpack.c.b16 %v5718, %v5717
      %v5767 = vunpack.c.l.b16 %v5639
      %v5768 = vunpack.c.l.b16 %v5640
      %v5769 = vunpack.c.l.b16 %v5641
      %v5770 = vunpack.c.l.b16 %v5642
      %v5771 = vunpack.c.l.b16 %v5643
      %v5772 = vunpack.c.l.b16 %v5644
      %v5773 = vunpack.c.l.b16 %v5645
      %v5774 = vunpack.c.l.b16 %v5646
      %v5775 = vunpack.c.l.b16 %v5647
      %v5776 = vunpack.c.l.b16 %v5648
      %v5777 = vunpack.c.l.b16 %v5649
      %v5778 = vunpack.c.l.b16 %v5650
      %v5779 = vunpack.c.l.b16 %v5651
      %v5780 = vunpack.c.l.b16 %v5652
      %v5781 = vunpack.c.l.b16 %v5653
      %v5782 = vunpack.c.l.b16 %v5654
      %v5783 = vpack.c.b16 %v5768, %v5767
      %v5784 = vpack.c.b16 %v5770, %v5769
      %v5785 = vpack.c.b16 %v5772, %v5771
      %v5786 = vpack.c.b16 %v5774, %v5773
      %v5787 = vpack.c.b16 %v5776, %v5775
      %v5788 = vpack.c.b16 %v5778, %v5777
      %v5789 = vpack.c.b16 %v5780, %v5779
      %v5790 = vpack.c.b16 %v5782, %v5781
      %5799 = vmatpush.bf16.msra.mxu0 %v5790
      %5800 = vmatpush.bf16.msra.mxu0 %v5789
      %5801 = vmatpush.bf16.msra.mxu0 %v5788
      %5802 = vmatpush.bf16.msra.mxu0 %v5787
      %5803 = vmatpush.bf16.msra.mxu0 %v5786
      %5804 = vmatpush.bf16.msra.mxu0 %v5785
      %5805 = vmatpush.bf16.msra.mxu0 %v5784
      %5806 = vmatpush.bf16.msra.mxu0 %v5783
      %5807 = vmatmul.bf16.gmra.mxu0 %v5719
      %v5808 = vpop.f32.mrf.mxu0
      %v5809 = vadd.f32 0.0, %v5808
      %v5810 = vpop.f32.mrf.mxu0
      %v5811 = vadd.f32 0.0, %v5810
      %5812 = vmatmul.bf16.gmra.mxu0 %v5720
      %v5813 = vpop.f32.mrf.mxu0
      %v5814 = vadd.f32 0.0, %v5813
      %v5815 = vpop.f32.mrf.mxu0
      %v5816 = vadd.f32 0.0, %v5815
      %5817 = vmatmul.bf16.gmra.mxu0 %v5721
      %v5818 = vpop.f32.mrf.mxu0
      %v5819 = vadd.f32 0.0, %v5818
      %v5820 = vpop.f32.mrf.mxu0
      %v5821 = vadd.f32 0.0, %v5820
      %5822 = vmatmul.bf16.gmra.mxu0 %v5722
      %v5823 = vpop.f32.mrf.mxu0
      %v5824 = vadd.f32 0.0, %v5823
      %v5825 = vpop.f32.mrf.mxu0
      %v5826 = vadd.f32 0.0, %v5825
      %5827 = vmatmul.bf16.gmra.mxu0 %v5723
      %v5828 = vpop.f32.mrf.mxu0
      %v5829 = vadd.f32 0.0, %v5828
      %v5830 = vpop.f32.mrf.mxu0
      %v5831 = vadd.f32 0.0, %v5830
      %5832 = vmatmul.bf16.gmra.mxu0 %v5724
      %v5833 = vpop.f32.mrf.mxu0
      %v5834 = vadd.f32 0.0, %v5833
      %v5835 = vpop.f32.mrf.mxu0
      %v5836 = vadd.f32 0.0, %v5835
      %5837 = vmatmul.bf16.gmra.mxu0 %v5725
      %v5838 = vpop.f32.mrf.mxu0
      %v5839 = vadd.f32 0.0, %v5838
      %v5840 = vpop.f32.mrf.mxu0
      %v5841 = vadd.f32 0.0, %v5840
      %5842 = vmatmul.bf16.gmra.mxu0 %v5726
      %v5843 = vpop.f32.mrf.mxu0
      %v5844 = vadd.f32 0.0, %v5843
      %v5845 = vpop.f32.mrf.mxu0
      %v5846 = vadd.f32 0.0, %v5845
      %5847 = vmatmul.bf16.gmra.mxu0 %v5727
      %v5848 = vpop.f32.mrf.mxu0
      %v5849 = vadd.f32 0.0, %v5848
      %v5850 = vpop.f32.mrf.mxu0
      %v5851 = vadd.f32 0.0, %v5850
      %5852 = vmatmul.bf16.gmra.mxu0 %v5728
      %v5853 = vpop.f32.mrf.mxu0
      %v5854 = vadd.f32 0.0, %v5853
      %v5855 = vpop.f32.mrf.mxu0
      %v5856 = vadd.f32 0.0, %v5855
      %5857 = vmatmul.bf16.gmra.mxu0 %v5729
      %v5858 = vpop.f32.mrf.mxu0
      %v5859 = vadd.f32 0.0, %v5858
      %v5860 = vpop.f32.mrf.mxu0
      %v5861 = vadd.f32 0.0, %v5860
      %5862 = vmatmul.bf16.gmra.mxu0 %v5730
      %v5863 = vpop.f32.mrf.mxu0
      %v5864 = vadd.f32 0.0, %v5863
      %v5865 = vpop.f32.mrf.mxu0
      %v5866 = vadd.f32 0.0, %v5865
      %5867 = vmatmul.bf16.gmra.mxu0 %v5731
      %v5868 = vpop.f32.mrf.mxu0
      %v5869 = vadd.f32 0.0, %v5868
      %v5870 = vpop.f32.mrf.mxu0
      %v5871 = vadd.f32 0.0, %v5870
      %5872 = vmatmul.bf16.gmra.mxu0 %v5732
      %v5873 = vpop.f32.mrf.mxu0
      %v5874 = vadd.f32 0.0, %v5873
      %v5875 = vpop.f32.mrf.mxu0
      %v5876 = vadd.f32 0.0, %v5875
      %5877 = vmatmul.bf16.gmra.mxu0 %v5733
      %v5878 = vpop.f32.mrf.mxu0
      %v5879 = vadd.f32 0.0, %v5878
      %v5880 = vpop.f32.mrf.mxu0
      %v5881 = vadd.f32 0.0, %v5880
      %5882 = vmatmul.bf16.gmra.mxu0 %v5734
      %v5883 = vpop.f32.mrf.mxu0
      %v5884 = vadd.f32 0.0, %v5883
      %v5885 = vpop.f32.mrf.mxu0
      %v5886 = vadd.f32 0.0, %v5885
      %5887 = vdwg.mxu0
      %v5888 = vld [vmem:[#allocation4] sm:$0xff]
      %v5889 = vld [vmem:[#allocation4 + $0x8] sm:$0xff]
      %v5890 = vld [vmem:[#allocation4 + $0x10] sm:$0xff]
      %v5891 = vld [vmem:[#allocation4 + $0x18] sm:$0xff]
      %v5892 = vld [vmem:[#allocation4 + $0x20] sm:$0xff]
      %v5893 = vld [vmem:[#allocation4 + $0x28] sm:$0xff]
      %v5894 = vld [vmem:[#allocation4 + $0x30] sm:$0xff]
      %v5895 = vld [vmem:[#allocation4 + $0x38] sm:$0xff]
      %v5896 = vld [vmem:[#allocation4 + $0x40] sm:$0xff]
      %v5897 = vld [vmem:[#allocation4 + $0x48] sm:$0xff]
      %v5898 = vld [vmem:[#allocation4 + $0x50] sm:$0xff]
      %v5899 = vld [vmem:[#allocation4 + $0x58] sm:$0xff]
      %v5900 = vld [vmem:[#allocation4 + $0x60] sm:$0xff]
      %v5901 = vld [vmem:[#allocation4 + $0x68] sm:$0xff]
      %v5902 = vld [vmem:[#allocation4 + $0x70] sm:$0xff]
      %v5903 = vld [vmem:[#allocation4 + $0x78] sm:$0xff]
      %v5904 = vld [vmem:[#allocation4 + $0x80] sm:$0xff]
      %v5905 = vld [vmem:[#allocation4 + $0x88] sm:$0xff]
      %v5906 = vld [vmem:[#allocation4 + $0x90] sm:$0xff]
      %v5907 = vld [vmem:[#allocation4 + $0x98] sm:$0xff]
      %v5908 = vld [vmem:[#allocation4 + $0xa0] sm:$0xff]
      %v5909 = vld [vmem:[#allocation4 + $0xa8] sm:$0xff]
      %v5910 = vld [vmem:[#allocation4 + $0xb0] sm:$0xff]
      %v5911 = vld [vmem:[#allocation4 + $0xb8] sm:$0xff]
      %v5912 = vld [vmem:[#allocation4 + $0xc0] sm:$0xff]
      %v5913 = vld [vmem:[#allocation4 + $0xc8] sm:$0xff]
      %v5914 = vld [vmem:[#allocation4 + $0xd0] sm:$0xff]
      %v5915 = vld [vmem:[#allocation4 + $0xd8] sm:$0xff]
      %v5916 = vld [vmem:[#allocation4 + $0xe0] sm:$0xff]
      %v5917 = vld [vmem:[#allocation4 + $0xe8] sm:$0xff]
      %v5918 = vld [vmem:[#allocation4 + $0xf0] sm:$0xff]
      %v5919 = vld [vmem:[#allocation4 + $0xf8] sm:$0xff]
      %v5920 = vadd.f32 %v5888, %v5809
      %v5921 = vadd.f32 %v5889, %v5811
      %v5922 = vadd.f32 %v5890, %v5814
      %v5923 = vadd.f32 %v5891, %v5816
      %v5924 = vadd.f32 %v5892, %v5819
      %v5925 = vadd.f32 %v5893, %v5821
      %v5926 = vadd.f32 %v5894, %v5824
      %v5927 = vadd.f32 %v5895, %v5826
      %v5928 = vadd.f32 %v5896, %v5829
      %v5929 = vadd.f32 %v5897, %v5831
      %v5930 = vadd.f32 %v5898, %v5834
      %v5931 = vadd.f32 %v5899, %v5836
      %v5932 = vadd.f32 %v5900, %v5839
      %v5933 = vadd.f32 %v5901, %v5841
      %v5934 = vadd.f32 %v5902, %v5844
      %v5935 = vadd.f32 %v5903, %v5846
      %v5936 = vadd.f32 %v5904, %v5849
      %v5937 = vadd.f32 %v5905, %v5851
      %v5938 = vadd.f32 %v5906, %v5854
      %v5939 = vadd.f32 %v5907, %v5856
      %v5940 = vadd.f32 %v5908, %v5859
      %v5941 = vadd.f32 %v5909, %v5861
      %v5942 = vadd.f32 %v5910, %v5864
      %v5943 = vadd.f32 %v5911, %v5866
      %v5944 = vadd.f32 %v5912, %v5869
      %v5945 = vadd.f32 %v5913, %v5871
      %v5946 = vadd.f32 %v5914, %v5874
      %v5947 = vadd.f32 %v5915, %v5876
      %v5948 = vadd.f32 %v5916, %v5879
      %v5949 = vadd.f32 %v5917, %v5881
      %v5950 = vadd.f32 %v5918, %v5884
      %v5951 = vadd.f32 %v5919, %v5886
      %5952 = vst [vmem:[#allocation4] sm:$0xff] %v5920
      %5953 = vst [vmem:[#allocation4 + $0x8] sm:$0xff] %v5921
      %5954 = vst [vmem:[#allocation4 + $0x10] sm:$0xff] %v5922
      %5955 = vst [vmem:[#allocation4 + $0x18] sm:$0xff] %v5923
      %5956 = vst [vmem:[#allocation4 + $0x20] sm:$0xff] %v5924
      %5957 = vst [vmem:[#allocation4 + $0x28] sm:$0xff] %v5925
      %5958 = vst [vmem:[#allocation4 + $0x30] sm:$0xff] %v5926
      %5959 = vst [vmem:[#allocation4 + $0x38] sm:$0xff] %v5927
      %5960 = vst [vmem:[#allocation4 + $0x40] sm:$0xff] %v5928
      %5961 = vst [vmem:[#allocation4 + $0x48] sm:$0xff] %v5929
      %5962 = vst [vmem:[#allocation4 + $0x50] sm:$0xff] %v5930
      %5963 = vst [vmem:[#allocation4 + $0x58] sm:$0xff] %v5931
      %5964 = vst [vmem:[#allocation4 + $0x60] sm:$0xff] %v5932
      %5965 = vst [vmem:[#allocation4 + $0x68] sm:$0xff] %v5933
      %5966 = vst [vmem:[#allocation4 + $0x70] sm:$0xff] %v5934
      %5967 = vst [vmem:[#allocation4 + $0x78] sm:$0xff] %v5935
      %5968 = vst [vmem:[#allocation4 + $0x80] sm:$0xff] %v5936
      %5969 = vst [vmem:[#allocation4 + $0x88] sm:$0xff] %v5937
      %5970 = vst [vmem:[#allocation4 + $0x90] sm:$0xff] %v5938
      %5971 = vst [vmem:[#allocation4 + $0x98] sm:$0xff] %v5939
      %5972 = vst [vmem:[#allocation4 + $0xa0] sm:$0xff] %v5940
      %5973 = vst [vmem:[#allocation4 + $0xa8] sm:$0xff] %v5941
      %5974 = vst [vmem:[#allocation4 + $0xb0] sm:$0xff] %v5942
      %5975 = vst [vmem:[#allocation4 + $0xb8] sm:$0xff] %v5943
      %5976 = vst [vmem:[#allocation4 + $0xc0] sm:$0xff] %v5944
      %5977 = vst [vmem:[#allocation4 + $0xc8] sm:$0xff] %v5945
      %5978 = vst [vmem:[#allocation4 + $0xd0] sm:$0xff] %v5946
      %5979 = vst [vmem:[#allocation4 + $0xd8] sm:$0xff] %v5947
      %5980 = vst [vmem:[#allocation4 + $0xe0] sm:$0xff] %v5948
      %5981 = vst [vmem:[#allocation4 + $0xe8] sm:$0xff] %v5949
      %5982 = vst [vmem:[#allocation4 + $0xf0] sm:$0xff] %v5950
      %5983 = vst [vmem:[#allocation4 + $0xf8] sm:$0xff] %v5951
      %v5984 = vld [vmem:[%s3966 + $0x2] sm:$0xff]
      %v5985 = vld [vmem:[%s3966 + $0xa] sm:$0xff]
      %v5986 = vld [vmem:[%s3966 + $0x1a] sm:$0xff]
      %v5987 = vld [vmem:[%s3966 + $0x22] sm:$0xff]
      %v5988 = vld [vmem:[%s3966 + $0x32] sm:$0xff]
      %v5989 = vld [vmem:[%s3966 + $0x3a] sm:$0xff]
      %v5990 = vld [vmem:[%s3966 + $0x4a] sm:$0xff]
      %v5991 = vld [vmem:[%s3966 + $0x52] sm:$0xff]
      %v5992 = vld [vmem:[%s3966 + $0x62] sm:$0xff]
      %v5993 = vld [vmem:[%s3966 + $0x6a] sm:$0xff]
      %v5994 = vld [vmem:[%s3966 + $0x7a] sm:$0xff]
      %v5995 = vld [vmem:[%s3966 + $0x82] sm:$0xff]
      %v5996 = vld [vmem:[%s3966 + $0x92] sm:$0xff]
      %v5997 = vld [vmem:[%s3966 + $0x9a] sm:$0xff]
      %v5998 = vld [vmem:[%s3966 + $0xaa] sm:$0xff]
      %v5999 = vld [vmem:[%s3966 + $0xb2] sm:$0xff]
      %v6000 = vld [vmem:[%s3966 + $0xc2] sm:$0xff]
      %v6001 = vld [vmem:[%s3966 + $0xca] sm:$0xff]
      %v6002 = vld [vmem:[%s3966 + $0xda] sm:$0xff]
      %v6003 = vld [vmem:[%s3966 + $0xe2] sm:$0xff]
      %v6004 = vld [vmem:[%s3966 + $0xf2] sm:$0xff]
      %v6005 = vld [vmem:[%s3966 + $0xfa] sm:$0xff]
      %v6006 = vld [vmem:[%s3966 + $0x10a] sm:$0xff]
      %v6007 = vld [vmem:[%s3966 + $0x112] sm:$0xff]
      %v6008 = vld [vmem:[%s3966 + $0x122] sm:$0xff]
      %v6009 = vld [vmem:[%s3966 + $0x12a] sm:$0xff]
      %v6010 = vld [vmem:[%s3966 + $0x13a] sm:$0xff]
      %v6011 = vld [vmem:[%s3966 + $0x142] sm:$0xff]
      %v6012 = vld [vmem:[%s3966 + $0x152] sm:$0xff]
      %v6013 = vld [vmem:[%s3966 + $0x15a] sm:$0xff]
      %v6014 = vld [vmem:[%s3966 + $0x16a] sm:$0xff]
      %v6015 = vld [vmem:[%s3966 + $0x172] sm:$0xff]
      %v6016 = vpack.c.bf16 %v5984, %v5984
      %v6017 = vpack.c.bf16 %v5985, %v5985
      %v6018 = vpack.c.bf16 %v5986, %v5986
      %v6019 = vpack.c.bf16 %v5987, %v5987
      %v6020 = vpack.c.bf16 %v5988, %v5988
      %v6021 = vpack.c.bf16 %v5989, %v5989
      %v6022 = vpack.c.bf16 %v5990, %v5990
      %v6023 = vpack.c.bf16 %v5991, %v5991
      %v6024 = vpack.c.bf16 %v5992, %v5992
      %v6025 = vpack.c.bf16 %v5993, %v5993
      %v6026 = vpack.c.bf16 %v5994, %v5994
      %v6027 = vpack.c.bf16 %v5995, %v5995
      %v6028 = vpack.c.bf16 %v5996, %v5996
      %v6029 = vpack.c.bf16 %v5997, %v5997
      %v6030 = vpack.c.bf16 %v5998, %v5998
      %v6031 = vpack.c.bf16 %v5999, %v5999
      %v6032 = vpack.c.bf16 %v6000, %v6000
      %v6033 = vpack.c.bf16 %v6001, %v6001
      %v6034 = vpack.c.bf16 %v6002, %v6002
      %v6035 = vpack.c.bf16 %v6003, %v6003
      %v6036 = vpack.c.bf16 %v6004, %v6004
      %v6037 = vpack.c.bf16 %v6005, %v6005
      %v6038 = vpack.c.bf16 %v6006, %v6006
      %v6039 = vpack.c.bf16 %v6007, %v6007
      %v6040 = vpack.c.bf16 %v6008, %v6008
      %v6041 = vpack.c.bf16 %v6009, %v6009
      %v6042 = vpack.c.bf16 %v6010, %v6010
      %v6043 = vpack.c.bf16 %v6011, %v6011
      %v6044 = vpack.c.bf16 %v6012, %v6012
      %v6045 = vpack.c.bf16 %v6013, %v6013
      %v6046 = vpack.c.bf16 %v6014, %v6014
      %v6047 = vpack.c.bf16 %v6015, %v6015
      %s6048 = scalar_lea.vmem %s4, 320
      %v6049 = vld [vmem:[%s6048] sm:$0xf]
      %v6050 = vld [vmem:[%s6048 + $0x4] sm:$0xf]
      %v6051 = vld [vmem:[%s6048 + $0x8] sm:$0xf]
      %v6052 = vld [vmem:[%s6048 + $0xc] sm:$0xf]
      %v6053 = vld [vmem:[%s6048 + $0x10] sm:$0xf]
      %v6054 = vld [vmem:[%s6048 + $0x14] sm:$0xf]
      %v6055 = vld [vmem:[%s6048 + $0x18] sm:$0xf]
      %v6056 = vld [vmem:[%s6048 + $0x1c] sm:$0xf]
      %v6057 = vld [vmem:[%s6048 + $0x20] sm:$0xf]
      %v6058 = vld [vmem:[%s6048 + $0x24] sm:$0xf]
      %v6059 = vld [vmem:[%s6048 + $0x28] sm:$0xf]
      %v6060 = vld [vmem:[%s6048 + $0x2c] sm:$0xf]
      %v6061 = vld [vmem:[%s6048 + $0x30] sm:$0xf]
      %v6062 = vld [vmem:[%s6048 + $0x34] sm:$0xf]
      %v6063 = vld [vmem:[%s6048 + $0x38] sm:$0xf]
      %v6064 = vld [vmem:[%s6048 + $0x3c] sm:$0xf]
      %v6097 = vunpack.c.l.b16 %v6016
      %v6098 = vunpack.c.l.b16 %v6017
      %v6099 = vunpack.c.l.b16 %v6018
      %v6100 = vunpack.c.l.b16 %v6019
      %v6101 = vunpack.c.l.b16 %v6020
      %v6102 = vunpack.c.l.b16 %v6021
      %v6103 = vunpack.c.l.b16 %v6022
      %v6104 = vunpack.c.l.b16 %v6023
      %v6105 = vunpack.c.l.b16 %v6024
      %v6106 = vunpack.c.l.b16 %v6025
      %v6107 = vunpack.c.l.b16 %v6026
      %v6108 = vunpack.c.l.b16 %v6027
      %v6109 = vunpack.c.l.b16 %v6028
      %v6110 = vunpack.c.l.b16 %v6029
      %v6111 = vunpack.c.l.b16 %v6030
      %v6112 = vunpack.c.l.b16 %v6031
      %v6113 = vunpack.c.l.b16 %v6032
      %v6114 = vunpack.c.l.b16 %v6033
      %v6115 = vunpack.c.l.b16 %v6034
      %v6116 = vunpack.c.l.b16 %v6035
      %v6117 = vunpack.c.l.b16 %v6036
      %v6118 = vunpack.c.l.b16 %v6037
      %v6119 = vunpack.c.l.b16 %v6038
      %v6120 = vunpack.c.l.b16 %v6039
      %v6121 = vunpack.c.l.b16 %v6040
      %v6122 = vunpack.c.l.b16 %v6041
      %v6123 = vunpack.c.l.b16 %v6042
      %v6124 = vunpack.c.l.b16 %v6043
      %v6125 = vunpack.c.l.b16 %v6044
      %v6126 = vunpack.c.l.b16 %v6045
      %v6127 = vunpack.c.l.b16 %v6046
      %v6128 = vunpack.c.l.b16 %v6047
      %v6129 = vpack.c.b16 %v6098, %v6097
      %v6130 = vpack.c.b16 %v6100, %v6099
      %v6131 = vpack.c.b16 %v6102, %v6101
      %v6132 = vpack.c.b16 %v6104, %v6103
      %v6133 = vpack.c.b16 %v6106, %v6105
      %v6134 = vpack.c.b16 %v6108, %v6107
      %v6135 = vpack.c.b16 %v6110, %v6109
      %v6136 = vpack.c.b16 %v6112, %v6111
      %v6137 = vpack.c.b16 %v6114, %v6113
      %v6138 = vpack.c.b16 %v6116, %v6115
      %v6139 = vpack.c.b16 %v6118, %v6117
      %v6140 = vpack.c.b16 %v6120, %v6119
      %v6141 = vpack.c.b16 %v6122, %v6121
      %v6142 = vpack.c.b16 %v6124, %v6123
      %v6143 = vpack.c.b16 %v6126, %v6125
      %v6144 = vpack.c.b16 %v6128, %v6127
      %v6177 = vunpack.c.l.b16 %v6049
      %v6178 = vunpack.c.l.b16 %v6050
      %v6179 = vunpack.c.l.b16 %v6051
      %v6180 = vunpack.c.l.b16 %v6052
      %v6181 = vunpack.c.l.b16 %v6053
      %v6182 = vunpack.c.l.b16 %v6054
      %v6183 = vunpack.c.l.b16 %v6055
      %v6184 = vunpack.c.l.b16 %v6056
      %v6185 = vunpack.c.l.b16 %v6057
      %v6186 = vunpack.c.l.b16 %v6058
      %v6187 = vunpack.c.l.b16 %v6059
      %v6188 = vunpack.c.l.b16 %v6060
      %v6189 = vunpack.c.l.b16 %v6061
      %v6190 = vunpack.c.l.b16 %v6062
      %v6191 = vunpack.c.l.b16 %v6063
      %v6192 = vunpack.c.l.b16 %v6064
      %v6193 = vpack.c.b16 %v6178, %v6177
      %v6194 = vpack.c.b16 %v6180, %v6179
      %v6195 = vpack.c.b16 %v6182, %v6181
      %v6196 = vpack.c.b16 %v6184, %v6183
      %v6197 = vpack.c.b16 %v6186, %v6185
      %v6198 = vpack.c.b16 %v6188, %v6187
      %v6199 = vpack.c.b16 %v6190, %v6189
      %v6200 = vpack.c.b16 %v6192, %v6191
      %6209 = vmatpush.bf16.msra.mxu0 %v6200
      %6210 = vmatpush.bf16.msra.mxu0 %v6199
      %6211 = vmatpush.bf16.msra.mxu0 %v6198
      %6212 = vmatpush.bf16.msra.mxu0 %v6197
      %6213 = vmatpush.bf16.msra.mxu0 %v6196
      %6214 = vmatpush.bf16.msra.mxu0 %v6195
      %6215 = vmatpush.bf16.msra.mxu0 %v6194
      %6216 = vmatpush.bf16.msra.mxu0 %v6193
      %6217 = vmatmul.bf16.gmra.mxu0 %v6129
      %v6218 = vpop.f32.mrf.mxu0
      %v6219 = vadd.f32 0.0, %v6218
      %v6220 = vpop.f32.mrf.mxu0
      %v6221 = vadd.f32 0.0, %v6220
      %6222 = vmatmul.bf16.gmra.mxu0 %v6130
      %v6223 = vpop.f32.mrf.mxu0
      %v6224 = vadd.f32 0.0, %v6223
      %v6225 = vpop.f32.mrf.mxu0
      %v6226 = vadd.f32 0.0, %v6225
      %6227 = vmatmul.bf16.gmra.mxu0 %v6131
      %v6228 = vpop.f32.mrf.mxu0
      %v6229 = vadd.f32 0.0, %v6228
      %v6230 = vpop.f32.mrf.mxu0
      %v6231 = vadd.f32 0.0, %v6230
      %6232 = vmatmul.bf16.gmra.mxu0 %v6132
      %v6233 = vpop.f32.mrf.mxu0
      %v6234 = vadd.f32 0.0, %v6233
      %v6235 = vpop.f32.mrf.mxu0
      %v6236 = vadd.f32 0.0, %v6235
      %6237 = vmatmul.bf16.gmra.mxu0 %v6133
      %v6238 = vpop.f32.mrf.mxu0
      %v6239 = vadd.f32 0.0, %v6238
      %v6240 = vpop.f32.mrf.mxu0
      %v6241 = vadd.f32 0.0, %v6240
      %6242 = vmatmul.bf16.gmra.mxu0 %v6134
      %v6243 = vpop.f32.mrf.mxu0
      %v6244 = vadd.f32 0.0, %v6243
      %v6245 = vpop.f32.mrf.mxu0
      %v6246 = vadd.f32 0.0, %v6245
      %6247 = vmatmul.bf16.gmra.mxu0 %v6135
      %v6248 = vpop.f32.mrf.mxu0
      %v6249 = vadd.f32 0.0, %v6248
      %v6250 = vpop.f32.mrf.mxu0
      %v6251 = vadd.f32 0.0, %v6250
      %6252 = vmatmul.bf16.gmra.mxu0 %v6136
      %v6253 = vpop.f32.mrf.mxu0
      %v6254 = vadd.f32 0.0, %v6253
      %v6255 = vpop.f32.mrf.mxu0
      %v6256 = vadd.f32 0.0, %v6255
      %6257 = vmatmul.bf16.gmra.mxu0 %v6137
      %v6258 = vpop.f32.mrf.mxu0
      %v6259 = vadd.f32 0.0, %v6258
      %v6260 = vpop.f32.mrf.mxu0
      %v6261 = vadd.f32 0.0, %v6260
      %6262 = vmatmul.bf16.gmra.mxu0 %v6138
      %v6263 = vpop.f32.mrf.mxu0
      %v6264 = vadd.f32 0.0, %v6263
      %v6265 = vpop.f32.mrf.mxu0
      %v6266 = vadd.f32 0.0, %v6265
      %6267 = vmatmul.bf16.gmra.mxu0 %v6139
      %v6268 = vpop.f32.mrf.mxu0
      %v6269 = vadd.f32 0.0, %v6268
      %v6270 = vpop.f32.mrf.mxu0
      %v6271 = vadd.f32 0.0, %v6270
      %6272 = vmatmul.bf16.gmra.mxu0 %v6140
      %v6273 = vpop.f32.mrf.mxu0
      %v6274 = vadd.f32 0.0, %v6273
      %v6275 = vpop.f32.mrf.mxu0
      %v6276 = vadd.f32 0.0, %v6275
      %6277 = vmatmul.bf16.gmra.mxu0 %v6141
      %v6278 = vpop.f32.mrf.mxu0
      %v6279 = vadd.f32 0.0, %v6278
      %v6280 = vpop.f32.mrf.mxu0
      %v6281 = vadd.f32 0.0, %v6280
      %6282 = vmatmul.bf16.gmra.mxu0 %v6142
      %v6283 = vpop.f32.mrf.mxu0
      %v6284 = vadd.f32 0.0, %v6283
      %v6285 = vpop.f32.mrf.mxu0
      %v6286 = vadd.f32 0.0, %v6285
      %6287 = vmatmul.bf16.gmra.mxu0 %v6143
      %v6288 = vpop.f32.mrf.mxu0
      %v6289 = vadd.f32 0.0, %v6288
      %v6290 = vpop.f32.mrf.mxu0
      %v6291 = vadd.f32 0.0, %v6290
      %6292 = vmatmul.bf16.gmra.mxu0 %v6144
      %v6293 = vpop.f32.mrf.mxu0
      %v6294 = vadd.f32 0.0, %v6293
      %v6295 = vpop.f32.mrf.mxu0
      %v6296 = vadd.f32 0.0, %v6295
      %6297 = vdwg.mxu0
      %v6298 = vld [vmem:[#allocation4] sm:$0xff]
      %v6299 = vld [vmem:[#allocation4 + $0x8] sm:$0xff]
      %v6300 = vld [vmem:[#allocation4 + $0x10] sm:$0xff]
      %v6301 = vld [vmem:[#allocation4 + $0x18] sm:$0xff]
      %v6302 = vld [vmem:[#allocation4 + $0x20] sm:$0xff]
      %v6303 = vld [vmem:[#allocation4 + $0x28] sm:$0xff]
      %v6304 = vld [vmem:[#allocation4 + $0x30] sm:$0xff]
      %v6305 = vld [vmem:[#allocation4 + $0x38] sm:$0xff]
      %v6306 = vld [vmem:[#allocation4 + $0x40] sm:$0xff]
      %v6307 = vld [vmem:[#allocation4 + $0x48] sm:$0xff]
      %v6308 = vld [vmem:[#allocation4 + $0x50] sm:$0xff]
      %v6309 = vld [vmem:[#allocation4 + $0x58] sm:$0xff]
      %v6310 = vld [vmem:[#allocation4 + $0x60] sm:$0xff]
      %v6311 = vld [vmem:[#allocation4 + $0x68] sm:$0xff]
      %v6312 = vld [vmem:[#allocation4 + $0x70] sm:$0xff]
      %v6313 = vld [vmem:[#allocation4 + $0x78] sm:$0xff]
      %v6314 = vld [vmem:[#allocation4 + $0x80] sm:$0xff]
      %v6315 = vld [vmem:[#allocation4 + $0x88] sm:$0xff]
      %v6316 = vld [vmem:[#allocation4 + $0x90] sm:$0xff]
      %v6317 = vld [vmem:[#allocation4 + $0x98] sm:$0xff]
      %v6318 = vld [vmem:[#allocation4 + $0xa0] sm:$0xff]
      %v6319 = vld [vmem:[#allocation4 + $0xa8] sm:$0xff]
      %v6320 = vld [vmem:[#allocation4 + $0xb0] sm:$0xff]
      %v6321 = vld [vmem:[#allocation4 + $0xb8] sm:$0xff]
      %v6322 = vld [vmem:[#allocation4 + $0xc0] sm:$0xff]
      %v6323 = vld [vmem:[#allocation4 + $0xc8] sm:$0xff]
      %v6324 = vld [vmem:[#allocation4 + $0xd0] sm:$0xff]
      %v6325 = vld [vmem:[#allocation4 + $0xd8] sm:$0xff]
      %v6326 = vld [vmem:[#allocation4 + $0xe0] sm:$0xff]
      %v6327 = vld [vmem:[#allocation4 + $0xe8] sm:$0xff]
      %v6328 = vld [vmem:[#allocation4 + $0xf0] sm:$0xff]
      %v6329 = vld [vmem:[#allocation4 + $0xf8] sm:$0xff]
      %v6330 = vadd.f32 %v6298, %v6219
      %v6331 = vadd.f32 %v6299, %v6221
      %v6332 = vadd.f32 %v6300, %v6224
      %v6333 = vadd.f32 %v6301, %v6226
      %v6334 = vadd.f32 %v6302, %v6229
      %v6335 = vadd.f32 %v6303, %v6231
      %v6336 = vadd.f32 %v6304, %v6234
      %v6337 = vadd.f32 %v6305, %v6236
      %v6338 = vadd.f32 %v6306, %v6239
      %v6339 = vadd.f32 %v6307, %v6241
      %v6340 = vadd.f32 %v6308, %v6244
      %v6341 = vadd.f32 %v6309, %v6246
      %v6342 = vadd.f32 %v6310, %v6249
      %v6343 = vadd.f32 %v6311, %v6251
      %v6344 = vadd.f32 %v6312, %v6254
      %v6345 = vadd.f32 %v6313, %v6256
      %v6346 = vadd.f32 %v6314, %v6259
      %v6347 = vadd.f32 %v6315, %v6261
      %v6348 = vadd.f32 %v6316, %v6264
      %v6349 = vadd.f32 %v6317, %v6266
      %v6350 = vadd.f32 %v6318, %v6269
      %v6351 = vadd.f32 %v6319, %v6271
      %v6352 = vadd.f32 %v6320, %v6274
      %v6353 = vadd.f32 %v6321, %v6276
      %v6354 = vadd.f32 %v6322, %v6279
      %v6355 = vadd.f32 %v6323, %v6281
      %v6356 = vadd.f32 %v6324, %v6284
      %v6357 = vadd.f32 %v6325, %v6286
      %v6358 = vadd.f32 %v6326, %v6289
      %v6359 = vadd.f32 %v6327, %v6291
      %v6360 = vadd.f32 %v6328, %v6294
      %v6361 = vadd.f32 %v6329, %v6296
      %6362 = vst [vmem:[#allocation4] sm:$0xff] %v6330
      %6363 = vst [vmem:[#allocation4 + $0x8] sm:$0xff] %v6331
      %6364 = vst [vmem:[#allocation4 + $0x10] sm:$0xff] %v6332
      %6365 = vst [vmem:[#allocation4 + $0x18] sm:$0xff] %v6333
      %6366 = vst [vmem:[#allocation4 + $0x20] sm:$0xff] %v6334
      %6367 = vst [vmem:[#allocation4 + $0x28] sm:$0xff] %v6335
      %6368 = vst [vmem:[#allocation4 + $0x30] sm:$0xff] %v6336
      %6369 = vst [vmem:[#allocation4 + $0x38] sm:$0xff] %v6337
      %6370 = vst [vmem:[#allocation4 + $0x40] sm:$0xff] %v6338
      %6371 = vst [vmem:[#allocation4 + $0x48] sm:$0xff] %v6339
      %6372 = vst [vmem:[#allocation4 + $0x50] sm:$0xff] %v6340
      %6373 = vst [vmem:[#allocation4 + $0x58] sm:$0xff] %v6341
      %6374 = vst [vmem:[#allocation4 + $0x60] sm:$0xff] %v6342
      %6375 = vst [vmem:[#allocation4 + $0x68] sm:$0xff] %v6343
      %6376 = vst [vmem:[#allocation4 + $0x70] sm:$0xff] %v6344
      %6377 = vst [vmem:[#allocation4 + $0x78] sm:$0xff] %v6345
      %6378 = vst [vmem:[#allocation4 + $0x80] sm:$0xff] %v6346
      %6379 = vst [vmem:[#allocation4 + $0x88] sm:$0xff] %v6347
      %6380 = vst [vmem:[#allocation4 + $0x90] sm:$0xff] %v6348
      %6381 = vst [vmem:[#allocation4 + $0x98] sm:$0xff] %v6349
      %6382 = vst [vmem:[#allocation4 + $0xa0] sm:$0xff] %v6350
      %6383 = vst [vmem:[#allocation4 + $0xa8] sm:$0xff] %v6351
      %6384 = vst [vmem:[#allocation4 + $0xb0] sm:$0xff] %v6352
      %6385 = vst [vmem:[#allocation4 + $0xb8] sm:$0xff] %v6353
      %6386 = vst [vmem:[#allocation4 + $0xc0] sm:$0xff] %v6354
      %6387 = vst [vmem:[#allocation4 + $0xc8] sm:$0xff] %v6355
      %6388 = vst [vmem:[#allocation4 + $0xd0] sm:$0xff] %v6356
      %6389 = vst [vmem:[#allocation4 + $0xd8] sm:$0xff] %v6357
      %6390 = vst [vmem:[#allocation4 + $0xe0] sm:$0xff] %v6358
      %6391 = vst [vmem:[#allocation4 + $0xe8] sm:$0xff] %v6359
      %6392 = vst [vmem:[#allocation4 + $0xf0] sm:$0xff] %v6360
      %6393 = vst [vmem:[#allocation4 + $0xf8] sm:$0xff] %v6361
      %s6394 = scalar_lea.vmem [#allocation3], 48
      %v6395 = vld [vmem:[%s6394] sm:$0xff]
      %v6396 = vld [vmem:[%s6394 + $0x8] sm:$0xff]
      %v6397 = vld [vmem:[%s6394 + $0x18] sm:$0xff]
      %v6398 = vld [vmem:[%s6394 + $0x20] sm:$0xff]
      %v6399 = vld [vmem:[%s6394 + $0x30] sm:$0xff]
      %v6400 = vld [vmem:[%s6394 + $0x38] sm:$0xff]
      %v6401 = vld [vmem:[%s6394 + $0x48] sm:$0xff]
      %v6402 = vld [vmem:[%s6394 + $0x50] sm:$0xff]
      %v6403 = vld [vmem:[%s6394 + $0x60] sm:$0xff]
      %v6404 = vld [vmem:[%s6394 + $0x68] sm:$0xff]
      %v6405 = vld [vmem:[%s6394 + $0x78] sm:$0xff]
      %v6406 = vld [vmem:[%s6394 + $0x80] sm:$0xff]
      %v6407 = vld [vmem:[%s6394 + $0x90] sm:$0xff]
      %v6408 = vld [vmem:[%s6394 + $0x98] sm:$0xff]
      %v6409 = vld [vmem:[%s6394 + $0xa8] sm:$0xff]
      %v6410 = vld [vmem:[%s6394 + $0xb0] sm:$0xff]
      %v6411 = vld [vmem:[%s6394 + $0xc0] sm:$0xff]
      %v6412 = vld [vmem:[%s6394 + $0xc8] sm:$0xff]
      %v6413 = vld [vmem:[%s6394 + $0xd8] sm:$0xff]
      %v6414 = vld [vmem:[%s6394 + $0xe0] sm:$0xff]
      %v6415 = vld [vmem:[%s6394 + $0xf0] sm:$0xff]
      %v6416 = vld [vmem:[%s6394 + $0xf8] sm:$0xff]
      %v6417 = vld [vmem:[%s6394 + $0x108] sm:$0xff]
      %v6418 = vld [vmem:[%s6394 + $0x110] sm:$0xff]
      %v6419 = vld [vmem:[%s6394 + $0x120] sm:$0xff]
      %v6420 = vld [vmem:[%s6394 + $0x128] sm:$0xff]
      %v6421 = vld [vmem:[%s6394 + $0x138] sm:$0xff]
      %v6422 = vld [vmem:[%s6394 + $0x140] sm:$0xff]
      %v6423 = vld [vmem:[%s6394 + $0x150] sm:$0xff]
      %v6424 = vld [vmem:[%s6394 + $0x158] sm:$0xff]
      %v6425 = vld [vmem:[%s6394 + $0x168] sm:$0xff]
      %v6426 = vld [vmem:[%s6394 + $0x170] sm:$0xff]
      %v6427 = vpack.c.bf16 %v6395, %v6395
      %v6428 = vpack.c.bf16 %v6396, %v6396
      %v6429 = vpack.c.bf16 %v6397, %v6397
      %v6430 = vpack.c.bf16 %v6398, %v6398
      %v6431 = vpack.c.bf16 %v6399, %v6399
      %v6432 = vpack.c.bf16 %v6400, %v6400
      %v6433 = vpack.c.bf16 %v6401, %v6401
      %v6434 = vpack.c.bf16 %v6402, %v6402
      %v6435 = vpack.c.bf16 %v6403, %v6403
      %v6436 = vpack.c.bf16 %v6404, %v6404
      %v6437 = vpack.c.bf16 %v6405, %v6405
      %v6438 = vpack.c.bf16 %v6406, %v6406
      %v6439 = vpack.c.bf16 %v6407, %v6407
      %v6440 = vpack.c.bf16 %v6408, %v6408
      %v6441 = vpack.c.bf16 %v6409, %v6409
      %v6442 = vpack.c.bf16 %v6410, %v6410
      %v6443 = vpack.c.bf16 %v6411, %v6411
      %v6444 = vpack.c.bf16 %v6412, %v6412
      %v6445 = vpack.c.bf16 %v6413, %v6413
      %v6446 = vpack.c.bf16 %v6414, %v6414
      %v6447 = vpack.c.bf16 %v6415, %v6415
      %v6448 = vpack.c.bf16 %v6416, %v6416
      %v6449 = vpack.c.bf16 %v6417, %v6417
      %v6450 = vpack.c.bf16 %v6418, %v6418
      %v6451 = vpack.c.bf16 %v6419, %v6419
      %v6452 = vpack.c.bf16 %v6420, %v6420
      %v6453 = vpack.c.bf16 %v6421, %v6421
      %v6454 = vpack.c.bf16 %v6422, %v6422
      %v6455 = vpack.c.bf16 %v6423, %v6423
      %v6456 = vpack.c.bf16 %v6424, %v6424
      %v6457 = vpack.c.bf16 %v6425, %v6425
      %v6458 = vpack.c.bf16 %v6426, %v6426
      %s6459 = scalar_lea.vmem %s4, 384
      %v6460 = vld [vmem:[%s6459] sm:$0xf]
      %v6461 = vld [vmem:[%s6459 + $0x4] sm:$0xf]
      %v6462 = vld [vmem:[%s6459 + $0x8] sm:$0xf]
      %v6463 = vld [vmem:[%s6459 + $0xc] sm:$0xf]
      %v6464 = vld [vmem:[%s6459 + $0x10] sm:$0xf]
      %v6465 = vld [vmem:[%s6459 + $0x14] sm:$0xf]
      %v6466 = vld [vmem:[%s6459 + $0x18] sm:$0xf]
      %v6467 = vld [vmem:[%s6459 + $0x1c] sm:$0xf]
      %v6468 = vld [vmem:[%s6459 + $0x20] sm:$0xf]
      %v6469 = vld [vmem:[%s6459 + $0x24] sm:$0xf]
      %v6470 = vld [vmem:[%s6459 + $0x28] sm:$0xf]
      %v6471 = vld [vmem:[%s6459 + $0x2c] sm:$0xf]
      %v6472 = vld [vmem:[%s6459 + $0x30] sm:$0xf]
      %v6473 = vld [vmem:[%s6459 + $0x34] sm:$0xf]
      %v6474 = vld [vmem:[%s6459 + $0x38] sm:$0xf]
      %v6475 = vld [vmem:[%s6459 + $0x3c] sm:$0xf]
      %v6508 = vunpack.c.l.b16 %v6427
      %v6509 = vunpack.c.l.b16 %v6428
      %v6510 = vunpack.c.l.b16 %v6429
      %v6511 = vunpack.c.l.b16 %v6430
      %v6512 = vunpack.c.l.b16 %v6431
      %v6513 = vunpack.c.l.b16 %v6432
      %v6514 = vunpack.c.l.b16 %v6433
      %v6515 = vunpack.c.l.b16 %v6434
      %v6516 = vunpack.c.l.b16 %v6435
      %v6517 = vunpack.c.l.b16 %v6436
      %v6518 = vunpack.c.l.b16 %v6437
      %v6519 = vunpack.c.l.b16 %v6438
      %v6520 = vunpack.c.l.b16 %v6439
      %v6521 = vunpack.c.l.b16 %v6440
      %v6522 = vunpack.c.l.b16 %v6441
      %v6523 = vunpack.c.l.b16 %v6442
      %v6524 = vunpack.c.l.b16 %v6443
      %v6525 = vunpack.c.l.b16 %v6444
      %v6526 = vunpack.c.l.b16 %v6445
      %v6527 = vunpack.c.l.b16 %v6446
      %v6528 = vunpack.c.l.b16 %v6447
      %v6529 = vunpack.c.l.b16 %v6448
      %v6530 = vunpack.c.l.b16 %v6449
      %v6531 = vunpack.c.l.b16 %v6450
      %v6532 = vunpack.c.l.b16 %v6451
      %v6533 = vunpack.c.l.b16 %v6452
      %v6534 = vunpack.c.l.b16 %v6453
      %v6535 = vunpack.c.l.b16 %v6454
      %v6536 = vunpack.c.l.b16 %v6455
      %v6537 = vunpack.c.l.b16 %v6456
      %v6538 = vunpack.c.l.b16 %v6457
      %v6539 = vunpack.c.l.b16 %v6458
      %v6540 = vpack.c.b16 %v6509, %v6508
      %v6541 = vpack.c.b16 %v6511, %v6510
      %v6542 = vpack.c.b16 %v6513, %v6512
      %v6543 = vpack.c.b16 %v6515, %v6514
      %v6544 = vpack.c.b16 %v6517, %v6516
      %v6545 = vpack.c.b16 %v6519, %v6518
      %v6546 = vpack.c.b16 %v6521, %v6520
      %v6547 = vpack.c.b16 %v6523, %v6522
      %v6548 = vpack.c.b16 %v6525, %v6524
      %v6549 = vpack.c.b16 %v6527, %v6526
      %v6550 = vpack.c.b16 %v6529, %v6528
      %v6551 = vpack.c.b16 %v6531, %v6530
      %v6552 = vpack.c.b16 %v6533, %v6532
      %v6553 = vpack.c.b16 %v6535, %v6534
      %v6554 = vpack.c.b16 %v6537, %v6536
      %v6555 = vpack.c.b16 %v6539, %v6538
      %v6588 = vunpack.c.l.b16 %v6460
      %v6589 = vunpack.c.l.b16 %v6461
      %v6590 = vunpack.c.l.b16 %v6462
      %v6591 = vunpack.c.l.b16 %v6463
      %v6592 = vunpack.c.l.b16 %v6464
      %v6593 = vunpack.c.l.b16 %v6465
      %v6594 = vunpack.c.l.b16 %v6466
      %v6595 = vunpack.c.l.b16 %v6467
      %v6596 = vunpack.c.l.b16 %v6468
      %v6597 = vunpack.c.l.b16 %v6469
      %v6598 = vunpack.c.l.b16 %v6470
      %v6599 = vunpack.c.l.b16 %v6471
      %v6600 = vunpack.c.l.b16 %v6472
      %v6601 = vunpack.c.l.b16 %v6473
      %v6602 = vunpack.c.l.b16 %v6474
      %v6603 = vunpack.c.l.b16 %v6475
      %v6604 = vpack.c.b16 %v6589, %v6588
      %v6605 = vpack.c.b16 %v6591, %v6590
      %v6606 = vpack.c.b16 %v6593, %v6592
      %v6607 = vpack.c.b16 %v6595, %v6594
      %v6608 = vpack.c.b16 %v6597, %v6596
      %v6609 = vpack.c.b16 %v6599, %v6598
      %v6610 = vpack.c.b16 %v6601, %v6600
      %v6611 = vpack.c.b16 %v6603, %v6602
      %6620 = vmatpush.bf16.msra.mxu0 %v6611
      %6621 = vmatpush.bf16.msra.mxu0 %v6610
      %6622 = vmatpush.bf16.msra.mxu0 %v6609
      %6623 = vmatpush.bf16.msra.mxu0 %v6608
      %6624 = vmatpush.bf16.msra.mxu0 %v6607
      %6625 = vmatpush.bf16.msra.mxu0 %v6606
      %6626 = vmatpush.bf16.msra.mxu0 %v6605
      %6627 = vmatpush.bf16.msra.mxu0 %v6604
      %6628 = vmatmul.bf16.gmra.mxu0 %v6540
      %v6629 = vpop.f32.mrf.mxu0
      %v6630 = vadd.f32 0.0, %v6629
      %v6631 = vpop.f32.mrf.mxu0
      %v6632 = vadd.f32 0.0, %v6631
      %6633 = vmatmul.bf16.gmra.mxu0 %v6541
      %v6634 = vpop.f32.mrf.mxu0
      %v6635 = vadd.f32 0.0, %v6634
      %v6636 = vpop.f32.mrf.mxu0
      %v6637 = vadd.f32 0.0, %v6636
      %6638 = vmatmul.bf16.gmra.mxu0 %v6542
      %v6639 = vpop.f32.mrf.mxu0
      %v6640 = vadd.f32 0.0, %v6639
      %v6641 = vpop.f32.mrf.mxu0
      %v6642 = vadd.f32 0.0, %v6641
      %6643 = vmatmul.bf16.gmra.mxu0 %v6543
      %v6644 = vpop.f32.mrf.mxu0
      %v6645 = vadd.f32 0.0, %v6644
      %v6646 = vpop.f32.mrf.mxu0
      %v6647 = vadd.f32 0.0, %v6646
      %6648 = vmatmul.bf16.gmra.mxu0 %v6544
      %v6649 = vpop.f32.mrf.mxu0
      %v6650 = vadd.f32 0.0, %v6649
      %v6651 = vpop.f32.mrf.mxu0
      %v6652 = vadd.f32 0.0, %v6651
      %6653 = vmatmul.bf16.gmra.mxu0 %v6545
      %v6654 = vpop.f32.mrf.mxu0
      %v6655 = vadd.f32 0.0, %v6654
      %v6656 = vpop.f32.mrf.mxu0
      %v6657 = vadd.f32 0.0, %v6656
      %6658 = vmatmul.bf16.gmra.mxu0 %v6546
      %v6659 = vpop.f32.mrf.mxu0
      %v6660 = vadd.f32 0.0, %v6659
      %v6661 = vpop.f32.mrf.mxu0
      %v6662 = vadd.f32 0.0, %v6661
      %6663 = vmatmul.bf16.gmra.mxu0 %v6547
      %v6664 = vpop.f32.mrf.mxu0
      %v6665 = vadd.f32 0.0, %v6664
      %v6666 = vpop.f32.mrf.mxu0
      %v6667 = vadd.f32 0.0, %v6666
      %6668 = vmatmul.bf16.gmra.mxu0 %v6548
      %v6669 = vpop.f32.mrf.mxu0
      %v6670 = vadd.f32 0.0, %v6669
      %v6671 = vpop.f32.mrf.mxu0
      %v6672 = vadd.f32 0.0, %v6671
      %6673 = vmatmul.bf16.gmra.mxu0 %v6549
      %v6674 = vpop.f32.mrf.mxu0
      %v6675 = vadd.f32 0.0, %v6674
      %v6676 = vpop.f32.mrf.mxu0
      %v6677 = vadd.f32 0.0, %v6676
      %6678 = vmatmul.bf16.gmra.mxu0 %v6550
      %v6679 = vpop.f32.mrf.mxu0
      %v6680 = vadd.f32 0.0, %v6679
      %v6681 = vpop.f32.mrf.mxu0
      %v6682 = vadd.f32 0.0, %v6681
      %6683 = vmatmul.bf16.gmra.mxu0 %v6551
      %v6684 = vpop.f32.mrf.mxu0
      %v6685 = vadd.f32 0.0, %v6684
      %v6686 = vpop.f32.mrf.mxu0
      %v6687 = vadd.f32 0.0, %v6686
      %6688 = vmatmul.bf16.gmra.mxu0 %v6552
      %v6689 = vpop.f32.mrf.mxu0
      %v6690 = vadd.f32 0.0, %v6689
      %v6691 = vpop.f32.mrf.mxu0
      %v6692 = vadd.f32 0.0, %v6691
      %6693 = vmatmul.bf16.gmra.mxu0 %v6553
      %v6694 = vpop.f32.mrf.mxu0
      %v6695 = vadd.f32 0.0, %v6694
      %v6696 = vpop.f32.mrf.mxu0
      %v6697 = vadd.f32 0.0, %v6696
      %6698 = vmatmul.bf16.gmra.mxu0 %v6554
      %v6699 = vpop.f32.mrf.mxu0
      %v6700 = vadd.f32 0.0, %v6699
      %v6701 = vpop.f32.mrf.mxu0
      %v6702 = vadd.f32 0.0, %v6701
      %6703 = vmatmul.bf16.gmra.mxu0 %v6555
      %v6704 = vpop.f32.mrf.mxu0
      %v6705 = vadd.f32 0.0, %v6704
      %v6706 = vpop.f32.mrf.mxu0
      %v6707 = vadd.f32 0.0, %v6706
      %6708 = vdwg.mxu0
      %v6709 = vld [vmem:[#allocation4] sm:$0xff]
      %v6710 = vld [vmem:[#allocation4 + $0x8] sm:$0xff]
      %v6711 = vld [vmem:[#allocation4 + $0x10] sm:$0xff]
      %v6712 = vld [vmem:[#allocation4 + $0x18] sm:$0xff]
      %v6713 = vld [vmem:[#allocation4 + $0x20] sm:$0xff]
      %v6714 = vld [vmem:[#allocation4 + $0x28] sm:$0xff]
      %v6715 = vld [vmem:[#allocation4 + $0x30] sm:$0xff]
      %v6716 = vld [vmem:[#allocation4 + $0x38] sm:$0xff]
      %v6717 = vld [vmem:[#allocation4 + $0x40] sm:$0xff]
      %v6718 = vld [vmem:[#allocation4 + $0x48] sm:$0xff]
      %v6719 = vld [vmem:[#allocation4 + $0x50] sm:$0xff]
      %v6720 = vld [vmem:[#allocation4 + $0x58] sm:$0xff]
      %v6721 = vld [vmem:[#allocation4 + $0x60] sm:$0xff]
      %v6722 = vld [vmem:[#allocation4 + $0x68] sm:$0xff]
      %v6723 = vld [vmem:[#allocation4 + $0x70] sm:$0xff]
      %v6724 = vld [vmem:[#allocation4 + $0x78] sm:$0xff]
      %v6725 = vld [vmem:[#allocation4 + $0x80] sm:$0xff]
      %v6726 = vld [vmem:[#allocation4 + $0x88] sm:$0xff]
      %v6727 = vld [vmem:[#allocation4 + $0x90] sm:$0xff]
      %v6728 = vld [vmem:[#allocation4 + $0x98] sm:$0xff]
      %v6729 = vld [vmem:[#allocation4 + $0xa0] sm:$0xff]
      %v6730 = vld [vmem:[#allocation4 + $0xa8] sm:$0xff]
      %v6731 = vld [vmem:[#allocation4 + $0xb0] sm:$0xff]
      %v6732 = vld [vmem:[#allocation4 + $0xb8] sm:$0xff]
      %v6733 = vld [vmem:[#allocation4 + $0xc0] sm:$0xff]
      %v6734 = vld [vmem:[#allocation4 + $0xc8] sm:$0xff]
      %v6735 = vld [vmem:[#allocation4 + $0xd0] sm:$0xff]
      %v6736 = vld [vmem:[#allocation4 + $0xd8] sm:$0xff]
      %v6737 = vld [vmem:[#allocation4 + $0xe0] sm:$0xff]
      %v6738 = vld [vmem:[#allocation4 + $0xe8] sm:$0xff]
      %v6739 = vld [vmem:[#allocation4 + $0xf0] sm:$0xff]
      %v6740 = vld [vmem:[#allocation4 + $0xf8] sm:$0xff]
      %v6741 = vadd.f32 %v6709, %v6630
      %v6742 = vadd.f32 %v6710, %v6632
      %v6743 = vadd.f32 %v6711, %v6635
      %v6744 = vadd.f32 %v6712, %v6637
      %v6745 = vadd.f32 %v6713, %v6640
      %v6746 = vadd.f32 %v6714, %v6642
      %v6747 = vadd.f32 %v6715, %v6645
      %v6748 = vadd.f32 %v6716, %v6647
      %v6749 = vadd.f32 %v6717, %v6650
      %v6750 = vadd.f32 %v6718, %v6652
      %v6751 = vadd.f32 %v6719, %v6655
      %v6752 = vadd.f32 %v6720, %v6657
      %v6753 = vadd.f32 %v6721, %v6660
      %v6754 = vadd.f32 %v6722, %v6662
      %v6755 = vadd.f32 %v6723, %v6665
      %v6756 = vadd.f32 %v6724, %v6667
      %v6757 = vadd.f32 %v6725, %v6670
      %v6758 = vadd.f32 %v6726, %v6672
      %v6759 = vadd.f32 %v6727, %v6675
      %v6760 = vadd.f32 %v6728, %v6677
      %v6761 = vadd.f32 %v6729, %v6680
      %v6762 = vadd.f32 %v6730, %v6682
      %v6763 = vadd.f32 %v6731, %v6685
      %v6764 = vadd.f32 %v6732, %v6687
      %v6765 = vadd.f32 %v6733, %v6690
      %v6766 = vadd.f32 %v6734, %v6692
      %v6767 = vadd.f32 %v6735, %v6695
      %v6768 = vadd.f32 %v6736, %v6697
      %v6769 = vadd.f32 %v6737, %v6700
      %v6770 = vadd.f32 %v6738, %v6702
      %v6771 = vadd.f32 %v6739, %v6705
      %v6772 = vadd.f32 %v6740, %v6707
      %6773 = vst [vmem:[#allocation4] sm:$0xff] %v6741
      %6774 = vst [vmem:[#allocation4 + $0x8] sm:$0xff] %v6742
      %6775 = vst [vmem:[#allocation4 + $0x10] sm:$0xff] %v6743
      %6776 = vst [vmem:[#allocation4 + $0x18] sm:$0xff] %v6744
      %6777 = vst [vmem:[#allocation4 + $0x20] sm:$0xff] %v6745
      %6778 = vst [vmem:[#allocation4 + $0x28] sm:$0xff] %v6746
      %6779 = vst [vmem:[#allocation4 + $0x30] sm:$0xff] %v6747
      %6780 = vst [vmem:[#allocation4 + $0x38] sm:$0xff] %v6748
      %6781 = vst [vmem:[#allocation4 + $0x40] sm:$0xff] %v6749
      %6782 = vst [vmem:[#allocation4 + $0x48] sm:$0xff] %v6750
      %6783 = vst [vmem:[#allocation4 + $0x50] sm:$0xff] %v6751
      %6784 = vst [vmem:[#allocation4 + $0x58] sm:$0xff] %v6752
      %6785 = vst [vmem:[#allocation4 + $0x60] sm:$0xff] %v6753
      %6786 = vst [vmem:[#allocation4 + $0x68] sm:$0xff] %v6754
      %6787 = vst [vmem:[#allocation4 + $0x70] sm:$0xff] %v6755
      %6788 = vst [vmem:[#allocation4 + $0x78] sm:$0xff] %v6756
      %6789 = vst [vmem:[#allocation4 + $0x80] sm:$0xff] %v6757
      %6790 = vst [vmem:[#allocation4 + $0x88] sm:$0xff] %v6758
      %6791 = vst [vmem:[#allocation4 + $0x90] sm:$0xff] %v6759
      %6792 = vst [vmem:[#allocation4 + $0x98] sm:$0xff] %v6760
      %6793 = vst [vmem:[#allocation4 + $0xa0] sm:$0xff] %v6761
      %6794 = vst [vmem:[#allocation4 + $0xa8] sm:$0xff] %v6762
      %6795 = vst [vmem:[#allocation4 + $0xb0] sm:$0xff] %v6763
      %6796 = vst [vmem:[#allocation4 + $0xb8] sm:$0xff] %v6764
      %6797 = vst [vmem:[#allocation4 + $0xc0] sm:$0xff] %v6765
      %6798 = vst [vmem:[#allocation4 + $0xc8] sm:$0xff] %v6766
      %6799 = vst [vmem:[#allocation4 + $0xd0] sm:$0xff] %v6767
      %6800 = vst [vmem:[#allocation4 + $0xd8] sm:$0xff] %v6768
      %6801 = vst [vmem:[#allocation4 + $0xe0] sm:$0xff] %v6769
      %6802 = vst [vmem:[#allocation4 + $0xe8] sm:$0xff] %v6770
      %6803 = vst [vmem:[#allocation4 + $0xf0] sm:$0xff] %v6771
      %6804 = vst [vmem:[#allocation4 + $0xf8] sm:$0xff] %v6772
      %v6805 = vld [vmem:[%s6394 + $0x1] sm:$0xff]
      %v6806 = vld [vmem:[%s6394 + $0x9] sm:$0xff]
      %v6807 = vld [vmem:[%s6394 + $0x19] sm:$0xff]
      %v6808 = vld [vmem:[%s6394 + $0x21] sm:$0xff]
      %v6809 = vld [vmem:[%s6394 + $0x31] sm:$0xff]
      %v6810 = vld [vmem:[%s6394 + $0x39] sm:$0xff]
      %v6811 = vld [vmem:[%s6394 + $0x49] sm:$0xff]
      %v6812 = vld [vmem:[%s6394 + $0x51] sm:$0xff]
      %v6813 = vld [vmem:[%s6394 + $0x61] sm:$0xff]
      %v6814 = vld [vmem:[%s6394 + $0x69] sm:$0xff]
      %v6815 = vld [vmem:[%s6394 + $0x79] sm:$0xff]
      %v6816 = vld [vmem:[%s6394 + $0x81] sm:$0xff]
      %v6817 = vld [vmem:[%s6394 + $0x91] sm:$0xff]
      %v6818 = vld [vmem:[%s6394 + $0x99] sm:$0xff]
      %v6819 = vld [vmem:[%s6394 + $0xa9] sm:$0xff]
      %v6820 = vld [vmem:[%s6394 + $0xb1] sm:$0xff]
      %v6821 = vld [vmem:[%s6394 + $0xc1] sm:$0xff]
      %v6822 = vld [vmem:[%s6394 + $0xc9] sm:$0xff]
      %v6823 = vld [vmem:[%s6394 + $0xd9] sm:$0xff]
      %v6824 = vld [vmem:[%s6394 + $0xe1] sm:$0xff]
      %v6825 = vld [vmem:[%s6394 + $0xf1] sm:$0xff]
      %v6826 = vld [vmem:[%s6394 + $0xf9] sm:$0xff]
      %v6827 = vld [vmem:[%s6394 + $0x109] sm:$0xff]
      %v6828 = vld [vmem:[%s6394 + $0x111] sm:$0xff]
      %v6829 = vld [vmem:[%s6394 + $0x121] sm:$0xff]
      %v6830 = vld [vmem:[%s6394 + $0x129] sm:$0xff]
      %v6831 = vld [vmem:[%s6394 + $0x139] sm:$0xff]
      %v6832 = vld [vmem:[%s6394 + $0x141] sm:$0xff]
      %v6833 = vld [vmem:[%s6394 + $0x151] sm:$0xff]
      %v6834 = vld [vmem:[%s6394 + $0x159] sm:$0xff]
      %v6835 = vld [vmem:[%s6394 + $0x169] sm:$0xff]
      %v6836 = vld [vmem:[%s6394 + $0x171] sm:$0xff]
      %v6837 = vpack.c.bf16 %v6805, %v6805
      %v6838 = vpack.c.bf16 %v6806, %v6806
      %v6839 = vpack.c.bf16 %v6807, %v6807
      %v6840 = vpack.c.bf16 %v6808, %v6808
      %v6841 = vpack.c.bf16 %v6809, %v6809
      %v6842 = vpack.c.bf16 %v6810, %v6810
      %v6843 = vpack.c.bf16 %v6811, %v6811
      %v6844 = vpack.c.bf16 %v6812, %v6812
      %v6845 = vpack.c.bf16 %v6813, %v6813
      %v6846 = vpack.c.bf16 %v6814, %v6814
      %v6847 = vpack.c.bf16 %v6815, %v6815
      %v6848 = vpack.c.bf16 %v6816, %v6816
      %v6849 = vpack.c.bf16 %v6817, %v6817
      %v6850 = vpack.c.bf16 %v6818, %v6818
      %v6851 = vpack.c.bf16 %v6819, %v6819
      %v6852 = vpack.c.bf16 %v6820, %v6820
      %v6853 = vpack.c.bf16 %v6821, %v6821
      %v6854 = vpack.c.bf16 %v6822, %v6822
      %v6855 = vpack.c.bf16 %v6823, %v6823
      %v6856 = vpack.c.bf16 %v6824, %v6824
      %v6857 = vpack.c.bf16 %v6825, %v6825
      %v6858 = vpack.c.bf16 %v6826, %v6826
      %v6859 = vpack.c.bf16 %v6827, %v6827
      %v6860 = vpack.c.bf16 %v6828, %v6828
      %v6861 = vpack.c.bf16 %v6829, %v6829
      %v6862 = vpack.c.bf16 %v6830, %v6830
      %v6863 = vpack.c.bf16 %v6831, %v6831
      %v6864 = vpack.c.bf16 %v6832, %v6832
      %v6865 = vpack.c.bf16 %v6833, %v6833
      %v6866 = vpack.c.bf16 %v6834, %v6834
      %v6867 = vpack.c.bf16 %v6835, %v6835
      %v6868 = vpack.c.bf16 %v6836, %v6836
      %s6869 = scalar_lea.vmem %s4, 448
      %v6870 = vld [vmem:[%s6869] sm:$0xf]
      %v6871 = vld [vmem:[%s6869 + $0x4] sm:$0xf]
      %v6872 = vld [vmem:[%s6869 + $0x8] sm:$0xf]
      %v6873 = vld [vmem:[%s6869 + $0xc] sm:$0xf]
      %v6874 = vld [vmem:[%s6869 + $0x10] sm:$0xf]
      %v6875 = vld [vmem:[%s6869 + $0x14] sm:$0xf]
      %v6876 = vld [vmem:[%s6869 + $0x18] sm:$0xf]
      %v6877 = vld [vmem:[%s6869 + $0x1c] sm:$0xf]
      %v6878 = vld [vmem:[%s6869 + $0x20] sm:$0xf]
      %v6879 = vld [vmem:[%s6869 + $0x24] sm:$0xf]
      %v6880 = vld [vmem:[%s6869 + $0x28] sm:$0xf]
      %v6881 = vld [vmem:[%s6869 + $0x2c] sm:$0xf]
      %v6882 = vld [vmem:[%s6869 + $0x30] sm:$0xf]
      %v6883 = vld [vmem:[%s6869 + $0x34] sm:$0xf]
      %v6884 = vld [vmem:[%s6869 + $0x38] sm:$0xf]
      %v6885 = vld [vmem:[%s6869 + $0x3c] sm:$0xf]
      %v6918 = vunpack.c.l.b16 %v6837
      %v6919 = vunpack.c.l.b16 %v6838
      %v6920 = vunpack.c.l.b16 %v6839
      %v6921 = vunpack.c.l.b16 %v6840
      %v6922 = vunpack.c.l.b16 %v6841
      %v6923 = vunpack.c.l.b16 %v6842
      %v6924 = vunpack.c.l.b16 %v6843
      %v6925 = vunpack.c.l.b16 %v6844
      %v6926 = vunpack.c.l.b16 %v6845
      %v6927 = vunpack.c.l.b16 %v6846
      %v6928 = vunpack.c.l.b16 %v6847
      %v6929 = vunpack.c.l.b16 %v6848
      %v6930 = vunpack.c.l.b16 %v6849
      %v6931 = vunpack.c.l.b16 %v6850
      %v6932 = vunpack.c.l.b16 %v6851
      %v6933 = vunpack.c.l.b16 %v6852
      %v6934 = vunpack.c.l.b16 %v6853
      %v6935 = vunpack.c.l.b16 %v6854
      %v6936 = vunpack.c.l.b16 %v6855
      %v6937 = vunpack.c.l.b16 %v6856
      %v6938 = vunpack.c.l.b16 %v6857
      %v6939 = vunpack.c.l.b16 %v6858
      %v6940 = vunpack.c.l.b16 %v6859
      %v6941 = vunpack.c.l.b16 %v6860
      %v6942 = vunpack.c.l.b16 %v6861
      %v6943 = vunpack.c.l.b16 %v6862
      %v6944 = vunpack.c.l.b16 %v6863
      %v6945 = vunpack.c.l.b16 %v6864
      %v6946 = vunpack.c.l.b16 %v6865
      %v6947 = vunpack.c.l.b16 %v6866
      %v6948 = vunpack.c.l.b16 %v6867
      %v6949 = vunpack.c.l.b16 %v6868
      %v6950 = vpack.c.b16 %v6919, %v6918
      %v6951 = vpack.c.b16 %v6921, %v6920
      %v6952 = vpack.c.b16 %v6923, %v6922
      %v6953 = vpack.c.b16 %v6925, %v6924
      %v6954 = vpack.c.b16 %v6927, %v6926
      %v6955 = vpack.c.b16 %v6929, %v6928
      %v6956 = vpack.c.b16 %v6931, %v6930
      %v6957 = vpack.c.b16 %v6933, %v6932
      %v6958 = vpack.c.b16 %v6935, %v6934
      %v6959 = vpack.c.b16 %v6937, %v6936
      %v6960 = vpack.c.b16 %v6939, %v6938
      %v6961 = vpack.c.b16 %v6941, %v6940
      %v6962 = vpack.c.b16 %v6943, %v6942
      %v6963 = vpack.c.b16 %v6945, %v6944
      %v6964 = vpack.c.b16 %v6947, %v6946
      %v6965 = vpack.c.b16 %v6949, %v6948
      %v6998 = vunpack.c.l.b16 %v6870
      %v6999 = vunpack.c.l.b16 %v6871
      %v7000 = vunpack.c.l.b16 %v6872
      %v7001 = vunpack.c.l.b16 %v6873
      %v7002 = vunpack.c.l.b16 %v6874
      %v7003 = vunpack.c.l.b16 %v6875
      %v7004 = vunpack.c.l.b16 %v6876
      %v7005 = vunpack.c.l.b16 %v6877
      %v7006 = vunpack.c.l.b16 %v6878
      %v7007 = vunpack.c.l.b16 %v6879
      %v7008 = vunpack.c.l.b16 %v6880
      %v7009 = vunpack.c.l.b16 %v6881
      %v7010 = vunpack.c.l.b16 %v6882
      %v7011 = vunpack.c.l.b16 %v6883
      %v7012 = vunpack.c.l.b16 %v6884
      %v7013 = vunpack.c.l.b16 %v6885
      %v7014 = vpack.c.b16 %v6999, %v6998
      %v7015 = vpack.c.b16 %v7001, %v7000
      %v7016 = vpack.c.b16 %v7003, %v7002
      %v7017 = vpack.c.b16 %v7005, %v7004
      %v7018 = vpack.c.b16 %v7007, %v7006
      %v7019 = vpack.c.b16 %v7009, %v7008
      %v7020 = vpack.c.b16 %v7011, %v7010
      %v7021 = vpack.c.b16 %v7013, %v7012
      %7030 = vmatpush.bf16.msra.mxu0 %v7021
      %7031 = vmatpush.bf16.msra.mxu0 %v7020
      %7032 = vmatpush.bf16.msra.mxu0 %v7019
      %7033 = vmatpush.bf16.msra.mxu0 %v7018
      %7034 = vmatpush.bf16.msra.mxu0 %v7017
      %7035 = vmatpush.bf16.msra.mxu0 %v7016
      %7036 = vmatpush.bf16.msra.mxu0 %v7015
      %7037 = vmatpush.bf16.msra.mxu0 %v7014
      %7038 = vmatmul.bf16.gmra.mxu0 %v6950
      %v7039 = vpop.f32.mrf.mxu0
      %v7040 = vadd.f32 0.0, %v7039
      %v7041 = vpop.f32.mrf.mxu0
      %v7042 = vadd.f32 0.0, %v7041
      %7043 = vmatmul.bf16.gmra.mxu0 %v6951
      %v7044 = vpop.f32.mrf.mxu0
      %v7045 = vadd.f32 0.0, %v7044
      %v7046 = vpop.f32.mrf.mxu0
      %v7047 = vadd.f32 0.0, %v7046
      %7048 = vmatmul.bf16.gmra.mxu0 %v6952
      %v7049 = vpop.f32.mrf.mxu0
      %v7050 = vadd.f32 0.0, %v7049
      %v7051 = vpop.f32.mrf.mxu0
      %v7052 = vadd.f32 0.0, %v7051
      %7053 = vmatmul.bf16.gmra.mxu0 %v6953
      %v7054 = vpop.f32.mrf.mxu0
      %v7055 = vadd.f32 0.0, %v7054
      %v7056 = vpop.f32.mrf.mxu0
      %v7057 = vadd.f32 0.0, %v7056
      %7058 = vmatmul.bf16.gmra.mxu0 %v6954
      %v7059 = vpop.f32.mrf.mxu0
      %v7060 = vadd.f32 0.0, %v7059
      %v7061 = vpop.f32.mrf.mxu0
      %v7062 = vadd.f32 0.0, %v7061
      %7063 = vmatmul.bf16.gmra.mxu0 %v6955
      %v7064 = vpop.f32.mrf.mxu0
      %v7065 = vadd.f32 0.0, %v7064
      %v7066 = vpop.f32.mrf.mxu0
      %v7067 = vadd.f32 0.0, %v7066
      %7068 = vmatmul.bf16.gmra.mxu0 %v6956
      %v7069 = vpop.f32.mrf.mxu0
      %v7070 = vadd.f32 0.0, %v7069
      %v7071 = vpop.f32.mrf.mxu0
      %v7072 = vadd.f32 0.0, %v7071
      %7073 = vmatmul.bf16.gmra.mxu0 %v6957
      %v7074 = vpop.f32.mrf.mxu0
      %v7075 = vadd.f32 0.0, %v7074
      %v7076 = vpop.f32.mrf.mxu0
      %v7077 = vadd.f32 0.0, %v7076
      %7078 = vmatmul.bf16.gmra.mxu0 %v6958
      %v7079 = vpop.f32.mrf.mxu0
      %v7080 = vadd.f32 0.0, %v7079
      %v7081 = vpop.f32.mrf.mxu0
      %v7082 = vadd.f32 0.0, %v7081
      %7083 = vmatmul.bf16.gmra.mxu0 %v6959
      %v7084 = vpop.f32.mrf.mxu0
      %v7085 = vadd.f32 0.0, %v7084
      %v7086 = vpop.f32.mrf.mxu0
      %v7087 = vadd.f32 0.0, %v7086
      %7088 = vmatmul.bf16.gmra.mxu0 %v6960
      %v7089 = vpop.f32.mrf.mxu0
      %v7090 = vadd.f32 0.0, %v7089
      %v7091 = vpop.f32.mrf.mxu0
      %v7092 = vadd.f32 0.0, %v7091
      %7093 = vmatmul.bf16.gmra.mxu0 %v6961
      %v7094 = vpop.f32.mrf.mxu0
      %v7095 = vadd.f32 0.0, %v7094
      %v7096 = vpop.f32.mrf.mxu0
      %v7097 = vadd.f32 0.0, %v7096
      %7098 = vmatmul.bf16.gmra.mxu0 %v6962
      %v7099 = vpop.f32.mrf.mxu0
      %v7100 = vadd.f32 0.0, %v7099
      %v7101 = vpop.f32.mrf.mxu0
      %v7102 = vadd.f32 0.0, %v7101
      %7103 = vmatmul.bf16.gmra.mxu0 %v6963
      %v7104 = vpop.f32.mrf.mxu0
      %v7105 = vadd.f32 0.0, %v7104
      %v7106 = vpop.f32.mrf.mxu0
      %v7107 = vadd.f32 0.0, %v7106
      %7108 = vmatmul.bf16.gmra.mxu0 %v6964
      %v7109 = vpop.f32.mrf.mxu0
      %v7110 = vadd.f32 0.0, %v7109
      %v7111 = vpop.f32.mrf.mxu0
      %v7112 = vadd.f32 0.0, %v7111
      %7113 = vmatmul.bf16.gmra.mxu0 %v6965
      %v7114 = vpop.f32.mrf.mxu0
      %v7115 = vadd.f32 0.0, %v7114
      %v7116 = vpop.f32.mrf.mxu0
      %v7117 = vadd.f32 0.0, %v7116
      %7118 = vdwg.mxu0
      %v7119 = vld [vmem:[#allocation4] sm:$0xff]
      %v7120 = vld [vmem:[#allocation4 + $0x8] sm:$0xff]
      %v7121 = vld [vmem:[#allocation4 + $0x10] sm:$0xff]
      %v7122 = vld [vmem:[#allocation4 + $0x18] sm:$0xff]
      %v7123 = vld [vmem:[#allocation4 + $0x20] sm:$0xff]
      %v7124 = vld [vmem:[#allocation4 + $0x28] sm:$0xff]
      %v7125 = vld [vmem:[#allocation4 + $0x30] sm:$0xff]
      %v7126 = vld [vmem:[#allocation4 + $0x38] sm:$0xff]
      %v7127 = vld [vmem:[#allocation4 + $0x40] sm:$0xff]
      %v7128 = vld [vmem:[#allocation4 + $0x48] sm:$0xff]
      %v7129 = vld [vmem:[#allocation4 + $0x50] sm:$0xff]
      %v7130 = vld [vmem:[#allocation4 + $0x58] sm:$0xff]
      %v7131 = vld [vmem:[#allocation4 + $0x60] sm:$0xff]
      %v7132 = vld [vmem:[#allocation4 + $0x68] sm:$0xff]
      %v7133 = vld [vmem:[#allocation4 + $0x70] sm:$0xff]
      %v7134 = vld [vmem:[#allocation4 + $0x78] sm:$0xff]
      %v7135 = vld [vmem:[#allocation4 + $0x80] sm:$0xff]
      %v7136 = vld [vmem:[#allocation4 + $0x88] sm:$0xff]
      %v7137 = vld [vmem:[#allocation4 + $0x90] sm:$0xff]
      %v7138 = vld [vmem:[#allocation4 + $0x98] sm:$0xff]
      %v7139 = vld [vmem:[#allocation4 + $0xa0] sm:$0xff]
      %v7140 = vld [vmem:[#allocation4 + $0xa8] sm:$0xff]
      %v7141 = vld [vmem:[#allocation4 + $0xb0] sm:$0xff]
      %v7142 = vld [vmem:[#allocation4 + $0xb8] sm:$0xff]
      %v7143 = vld [vmem:[#allocation4 + $0xc0] sm:$0xff]
      %v7144 = vld [vmem:[#allocation4 + $0xc8] sm:$0xff]
      %v7145 = vld [vmem:[#allocation4 + $0xd0] sm:$0xff]
      %v7146 = vld [vmem:[#allocation4 + $0xd8] sm:$0xff]
      %v7147 = vld [vmem:[#allocation4 + $0xe0] sm:$0xff]
      %v7148 = vld [vmem:[#allocation4 + $0xe8] sm:$0xff]
      %v7149 = vld [vmem:[#allocation4 + $0xf0] sm:$0xff]
      %v7150 = vld [vmem:[#allocation4 + $0xf8] sm:$0xff]
      %v7151 = vadd.f32 %v7119, %v7040
      %v7152 = vadd.f32 %v7120, %v7042
      %v7153 = vadd.f32 %v7121, %v7045
      %v7154 = vadd.f32 %v7122, %v7047
      %v7155 = vadd.f32 %v7123, %v7050
      %v7156 = vadd.f32 %v7124, %v7052
      %v7157 = vadd.f32 %v7125, %v7055
      %v7158 = vadd.f32 %v7126, %v7057
      %v7159 = vadd.f32 %v7127, %v7060
      %v7160 = vadd.f32 %v7128, %v7062
      %v7161 = vadd.f32 %v7129, %v7065
      %v7162 = vadd.f32 %v7130, %v7067
      %v7163 = vadd.f32 %v7131, %v7070
      %v7164 = vadd.f32 %v7132, %v7072
      %v7165 = vadd.f32 %v7133, %v7075
      %v7166 = vadd.f32 %v7134, %v7077
      %v7167 = vadd.f32 %v7135, %v7080
      %v7168 = vadd.f32 %v7136, %v7082
      %v7169 = vadd.f32 %v7137, %v7085
      %v7170 = vadd.f32 %v7138, %v7087
      %v7171 = vadd.f32 %v7139, %v7090
      %v7172 = vadd.f32 %v7140, %v7092
      %v7173 = vadd.f32 %v7141, %v7095
      %v7174 = vadd.f32 %v7142, %v7097
      %v7175 = vadd.f32 %v7143, %v7100
      %v7176 = vadd.f32 %v7144, %v7102
      %v7177 = vadd.f32 %v7145, %v7105
      %v7178 = vadd.f32 %v7146, %v7107
      %v7179 = vadd.f32 %v7147, %v7110
      %v7180 = vadd.f32 %v7148, %v7112
      %v7181 = vadd.f32 %v7149, %v7115
      %v7182 = vadd.f32 %v7150, %v7117
      %7183 = vst [vmem:[#allocation4] sm:$0xff] %v7151
      %7184 = vst [vmem:[#allocation4 + $0x8] sm:$0xff] %v7152
      %7185 = vst [vmem:[#allocation4 + $0x10] sm:$0xff] %v7153
      %7186 = vst [vmem:[#allocation4 + $0x18] sm:$0xff] %v7154
      %7187 = vst [vmem:[#allocation4 + $0x20] sm:$0xff] %v7155
      %7188 = vst [vmem:[#allocation4 + $0x28] sm:$0xff] %v7156
      %7189 = vst [vmem:[#allocation4 + $0x30] sm:$0xff] %v7157
      %7190 = vst [vmem:[#allocation4 + $0x38] sm:$0xff] %v7158
      %7191 = vst [vmem:[#allocation4 + $0x40] sm:$0xff] %v7159
      %7192 = vst [vmem:[#allocation4 + $0x48] sm:$0xff] %v7160
      %7193 = vst [vmem:[#allocation4 + $0x50] sm:$0xff] %v7161
      %7194 = vst [vmem:[#allocation4 + $0x58] sm:$0xff] %v7162
      %7195 = vst [vmem:[#allocation4 + $0x60] sm:$0xff] %v7163
      %7196 = vst [vmem:[#allocation4 + $0x68] sm:$0xff] %v7164
      %7197 = vst [vmem:[#allocation4 + $0x70] sm:$0xff] %v7165
      %7198 = vst [vmem:[#allocation4 + $0x78] sm:$0xff] %v7166
      %7199 = vst [vmem:[#allocation4 + $0x80] sm:$0xff] %v7167
      %7200 = vst [vmem:[#allocation4 + $0x88] sm:$0xff] %v7168
      %7201 = vst [vmem:[#allocation4 + $0x90] sm:$0xff] %v7169
      %7202 = vst [vmem:[#allocation4 + $0x98] sm:$0xff] %v7170
      %7203 = vst [vmem:[#allocation4 + $0xa0] sm:$0xff] %v7171
      %7204 = vst [vmem:[#allocation4 + $0xa8] sm:$0xff] %v7172
      %7205 = vst [vmem:[#allocation4 + $0xb0] sm:$0xff] %v7173
      %7206 = vst [vmem:[#allocation4 + $0xb8] sm:$0xff] %v7174
      %7207 = vst [vmem:[#allocation4 + $0xc0] sm:$0xff] %v7175
      %7208 = vst [vmem:[#allocation4 + $0xc8] sm:$0xff] %v7176
      %7209 = vst [vmem:[#allocation4 + $0xd0] sm:$0xff] %v7177
      %7210 = vst [vmem:[#allocation4 + $0xd8] sm:$0xff] %v7178
      %7211 = vst [vmem:[#allocation4 + $0xe0] sm:$0xff] %v7179
      %7212 = vst [vmem:[#allocation4 + $0xe8] sm:$0xff] %v7180
      %7213 = vst [vmem:[#allocation4 + $0xf0] sm:$0xff] %v7181
      %7214 = vst [vmem:[#allocation4 + $0xf8] sm:$0xff] %v7182
      %v7215 = vld [vmem:[%s6394 + $0x2] sm:$0xff]
      %v7216 = vld [vmem:[%s6394 + $0xa] sm:$0xff]
      %v7217 = vld [vmem:[%s6394 + $0x1a] sm:$0xff]
      %v7218 = vld [vmem:[%s6394 + $0x22] sm:$0xff]
      %v7219 = vld [vmem:[%s6394 + $0x32] sm:$0xff]
      %v7220 = vld [vmem:[%s6394 + $0x3a] sm:$0xff]
      %v7221 = vld [vmem:[%s6394 + $0x4a] sm:$0xff]
      %v7222 = vld [vmem:[%s6394 + $0x52] sm:$0xff]
      %v7223 = vld [vmem:[%s6394 + $0x62] sm:$0xff]
      %v7224 = vld [vmem:[%s6394 + $0x6a] sm:$0xff]
      %v7225 = vld [vmem:[%s6394 + $0x7a] sm:$0xff]
      %v7226 = vld [vmem:[%s6394 + $0x82] sm:$0xff]
      %v7227 = vld [vmem:[%s6394 + $0x92] sm:$0xff]
      %v7228 = vld [vmem:[%s6394 + $0x9a] sm:$0xff]
      %v7229 = vld [vmem:[%s6394 + $0xaa] sm:$0xff]
      %v7230 = vld [vmem:[%s6394 + $0xb2] sm:$0xff]
      %v7231 = vld [vmem:[%s6394 + $0xc2] sm:$0xff]
      %v7232 = vld [vmem:[%s6394 + $0xca] sm:$0xff]
      %v7233 = vld [vmem:[%s6394 + $0xda] sm:$0xff]
      %v7234 = vld [vmem:[%s6394 + $0xe2] sm:$0xff]
      %v7235 = vld [vmem:[%s6394 + $0xf2] sm:$0xff]
      %v7236 = vld [vmem:[%s6394 + $0xfa] sm:$0xff]
      %v7237 = vld [vmem:[%s6394 + $0x10a] sm:$0xff]
      %v7238 = vld [vmem:[%s6394 + $0x112] sm:$0xff]
      %v7239 = vld [vmem:[%s6394 + $0x122] sm:$0xff]
      %v7240 = vld [vmem:[%s6394 + $0x12a] sm:$0xff]
      %v7241 = vld [vmem:[%s6394 + $0x13a] sm:$0xff]
      %v7242 = vld [vmem:[%s6394 + $0x142] sm:$0xff]
      %v7243 = vld [vmem:[%s6394 + $0x152] sm:$0xff]
      %v7244 = vld [vmem:[%s6394 + $0x15a] sm:$0xff]
      %v7245 = vld [vmem:[%s6394 + $0x16a] sm:$0xff]
      %v7246 = vld [vmem:[%s6394 + $0x172] sm:$0xff]
      %v7247 = vpack.c.bf16 %v7215, %v7215
      %v7248 = vpack.c.bf16 %v7216, %v7216
      %v7249 = vpack.c.bf16 %v7217, %v7217
      %v7250 = vpack.c.bf16 %v7218, %v7218
      %v7251 = vpack.c.bf16 %v7219, %v7219
      %v7252 = vpack.c.bf16 %v7220, %v7220
      %v7253 = vpack.c.bf16 %v7221, %v7221
      %v7254 = vpack.c.bf16 %v7222, %v7222
      %v7255 = vpack.c.bf16 %v7223, %v7223
      %v7256 = vpack.c.bf16 %v7224, %v7224
      %v7257 = vpack.c.bf16 %v7225, %v7225
      %v7258 = vpack.c.bf16 %v7226, %v7226
      %v7259 = vpack.c.bf16 %v7227, %v7227
      %v7260 = vpack.c.bf16 %v7228, %v7228
      %v7261 = vpack.c.bf16 %v7229, %v7229
      %v7262 = vpack.c.bf16 %v7230, %v7230
      %v7263 = vpack.c.bf16 %v7231, %v7231
      %v7264 = vpack.c.bf16 %v7232, %v7232
      %v7265 = vpack.c.bf16 %v7233, %v7233
      %v7266 = vpack.c.bf16 %v7234, %v7234
      %v7267 = vpack.c.bf16 %v7235, %v7235
      %v7268 = vpack.c.bf16 %v7236, %v7236
      %v7269 = vpack.c.bf16 %v7237, %v7237
      %v7270 = vpack.c.bf16 %v7238, %v7238
      %v7271 = vpack.c.bf16 %v7239, %v7239
      %v7272 = vpack.c.bf16 %v7240, %v7240
      %v7273 = vpack.c.bf16 %v7241, %v7241
      %v7274 = vpack.c.bf16 %v7242, %v7242
      %v7275 = vpack.c.bf16 %v7243, %v7243
      %v7276 = vpack.c.bf16 %v7244, %v7244
      %v7277 = vpack.c.bf16 %v7245, %v7245
      %v7278 = vpack.c.bf16 %v7246, %v7246
      %s7279 = scalar_lea.vmem %s4, 512
      %v7280 = vld [vmem:[%s7279] sm:$0xf]
      %v7281 = vld [vmem:[%s7279 + $0x4] sm:$0xf]
      %v7282 = vld [vmem:[%s7279 + $0x8] sm:$0xf]
      %v7283 = vld [vmem:[%s7279 + $0xc] sm:$0xf]
      %v7284 = vld [vmem:[%s7279 + $0x10] sm:$0xf]
      %v7285 = vld [vmem:[%s7279 + $0x14] sm:$0xf]
      %v7286 = vld [vmem:[%s7279 + $0x18] sm:$0xf]
      %v7287 = vld [vmem:[%s7279 + $0x1c] sm:$0xf]
      %v7288 = vld [vmem:[%s7279 + $0x20] sm:$0xf]
      %v7289 = vld [vmem:[%s7279 + $0x24] sm:$0xf]
      %v7290 = vld [vmem:[%s7279 + $0x28] sm:$0xf]
      %v7291 = vld [vmem:[%s7279 + $0x2c] sm:$0xf]
      %v7292 = vld [vmem:[%s7279 + $0x30] sm:$0xf]
      %v7293 = vld [vmem:[%s7279 + $0x34] sm:$0xf]
      %v7294 = vld [vmem:[%s7279 + $0x38] sm:$0xf]
      %v7295 = vld [vmem:[%s7279 + $0x3c] sm:$0xf]
      %v7328 = vunpack.c.l.b16 %v7247
      %v7329 = vunpack.c.l.b16 %v7248
      %v7330 = vunpack.c.l.b16 %v7249
      %v7331 = vunpack.c.l.b16 %v7250
      %v7332 = vunpack.c.l.b16 %v7251
      %v7333 = vunpack.c.l.b16 %v7252
      %v7334 = vunpack.c.l.b16 %v7253
      %v7335 = vunpack.c.l.b16 %v7254
      %v7336 = vunpack.c.l.b16 %v7255
      %v7337 = vunpack.c.l.b16 %v7256
      %v7338 = vunpack.c.l.b16 %v7257
      %v7339 = vunpack.c.l.b16 %v7258
      %v7340 = vunpack.c.l.b16 %v7259
      %v7341 = vunpack.c.l.b16 %v7260
      %v7342 = vunpack.c.l.b16 %v7261
      %v7343 = vunpack.c.l.b16 %v7262
      %v7344 = vunpack.c.l.b16 %v7263
      %v7345 = vunpack.c.l.b16 %v7264
      %v7346 = vunpack.c.l.b16 %v7265
      %v7347 = vunpack.c.l.b16 %v7266
      %v7348 = vunpack.c.l.b16 %v7267
      %v7349 = vunpack.c.l.b16 %v7268
      %v7350 = vunpack.c.l.b16 %v7269
      %v7351 = vunpack.c.l.b16 %v7270
      %v7352 = vunpack.c.l.b16 %v7271
      %v7353 = vunpack.c.l.b16 %v7272
      %v7354 = vunpack.c.l.b16 %v7273
      %v7355 = vunpack.c.l.b16 %v7274
      %v7356 = vunpack.c.l.b16 %v7275
      %v7357 = vunpack.c.l.b16 %v7276
      %v7358 = vunpack.c.l.b16 %v7277
      %v7359 = vunpack.c.l.b16 %v7278
      %v7360 = vpack.c.b16 %v7329, %v7328
      %v7361 = vpack.c.b16 %v7331, %v7330
      %v7362 = vpack.c.b16 %v7333, %v7332
      %v7363 = vpack.c.b16 %v7335, %v7334
      %v7364 = vpack.c.b16 %v7337, %v7336
      %v7365 = vpack.c.b16 %v7339, %v7338
      %v7366 = vpack.c.b16 %v7341, %v7340
      %v7367 = vpack.c.b16 %v7343, %v7342
      %v7368 = vpack.c.b16 %v7345, %v7344
      %v7369 = vpack.c.b16 %v7347, %v7346
      %v7370 = vpack.c.b16 %v7349, %v7348
      %v7371 = vpack.c.b16 %v7351, %v7350
      %v7372 = vpack.c.b16 %v7353, %v7352
      %v7373 = vpack.c.b16 %v7355, %v7354
      %v7374 = vpack.c.b16 %v7357, %v7356
      %v7375 = vpack.c.b16 %v7359, %v7358
      %v7408 = vunpack.c.l.b16 %v7280
      %v7409 = vunpack.c.l.b16 %v7281
      %v7410 = vunpack.c.l.b16 %v7282
      %v7411 = vunpack.c.l.b16 %v7283
      %v7412 = vunpack.c.l.b16 %v7284
      %v7413 = vunpack.c.l.b16 %v7285
      %v7414 = vunpack.c.l.b16 %v7286
      %v7415 = vunpack.c.l.b16 %v7287
      %v7416 = vunpack.c.l.b16 %v7288
      %v7417 = vunpack.c.l.b16 %v7289
      %v7418 = vunpack.c.l.b16 %v7290
      %v7419 = vunpack.c.l.b16 %v7291
      %v7420 = vunpack.c.l.b16 %v7292
      %v7421 = vunpack.c.l.b16 %v7293
      %v7422 = vunpack.c.l.b16 %v7294
      %v7423 = vunpack.c.l.b16 %v7295
      %v7424 = vpack.c.b16 %v7409, %v7408
      %v7425 = vpack.c.b16 %v7411, %v7410
      %v7426 = vpack.c.b16 %v7413, %v7412
      %v7427 = vpack.c.b16 %v7415, %v7414
      %v7428 = vpack.c.b16 %v7417, %v7416
      %v7429 = vpack.c.b16 %v7419, %v7418
      %v7430 = vpack.c.b16 %v7421, %v7420
      %v7431 = vpack.c.b16 %v7423, %v7422
      %7440 = vmatpush.bf16.msra.mxu0 %v7431
      %7441 = vmatpush.bf16.msra.mxu0 %v7430
      %7442 = vmatpush.bf16.msra.mxu0 %v7429
      %7443 = vmatpush.bf16.msra.mxu0 %v7428
      %7444 = vmatpush.bf16.msra.mxu0 %v7427
      %7445 = vmatpush.bf16.msra.mxu0 %v7426
      %7446 = vmatpush.bf16.msra.mxu0 %v7425
      %7447 = vmatpush.bf16.msra.mxu0 %v7424
      %7448 = vmatmul.bf16.gmra.mxu0 %v7360
      %v7449 = vpop.f32.mrf.mxu0
      %v7450 = vadd.f32 0.0, %v7449
      %v7451 = vpop.f32.mrf.mxu0
      %v7452 = vadd.f32 0.0, %v7451
      %7453 = vmatmul.bf16.gmra.mxu0 %v7361
      %v7454 = vpop.f32.mrf.mxu0
      %v7455 = vadd.f32 0.0, %v7454
      %v7456 = vpop.f32.mrf.mxu0
      %v7457 = vadd.f32 0.0, %v7456
      %7458 = vmatmul.bf16.gmra.mxu0 %v7362
      %v7459 = vpop.f32.mrf.mxu0
      %v7460 = vadd.f32 0.0, %v7459
      %v7461 = vpop.f32.mrf.mxu0
      %v7462 = vadd.f32 0.0, %v7461
      %7463 = vmatmul.bf16.gmra.mxu0 %v7363
      %v7464 = vpop.f32.mrf.mxu0
      %v7465 = vadd.f32 0.0, %v7464
      %v7466 = vpop.f32.mrf.mxu0
      %v7467 = vadd.f32 0.0, %v7466
      %7468 = vmatmul.bf16.gmra.mxu0 %v7364
      %v7469 = vpop.f32.mrf.mxu0
      %v7470 = vadd.f32 0.0, %v7469
      %v7471 = vpop.f32.mrf.mxu0
      %v7472 = vadd.f32 0.0, %v7471
      %7473 = vmatmul.bf16.gmra.mxu0 %v7365
      %v7474 = vpop.f32.mrf.mxu0
      %v7475 = vadd.f32 0.0, %v7474
      %v7476 = vpop.f32.mrf.mxu0
      %v7477 = vadd.f32 0.0, %v7476
      %7478 = vmatmul.bf16.gmra.mxu0 %v7366
      %v7479 = vpop.f32.mrf.mxu0
      %v7480 = vadd.f32 0.0, %v7479
      %v7481 = vpop.f32.mrf.mxu0
      %v7482 = vadd.f32 0.0, %v7481
      %7483 = vmatmul.bf16.gmra.mxu0 %v7367
      %v7484 = vpop.f32.mrf.mxu0
      %v7485 = vadd.f32 0.0, %v7484
      %v7486 = vpop.f32.mrf.mxu0
      %v7487 = vadd.f32 0.0, %v7486
      %7488 = vmatmul.bf16.gmra.mxu0 %v7368
      %v7489 = vpop.f32.mrf.mxu0
      %v7490 = vadd.f32 0.0, %v7489
      %v7491 = vpop.f32.mrf.mxu0
      %v7492 = vadd.f32 0.0, %v7491
      %7493 = vmatmul.bf16.gmra.mxu0 %v7369
      %v7494 = vpop.f32.mrf.mxu0
      %v7495 = vadd.f32 0.0, %v7494
      %v7496 = vpop.f32.mrf.mxu0
      %v7497 = vadd.f32 0.0, %v7496
      %7498 = vmatmul.bf16.gmra.mxu0 %v7370
      %v7499 = vpop.f32.mrf.mxu0
      %v7500 = vadd.f32 0.0, %v7499
      %v7501 = vpop.f32.mrf.mxu0
      %v7502 = vadd.f32 0.0, %v7501
      %7503 = vmatmul.bf16.gmra.mxu0 %v7371
      %v7504 = vpop.f32.mrf.mxu0
      %v7505 = vadd.f32 0.0, %v7504
      %v7506 = vpop.f32.mrf.mxu0
      %v7507 = vadd.f32 0.0, %v7506
      %7508 = vmatmul.bf16.gmra.mxu0 %v7372
      %v7509 = vpop.f32.mrf.mxu0
      %v7510 = vadd.f32 0.0, %v7509
      %v7511 = vpop.f32.mrf.mxu0
      %v7512 = vadd.f32 0.0, %v7511
      %7513 = vmatmul.bf16.gmra.mxu0 %v7373
      %v7514 = vpop.f32.mrf.mxu0
      %v7515 = vadd.f32 0.0, %v7514
      %v7516 = vpop.f32.mrf.mxu0
      %v7517 = vadd.f32 0.0, %v7516
      %7518 = vmatmul.bf16.gmra.mxu0 %v7374
      %v7519 = vpop.f32.mrf.mxu0
      %v7520 = vadd.f32 0.0, %v7519
      %v7521 = vpop.f32.mrf.mxu0
      %v7522 = vadd.f32 0.0, %v7521
      %7523 = vmatmul.bf16.gmra.mxu0 %v7375
      %v7524 = vpop.f32.mrf.mxu0
      %v7525 = vadd.f32 0.0, %v7524
      %v7526 = vpop.f32.mrf.mxu0
      %v7527 = vadd.f32 0.0, %v7526
      %7528 = vdwg.mxu0
      %v7529 = vld [vmem:[#allocation4] sm:$0xff]
      %v7530 = vld [vmem:[#allocation4 + $0x8] sm:$0xff]
      %v7531 = vld [vmem:[#allocation4 + $0x10] sm:$0xff]
      %v7532 = vld [vmem:[#allocation4 + $0x18] sm:$0xff]
      %v7533 = vld [vmem:[#allocation4 + $0x20] sm:$0xff]
      %v7534 = vld [vmem:[#allocation4 + $0x28] sm:$0xff]
      %v7535 = vld [vmem:[#allocation4 + $0x30] sm:$0xff]
      %v7536 = vld [vmem:[#allocation4 + $0x38] sm:$0xff]
      %v7537 = vld [vmem:[#allocation4 + $0x40] sm:$0xff]
      %v7538 = vld [vmem:[#allocation4 + $0x48] sm:$0xff]
      %v7539 = vld [vmem:[#allocation4 + $0x50] sm:$0xff]
      %v7540 = vld [vmem:[#allocation4 + $0x58] sm:$0xff]
      %v7541 = vld [vmem:[#allocation4 + $0x60] sm:$0xff]
      %v7542 = vld [vmem:[#allocation4 + $0x68] sm:$0xff]
      %v7543 = vld [vmem:[#allocation4 + $0x70] sm:$0xff]
      %v7544 = vld [vmem:[#allocation4 + $0x78] sm:$0xff]
      %v7545 = vld [vmem:[#allocation4 + $0x80] sm:$0xff]
      %v7546 = vld [vmem:[#allocation4 + $0x88] sm:$0xff]
      %v7547 = vld [vmem:[#allocation4 + $0x90] sm:$0xff]
      %v7548 = vld [vmem:[#allocation4 + $0x98] sm:$0xff]
      %v7549 = vld [vmem:[#allocation4 + $0xa0] sm:$0xff]
      %v7550 = vld [vmem:[#allocation4 + $0xa8] sm:$0xff]
      %v7551 = vld [vmem:[#allocation4 + $0xb0] sm:$0xff]
      %v7552 = vld [vmem:[#allocation4 + $0xb8] sm:$0xff]
      %v7553 = vld [vmem:[#allocation4 + $0xc0] sm:$0xff]
      %v7554 = vld [vmem:[#allocation4 + $0xc8] sm:$0xff]
      %v7555 = vld [vmem:[#allocation4 + $0xd0] sm:$0xff]
      %v7556 = vld [vmem:[#allocation4 + $0xd8] sm:$0xff]
      %v7557 = vld [vmem:[#allocation4 + $0xe0] sm:$0xff]
      %v7558 = vld [vmem:[#allocation4 + $0xe8] sm:$0xff]
      %v7559 = vld [vmem:[#allocation4 + $0xf0] sm:$0xff]
      %v7560 = vld [vmem:[#allocation4 + $0xf8] sm:$0xff]
      %v7561 = vadd.f32 %v7529, %v7450
      %v7562 = vadd.f32 %v7530, %v7452
      %v7563 = vadd.f32 %v7531, %v7455
      %v7564 = vadd.f32 %v7532, %v7457
      %v7565 = vadd.f32 %v7533, %v7460
      %v7566 = vadd.f32 %v7534, %v7462
      %v7567 = vadd.f32 %v7535, %v7465
      %v7568 = vadd.f32 %v7536, %v7467
      %v7569 = vadd.f32 %v7537, %v7470
      %v7570 = vadd.f32 %v7538, %v7472
      %v7571 = vadd.f32 %v7539, %v7475
      %v7572 = vadd.f32 %v7540, %v7477
      %v7573 = vadd.f32 %v7541, %v7480
      %v7574 = vadd.f32 %v7542, %v7482
      %v7575 = vadd.f32 %v7543, %v7485
      %v7576 = vadd.f32 %v7544, %v7487
      %v7577 = vadd.f32 %v7545, %v7490
      %v7578 = vadd.f32 %v7546, %v7492
      %v7579 = vadd.f32 %v7547, %v7495
      %v7580 = vadd.f32 %v7548, %v7497
      %v7581 = vadd.f32 %v7549, %v7500
      %v7582 = vadd.f32 %v7550, %v7502
      %v7583 = vadd.f32 %v7551, %v7505
      %v7584 = vadd.f32 %v7552, %v7507
      %v7585 = vadd.f32 %v7553, %v7510
      %v7586 = vadd.f32 %v7554, %v7512
      %v7587 = vadd.f32 %v7555, %v7515
      %v7588 = vadd.f32 %v7556, %v7517
      %v7589 = vadd.f32 %v7557, %v7520
      %v7590 = vadd.f32 %v7558, %v7522
      %v7591 = vadd.f32 %v7559, %v7525
      %v7592 = vadd.f32 %v7560, %v7527
      %7593 = vst [vmem:[#allocation4] sm:$0xff] %v7561
      %7594 = vst [vmem:[#allocation4 + $0x8] sm:$0xff] %v7562
      %7595 = vst [vmem:[#allocation4 + $0x10] sm:$0xff] %v7563
      %7596 = vst [vmem:[#allocation4 + $0x18] sm:$0xff] %v7564
      %7597 = vst [vmem:[#allocation4 + $0x20] sm:$0xff] %v7565
      %7598 = vst [vmem:[#allocation4 + $0x28] sm:$0xff] %v7566
      %7599 = vst [vmem:[#allocation4 + $0x30] sm:$0xff] %v7567
      %7600 = vst [vmem:[#allocation4 + $0x38] sm:$0xff] %v7568
      %7601 = vst [vmem:[#allocation4 + $0x40] sm:$0xff] %v7569
      %7602 = vst [vmem:[#allocation4 + $0x48] sm:$0xff] %v7570
      %7603 = vst [vmem:[#allocation4 + $0x50] sm:$0xff] %v7571
      %7604 = vst [vmem:[#allocation4 + $0x58] sm:$0xff] %v7572
      %7605 = vst [vmem:[#allocation4 + $0x60] sm:$0xff] %v7573
      %7606 = vst [vmem:[#allocation4 + $0x68] sm:$0xff] %v7574
      %7607 = vst [vmem:[#allocation4 + $0x70] sm:$0xff] %v7575
      %7608 = vst [vmem:[#allocation4 + $0x78] sm:$0xff] %v7576
      %7609 = vst [vmem:[#allocation4 + $0x80] sm:$0xff] %v7577
      %7610 = vst [vmem:[#allocation4 + $0x88] sm:$0xff] %v7578
      %7611 = vst [vmem:[#allocation4 + $0x90] sm:$0xff] %v7579
      %7612 = vst [vmem:[#allocation4 + $0x98] sm:$0xff] %v7580
      %7613 = vst [vmem:[#allocation4 + $0xa0] sm:$0xff] %v7581
      %7614 = vst [vmem:[#allocation4 + $0xa8] sm:$0xff] %v7582
      %7615 = vst [vmem:[#allocation4 + $0xb0] sm:$0xff] %v7583
      %7616 = vst [vmem:[#allocation4 + $0xb8] sm:$0xff] %v7584
      %7617 = vst [vmem:[#allocation4 + $0xc0] sm:$0xff] %v7585
      %7618 = vst [vmem:[#allocation4 + $0xc8] sm:$0xff] %v7586
      %7619 = vst [vmem:[#allocation4 + $0xd0] sm:$0xff] %v7587
      %7620 = vst [vmem:[#allocation4 + $0xd8] sm:$0xff] %v7588
      %7621 = vst [vmem:[#allocation4 + $0xe0] sm:$0xff] %v7589
      %7622 = vst [vmem:[#allocation4 + $0xe8] sm:$0xff] %v7590
      %7623 = vst [vmem:[#allocation4 + $0xf0] sm:$0xff] %v7591
      %7624 = vst [vmem:[#allocation4 + $0xf8] sm:$0xff] %v7592
      %v7625 = vld [vmem:[#allocation4] sm:$0xff]
      %v7626 = vld [vmem:[#allocation4 + $0x8] sm:$0xff]
      %v7627 = vld [vmem:[#allocation4 + $0x10] sm:$0xff]
      %v7628 = vld [vmem:[#allocation4 + $0x18] sm:$0xff]
      %v7629 = vld [vmem:[#allocation4 + $0x20] sm:$0xff]
      %v7630 = vld [vmem:[#allocation4 + $0x28] sm:$0xff]
      %v7631 = vld [vmem:[#allocation4 + $0x30] sm:$0xff]
      %v7632 = vld [vmem:[#allocation4 + $0x38] sm:$0xff]
      %v7633 = vld [vmem:[#allocation4 + $0x40] sm:$0xff]
      %v7634 = vld [vmem:[#allocation4 + $0x48] sm:$0xff]
      %v7635 = vld [vmem:[#allocation4 + $0x50] sm:$0xff]
      %v7636 = vld [vmem:[#allocation4 + $0x58] sm:$0xff]
      %v7637 = vld [vmem:[#allocation4 + $0x60] sm:$0xff]
      %v7638 = vld [vmem:[#allocation4 + $0x68] sm:$0xff]
      %v7639 = vld [vmem:[#allocation4 + $0x70] sm:$0xff]
      %v7640 = vld [vmem:[#allocation4 + $0x78] sm:$0xff]
      %v7641 = vld [vmem:[#allocation4 + $0x80] sm:$0xff]
      %v7642 = vld [vmem:[#allocation4 + $0x88] sm:$0xff]
      %v7643 = vld [vmem:[#allocation4 + $0x90] sm:$0xff]
      %v7644 = vld [vmem:[#allocation4 + $0x98] sm:$0xff]
      %v7645 = vld [vmem:[#allocation4 + $0xa0] sm:$0xff]
      %v7646 = vld [vmem:[#allocation4 + $0xa8] sm:$0xff]
      %v7647 = vld [vmem:[#allocation4 + $0xb0] sm:$0xff]
      %v7648 = vld [vmem:[#allocation4 + $0xb8] sm:$0xff]
      %v7649 = vld [vmem:[#allocation4 + $0xc0] sm:$0xff]
      %v7650 = vld [vmem:[#allocation4 + $0xc8] sm:$0xff]
      %v7651 = vld [vmem:[#allocation4 + $0xd0] sm:$0xff]
      %v7652 = vld [vmem:[#allocation4 + $0xd8] sm:$0xff]
      %v7653 = vld [vmem:[#allocation4 + $0xe0] sm:$0xff]
      %v7654 = vld [vmem:[#allocation4 + $0xe8] sm:$0xff]
      %v7655 = vld [vmem:[#allocation4 + $0xf0] sm:$0xff]
      %v7656 = vld [vmem:[#allocation4 + $0xf8] sm:$0xff]
      %v7657 = vld [vmem:[%s5] sm:$0x1]
      %v7659 = vperm.slane %v7657, 0
      %v7661 = vmul.f32 %v7625, %v7659
      %v7662 = vmul.f32 %v7626, %v7659
      %v7663 = vmul.f32 %v7627, %v7659
      %v7664 = vmul.f32 %v7628, %v7659
      %v7665 = vmul.f32 %v7629, %v7659
      %v7666 = vmul.f32 %v7630, %v7659
      %v7667 = vmul.f32 %v7631, %v7659
      %v7668 = vmul.f32 %v7632, %v7659
      %v7669 = vmul.f32 %v7633, %v7659
      %v7670 = vmul.f32 %v7634, %v7659
      %v7671 = vmul.f32 %v7635, %v7659
      %v7672 = vmul.f32 %v7636, %v7659
      %v7673 = vmul.f32 %v7637, %v7659
      %v7674 = vmul.f32 %v7638, %v7659
      %v7675 = vmul.f32 %v7639, %v7659
      %v7676 = vmul.f32 %v7640, %v7659
      %v7677 = vmul.f32 %v7641, %v7659
      %v7678 = vmul.f32 %v7642, %v7659
      %v7679 = vmul.f32 %v7643, %v7659
      %v7680 = vmul.f32 %v7644, %v7659
      %v7681 = vmul.f32 %v7645, %v7659
      %v7682 = vmul.f32 %v7646, %v7659
      %v7683 = vmul.f32 %v7647, %v7659
      %v7684 = vmul.f32 %v7648, %v7659
      %v7685 = vmul.f32 %v7649, %v7659
      %v7686 = vmul.f32 %v7650, %v7659
      %v7687 = vmul.f32 %v7651, %v7659
      %v7688 = vmul.f32 %v7652, %v7659
      %v7689 = vmul.f32 %v7653, %v7659
      %v7690 = vmul.f32 %v7654, %v7659
      %v7691 = vmul.f32 %v7655, %v7659
      %v7692 = vmul.f32 %v7656, %v7659
      %v7693 = vld [vmem:[%s6] sm:$0x1]
      %v7695 = vperm.slane %v7693, 0
      %v7697 = vadd.f32 %v7661, %v7695
      %v7698 = vadd.f32 %v7662, %v7695
      %v7699 = vadd.f32 %v7663, %v7695
      %v7700 = vadd.f32 %v7664, %v7695
      %v7701 = vadd.f32 %v7665, %v7695
      %v7702 = vadd.f32 %v7666, %v7695
      %v7703 = vadd.f32 %v7667, %v7695
      %v7704 = vadd.f32 %v7668, %v7695
      %v7705 = vadd.f32 %v7669, %v7695
      %v7706 = vadd.f32 %v7670, %v7695
      %v7707 = vadd.f32 %v7671, %v7695
      %v7708 = vadd.f32 %v7672, %v7695
      %v7709 = vadd.f32 %v7673, %v7695
      %v7710 = vadd.f32 %v7674, %v7695
      %v7711 = vadd.f32 %v7675, %v7695
      %v7712 = vadd.f32 %v7676, %v7695
      %v7713 = vadd.f32 %v7677, %v7695
      %v7714 = vadd.f32 %v7678, %v7695
      %v7715 = vadd.f32 %v7679, %v7695
      %v7716 = vadd.f32 %v7680, %v7695
      %v7717 = vadd.f32 %v7681, %v7695
      %v7718 = vadd.f32 %v7682, %v7695
      %v7719 = vadd.f32 %v7683, %v7695
      %v7720 = vadd.f32 %v7684, %v7695
      %v7721 = vadd.f32 %v7685, %v7695
      %v7722 = vadd.f32 %v7686, %v7695
      %v7723 = vadd.f32 %v7687, %v7695
      %v7724 = vadd.f32 %v7688, %v7695
      %v7725 = vadd.f32 %v7689, %v7695
      %v7726 = vadd.f32 %v7690, %v7695
      %v7727 = vadd.f32 %v7691, %v7695
      %v7728 = vadd.f32 %v7692, %v7695
      %v7729 = vadd.f32 %v3934, %v7697
      %v7730 = vadd.f32 %v3935, %v7698
      %v7731 = vadd.f32 %v3936, %v7699
      %v7732 = vadd.f32 %v3937, %v7700
      %v7733 = vadd.f32 %v3938, %v7701
      %v7734 = vadd.f32 %v3939, %v7702
      %v7735 = vadd.f32 %v3940, %v7703
      %v7736 = vadd.f32 %v3941, %v7704
      %v7737 = vadd.f32 %v3942, %v7705
      %v7738 = vadd.f32 %v3943, %v7706
      %v7739 = vadd.f32 %v3944, %v7707
      %v7740 = vadd.f32 %v3945, %v7708
      %v7741 = vadd.f32 %v3946, %v7709
      %v7742 = vadd.f32 %v3947, %v7710
      %v7743 = vadd.f32 %v3948, %v7711
      %v7744 = vadd.f32 %v3949, %v7712
      %v7745 = vadd.f32 %v3950, %v7713
      %v7746 = vadd.f32 %v3951, %v7714
      %v7747 = vadd.f32 %v3952, %v7715
      %v7748 = vadd.f32 %v3953, %v7716
      %v7749 = vadd.f32 %v3954, %v7717
      %v7750 = vadd.f32 %v3955, %v7718
      %v7751 = vadd.f32 %v3956, %v7719
      %v7752 = vadd.f32 %v3957, %v7720
      %v7753 = vadd.f32 %v3958, %v7721
      %v7754 = vadd.f32 %v3959, %v7722
      %v7755 = vadd.f32 %v3960, %v7723
      %v7756 = vadd.f32 %v3961, %v7724
      %v7757 = vadd.f32 %v3962, %v7725
      %v7758 = vadd.f32 %v3963, %v7726
      %v7759 = vadd.f32 %v3964, %v7727
      %v7760 = vadd.f32 %v3965, %v7728
      %v7761 = vmax.f32 %v7729, 0.0
      %v7762 = vmax.f32 %v7730, 0.0
      %v7763 = vmax.f32 %v7731, 0.0
      %v7764 = vmax.f32 %v7732, 0.0
      %v7765 = vmax.f32 %v7733, 0.0
      %v7766 = vmax.f32 %v7734, 0.0
      %v7767 = vmax.f32 %v7735, 0.0
      %v7768 = vmax.f32 %v7736, 0.0
      %v7769 = vmax.f32 %v7737, 0.0
      %v7770 = vmax.f32 %v7738, 0.0
      %v7771 = vmax.f32 %v7739, 0.0
      %v7772 = vmax.f32 %v7740, 0.0
      %v7773 = vmax.f32 %v7741, 0.0
      %v7774 = vmax.f32 %v7742, 0.0
      %v7775 = vmax.f32 %v7743, 0.0
      %v7776 = vmax.f32 %v7744, 0.0
      %v7777 = vmax.f32 %v7745, 0.0
      %v7778 = vmax.f32 %v7746, 0.0
      %v7779 = vmax.f32 %v7747, 0.0
      %v7780 = vmax.f32 %v7748, 0.0
      %v7781 = vmax.f32 %v7749, 0.0
      %v7782 = vmax.f32 %v7750, 0.0
      %v7783 = vmax.f32 %v7751, 0.0
      %v7784 = vmax.f32 %v7752, 0.0
      %v7785 = vmax.f32 %v7753, 0.0
      %v7786 = vmax.f32 %v7754, 0.0
      %v7787 = vmax.f32 %v7755, 0.0
      %v7788 = vmax.f32 %v7756, 0.0
      %v7789 = vmax.f32 %v7757, 0.0
      %v7790 = vmax.f32 %v7758, 0.0
      %v7791 = vmax.f32 %v7759, 0.0
      %v7792 = vmax.f32 %v7760, 0.0
      %7793 = vst [vmem:[%s278] sm:$0xff] %v7761
      %7794 = vst [vmem:[%s278 + $0x8] sm:$0xff] %v7762
      %7795 = vst [vmem:[%s278 + $0x10] sm:$0xff] %v7763
      %7796 = vst [vmem:[%s278 + $0x18] sm:$0xff] %v7764
      %7797 = vst [vmem:[%s278 + $0x20] sm:$0xff] %v7765
      %7798 = vst [vmem:[%s278 + $0x28] sm:$0xff] %v7766
      %7799 = vst [vmem:[%s278 + $0x30] sm:$0xff] %v7767
      %7800 = vst [vmem:[%s278 + $0x38] sm:$0xff] %v7768
      %7801 = vst [vmem:[%s278 + $0x40] sm:$0xff] %v7769
      %7802 = vst [vmem:[%s278 + $0x48] sm:$0xff] %v7770
      %7803 = vst [vmem:[%s278 + $0x50] sm:$0xff] %v7771
      %7804 = vst [vmem:[%s278 + $0x58] sm:$0xff] %v7772
      %7805 = vst [vmem:[%s278 + $0x60] sm:$0xff] %v7773
      %7806 = vst [vmem:[%s278 + $0x68] sm:$0xff] %v7774
      %7807 = vst [vmem:[%s278 + $0x70] sm:$0xff] %v7775
      %7808 = vst [vmem:[%s278 + $0x78] sm:$0xff] %v7776
      %7809 = vst [vmem:[%s278 + $0x80] sm:$0xff] %v7777
      %7810 = vst [vmem:[%s278 + $0x88] sm:$0xff] %v7778
      %7811 = vst [vmem:[%s278 + $0x90] sm:$0xff] %v7779
      %7812 = vst [vmem:[%s278 + $0x98] sm:$0xff] %v7780
      %7813 = vst [vmem:[%s278 + $0xa0] sm:$0xff] %v7781
      %7814 = vst [vmem:[%s278 + $0xa8] sm:$0xff] %v7782
      %7815 = vst [vmem:[%s278 + $0xb0] sm:$0xff] %v7783
      %7816 = vst [vmem:[%s278 + $0xb8] sm:$0xff] %v7784
      %7817 = vst [vmem:[%s278 + $0xc0] sm:$0xff] %v7785
      %7818 = vst [vmem:[%s278 + $0xc8] sm:$0xff] %v7786
      %7819 = vst [vmem:[%s278 + $0xd0] sm:$0xff] %v7787
      %7820 = vst [vmem:[%s278 + $0xd8] sm:$0xff] %v7788
      %7821 = vst [vmem:[%s278 + $0xe0] sm:$0xff] %v7789
      %7822 = vst [vmem:[%s278 + $0xe8] sm:$0xff] %v7790
      %7823 = vst [vmem:[%s278 + $0xf0] sm:$0xff] %v7791
      %7824 = vst [vmem:[%s278 + $0xf8] sm:$0xff] %v7792
      %p7825 = scmp.lt.s32.totalorder %s18, 1
      %s7826 = scalar_select %p7825, %s18, 1
      %s7827 = smul.addr %s7826, 32
      %s7828 = smul.addr %s7827, 8
      %s7829 = scalar_lea.vmem %s7, %s7828
      // Predicated region
      $region49: #{simple_res_block.1} parent=47 // pred_check
        %p7830 = pneg %p188
      $region50: #{simple_res_block.1} parent=47 // pred_check_branch
        %7832 = sbr.rel (%p7830) target = $region52
      $region51: #{simple_res_block.1} parent=47 // pred_region
        _
      $region52: #{simple_res_block.1} parent=47 // pred_fallthru
        _
    $region48: #{simple_res_block.1} parent=5 // pred_fallthru
      _
    %p7833 = scmp.le.s32.totalorder 2, %s13
    // Predicated region
    $region53: #{simple_res_block.1} parent=5 // pred_check
      %p7834 = pneg %p7833
    $region54: #{simple_res_block.1} parent=5 // pred_check_branch
      %7836 = sbr.rel (%p7834) target = $region56
    $region55: #{simple_res_block.1} parent=5 // pred_region
      %s7837 = ssub.s32 %s13, 2
      // Predicated region
      $region57: #{simple_res_block.1} parent=55 // pred_check
        %p7838 = pneg %p194
      $region58: #{simple_res_block.1} parent=55 // pred_check_branch
        %7840 = sbr.rel (%p7838) target = $region60
      $region59: #{simple_res_block.1} parent=55 // pred_region
        %p7841 = scmp.lt.s32.totalorder %s19, 1
        %s7842 = scalar_select %p7841, %s19, 1
        %s7843 = smul.addr %s7842, 32
        %s7844 = smul.addr %s7843, 8
        %s7845 = scalar_lea.vmem %s7, %s7844
      $region60: #{simple_res_block.1} parent=55 // pred_fallthru
        _
    $region56: #{simple_res_block.1} parent=5 // pred_fallthru
      _
  $region6: #{simple_res_block.1} parent=0 // loop_footer
    %s17 = sadd.s32 1, %s13
  $region7: #{simple_res_block.1} parent=0 // loop_footer_branch
    %12 = sbr.rel target = $region3
  $region8: #{simple_res_block.1} parent=0 // loop_exit
    _

</llo_original>
